<compile_context>
chip_gen: v7x
topology: tpu7x:2x2x1
jax: 0.10.0
libtpu: 0.0.40
codegen_flags: <defaults>
</compile_context>

<pallas_src>
import jax
import jax.numpy as jnp
from jax.experimental import pallas as pl
from jax.experimental.pallas import tpu as pltpu

IN_FEATURES = 28 * 28 * 3     # 2352 (kept unpadded: full-array K block)
HIDDEN = 600                  # logical
NUM_CLASSES = 2               # logical

HID_PAD = 640                 # 5 * 128, lane-aligned hidden width
CLS_PAD = 128                 # lane-dense output slab; real logits in [:, :2]


def _round_up(x, m):
    return (x + m - 1) // m * m


def _pad2(a, rows, cols):
    return jnp.pad(a, ((0, rows - a.shape[0]), (0, cols - a.shape[1])))


def mlp_kernel(x_ref, w1_ref, b1_ref, w2_ref, b2_ref, w3_ref, b3_ref, o_ref):
    # x arrives as the raw f32 tile (no separate pad/cast HBM pass);
    # cast to bf16 in VMEM so the MXU runs bf16 x bf16 -> f32.
    x = x_ref[...].astype(jnp.bfloat16)
    # fc1 + bias + ReLU. K = 2352 is the full array dim; Mosaic masks the
    # ragged final lane tile of the contraction.
    h1 = jnp.dot(x, w1_ref[...], preferred_element_type=jnp.float32)
    h1 = jnp.maximum(h1 + b1_ref[...], 0.0)
    # dropout1 (p=0.2): identity in eval mode
    # fc2 + bias + ReLU
    h2 = jnp.dot(h1.astype(jnp.bfloat16), w2_ref[...],
                 preferred_element_type=jnp.float32)
    h2 = jnp.maximum(h2 + b2_ref[...], 0.0)
    # dropout2: identity in eval mode
    # fc3 + bias + ReLU (lane-dense padded output; real logits in [:, :2])
    h3 = jnp.dot(h2.astype(jnp.bfloat16), w3_ref[...],
                 preferred_element_type=jnp.float32)
    o_ref[...] = jnp.maximum(h3 + b3_ref[...], 0.0).astype(o_ref.dtype)


def prepare_params(params):
    """One-time pad + bf16 cast of weights/biases (hoisted out of the forward).

    w1 keeps its logical K = 2352 (full-array block) so x needs no feature
    padding; only the output dims are padded to lane multiples of 128.
    Zero padding is exact for the downstream matmuls/ReLUs.
    """
    w1, b1, w2, b2, w3, b3 = params
    w1_p = _pad2(w1, IN_FEATURES, HID_PAD).astype(jnp.bfloat16)
    w2_p = _pad2(w2, HID_PAD, HID_PAD).astype(jnp.bfloat16)
    w3_p = _pad2(w3, HID_PAD, CLS_PAD).astype(jnp.bfloat16)
    b1_p = _pad2(b1, 1, HID_PAD).astype(jnp.float32)
    b2_p = _pad2(b2, 1, HID_PAD).astype(jnp.float32)
    b3_p = _pad2(b3, 1, CLS_PAD).astype(jnp.float32)
    return (w1_p, b1_p, w2_p, b2_p, w3_p, b3_p)


def _pick_batch_tile(B):
    """Batch tile: multiple of 16 (bf16 sublane packing).

    - tiny batches: one 16-row tile
    - medium batches: split into >= 2 grid steps so both v7x TensorCores get
      work under dimension_semantics=("parallel",)
    - large batches: 512 rows/tile amortizes the ~0.35 us per-step overhead
      on v5e/v6e while keeping VMEM modest.
    """
    if B <= 16:
        return 16
    if B <= 1024:
        return _round_up(pl.cdiv(B, 2), 16)
    return 512


@jax.jit
def mlp_forward(x, prepared):
    """x: [B, 2352] f32. prepared: output of prepare_params (padded bf16)."""
    w1_p, b1_p, w2_p, b2_p, w3_p, b3_p = prepared
    B = x.shape[0]

    TB = _pick_batch_tile(B)
    B_pad = _round_up(B, TB)
    if B_pad != B:
        # Batch-dim padding only (no feature pad / dtype round-trip).
        x = jnp.pad(x, ((0, B_pad - B), (0, 0)))
    grid = (B_pad // TB,)

    flops = 2 * B_pad * (IN_FEATURES * HID_PAD
                         + HID_PAD * HID_PAD
                         + HID_PAD * CLS_PAD)
    bytes_accessed = (
        B_pad * IN_FEATURES * 4                              # x (f32, read once)
        + (w1_p.size + w2_p.size + w3_p.size) * 2            # bf16 weights
        + (b1_p.size + b2_p.size + b3_p.size) * 4            # f32 biases
        + B_pad * CLS_PAD * 4                                # f32 output
    )

    def resident(shape):
        # Constant index_map => fetched once, stays resident in VMEM.
        return pl.BlockSpec(shape, lambda i: (0, 0))

    out_padded = pl.pallas_call(
        mlp_kernel,
        out_shape=jax.ShapeDtypeStruct((B_pad, CLS_PAD), jnp.float32),
        grid=grid,
        in_specs=[
            pl.BlockSpec((TB, IN_FEATURES), lambda i: (i, 0)),  # x tile (pipelined)
            resident((IN_FEATURES, HID_PAD)),                   # w1
            resident((1, HID_PAD)),                             # b1
            resident((HID_PAD, HID_PAD)),                       # w2
            resident((1, HID_PAD)),                             # b2
            resident((HID_PAD, CLS_PAD)),                       # w3
            resident((1, CLS_PAD)),                             # b3
        ],
        out_specs=pl.BlockSpec((TB, CLS_PAD), lambda i: (i, 0)),
        compiler_params=pltpu.CompilerParams(
            dimension_semantics=("parallel",),   # shard batch tiles across TCs (v7x)
            vmem_limit_bytes=48 << 20,           # room for TB=512 tiles; < v7x 64 MiB physical
        ),
        cost_estimate=pl.CostEstimate(
            flops=flops, transcendentals=0, bytes_accessed=bytes_accessed),
    )(x, w1_p, b1_p, w2_p, b2_p, w3_p, b3_p)

    return out_padded[:B, :NUM_CLASSES]


def init_params(key):
    """Deterministic init mimicking nn.Linear default (uniform +-1/sqrt(fan_in)).

    Weights stored as [in_features, out_features] (y = x @ W + b, which equals
    PyTorch's x @ W.T + b for W of shape [out, in]). Biases are [1, out].
    """
    k1, k2, k3, k4, k5, k6 = jax.random.split(key, 6)

    def linear(kw, kb, fan_in, fan_out):
        bound = 1.0 / jnp.sqrt(float(fan_in))
        w = jax.random.uniform(kw, (fan_in, fan_out), jnp.float32, -bound, bound)
        b = jax.random.uniform(kb, (1, fan_out), jnp.float32, -bound, bound)
        return w, b

    w1, b1 = linear(k1, k2, IN_FEATURES, HIDDEN)
    w2, b2 = linear(k3, k4, HIDDEN, HIDDEN)
    w3, b3 = linear(k5, k6, HIDDEN, NUM_CLASSES)
    return (w1, b1, w2, b2, w3, b3)


def mlp_reference_bf16(x, params):
    """Plain-JAX mirror of the kernel math (bf16 operands, f32 accumulate)."""
    w1, b1, w2, b2, w3, b3 = params
    xb = x.astype(jnp.bfloat16)
    w1b, w2b, w3b = (w.astype(jnp.bfloat16) for w in (w1, w2, w3))
    h1 = jnp.maximum(jnp.dot(xb, w1b, preferred_element_type=jnp.float32) + b1, 0.0)
    h2 = jnp.maximum(
        jnp.dot(h1.astype(jnp.bfloat16), w2b, preferred_element_type=jnp.float32) + b2, 0.0)
    h3 = jnp.dot(h2.astype(jnp.bfloat16), w3b, preferred_element_type=jnp.float32) + b3
    return jnp.maximum(h3, 0.0)


def mlp_reference_f32(x, params):
    """Full-precision reference (loose sanity check)."""
    w1, b1, w2, b2, w3, b3 = params
    h1 = jnp.maximum(x @ w1 + b1, 0.0)
    h2 = jnp.maximum(h1 @ w2 + b2, 0.0)
    return jnp.maximum(h2 @ w3 + b3, 0.0)


if __name__ == "__main__":
    key = jax.random.PRNGKey(0)
    kx, kp = jax.random.split(key)

    batch = 2
    x = jax.random.normal(kx, (batch, IN_FEATURES), jnp.float32)
    params = init_params(kp)

    # One-time weight prep (padding + bf16 cast) outside the per-call forward.
    prepared = jax.block_until_ready(prepare_params(params))

    out = mlp_forward(x, prepared)
    out = jax.block_until_ready(out)
    assert out.shape == (batch, NUM_CLASSES)

    ref_bf16 = mlp_reference_bf16(x, params)
    assert jnp.allclose(out, ref_bf16, atol=2e-2, rtol=2e-2), "mismatch vs bf16 mirror"

    ref_f32 = mlp_reference_f32(x, params)
    assert jnp.allclose(out, ref_f32, atol=1e-1, rtol=1e-1), "mismatch vs f32 reference"

    print("KERNEL_OK")
</pallas_src>

<mosaic_0001>
module attributes {stable_mosaic.version = 11 : i64} {
  func.func @mlp_kernel(%arg0: i32, %arg1: memref<16x2352xf32, #tpu.memory_space<vmem>>, %arg2: memref<2352x640xbf16, #tpu.memory_space<vmem>>, %arg3: memref<1x640xf32, #tpu.memory_space<vmem>>, %arg4: memref<640x640xbf16, #tpu.memory_space<vmem>>, %arg5: memref<1x640xf32, #tpu.memory_space<vmem>>, %arg6: memref<640x128xbf16, #tpu.memory_space<vmem>>, %arg7: memref<1x128xf32, #tpu.memory_space<vmem>>, %arg8: memref<16x128xf32, #tpu.memory_space<vmem>>) attributes {dimension_semantics = [#tpu.dimension_semantics<parallel>], iteration_bounds = array<i64: 1>, scalar_prefetch = 0 : i64, scratch_operands = 0 : i64, tpu.core_type = #tpu.core_type<tc>, window_params = [{transform_indices = @transform_0, window_bounds = array<i64: 16, 2352>}, {pipeline_mode = #tpu.pipeline_mode<synchronous>, transform_indices = @transform_1, window_bounds = array<i64: 2352, 640>}, {pipeline_mode = #tpu.pipeline_mode<synchronous>, transform_indices = @transform_2, window_bounds = array<i64: 1, 640>}, {pipeline_mode = #tpu.pipeline_mode<synchronous>, transform_indices = @transform_3, window_bounds = array<i64: 640, 640>}, {pipeline_mode = #tpu.pipeline_mode<synchronous>, transform_indices = @transform_4, window_bounds = array<i64: 1, 640>}, {pipeline_mode = #tpu.pipeline_mode<synchronous>, transform_indices = @transform_5, window_bounds = array<i64: 640, 128>}, {pipeline_mode = #tpu.pipeline_mode<synchronous>, transform_indices = @transform_6, window_bounds = array<i64: 1, 128>}, {transform_indices = @transform_7, window_bounds = array<i64: 16, 128>}]} {
    %c0 = arith.constant 0 : index
    %c0_0 = arith.constant 0 : index
    %0 = vector.load %arg1[%c0, %c0_0] : memref<16x2352xf32, #tpu.memory_space<vmem>>, vector<16x2352xf32>
    %1 = arith.truncf %0 : vector<16x2352xf32> to vector<16x2352xbf16>
    %c0_1 = arith.constant 0 : index
    %c0_2 = arith.constant 0 : index
    %2 = vector.load %arg2[%c0_1, %c0_2] : memref<2352x640xbf16, #tpu.memory_space<vmem>>, vector<2352x640xbf16>
    %cst = arith.constant dense<0.000000e+00> : vector<16x640xf32>
    %3 = tpu.matmul %1, %2, %cst {dimension_numbers = #tpu.dot_dimension_numbers<[1], [0], [0], [1], [0, 0, 1, 1], [], []>} : vector<16x2352xbf16>, vector<2352x640xbf16>, vector<16x640xf32> -> vector<16x640xf32>
    %c0_3 = arith.constant 0 : index
    %c0_4 = arith.constant 0 : index
    %4 = vector.load %arg3[%c0_3, %c0_4] : memref<1x640xf32, #tpu.memory_space<vmem>>, vector<1x640xf32>
    %5 = vector.broadcast %4 : vector<1x640xf32> to vector<16x640xf32>
    %6 = arith.addf %3, %5 : vector<16x640xf32>
    %cst_5 = arith.constant 0.000000e+00 : f32
    %7 = vector.broadcast %cst_5 : f32 to vector<16x640xf32>
    %8 = arith.maximumf %6, %7 : vector<16x640xf32>
    %9 = arith.truncf %8 : vector<16x640xf32> to vector<16x640xbf16>
    %c0_6 = arith.constant 0 : index
    %c0_7 = arith.constant 0 : index
    %10 = vector.load %arg4[%c0_6, %c0_7] : memref<640x640xbf16, #tpu.memory_space<vmem>>, vector<640x640xbf16>
    %cst_8 = arith.constant dense<0.000000e+00> : vector<16x640xf32>
    %11 = tpu.matmul %9, %10, %cst_8 {dimension_numbers = #tpu.dot_dimension_numbers<[1], [0], [0], [1], [0, 0, 1, 1], [], []>} : vector<16x640xbf16>, vector<640x640xbf16>, vector<16x640xf32> -> vector<16x640xf32>
    %c0_9 = arith.constant 0 : index
    %c0_10 = arith.constant 0 : index
    %12 = vector.load %arg5[%c0_9, %c0_10] : memref<1x640xf32, #tpu.memory_space<vmem>>, vector<1x640xf32>
    %13 = vector.broadcast %12 : vector<1x640xf32> to vector<16x640xf32>
    %14 = arith.addf %11, %13 : vector<16x640xf32>
    %cst_11 = arith.constant 0.000000e+00 : f32
    %15 = vector.broadcast %cst_11 : f32 to vector<16x640xf32>
    %16 = arith.maximumf %14, %15 : vector<16x640xf32>
    %17 = arith.truncf %16 : vector<16x640xf32> to vector<16x640xbf16>
    %c0_12 = arith.constant 0 : index
    %c0_13 = arith.constant 0 : index
    %18 = vector.load %arg6[%c0_12, %c0_13] : memref<640x128xbf16, #tpu.memory_space<vmem>>, vector<640x128xbf16>
    %cst_14 = arith.constant dense<0.000000e+00> : vector<16x128xf32>
    %19 = tpu.matmul %17, %18, %cst_14 {dimension_numbers = #tpu.dot_dimension_numbers<[1], [0], [0], [1], [0, 0, 1, 1], [], []>} : vector<16x640xbf16>, vector<640x128xbf16>, vector<16x128xf32> -> vector<16x128xf32>
    %c0_15 = arith.constant 0 : index
    %c0_16 = arith.constant 0 : index
    %20 = vector.load %arg7[%c0_15, %c0_16] : memref<1x128xf32, #tpu.memory_space<vmem>>, vector<1x128xf32>
    %21 = vector.broadcast %20 : vector<1x128xf32> to vector<16x128xf32>
    %22 = arith.addf %19, %21 : vector<16x128xf32>
    %cst_17 = arith.constant 0.000000e+00 : f32
    %23 = vector.broadcast %cst_17 : f32 to vector<16x128xf32>
    %24 = arith.maximumf %22, %23 : vector<16x128xf32>
    %c0_18 = arith.constant 0 : index
    %c0_19 = arith.constant 0 : index
    %25 = vector.load %arg8[%c0_18, %c0_19] : memref<16x128xf32, #tpu.memory_space<vmem>>, vector<16x128xf32>
    tpu.vector_store %arg8[%c0_18, %c0_19], %24 {strides = array<i32>} : memref<16x128xf32, #tpu.memory_space<vmem>>, vector<16x128xf32>,
    return
  }
  func.func @transform_0(%arg0: i32) -> (i32, i32) {
    %c0_i32 = arith.constant 0 : i32
    %c0_i32_0 = arith.constant 0 : i32
    return %arg0, %c0_i32 : i32, i32
  }
  func.func @transform_1(%arg0: i32) -> (i32, i32) {
    %c0_i32 = arith.constant 0 : i32
    %c0_i32_0 = arith.constant 0 : i32
    %c0_i32_1 = arith.constant 0 : i32
    return %c0_i32, %c0_i32_0 : i32, i32
  }
  func.func @transform_2(%arg0: i32) -> (i32, i32) {
    %c0_i32 = arith.constant 0 : i32
    %c0_i32_0 = arith.constant 0 : i32
    %c0_i32_1 = arith.constant 0 : i32
    return %c0_i32, %c0_i32_0 : i32, i32
  }
  func.func @transform_3(%arg0: i32) -> (i32, i32) {
    %c0_i32 = arith.constant 0 : i32
    %c0_i32_0 = arith.constant 0 : i32
    %c0_i32_1 = arith.constant 0 : i32
    return %c0_i32, %c0_i32_0 : i32, i32
  }
  func.func @transform_4(%arg0: i32) -> (i32, i32) {
    %c0_i32 = arith.constant 0 : i32
    %c0_i32_0 = arith.constant 0 : i32
    %c0_i32_1 = arith.constant 0 : i32
    return %c0_i32, %c0_i32_0 : i32, i32
  }
  func.func @transform_5(%arg0: i32) -> (i32, i32) {
    %c0_i32 = arith.constant 0 : i32
    %c0_i32_0 = arith.constant 0 : i32
    %c0_i32_1 = arith.constant 0 : i32
    return %c0_i32, %c0_i32_0 : i32, i32
  }
  func.func @transform_6(%arg0: i32) -> (i32, i32) {
    %c0_i32 = arith.constant 0 : i32
    %c0_i32_0 = arith.constant 0 : i32
    %c0_i32_1 = arith.constant 0 : i32
    return %c0_i32, %c0_i32_0 : i32, i32
  }
  func.func @transform_7(%arg0: i32) -> (i32, i32) {
    %c0_i32 = arith.constant 0 : i32
    %c0_i32_0 = arith.constant 0 : i32
    return %arg0, %c0_i32 : i32, i32
  }
}

</mosaic_0001>

<llo_original>
// kernel: mlp_forward.1
$region0: #{mlp_forward.1}
  #allocation0 [shape = 'u32[]', space=smem, size = 0x4, offset = 0x4, fixed_abs, tag = 'smem constant byte address 0x4 - core index']
  #allocation1 [shape = 'u32[144,128]{1,0:T(1,128)}', space=vmem, size = 0x12000, scoped, tag = 'internal scratch']
  %s0 = inlined_call_operand.vmem [shape: f32[16,2352], index: 0, kind: input, shape index: {}]
  %s1 = inlined_call_operand.hbm [shape: bf16[2352,640], index: 1, kind: input, shape index: {}]
  %s2 = inlined_call_operand.hbm [shape: f32[1,640], index: 2, kind: input, shape index: {}]
  %s3 = inlined_call_operand.hbm [shape: bf16[640,640], index: 3, kind: input, shape index: {}]
  %s4 = inlined_call_operand.hbm [shape: f32[1,640], index: 4, kind: input, shape index: {}]
  %s5 = inlined_call_operand.hbm [shape: bf16[640,128], index: 5, kind: input, shape index: {}]
  %s6 = inlined_call_operand.hbm [shape: f32[1,128], index: 6, kind: input, shape index: {}]
  %s7 = inlined_call_operand.vmem [shape: f32[16,128], index: 7, kind: output, shape index: {}]
  %s8 = sld [smem:[#allocation0]]
  $region62: #{mlp_forward.1} parent=0
    _
  %s10 = ssub.s32 1, %s8
  %s11 = scalar_select 0, %s10, %s8
  $region1: #{mlp_forward.1} parent=0
    #allocation2 [shape = 'u8[3010560]{0}', space=vmem, size = 0x2df000, scoped, tag = 'input window, operand 1, single buffered']
    #allocation3 [shape = 's32[1]{0}', space=sflag, size = 0x4, scoped, tag = 'scoped memory for mlp_forward.1']
    #allocation4 [shape = 'u8[2560]{0}', space=vmem, size = 0xc00, scoped, tag = 'input window, operand 2, single buffered']
    #allocation5 [shape = 's32[1]{0}', space=sflag, size = 0x4, scoped, tag = 'scoped memory for mlp_forward.1']
    #allocation6 [shape = 'u8[819200]{0}', space=vmem, size = 0xc8000, scoped, tag = 'input window, operand 3, single buffered']
    #allocation7 [shape = 'u8[2560]{0}', space=vmem, size = 0xc00, scoped, tag = 'input window, operand 4, single buffered']
    #allocation8 [shape = 's32[1]{0}', space=sflag, size = 0x4, scoped, tag = 'scoped memory for mlp_forward.1']
    #allocation9 [shape = 'u8[163840]{0}', space=vmem, size = 0x28000, scoped, tag = 'input window, operand 5, single buffered']
    #allocation10 [shape = 'u8[512]{0}', space=vmem, size = 0x400, scoped, tag = 'input window, operand 6, single buffered']
    #allocation11 [shape = 's32[1]{0}', space=sflag, size = 0x4, scoped, tag = 'scoped memory for mlp_forward.1']
    %12 = vsyncpa [#allocation3], 0
    %13 = vsyncpa [#allocation5], 0
    %14 = vsyncpa [#allocation8], 0
    %15 = vsyncpa [#allocation11], 0
    // Predicated region
    $region2: #{mlp_forward.1} parent=1 // pred_check
      _
    $region3: #{mlp_forward.1} parent=1 // pred_check_branch
      %17 = sbr.rel (0) target = $region5
    $region4: #{mlp_forward.1} parent=1 // pred_region
      _
    $region5: #{mlp_forward.1} parent=1 // pred_fallthru
      _
    // Predicated region
    $region6: #{mlp_forward.1} parent=1 // pred_check
      _
    $region7: #{mlp_forward.1} parent=1 // pred_check_branch
      %19 = sbr.rel (0) target = $region9
    $region8: #{mlp_forward.1} parent=1 // pred_region
      %s21 = ssub.s32 94080, 94080
      %22 = vsyncadd [#allocation3], %s21
      %s23 = sshll.u32 [#allocation2], 4
      %s24 = int_to_ptr.vmem [resolvable:$true] %s23
      %29 = dma.hbm_to_vmem [thread:$0]  %s1, 94080, %s24, [#allocation3], 320, 320, 20
    $region9: #{mlp_forward.1} parent=1 // pred_fallthru
      _
    // Predicated region
    $region10: #{mlp_forward.1} parent=1 // pred_check
      _
    $region11: #{mlp_forward.1} parent=1 // pred_check_branch
      %31 = sbr.rel (0) target = $region13
    $region12: #{mlp_forward.1} parent=1 // pred_region
      %s33 = ssub.s32 80, 80
      %34 = vsyncadd [#allocation5], %s33
      %s36 = sshll.u32 [#allocation4], 4
      %s37 = int_to_ptr.vmem [resolvable:$true] %s36
      %39 = dma.hbm_to_vmem [thread:$0]  %s2, 80, %s37, [#allocation5]
    $region13: #{mlp_forward.1} parent=1 // pred_fallthru
      _
    // Predicated region
    $region14: #{mlp_forward.1} parent=1 // pred_check
      _
    $region15: #{mlp_forward.1} parent=1 // pred_check_branch
      %41 = sbr.rel (0) target = $region17
    $region16: #{mlp_forward.1} parent=1 // pred_region
      %s43 = ssub.s32 25600, 25600
      %44 = vsyncadd [#allocation5], %s43
      %s45 = sshll.u32 [#allocation6], 4
      %s46 = int_to_ptr.vmem [resolvable:$true] %s45
      %51 = dma.hbm_to_vmem [thread:$0]  %s3, 25600, %s46, [#allocation5], 320, 320, 20
    $region17: #{mlp_forward.1} parent=1 // pred_fallthru
      _
    // Predicated region
    $region18: #{mlp_forward.1} parent=1 // pred_check
      _
    $region19: #{mlp_forward.1} parent=1 // pred_check_branch
      %53 = sbr.rel (0) target = $region21
    $region20: #{mlp_forward.1} parent=1 // pred_region
      %s55 = ssub.s32 80, 80
      %56 = vsyncadd [#allocation8], %s55
      %s58 = sshll.u32 [#allocation7], 4
      %s59 = int_to_ptr.vmem [resolvable:$true] %s58
      %61 = dma.hbm_to_vmem [thread:$0]  %s4, 80, %s59, [#allocation8]
    $region21: #{mlp_forward.1} parent=1 // pred_fallthru
      _
    // Predicated region
    $region22: #{mlp_forward.1} parent=1 // pred_check
      _
    $region23: #{mlp_forward.1} parent=1 // pred_check_branch
      %63 = sbr.rel (0) target = $region25
    $region24: #{mlp_forward.1} parent=1 // pred_region
      %s65 = ssub.s32 5120, 5120
      %66 = vsyncadd [#allocation8], %s65
      %s67 = sshll.u32 [#allocation9], 4
      %s68 = int_to_ptr.vmem [resolvable:$true] %s67
      %73 = dma.hbm_to_vmem [thread:$0]  %s5, 5120, %s68, [#allocation8], 64, 64, 4
    $region25: #{mlp_forward.1} parent=1 // pred_fallthru
      _
    // Predicated region
    $region26: #{mlp_forward.1} parent=1 // pred_check
      _
    $region27: #{mlp_forward.1} parent=1 // pred_check_branch
      %75 = sbr.rel (0) target = $region29
    $region28: #{mlp_forward.1} parent=1 // pred_region
      %s77 = ssub.s32 16, 16
      %78 = vsyncadd [#allocation11], %s77
      %s80 = sshll.u32 [#allocation10], 4
      %s81 = int_to_ptr.vmem [resolvable:$true] %s80
      %83 = dma.hbm_to_vmem [thread:$0]  %s6, 16, %s81, [#allocation11]
    $region29: #{mlp_forward.1} parent=1 // pred_fallthru
      _
    // Predicated region
    $region30: #{mlp_forward.1} parent=1 // pred_check
      _
    $region31: #{mlp_forward.1} parent=1 // pred_check_branch
      %85 = sbr.rel (0) target = $region33
    $region32: #{mlp_forward.1} parent=1 // pred_region
      %86 = dma.done [#allocation3], 94080
    $region33: #{mlp_forward.1} parent=1 // pred_fallthru
      _
    // Predicated region
    $region34: #{mlp_forward.1} parent=1 // pred_check
      _
    $region35: #{mlp_forward.1} parent=1 // pred_check_branch
      %88 = sbr.rel (0) target = $region37
    $region36: #{mlp_forward.1} parent=1 // pred_region
      %89 = dma.done [#allocation5], 80
    $region37: #{mlp_forward.1} parent=1 // pred_fallthru
      _
    // Predicated region
    $region38: #{mlp_forward.1} parent=1 // pred_check
      _
    $region39: #{mlp_forward.1} parent=1 // pred_check_branch
      %91 = sbr.rel (0) target = $region41
    $region40: #{mlp_forward.1} parent=1 // pred_region
      %92 = dma.done [#allocation5], 25600
    $region41: #{mlp_forward.1} parent=1 // pred_fallthru
      _
    // Predicated region
    $region42: #{mlp_forward.1} parent=1 // pred_check
      _
    $region43: #{mlp_forward.1} parent=1 // pred_check_branch
      %94 = sbr.rel (0) target = $region45
    $region44: #{mlp_forward.1} parent=1 // pred_region
      %95 = dma.done [#allocation8], 80
    $region45: #{mlp_forward.1} parent=1 // pred_fallthru
      _
    // Predicated region
    $region46: #{mlp_forward.1} parent=1 // pred_check
      _
    $region47: #{mlp_forward.1} parent=1 // pred_check_branch
      %97 = sbr.rel (0) target = $region49
    $region48: #{mlp_forward.1} parent=1 // pred_region
      %98 = dma.done [#allocation8], 5120
    $region49: #{mlp_forward.1} parent=1 // pred_fallthru
      _
    // Predicated region
    $region50: #{mlp_forward.1} parent=1 // pred_check
      _
    $region51: #{mlp_forward.1} parent=1 // pred_check_branch
      %100 = sbr.rel (0) target = $region53
    $region52: #{mlp_forward.1} parent=1 // pred_region
      %101 = dma.done [#allocation11], 16
    $region53: #{mlp_forward.1} parent=1 // pred_fallthru
      _
    %v103 = vld [vmem:[%s0] sm:$0xff]
    %v104 = vld [vmem:[%s0 + $0x8] sm:$0xff]
    %v105 = vld [vmem:[%s0 + $0x10] sm:$0xff]
    %v106 = vld [vmem:[%s0 + $0x18] sm:$0xff]
    %v107 = vld [vmem:[%s0 + $0x20] sm:$0xff]
    %v108 = vld [vmem:[%s0 + $0x28] sm:$0xff]
    %v109 = vld [vmem:[%s0 + $0x30] sm:$0xff]
    %v110 = vld [vmem:[%s0 + $0x38] sm:$0xff]
    %v111 = vld [vmem:[%s0 + $0x40] sm:$0xff]
    %v112 = vld [vmem:[%s0 + $0x48] sm:$0xff]
    %v113 = vld [vmem:[%s0 + $0x50] sm:$0xff]
    %v114 = vld [vmem:[%s0 + $0x58] sm:$0xff]
    %v115 = vld [vmem:[%s0 + $0x60] sm:$0xff]
    %v116 = vld [vmem:[%s0 + $0x68] sm:$0xff]
    %v117 = vld [vmem:[%s0 + $0x70] sm:$0xff]
    %v118 = vld [vmem:[%s0 + $0x78] sm:$0xff]
    %v119 = vld [vmem:[%s0 + $0x80] sm:$0xff]
    %v120 = vld [vmem:[%s0 + $0x88] sm:$0xff]
    %v121 = vld [vmem:[%s0 + $0x90] sm:$0xff]
    %v122 = vld [vmem:[%s0 + $0x98] sm:$0xff]
    %v123 = vld [vmem:[%s0 + $0xa0] sm:$0xff]
    %v124 = vld [vmem:[%s0 + $0xa8] sm:$0xff]
    %v125 = vld [vmem:[%s0 + $0xb0] sm:$0xff]
    %v126 = vld [vmem:[%s0 + $0xb8] sm:$0xff]
    %v127 = vld [vmem:[%s0 + $0xc0] sm:$0xff]
    %v128 = vld [vmem:[%s0 + $0xc8] sm:$0xff]
    %v129 = vld [vmem:[%s0 + $0xd0] sm:$0xff]
    %v130 = vld [vmem:[%s0 + $0xd8] sm:$0xff]
    %v131 = vld [vmem:[%s0 + $0xe0] sm:$0xff]
    %v132 = vld [vmem:[%s0 + $0xe8] sm:$0xff]
    %v133 = vld [vmem:[%s0 + $0xf0] sm:$0xff]
    %v134 = vld [vmem:[%s0 + $0xf8] sm:$0xff]
    %v135 = vld [vmem:[%s0 + $0x100] sm:$0xff]
    %v136 = vld [vmem:[%s0 + $0x108] sm:$0xff]
    %v137 = vld [vmem:[%s0 + $0x110] sm:$0xff]
    %v138 = vld [vmem:[%s0 + $0x118] sm:$0xff]
    %v139 = vld [vmem:[%s0 + $0x120] sm:$0xff]
    %v140 = vld [vmem:[%s0 + $0x128] sm:$0xff]
    %v141 = vpack.c.bf16 %v122, %v103
    %v142 = vpack.c.bf16 %v123, %v104
    %v143 = vpack.c.bf16 %v124, %v105
    %v144 = vpack.c.bf16 %v125, %v106
    %v145 = vpack.c.bf16 %v126, %v107
    %v146 = vpack.c.bf16 %v127, %v108
    %v147 = vpack.c.bf16 %v128, %v109
    %v148 = vpack.c.bf16 %v129, %v110
    %v149 = vpack.c.bf16 %v130, %v111
    %v150 = vpack.c.bf16 %v131, %v112
    %v151 = vpack.c.bf16 %v132, %v113
    %v152 = vpack.c.bf16 %v133, %v114
    %v153 = vpack.c.bf16 %v134, %v115
    %v154 = vpack.c.bf16 %v135, %v116
    %v155 = vpack.c.bf16 %v136, %v117
    %v156 = vpack.c.bf16 %v137, %v118
    %v157 = vpack.c.bf16 %v138, %v119
    %v158 = vpack.c.bf16 %v139, %v120
    %v159 = vpack.c.bf16 %v140, %v121
    %v160 = vld [vmem:[#allocation2] sm:$0xff]
    %v161 = vld [vmem:[#allocation2 + $0x8] sm:$0xff]
    %v162 = vld [vmem:[#allocation2 + $0x10] sm:$0xf]
    %v163 = vld [vmem:[#allocation2 + $0x14] sm:$0xff]
    %v164 = vld [vmem:[#allocation2 + $0x1c] sm:$0xff]
    %v165 = vld [vmem:[#allocation2 + $0x24] sm:$0xf]
    %v166 = vld [vmem:[#allocation2 + $0x28] sm:$0xff]
    %v167 = vld [vmem:[#allocation2 + $0x30] sm:$0xff]
    %v168 = vld [vmem:[#allocation2 + $0x38] sm:$0xf]
    %v169 = vld [vmem:[#allocation2 + $0x3c] sm:$0xff]
    %v170 = vld [vmem:[#allocation2 + $0x44] sm:$0xff]
    %v171 = vld [vmem:[#allocation2 + $0x4c] sm:$0xf]
    %v172 = vld [vmem:[#allocation2 + $0x50] sm:$0xff]
    %v173 = vld [vmem:[#allocation2 + $0x58] sm:$0xff]
    %v174 = vld [vmem:[#allocation2 + $0x60] sm:$0xf]
    %v175 = vld [vmem:[#allocation2 + $0x64] sm:$0xff]
    %v176 = vld [vmem:[#allocation2 + $0x6c] sm:$0xff]
    %v177 = vld [vmem:[#allocation2 + $0x74] sm:$0xf]
    %v178 = vld [vmem:[#allocation2 + $0x78] sm:$0xff]
    %v179 = vld [vmem:[#allocation2 + $0x80] sm:$0xff]
    %v180 = vld [vmem:[#allocation2 + $0x88] sm:$0xf]
    %v181 = vld [vmem:[#allocation2 + $0x8c] sm:$0xff]
    %v182 = vld [vmem:[#allocation2 + $0x94] sm:$0xff]
    %v183 = vld [vmem:[#allocation2 + $0x9c] sm:$0xf]
    %v184 = vld [vmem:[#allocation2 + $0xa0] sm:$0xff]
    %v185 = vld [vmem:[#allocation2 + $0xa8] sm:$0xff]
    %v186 = vld [vmem:[#allocation2 + $0xb0] sm:$0xf]
    %v187 = vld [vmem:[#allocation2 + $0xb4] sm:$0xff]
    %v188 = vld [vmem:[#allocation2 + $0xbc] sm:$0xff]
    %v189 = vld [vmem:[#allocation2 + $0xc4] sm:$0xf]
    %v190 = vld [vmem:[#allocation2 + $0xc8] sm:$0xff]
    %v191 = vld [vmem:[#allocation2 + $0xd0] sm:$0xff]
    %v192 = vld [vmem:[#allocation2 + $0xd8] sm:$0xf]
    %v193 = vld [vmem:[#allocation2 + $0xdc] sm:$0xff]
    %v194 = vld [vmem:[#allocation2 + $0xe4] sm:$0xff]
    %v195 = vld [vmem:[#allocation2 + $0xec] sm:$0xf]
    %v196 = vld [vmem:[#allocation2 + $0xf0] sm:$0xff]
    %v197 = vld [vmem:[#allocation2 + $0xf8] sm:$0xff]
    %v198 = vld [vmem:[#allocation2 + $0x100] sm:$0xf]
    %v199 = vld [vmem:[#allocation2 + $0x104] sm:$0xff]
    %v200 = vld [vmem:[#allocation2 + $0x10c] sm:$0xff]
    %v201 = vld [vmem:[#allocation2 + $0x114] sm:$0xf]
    %v202 = vld [vmem:[#allocation2 + $0x118] sm:$0xff]
    %v203 = vld [vmem:[#allocation2 + $0x120] sm:$0xff]
    %v204 = vld [vmem:[#allocation2 + $0x128] sm:$0xf]
    %v205 = vld [vmem:[#allocation2 + $0x12c] sm:$0xff]
    %v206 = vld [vmem:[#allocation2 + $0x134] sm:$0xff]
    %v207 = vld [vmem:[#allocation2 + $0x13c] sm:$0xf]
    %v208 = vld [vmem:[#allocation2 + $0x140] sm:$0xff]
    %v209 = vld [vmem:[#allocation2 + $0x148] sm:$0xff]
    %v210 = vld [vmem:[#allocation2 + $0x150] sm:$0xf]
    %v211 = vld [vmem:[#allocation2 + $0x154] sm:$0xff]
    %v212 = vld [vmem:[#allocation2 + $0x15c] sm:$0xff]
    %v213 = vld [vmem:[#allocation2 + $0x164] sm:$0xf]
    %v214 = vld [vmem:[#allocation2 + $0x168] sm:$0xff]
    %v215 = vld [vmem:[#allocation2 + $0x170] sm:$0xff]
    %v216 = vld [vmem:[#allocation2 + $0x178] sm:$0xf]
    %v217 = vld [vmem:[#allocation2 + $0x17c] sm:$0xff]
    %v218 = vld [vmem:[#allocation2 + $0x184] sm:$0xff]
    %v219 = vld [vmem:[#allocation2 + $0x18c] sm:$0xf]
    %v220 = vld [vmem:[#allocation2 + $0x190] sm:$0xff]
    %v221 = vld [vmem:[#allocation2 + $0x198] sm:$0xff]
    %v222 = vld [vmem:[#allocation2 + $0x1a0] sm:$0xf]
    %v223 = vld [vmem:[#allocation2 + $0x1a4] sm:$0xff]
    %v224 = vld [vmem:[#allocation2 + $0x1ac] sm:$0xff]
    %v225 = vld [vmem:[#allocation2 + $0x1b4] sm:$0xf]
    %v226 = vld [vmem:[#allocation2 + $0x1b8] sm:$0xff]
    %v227 = vld [vmem:[#allocation2 + $0x1c0] sm:$0xff]
    %v228 = vld [vmem:[#allocation2 + $0x1c8] sm:$0xf]
    %v229 = vld [vmem:[#allocation2 + $0x1cc] sm:$0xff]
    %v230 = vld [vmem:[#allocation2 + $0x1d4] sm:$0xff]
    %v231 = vld [vmem:[#allocation2 + $0x1dc] sm:$0xf]
    %v232 = vld [vmem:[#allocation2 + $0x1e0] sm:$0xff]
    %v233 = vld [vmem:[#allocation2 + $0x1e8] sm:$0xff]
    %v234 = vld [vmem:[#allocation2 + $0x1f0] sm:$0xf]
    %v235 = vld [vmem:[#allocation2 + $0x1f4] sm:$0xff]
    %v236 = vld [vmem:[#allocation2 + $0x1fc] sm:$0xff]
    %v237 = vld [vmem:[#allocation2 + $0x204] sm:$0xf]
    %v238 = vld [vmem:[#allocation2 + $0x208] sm:$0xff]
    %v239 = vld [vmem:[#allocation2 + $0x210] sm:$0xff]
    %v240 = vld [vmem:[#allocation2 + $0x218] sm:$0xf]
    %v241 = vld [vmem:[#allocation2 + $0x21c] sm:$0xff]
    %v242 = vld [vmem:[#allocation2 + $0x224] sm:$0xff]
    %v243 = vld [vmem:[#allocation2 + $0x22c] sm:$0xf]
    %v244 = vld [vmem:[#allocation2 + $0x230] sm:$0xff]
    %v245 = vld [vmem:[#allocation2 + $0x238] sm:$0xff]
    %v246 = vld [vmem:[#allocation2 + $0x240] sm:$0xf]
    %v247 = vld [vmem:[#allocation2 + $0x244] sm:$0xff]
    %v248 = vld [vmem:[#allocation2 + $0x24c] sm:$0xff]
    %v249 = vld [vmem:[#allocation2 + $0x254] sm:$0xf]
    %v250 = vld [vmem:[#allocation2 + $0x258] sm:$0xff]
    %v251 = vld [vmem:[#allocation2 + $0x260] sm:$0xff]
    %v252 = vld [vmem:[#allocation2 + $0x268] sm:$0xf]
    %v253 = vld [vmem:[#allocation2 + $0x26c] sm:$0xff]
    %v254 = vld [vmem:[#allocation2 + $0x274] sm:$0xff]
    %v255 = vld [vmem:[#allocation2 + $0x27c] sm:$0xf]
    %v256 = vld [vmem:[#allocation2 + $0x280] sm:$0xff]
    %v257 = vld [vmem:[#allocation2 + $0x288] sm:$0xff]
    %v258 = vld [vmem:[#allocation2 + $0x290] sm:$0xf]
    %v259 = vld [vmem:[#allocation2 + $0x294] sm:$0xff]
    %v260 = vld [vmem:[#allocation2 + $0x29c] sm:$0xff]
    %v261 = vld [vmem:[#allocation2 + $0x2a4] sm:$0xf]
    %v262 = vld [vmem:[#allocation2 + $0x2a8] sm:$0xff]
    %v263 = vld [vmem:[#allocation2 + $0x2b0] sm:$0xff]
    %v264 = vld [vmem:[#allocation2 + $0x2b8] sm:$0xf]
    %v265 = vld [vmem:[#allocation2 + $0x2bc] sm:$0xff]
    %v266 = vld [vmem:[#allocation2 + $0x2c4] sm:$0xff]
    %v267 = vld [vmem:[#allocation2 + $0x2cc] sm:$0xf]
    %v268 = vld [vmem:[#allocation2 + $0x2d0] sm:$0xff]
    %v269 = vld [vmem:[#allocation2 + $0x2d8] sm:$0xff]
    %v270 = vld [vmem:[#allocation2 + $0x2e0] sm:$0xf]
    %v271 = vld [vmem:[#allocation2 + $0x2e4] sm:$0xff]
    %v272 = vld [vmem:[#allocation2 + $0x2ec] sm:$0xff]
    %v273 = vld [vmem:[#allocation2 + $0x2f4] sm:$0xf]
    %v274 = vld [vmem:[#allocation2 + $0x2f8] sm:$0xff]
    %v275 = vld [vmem:[#allocation2 + $0x300] sm:$0xff]
    %v276 = vld [vmem:[#allocation2 + $0x308] sm:$0xf]
    %v277 = vld [vmem:[#allocation2 + $0x30c] sm:$0xff]
    %v278 = vld [vmem:[#allocation2 + $0x314] sm:$0xff]
    %v279 = vld [vmem:[#allocation2 + $0x31c] sm:$0xf]
    %v280 = vld [vmem:[#allocation2 + $0x320] sm:$0xff]
    %v281 = vld [vmem:[#allocation2 + $0x328] sm:$0xff]
    %v282 = vld [vmem:[#allocation2 + $0x330] sm:$0xf]
    %v283 = vld [vmem:[#allocation2 + $0x334] sm:$0xff]
    %v284 = vld [vmem:[#allocation2 + $0x33c] sm:$0xff]
    %v285 = vld [vmem:[#allocation2 + $0x344] sm:$0xf]
    %v286 = vld [vmem:[#allocation2 + $0x348] sm:$0xff]
    %v287 = vld [vmem:[#allocation2 + $0x350] sm:$0xff]
    %v288 = vld [vmem:[#allocation2 + $0x358] sm:$0xf]
    %v289 = vld [vmem:[#allocation2 + $0x35c] sm:$0xff]
    %v290 = vld [vmem:[#allocation2 + $0x364] sm:$0xff]
    %v291 = vld [vmem:[#allocation2 + $0x36c] sm:$0xf]
    %v292 = vld [vmem:[#allocation2 + $0x370] sm:$0xff]
    %v293 = vld [vmem:[#allocation2 + $0x378] sm:$0xff]
    %v294 = vld [vmem:[#allocation2 + $0x380] sm:$0xf]
    %v295 = vld [vmem:[#allocation2 + $0x384] sm:$0xff]
    %v296 = vld [vmem:[#allocation2 + $0x38c] sm:$0xff]
    %v297 = vld [vmem:[#allocation2 + $0x394] sm:$0xf]
    %v298 = vld [vmem:[#allocation2 + $0x398] sm:$0xff]
    %v299 = vld [vmem:[#allocation2 + $0x3a0] sm:$0xff]
    %v300 = vld [vmem:[#allocation2 + $0x3a8] sm:$0xf]
    %v301 = vld [vmem:[#allocation2 + $0x3ac] sm:$0xff]
    %v302 = vld [vmem:[#allocation2 + $0x3b4] sm:$0xff]
    %v303 = vld [vmem:[#allocation2 + $0x3bc] sm:$0xf]
    %v304 = vld [vmem:[#allocation2 + $0x3c0] sm:$0xff]
    %v305 = vld [vmem:[#allocation2 + $0x3c8] sm:$0xff]
    %v306 = vld [vmem:[#allocation2 + $0x3d0] sm:$0xf]
    %v307 = vld [vmem:[#allocation2 + $0x3d4] sm:$0xff]
    %v308 = vld [vmem:[#allocation2 + $0x3dc] sm:$0xff]
    %v309 = vld [vmem:[#allocation2 + $0x3e4] sm:$0xf]
    %v310 = vld [vmem:[#allocation2 + $0x3e8] sm:$0xff]
    %v311 = vld [vmem:[#allocation2 + $0x3f0] sm:$0xff]
    %v312 = vld [vmem:[#allocation2 + $0x3f8] sm:$0xf]
    %v313 = vld [vmem:[#allocation2 + $0x3fc] sm:$0xff]
    %v314 = vld [vmem:[#allocation2 + $0x404] sm:$0xff]
    %v315 = vld [vmem:[#allocation2 + $0x40c] sm:$0xf]
    %v316 = vld [vmem:[#allocation2 + $0x410] sm:$0xff]
    %v317 = vld [vmem:[#allocation2 + $0x418] sm:$0xff]
    %v318 = vld [vmem:[#allocation2 + $0x420] sm:$0xf]
    %v319 = vld [vmem:[#allocation2 + $0x424] sm:$0xff]
    %v320 = vld [vmem:[#allocation2 + $0x42c] sm:$0xff]
    %v321 = vld [vmem:[#allocation2 + $0x434] sm:$0xf]
    %v322 = vld [vmem:[#allocation2 + $0x438] sm:$0xff]
    %v323 = vld [vmem:[#allocation2 + $0x440] sm:$0xff]
    %v324 = vld [vmem:[#allocation2 + $0x448] sm:$0xf]
    %v325 = vld [vmem:[#allocation2 + $0x44c] sm:$0xff]
    %v326 = vld [vmem:[#allocation2 + $0x454] sm:$0xff]
    %v327 = vld [vmem:[#allocation2 + $0x45c] sm:$0xf]
    %v328 = vld [vmem:[#allocation2 + $0x460] sm:$0xff]
    %v329 = vld [vmem:[#allocation2 + $0x468] sm:$0xff]
    %v330 = vld [vmem:[#allocation2 + $0x470] sm:$0xf]
    %v331 = vld [vmem:[#allocation2 + $0x474] sm:$0xff]
    %v332 = vld [vmem:[#allocation2 + $0x47c] sm:$0xff]
    %v333 = vld [vmem:[#allocation2 + $0x484] sm:$0xf]
    %v334 = vld [vmem:[#allocation2 + $0x488] sm:$0xff]
    %v335 = vld [vmem:[#allocation2 + $0x490] sm:$0xff]
    %v336 = vld [vmem:[#allocation2 + $0x498] sm:$0xf]
    %v337 = vld [vmem:[#allocation2 + $0x49c] sm:$0xff]
    %v338 = vld [vmem:[#allocation2 + $0x4a4] sm:$0xff]
    %v339 = vld [vmem:[#allocation2 + $0x4ac] sm:$0xf]
    %v340 = vld [vmem:[#allocation2 + $0x4b0] sm:$0xff]
    %v341 = vld [vmem:[#allocation2 + $0x4b8] sm:$0xff]
    %v342 = vld [vmem:[#allocation2 + $0x4c0] sm:$0xf]
    %v343 = vld [vmem:[#allocation2 + $0x4c4] sm:$0xff]
    %v344 = vld [vmem:[#allocation2 + $0x4cc] sm:$0xff]
    %v345 = vld [vmem:[#allocation2 + $0x4d4] sm:$0xf]
    %v346 = vld [vmem:[#allocation2 + $0x4d8] sm:$0xff]
    %v347 = vld [vmem:[#allocation2 + $0x4e0] sm:$0xff]
    %v348 = vld [vmem:[#allocation2 + $0x4e8] sm:$0xf]
    %v349 = vld [vmem:[#allocation2 + $0x4ec] sm:$0xff]
    %v350 = vld [vmem:[#allocation2 + $0x4f4] sm:$0xff]
    %v351 = vld [vmem:[#allocation2 + $0x4fc] sm:$0xf]
    %v352 = vld [vmem:[#allocation2 + $0x500] sm:$0xff]
    %v353 = vld [vmem:[#allocation2 + $0x508] sm:$0xff]
    %v354 = vld [vmem:[#allocation2 + $0x510] sm:$0xf]
    %v355 = vld [vmem:[#allocation2 + $0x514] sm:$0xff]
    %v356 = vld [vmem:[#allocation2 + $0x51c] sm:$0xff]
    %v357 = vld [vmem:[#allocation2 + $0x524] sm:$0xf]
    %v358 = vld [vmem:[#allocation2 + $0x528] sm:$0xff]
    %v359 = vld [vmem:[#allocation2 + $0x530] sm:$0xff]
    %v360 = vld [vmem:[#allocation2 + $0x538] sm:$0xf]
    %v361 = vld [vmem:[#allocation2 + $0x53c] sm:$0xff]
    %v362 = vld [vmem:[#allocation2 + $0x544] sm:$0xff]
    %v363 = vld [vmem:[#allocation2 + $0x54c] sm:$0xf]
    %v364 = vld [vmem:[#allocation2 + $0x550] sm:$0xff]
    %v365 = vld [vmem:[#allocation2 + $0x558] sm:$0xff]
    %v366 = vld [vmem:[#allocation2 + $0x560] sm:$0xf]
    %v367 = vld [vmem:[#allocation2 + $0x564] sm:$0xff]
    %v368 = vld [vmem:[#allocation2 + $0x56c] sm:$0xff]
    %v369 = vld [vmem:[#allocation2 + $0x574] sm:$0xf]
    %v370 = vld [vmem:[#allocation2 + $0x578] sm:$0xff]
    %v371 = vld [vmem:[#allocation2 + $0x580] sm:$0xff]
    %v372 = vld [vmem:[#allocation2 + $0x588] sm:$0xf]
    %v373 = vld [vmem:[#allocation2 + $0x58c] sm:$0xff]
    %v374 = vld [vmem:[#allocation2 + $0x594] sm:$0xff]
    %v375 = vld [vmem:[#allocation2 + $0x59c] sm:$0xf]
    %v376 = vld [vmem:[#allocation2 + $0x5a0] sm:$0xff]
    %v377 = vld [vmem:[#allocation2 + $0x5a8] sm:$0xff]
    %v378 = vld [vmem:[#allocation2 + $0x5b0] sm:$0xf]
    %v379 = vld [vmem:[#allocation2 + $0x5b4] sm:$0xff]
    %v380 = vld [vmem:[#allocation2 + $0x5bc] sm:$0xff]
    %v381 = vld [vmem:[#allocation2 + $0x5c4] sm:$0xf]
    %v382 = vld [vmem:[#allocation2 + $0x5c8] sm:$0xff]
    %v383 = vld [vmem:[#allocation2 + $0x5d0] sm:$0xff]
    %v384 = vld [vmem:[#allocation2 + $0x5d8] sm:$0xf]
    %v385 = vld [vmem:[#allocation2 + $0x5dc] sm:$0xff]
    %v386 = vld [vmem:[#allocation2 + $0x5e4] sm:$0xff]
    %v387 = vld [vmem:[#allocation2 + $0x5ec] sm:$0xf]
    %v388 = vld [vmem:[#allocation2 + $0x5f0] sm:$0xff]
    %v389 = vld [vmem:[#allocation2 + $0x5f8] sm:$0xff]
    %v390 = vld [vmem:[#allocation2 + $0x600] sm:$0xf]
    %v391 = vld [vmem:[#allocation2 + $0x604] sm:$0xff]
    %v392 = vld [vmem:[#allocation2 + $0x60c] sm:$0xff]
    %v393 = vld [vmem:[#allocation2 + $0x614] sm:$0xf]
    %v394 = vld [vmem:[#allocation2 + $0x618] sm:$0xff]
    %v395 = vld [vmem:[#allocation2 + $0x620] sm:$0xff]
    %v396 = vld [vmem:[#allocation2 + $0x628] sm:$0xf]
    %v397 = vld [vmem:[#allocation2 + $0x62c] sm:$0xff]
    %v398 = vld [vmem:[#allocation2 + $0x634] sm:$0xff]
    %v399 = vld [vmem:[#allocation2 + $0x63c] sm:$0xf]
    %v400 = vld [vmem:[#allocation2 + $0x640] sm:$0xff]
    %v401 = vld [vmem:[#allocation2 + $0x648] sm:$0xff]
    %v402 = vld [vmem:[#allocation2 + $0x650] sm:$0xf]
    %v403 = vld [vmem:[#allocation2 + $0x654] sm:$0xff]
    %v404 = vld [vmem:[#allocation2 + $0x65c] sm:$0xff]
    %v405 = vld [vmem:[#allocation2 + $0x664] sm:$0xf]
    %v406 = vld [vmem:[#allocation2 + $0x668] sm:$0xff]
    %v407 = vld [vmem:[#allocation2 + $0x670] sm:$0xff]
    %v408 = vld [vmem:[#allocation2 + $0x678] sm:$0xf]
    %v409 = vld [vmem:[#allocation2 + $0x67c] sm:$0xff]
    %v410 = vld [vmem:[#allocation2 + $0x684] sm:$0xff]
    %v411 = vld [vmem:[#allocation2 + $0x68c] sm:$0xf]
    %v412 = vld [vmem:[#allocation2 + $0x690] sm:$0xff]
    %v413 = vld [vmem:[#allocation2 + $0x698] sm:$0xff]
    %v414 = vld [vmem:[#allocation2 + $0x6a0] sm:$0xf]
    %v415 = vld [vmem:[#allocation2 + $0x6a4] sm:$0xff]
    %v416 = vld [vmem:[#allocation2 + $0x6ac] sm:$0xff]
    %v417 = vld [vmem:[#allocation2 + $0x6b4] sm:$0xf]
    %v418 = vld [vmem:[#allocation2 + $0x6b8] sm:$0xff]
    %v419 = vld [vmem:[#allocation2 + $0x6c0] sm:$0xff]
    %v420 = vld [vmem:[#allocation2 + $0x6c8] sm:$0xf]
    %v421 = vld [vmem:[#allocation2 + $0x6cc] sm:$0xff]
    %v422 = vld [vmem:[#allocation2 + $0x6d4] sm:$0xff]
    %v423 = vld [vmem:[#allocation2 + $0x6dc] sm:$0xf]
    %v424 = vld [vmem:[#allocation2 + $0x6e0] sm:$0xff]
    %v425 = vld [vmem:[#allocation2 + $0x6e8] sm:$0xff]
    %v426 = vld [vmem:[#allocation2 + $0x6f0] sm:$0xf]
    %v427 = vld [vmem:[#allocation2 + $0x6f4] sm:$0xff]
    %v428 = vld [vmem:[#allocation2 + $0x6fc] sm:$0xff]
    %v429 = vld [vmem:[#allocation2 + $0x704] sm:$0xf]
    %v430 = vld [vmem:[#allocation2 + $0x708] sm:$0xff]
    %v431 = vld [vmem:[#allocation2 + $0x710] sm:$0xff]
    %v432 = vld [vmem:[#allocation2 + $0x718] sm:$0xf]
    %v433 = vld [vmem:[#allocation2 + $0x71c] sm:$0xff]
    %v434 = vld [vmem:[#allocation2 + $0x724] sm:$0xff]
    %v435 = vld [vmem:[#allocation2 + $0x72c] sm:$0xf]
    %v436 = vld [vmem:[#allocation2 + $0x730] sm:$0xff]
    %v437 = vld [vmem:[#allocation2 + $0x738] sm:$0xff]
    %v438 = vld [vmem:[#allocation2 + $0x740] sm:$0xf]
    %v439 = vld [vmem:[#allocation2 + $0x744] sm:$0xff]
    %v440 = vld [vmem:[#allocation2 + $0x74c] sm:$0xff]
    %v441 = vld [vmem:[#allocation2 + $0x754] sm:$0xf]
    %v442 = vld [vmem:[#allocation2 + $0x758] sm:$0xff]
    %v443 = vld [vmem:[#allocation2 + $0x760] sm:$0xff]
    %v444 = vld [vmem:[#allocation2 + $0x768] sm:$0xf]
    %v445 = vld [vmem:[#allocation2 + $0x76c] sm:$0xff]
    %v446 = vld [vmem:[#allocation2 + $0x774] sm:$0xff]
    %v447 = vld [vmem:[#allocation2 + $0x77c] sm:$0xf]
    %v448 = vld [vmem:[#allocation2 + $0x780] sm:$0xff]
    %v449 = vld [vmem:[#allocation2 + $0x788] sm:$0xff]
    %v450 = vld [vmem:[#allocation2 + $0x790] sm:$0xf]
    %v451 = vld [vmem:[#allocation2 + $0x794] sm:$0xff]
    %v452 = vld [vmem:[#allocation2 + $0x79c] sm:$0xff]
    %v453 = vld [vmem:[#allocation2 + $0x7a4] sm:$0xf]
    %v454 = vld [vmem:[#allocation2 + $0x7a8] sm:$0xff]
    %v455 = vld [vmem:[#allocation2 + $0x7b0] sm:$0xff]
    %v456 = vld [vmem:[#allocation2 + $0x7b8] sm:$0xf]
    %v457 = vld [vmem:[#allocation2 + $0x7bc] sm:$0xff]
    %v458 = vld [vmem:[#allocation2 + $0x7c4] sm:$0xff]
    %v459 = vld [vmem:[#allocation2 + $0x7cc] sm:$0xf]
    %v460 = vld [vmem:[#allocation2 + $0x7d0] sm:$0xff]
    %v461 = vld [vmem:[#allocation2 + $0x7d8] sm:$0xff]
    %v462 = vld [vmem:[#allocation2 + $0x7e0] sm:$0xf]
    %v463 = vld [vmem:[#allocation2 + $0x7e4] sm:$0xff]
    %v464 = vld [vmem:[#allocation2 + $0x7ec] sm:$0xff]
    %v465 = vld [vmem:[#allocation2 + $0x7f4] sm:$0xf]
    %v466 = vld [vmem:[#allocation2 + $0x7f8] sm:$0xff]
    %v467 = vld [vmem:[#allocation2 + $0x800] sm:$0xff]
    %v468 = vld [vmem:[#allocation2 + $0x808] sm:$0xf]
    %v469 = vld [vmem:[#allocation2 + $0x80c] sm:$0xff]
    %v470 = vld [vmem:[#allocation2 + $0x814] sm:$0xff]
    %v471 = vld [vmem:[#allocation2 + $0x81c] sm:$0xf]
    %v472 = vld [vmem:[#allocation2 + $0x820] sm:$0xff]
    %v473 = vld [vmem:[#allocation2 + $0x828] sm:$0xff]
    %v474 = vld [vmem:[#allocation2 + $0x830] sm:$0xf]
    %v475 = vld [vmem:[#allocation2 + $0x834] sm:$0xff]
    %v476 = vld [vmem:[#allocation2 + $0x83c] sm:$0xff]
    %v477 = vld [vmem:[#allocation2 + $0x844] sm:$0xf]
    %v478 = vld [vmem:[#allocation2 + $0x848] sm:$0xff]
    %v479 = vld [vmem:[#allocation2 + $0x850] sm:$0xff]
    %v480 = vld [vmem:[#allocation2 + $0x858] sm:$0xf]
    %v481 = vld [vmem:[#allocation2 + $0x85c] sm:$0xff]
    %v482 = vld [vmem:[#allocation2 + $0x864] sm:$0xff]
    %v483 = vld [vmem:[#allocation2 + $0x86c] sm:$0xf]
    %v484 = vld [vmem:[#allocation2 + $0x870] sm:$0xff]
    %v485 = vld [vmem:[#allocation2 + $0x878] sm:$0xff]
    %v486 = vld [vmem:[#allocation2 + $0x880] sm:$0xf]
    %v487 = vld [vmem:[#allocation2 + $0x884] sm:$0xff]
    %v488 = vld [vmem:[#allocation2 + $0x88c] sm:$0xff]
    %v489 = vld [vmem:[#allocation2 + $0x894] sm:$0xf]
    %v490 = vld [vmem:[#allocation2 + $0x898] sm:$0xff]
    %v491 = vld [vmem:[#allocation2 + $0x8a0] sm:$0xff]
    %v492 = vld [vmem:[#allocation2 + $0x8a8] sm:$0xf]
    %v493 = vld [vmem:[#allocation2 + $0x8ac] sm:$0xff]
    %v494 = vld [vmem:[#allocation2 + $0x8b4] sm:$0xff]
    %v495 = vld [vmem:[#allocation2 + $0x8bc] sm:$0xf]
    %v496 = vld [vmem:[#allocation2 + $0x8c0] sm:$0xff]
    %v497 = vld [vmem:[#allocation2 + $0x8c8] sm:$0xff]
    %v498 = vld [vmem:[#allocation2 + $0x8d0] sm:$0xf]
    %v499 = vld [vmem:[#allocation2 + $0x8d4] sm:$0xff]
    %v500 = vld [vmem:[#allocation2 + $0x8dc] sm:$0xff]
    %v501 = vld [vmem:[#allocation2 + $0x8e4] sm:$0xf]
    %v502 = vld [vmem:[#allocation2 + $0x8e8] sm:$0xff]
    %v503 = vld [vmem:[#allocation2 + $0x8f0] sm:$0xff]
    %v504 = vld [vmem:[#allocation2 + $0x8f8] sm:$0xf]
    %v505 = vld [vmem:[#allocation2 + $0x8fc] sm:$0xff]
    %v506 = vld [vmem:[#allocation2 + $0x904] sm:$0xff]
    %v507 = vld [vmem:[#allocation2 + $0x90c] sm:$0xf]
    %v508 = vld [vmem:[#allocation2 + $0x910] sm:$0xff]
    %v509 = vld [vmem:[#allocation2 + $0x918] sm:$0xff]
    %v510 = vld [vmem:[#allocation2 + $0x920] sm:$0xf]
    %v511 = vld [vmem:[#allocation2 + $0x924] sm:$0xff]
    %v512 = vld [vmem:[#allocation2 + $0x92c] sm:$0xff]
    %v513 = vld [vmem:[#allocation2 + $0x934] sm:$0xf]
    %v514 = vld [vmem:[#allocation2 + $0x938] sm:$0xff]
    %v515 = vld [vmem:[#allocation2 + $0x940] sm:$0xff]
    %v516 = vld [vmem:[#allocation2 + $0x948] sm:$0xf]
    %v517 = vld [vmem:[#allocation2 + $0x94c] sm:$0xff]
    %v518 = vld [vmem:[#allocation2 + $0x954] sm:$0xff]
    %v519 = vld [vmem:[#allocation2 + $0x95c] sm:$0xf]
    %v520 = vld [vmem:[#allocation2 + $0x960] sm:$0xff]
    %v521 = vld [vmem:[#allocation2 + $0x968] sm:$0xff]
    %v522 = vld [vmem:[#allocation2 + $0x970] sm:$0xf]
    %v523 = vld [vmem:[#allocation2 + $0x974] sm:$0xff]
    %v524 = vld [vmem:[#allocation2 + $0x97c] sm:$0xff]
    %v525 = vld [vmem:[#allocation2 + $0x984] sm:$0xf]
    %v526 = vld [vmem:[#allocation2 + $0x988] sm:$0xff]
    %v527 = vld [vmem:[#allocation2 + $0x990] sm:$0xff]
    %v528 = vld [vmem:[#allocation2 + $0x998] sm:$0xf]
    %v529 = vld [vmem:[#allocation2 + $0x99c] sm:$0xff]
    %v530 = vld [vmem:[#allocation2 + $0x9a4] sm:$0xff]
    %v531 = vld [vmem:[#allocation2 + $0x9ac] sm:$0xf]
    %v532 = vld [vmem:[#allocation2 + $0x9b0] sm:$0xff]
    %v533 = vld [vmem:[#allocation2 + $0x9b8] sm:$0xff]
    %v534 = vld [vmem:[#allocation2 + $0x9c0] sm:$0xf]
    %v535 = vld [vmem:[#allocation2 + $0x9c4] sm:$0xff]
    %v536 = vld [vmem:[#allocation2 + $0x9cc] sm:$0xff]
    %v537 = vld [vmem:[#allocation2 + $0x9d4] sm:$0xf]
    %v538 = vld [vmem:[#allocation2 + $0x9d8] sm:$0xff]
    %v539 = vld [vmem:[#allocation2 + $0x9e0] sm:$0xff]
    %v540 = vld [vmem:[#allocation2 + $0x9e8] sm:$0xf]
    %v541 = vld [vmem:[#allocation2 + $0x9ec] sm:$0xff]
    %v542 = vld [vmem:[#allocation2 + $0x9f4] sm:$0xff]
    %v543 = vld [vmem:[#allocation2 + $0x9fc] sm:$0xf]
    %v544 = vld [vmem:[#allocation2 + $0xa00] sm:$0xff]
    %v545 = vld [vmem:[#allocation2 + $0xa08] sm:$0xff]
    %v546 = vld [vmem:[#allocation2 + $0xa10] sm:$0xf]
    %v547 = vld [vmem:[#allocation2 + $0xa14] sm:$0xff]
    %v548 = vld [vmem:[#allocation2 + $0xa1c] sm:$0xff]
    %v549 = vld [vmem:[#allocation2 + $0xa24] sm:$0xf]
    %v550 = vld [vmem:[#allocation2 + $0xa28] sm:$0xff]
    %v551 = vld [vmem:[#allocation2 + $0xa30] sm:$0xff]
    %v552 = vld [vmem:[#allocation2 + $0xa38] sm:$0xf]
    %v553 = vld [vmem:[#allocation2 + $0xa3c] sm:$0xff]
    %v554 = vld [vmem:[#allocation2 + $0xa44] sm:$0xff]
    %v555 = vld [vmem:[#allocation2 + $0xa4c] sm:$0xf]
    %v556 = vld [vmem:[#allocation2 + $0xa50] sm:$0xff]
    %v557 = vld [vmem:[#allocation2 + $0xa58] sm:$0xff]
    %v558 = vld [vmem:[#allocation2 + $0xa60] sm:$0xf]
    %v559 = vld [vmem:[#allocation2 + $0xa64] sm:$0xff]
    %v560 = vld [vmem:[#allocation2 + $0xa6c] sm:$0xff]
    %v561 = vld [vmem:[#allocation2 + $0xa74] sm:$0xf]
    %v562 = vld [vmem:[#allocation2 + $0xa78] sm:$0xff]
    %v563 = vld [vmem:[#allocation2 + $0xa80] sm:$0xff]
    %v564 = vld [vmem:[#allocation2 + $0xa88] sm:$0xf]
    %v565 = vld [vmem:[#allocation2 + $0xa8c] sm:$0xff]
    %v566 = vld [vmem:[#allocation2 + $0xa94] sm:$0xff]
    %v567 = vld [vmem:[#allocation2 + $0xa9c] sm:$0xf]
    %v568 = vld [vmem:[#allocation2 + $0xaa0] sm:$0xff]
    %v569 = vld [vmem:[#allocation2 + $0xaa8] sm:$0xff]
    %v570 = vld [vmem:[#allocation2 + $0xab0] sm:$0xf]
    %v571 = vld [vmem:[#allocation2 + $0xab4] sm:$0xff]
    %v572 = vld [vmem:[#allocation2 + $0xabc] sm:$0xff]
    %v573 = vld [vmem:[#allocation2 + $0xac4] sm:$0xf]
    %v574 = vld [vmem:[#allocation2 + $0xac8] sm:$0xff]
    %v575 = vld [vmem:[#allocation2 + $0xad0] sm:$0xff]
    %v576 = vld [vmem:[#allocation2 + $0xad8] sm:$0xf]
    %v577 = vld [vmem:[#allocation2 + $0xadc] sm:$0xff]
    %v578 = vld [vmem:[#allocation2 + $0xae4] sm:$0xff]
    %v579 = vld [vmem:[#allocation2 + $0xaec] sm:$0xf]
    %v580 = vld [vmem:[#allocation2 + $0xaf0] sm:$0xff]
    %v581 = vld [vmem:[#allocation2 + $0xaf8] sm:$0xff]
    %v582 = vld [vmem:[#allocation2 + $0xb00] sm:$0xf]
    %v583 = vld [vmem:[#allocation2 + $0xb04] sm:$0xff]
    %v584 = vld [vmem:[#allocation2 + $0xb0c] sm:$0xff]
    %v585 = vld [vmem:[#allocation2 + $0xb14] sm:$0xf]
    %v586 = vld [vmem:[#allocation2 + $0xb18] sm:$0xff]
    %v587 = vld [vmem:[#allocation2 + $0xb20] sm:$0xff]
    %v588 = vld [vmem:[#allocation2 + $0xb28] sm:$0xf]
    %v589 = vld [vmem:[#allocation2 + $0xb2c] sm:$0xff]
    %v590 = vld [vmem:[#allocation2 + $0xb34] sm:$0xff]
    %v591 = vld [vmem:[#allocation2 + $0xb3c] sm:$0xf]
    %v592 = vld [vmem:[#allocation2 + $0xb40] sm:$0xff]
    %v593 = vld [vmem:[#allocation2 + $0xb48] sm:$0xff]
    %v594 = vld [vmem:[#allocation2 + $0xb50] sm:$0xf]
    %v595 = vld [vmem:[#allocation2 + $0xb54] sm:$0xff]
    %v596 = vld [vmem:[#allocation2 + $0xb5c] sm:$0xff]
    %v597 = vld [vmem:[#allocation2 + $0xb64] sm:$0xf]
    %v598 = vld [vmem:[#allocation2 + $0xb68] sm:$0xff]
    %v599 = vld [vmem:[#allocation2 + $0xb70] sm:$0xff]
    %v600 = vld [vmem:[#allocation2 + $0xb78] sm:$0xf]
    %v601 = vld [vmem:[#allocation2 + $0xb7c] sm:$0xff]
    %v602 = vld [vmem:[#allocation2 + $0xb84] sm:$0xff]
    %v603 = vld [vmem:[#allocation2 + $0xb8c] sm:$0xf]
    %v604 = vld [vmem:[#allocation2 + $0xb90] sm:$0xff]
    %v605 = vld [vmem:[#allocation2 + $0xb98] sm:$0xff]
    %v606 = vld [vmem:[#allocation2 + $0xba0] sm:$0xf]
    %v607 = vld [vmem:[#allocation2 + $0xba4] sm:$0xff]
    %v608 = vld [vmem:[#allocation2 + $0xbac] sm:$0xff]
    %v609 = vld [vmem:[#allocation2 + $0xbb4] sm:$0xf]
    %v610 = vld [vmem:[#allocation2 + $0xbb8] sm:$0xff]
    %v611 = vld [vmem:[#allocation2 + $0xbc0] sm:$0xff]
    %v612 = vld [vmem:[#allocation2 + $0xbc8] sm:$0xf]
    %v613 = vld [vmem:[#allocation2 + $0xbcc] sm:$0xff]
    %v614 = vld [vmem:[#allocation2 + $0xbd4] sm:$0xff]
    %v615 = vld [vmem:[#allocation2 + $0xbdc] sm:$0xf]
    %v616 = vld [vmem:[#allocation2 + $0xbe0] sm:$0xff]
    %v617 = vld [vmem:[#allocation2 + $0xbe8] sm:$0xff]
    %v618 = vld [vmem:[#allocation2 + $0xbf0] sm:$0xf]
    %v619 = vld [vmem:[#allocation2 + $0xbf4] sm:$0xff]
    %v620 = vld [vmem:[#allocation2 + $0xbfc] sm:$0xff]
    %v621 = vld [vmem:[#allocation2 + $0xc04] sm:$0xf]
    %v622 = vld [vmem:[#allocation2 + $0xc08] sm:$0xff]
    %v623 = vld [vmem:[#allocation2 + $0xc10] sm:$0xff]
    %v624 = vld [vmem:[#allocation2 + $0xc18] sm:$0xf]
    %v625 = vld [vmem:[#allocation2 + $0xc1c] sm:$0xff]
    %v626 = vld [vmem:[#allocation2 + $0xc24] sm:$0xff]
    %v627 = vld [vmem:[#allocation2 + $0xc2c] sm:$0xf]
    %v628 = vld [vmem:[#allocation2 + $0xc30] sm:$0xff]
    %v629 = vld [vmem:[#allocation2 + $0xc38] sm:$0xff]
    %v630 = vld [vmem:[#allocation2 + $0xc40] sm:$0xf]
    %v631 = vld [vmem:[#allocation2 + $0xc44] sm:$0xff]
    %v632 = vld [vmem:[#allocation2 + $0xc4c] sm:$0xff]
    %v633 = vld [vmem:[#allocation2 + $0xc54] sm:$0xf]
    %v634 = vld [vmem:[#allocation2 + $0xc58] sm:$0xff]
    %v635 = vld [vmem:[#allocation2 + $0xc60] sm:$0xff]
    %v636 = vld [vmem:[#allocation2 + $0xc68] sm:$0xf]
    %v637 = vld [vmem:[#allocation2 + $0xc6c] sm:$0xff]
    %v638 = vld [vmem:[#allocation2 + $0xc74] sm:$0xff]
    %v639 = vld [vmem:[#allocation2 + $0xc7c] sm:$0xf]
    %v640 = vld [vmem:[#allocation2 + $0xc80] sm:$0xff]
    %v641 = vld [vmem:[#allocation2 + $0xc88] sm:$0xff]
    %v642 = vld [vmem:[#allocation2 + $0xc90] sm:$0xf]
    %v643 = vld [vmem:[#allocation2 + $0xc94] sm:$0xff]
    %v644 = vld [vmem:[#allocation2 + $0xc9c] sm:$0xff]
    %v645 = vld [vmem:[#allocation2 + $0xca4] sm:$0xf]
    %v646 = vld [vmem:[#allocation2 + $0xca8] sm:$0xff]
    %v647 = vld [vmem:[#allocation2 + $0xcb0] sm:$0xff]
    %v648 = vld [vmem:[#allocation2 + $0xcb8] sm:$0xf]
    %v649 = vld [vmem:[#allocation2 + $0xcbc] sm:$0xff]
    %v650 = vld [vmem:[#allocation2 + $0xcc4] sm:$0xff]
    %v651 = vld [vmem:[#allocation2 + $0xccc] sm:$0xf]
    %v652 = vld [vmem:[#allocation2 + $0xcd0] sm:$0xff]
    %v653 = vld [vmem:[#allocation2 + $0xcd8] sm:$0xff]
    %v654 = vld [vmem:[#allocation2 + $0xce0] sm:$0xf]
    %v655 = vld [vmem:[#allocation2 + $0xce4] sm:$0xff]
    %v656 = vld [vmem:[#allocation2 + $0xcec] sm:$0xff]
    %v657 = vld [vmem:[#allocation2 + $0xcf4] sm:$0xf]
    %v658 = vld [vmem:[#allocation2 + $0xcf8] sm:$0xff]
    %v659 = vld [vmem:[#allocation2 + $0xd00] sm:$0xff]
    %v660 = vld [vmem:[#allocation2 + $0xd08] sm:$0xf]
    %v661 = vld [vmem:[#allocation2 + $0xd0c] sm:$0xff]
    %v662 = vld [vmem:[#allocation2 + $0xd14] sm:$0xff]
    %v663 = vld [vmem:[#allocation2 + $0xd1c] sm:$0xf]
    %v664 = vld [vmem:[#allocation2 + $0xd20] sm:$0xff]
    %v665 = vld [vmem:[#allocation2 + $0xd28] sm:$0xff]
    %v666 = vld [vmem:[#allocation2 + $0xd30] sm:$0xf]
    %v667 = vld [vmem:[#allocation2 + $0xd34] sm:$0xff]
    %v668 = vld [vmem:[#allocation2 + $0xd3c] sm:$0xff]
    %v669 = vld [vmem:[#allocation2 + $0xd44] sm:$0xf]
    %v670 = vld [vmem:[#allocation2 + $0xd48] sm:$0xff]
    %v671 = vld [vmem:[#allocation2 + $0xd50] sm:$0xff]
    %v672 = vld [vmem:[#allocation2 + $0xd58] sm:$0xf]
    %v673 = vld [vmem:[#allocation2 + $0xd5c] sm:$0xff]
    %v674 = vld [vmem:[#allocation2 + $0xd64] sm:$0xff]
    %v675 = vld [vmem:[#allocation2 + $0xd6c] sm:$0xf]
    %v676 = vld [vmem:[#allocation2 + $0xd70] sm:$0xff]
    %v677 = vld [vmem:[#allocation2 + $0xd78] sm:$0xff]
    %v678 = vld [vmem:[#allocation2 + $0xd80] sm:$0xf]
    %v679 = vld [vmem:[#allocation2 + $0xd84] sm:$0xff]
    %v680 = vld [vmem:[#allocation2 + $0xd8c] sm:$0xff]
    %v681 = vld [vmem:[#allocation2 + $0xd94] sm:$0xf]
    %v682 = vld [vmem:[#allocation2 + $0xd98] sm:$0xff]
    %v683 = vld [vmem:[#allocation2 + $0xda0] sm:$0xff]
    %v684 = vld [vmem:[#allocation2 + $0xda8] sm:$0xf]
    %v685 = vld [vmem:[#allocation2 + $0xdac] sm:$0xff]
    %v686 = vld [vmem:[#allocation2 + $0xdb4] sm:$0xff]
    %v687 = vld [vmem:[#allocation2 + $0xdbc] sm:$0xf]
    %v688 = vld [vmem:[#allocation2 + $0xdc0] sm:$0xff]
    %v689 = vld [vmem:[#allocation2 + $0xdc8] sm:$0xff]
    %v690 = vld [vmem:[#allocation2 + $0xdd0] sm:$0xf]
    %v691 = vld [vmem:[#allocation2 + $0xdd4] sm:$0xff]
    %v692 = vld [vmem:[#allocation2 + $0xddc] sm:$0xff]
    %v693 = vld [vmem:[#allocation2 + $0xde4] sm:$0xf]
    %v694 = vld [vmem:[#allocation2 + $0xde8] sm:$0xff]
    %v695 = vld [vmem:[#allocation2 + $0xdf0] sm:$0xff]
    %v696 = vld [vmem:[#allocation2 + $0xdf8] sm:$0xf]
    %v697 = vld [vmem:[#allocation2 + $0xdfc] sm:$0xff]
    %v698 = vld [vmem:[#allocation2 + $0xe04] sm:$0xff]
    %v699 = vld [vmem:[#allocation2 + $0xe0c] sm:$0xf]
    %v700 = vld [vmem:[#allocation2 + $0xe10] sm:$0xff]
    %v701 = vld [vmem:[#allocation2 + $0xe18] sm:$0xff]
    %v702 = vld [vmem:[#allocation2 + $0xe20] sm:$0xf]
    %v703 = vld [vmem:[#allocation2 + $0xe24] sm:$0xff]
    %v704 = vld [vmem:[#allocation2 + $0xe2c] sm:$0xff]
    %v705 = vld [vmem:[#allocation2 + $0xe34] sm:$0xf]
    %v706 = vld [vmem:[#allocation2 + $0xe38] sm:$0xff]
    %v707 = vld [vmem:[#allocation2 + $0xe40] sm:$0xff]
    %v708 = vld [vmem:[#allocation2 + $0xe48] sm:$0xf]
    %v709 = vld [vmem:[#allocation2 + $0xe4c] sm:$0xff]
    %v710 = vld [vmem:[#allocation2 + $0xe54] sm:$0xff]
    %v711 = vld [vmem:[#allocation2 + $0xe5c] sm:$0xf]
    %v712 = vld [vmem:[#allocation2 + $0xe60] sm:$0xff]
    %v713 = vld [vmem:[#allocation2 + $0xe68] sm:$0xff]
    %v714 = vld [vmem:[#allocation2 + $0xe70] sm:$0xf]
    %v715 = vld [vmem:[#allocation2 + $0xe74] sm:$0xff]
    %v716 = vld [vmem:[#allocation2 + $0xe7c] sm:$0xff]
    %v717 = vld [vmem:[#allocation2 + $0xe84] sm:$0xf]
    %v718 = vld [vmem:[#allocation2 + $0xe88] sm:$0xff]
    %v719 = vld [vmem:[#allocation2 + $0xe90] sm:$0xff]
    %v720 = vld [vmem:[#allocation2 + $0xe98] sm:$0xf]
    %v721 = vld [vmem:[#allocation2 + $0xe9c] sm:$0xff]
    %v722 = vld [vmem:[#allocation2 + $0xea4] sm:$0xff]
    %v723 = vld [vmem:[#allocation2 + $0xeac] sm:$0xf]
    %v724 = vld [vmem:[#allocation2 + $0xeb0] sm:$0xff]
    %v725 = vld [vmem:[#allocation2 + $0xeb8] sm:$0xff]
    %v726 = vld [vmem:[#allocation2 + $0xec0] sm:$0xf]
    %v727 = vld [vmem:[#allocation2 + $0xec4] sm:$0xff]
    %v728 = vld [vmem:[#allocation2 + $0xecc] sm:$0xff]
    %v729 = vld [vmem:[#allocation2 + $0xed4] sm:$0xf]
    %v730 = vld [vmem:[#allocation2 + $0xed8] sm:$0xff]
    %v731 = vld [vmem:[#allocation2 + $0xee0] sm:$0xff]
    %v732 = vld [vmem:[#allocation2 + $0xee8] sm:$0xf]
    %v733 = vld [vmem:[#allocation2 + $0xeec] sm:$0xff]
    %v734 = vld [vmem:[#allocation2 + $0xef4] sm:$0xff]
    %v735 = vld [vmem:[#allocation2 + $0xefc] sm:$0xf]
    %v736 = vld [vmem:[#allocation2 + $0xf00] sm:$0xff]
    %v737 = vld [vmem:[#allocation2 + $0xf08] sm:$0xff]
    %v738 = vld [vmem:[#allocation2 + $0xf10] sm:$0xf]
    %v739 = vld [vmem:[#allocation2 + $0xf14] sm:$0xff]
    %v740 = vld [vmem:[#allocation2 + $0xf1c] sm:$0xff]
    %v741 = vld [vmem:[#allocation2 + $0xf24] sm:$0xf]
    %v742 = vld [vmem:[#allocation2 + $0xf28] sm:$0xff]
    %v743 = vld [vmem:[#allocation2 + $0xf30] sm:$0xff]
    %v744 = vld [vmem:[#allocation2 + $0xf38] sm:$0xf]
    %v745 = vld [vmem:[#allocation2 + $0xf3c] sm:$0xff]
    %v746 = vld [vmem:[#allocation2 + $0xf44] sm:$0xff]
    %v747 = vld [vmem:[#allocation2 + $0xf4c] sm:$0xf]
    %v748 = vld [vmem:[#allocation2 + $0xf50] sm:$0xff]
    %v749 = vld [vmem:[#allocation2 + $0xf58] sm:$0xff]
    %v750 = vld [vmem:[#allocation2 + $0xf60] sm:$0xf]
    %v751 = vld [vmem:[#allocation2 + $0xf64] sm:$0xff]
    %v752 = vld [vmem:[#allocation2 + $0xf6c] sm:$0xff]
    %v753 = vld [vmem:[#allocation2 + $0xf74] sm:$0xf]
    %v754 = vld [vmem:[#allocation2 + $0xf78] sm:$0xff]
    %v755 = vld [vmem:[#allocation2 + $0xf80] sm:$0xff]
    %v756 = vld [vmem:[#allocation2 + $0xf88] sm:$0xf]
    %v757 = vld [vmem:[#allocation2 + $0xf8c] sm:$0xff]
    %v758 = vld [vmem:[#allocation2 + $0xf94] sm:$0xff]
    %v759 = vld [vmem:[#allocation2 + $0xf9c] sm:$0xf]
    %v760 = vld [vmem:[#allocation2 + $0xfa0] sm:$0xff]
    %v761 = vld [vmem:[#allocation2 + $0xfa8] sm:$0xff]
    %v762 = vld [vmem:[#allocation2 + $0xfb0] sm:$0xf]
    %v763 = vld [vmem:[#allocation2 + $0xfb4] sm:$0xff]
    %v764 = vld [vmem:[#allocation2 + $0xfbc] sm:$0xff]
    %v765 = vld [vmem:[#allocation2 + $0xfc4] sm:$0xf]
    %v766 = vld [vmem:[#allocation2 + $0xfc8] sm:$0xff]
    %v767 = vld [vmem:[#allocation2 + $0xfd0] sm:$0xff]
    %v768 = vld [vmem:[#allocation2 + $0xfd8] sm:$0xf]
    %v769 = vld [vmem:[#allocation2 + $0xfdc] sm:$0xff]
    %v770 = vld [vmem:[#allocation2 + $0xfe4] sm:$0xff]
    %v771 = vld [vmem:[#allocation2 + $0xfec] sm:$0xf]
    %v772 = vld [vmem:[#allocation2 + $0xff0] sm:$0xff]
    %v773 = vld [vmem:[#allocation2 + $0xff8] sm:$0xff]
    %v774 = vld [vmem:[#allocation2 + $0x1000] sm:$0xf]
    %v775 = vld [vmem:[#allocation2 + $0x1004] sm:$0xff]
    %v776 = vld [vmem:[#allocation2 + $0x100c] sm:$0xff]
    %v777 = vld [vmem:[#allocation2 + $0x1014] sm:$0xf]
    %v778 = vld [vmem:[#allocation2 + $0x1018] sm:$0xff]
    %v779 = vld [vmem:[#allocation2 + $0x1020] sm:$0xff]
    %v780 = vld [vmem:[#allocation2 + $0x1028] sm:$0xf]
    %v781 = vld [vmem:[#allocation2 + $0x102c] sm:$0xff]
    %v782 = vld [vmem:[#allocation2 + $0x1034] sm:$0xff]
    %v783 = vld [vmem:[#allocation2 + $0x103c] sm:$0xf]
    %v784 = vld [vmem:[#allocation2 + $0x1040] sm:$0xff]
    %v785 = vld [vmem:[#allocation2 + $0x1048] sm:$0xff]
    %v786 = vld [vmem:[#allocation2 + $0x1050] sm:$0xf]
    %v787 = vld [vmem:[#allocation2 + $0x1054] sm:$0xff]
    %v788 = vld [vmem:[#allocation2 + $0x105c] sm:$0xff]
    %v789 = vld [vmem:[#allocation2 + $0x1064] sm:$0xf]
    %v790 = vld [vmem:[#allocation2 + $0x1068] sm:$0xff]
    %v791 = vld [vmem:[#allocation2 + $0x1070] sm:$0xff]
    %v792 = vld [vmem:[#allocation2 + $0x1078] sm:$0xf]
    %v793 = vld [vmem:[#allocation2 + $0x107c] sm:$0xff]
    %v794 = vld [vmem:[#allocation2 + $0x1084] sm:$0xff]
    %v795 = vld [vmem:[#allocation2 + $0x108c] sm:$0xf]
    %v796 = vld [vmem:[#allocation2 + $0x1090] sm:$0xff]
    %v797 = vld [vmem:[#allocation2 + $0x1098] sm:$0xff]
    %v798 = vld [vmem:[#allocation2 + $0x10a0] sm:$0xf]
    %v799 = vld [vmem:[#allocation2 + $0x10a4] sm:$0xff]
    %v800 = vld [vmem:[#allocation2 + $0x10ac] sm:$0xff]
    %v801 = vld [vmem:[#allocation2 + $0x10b4] sm:$0xf]
    %v802 = vld [vmem:[#allocation2 + $0x10b8] sm:$0xff]
    %v803 = vld [vmem:[#allocation2 + $0x10c0] sm:$0xff]
    %v804 = vld [vmem:[#allocation2 + $0x10c8] sm:$0xf]
    %v805 = vld [vmem:[#allocation2 + $0x10cc] sm:$0xff]
    %v806 = vld [vmem:[#allocation2 + $0x10d4] sm:$0xff]
    %v807 = vld [vmem:[#allocation2 + $0x10dc] sm:$0xf]
    %v808 = vld [vmem:[#allocation2 + $0x10e0] sm:$0xff]
    %v809 = vld [vmem:[#allocation2 + $0x10e8] sm:$0xff]
    %v810 = vld [vmem:[#allocation2 + $0x10f0] sm:$0xf]
    %v811 = vld [vmem:[#allocation2 + $0x10f4] sm:$0xff]
    %v812 = vld [vmem:[#allocation2 + $0x10fc] sm:$0xff]
    %v813 = vld [vmem:[#allocation2 + $0x1104] sm:$0xf]
    %v814 = vld [vmem:[#allocation2 + $0x1108] sm:$0xff]
    %v815 = vld [vmem:[#allocation2 + $0x1110] sm:$0xff]
    %v816 = vld [vmem:[#allocation2 + $0x1118] sm:$0xf]
    %v817 = vld [vmem:[#allocation2 + $0x111c] sm:$0xff]
    %v818 = vld [vmem:[#allocation2 + $0x1124] sm:$0xff]
    %v819 = vld [vmem:[#allocation2 + $0x112c] sm:$0xf]
    %v820 = vld [vmem:[#allocation2 + $0x1130] sm:$0xff]
    %v821 = vld [vmem:[#allocation2 + $0x1138] sm:$0xff]
    %v822 = vld [vmem:[#allocation2 + $0x1140] sm:$0xf]
    %v823 = vld [vmem:[#allocation2 + $0x1144] sm:$0xff]
    %v824 = vld [vmem:[#allocation2 + $0x114c] sm:$0xff]
    %v825 = vld [vmem:[#allocation2 + $0x1154] sm:$0xf]
    %v826 = vld [vmem:[#allocation2 + $0x1158] sm:$0xff]
    %v827 = vld [vmem:[#allocation2 + $0x1160] sm:$0xff]
    %v828 = vld [vmem:[#allocation2 + $0x1168] sm:$0xf]
    %v829 = vld [vmem:[#allocation2 + $0x116c] sm:$0xff]
    %v830 = vld [vmem:[#allocation2 + $0x1174] sm:$0xff]
    %v831 = vld [vmem:[#allocation2 + $0x117c] sm:$0xf]
    %v832 = vld [vmem:[#allocation2 + $0x1180] sm:$0xff]
    %v833 = vld [vmem:[#allocation2 + $0x1188] sm:$0xff]
    %v834 = vld [vmem:[#allocation2 + $0x1190] sm:$0xf]
    %v835 = vld [vmem:[#allocation2 + $0x1194] sm:$0xff]
    %v836 = vld [vmem:[#allocation2 + $0x119c] sm:$0xff]
    %v837 = vld [vmem:[#allocation2 + $0x11a4] sm:$0xf]
    %v838 = vld [vmem:[#allocation2 + $0x11a8] sm:$0xff]
    %v839 = vld [vmem:[#allocation2 + $0x11b0] sm:$0xff]
    %v840 = vld [vmem:[#allocation2 + $0x11b8] sm:$0xf]
    %v841 = vld [vmem:[#allocation2 + $0x11bc] sm:$0xff]
    %v842 = vld [vmem:[#allocation2 + $0x11c4] sm:$0xff]
    %v843 = vld [vmem:[#allocation2 + $0x11cc] sm:$0xf]
    %v844 = vld [vmem:[#allocation2 + $0x11d0] sm:$0xff]
    %v845 = vld [vmem:[#allocation2 + $0x11d8] sm:$0xff]
    %v846 = vld [vmem:[#allocation2 + $0x11e0] sm:$0xf]
    %v847 = vld [vmem:[#allocation2 + $0x11e4] sm:$0xff]
    %v848 = vld [vmem:[#allocation2 + $0x11ec] sm:$0xff]
    %v849 = vld [vmem:[#allocation2 + $0x11f4] sm:$0xf]
    %v850 = vld [vmem:[#allocation2 + $0x11f8] sm:$0xff]
    %v851 = vld [vmem:[#allocation2 + $0x1200] sm:$0xff]
    %v852 = vld [vmem:[#allocation2 + $0x1208] sm:$0xf]
    %v853 = vld [vmem:[#allocation2 + $0x120c] sm:$0xff]
    %v854 = vld [vmem:[#allocation2 + $0x1214] sm:$0xff]
    %v855 = vld [vmem:[#allocation2 + $0x121c] sm:$0xf]
    %v856 = vld [vmem:[#allocation2 + $0x1220] sm:$0xff]
    %v857 = vld [vmem:[#allocation2 + $0x1228] sm:$0xff]
    %v858 = vld [vmem:[#allocation2 + $0x1230] sm:$0xf]
    %v859 = vld [vmem:[#allocation2 + $0x1234] sm:$0xff]
    %v860 = vld [vmem:[#allocation2 + $0x123c] sm:$0xff]
    %v861 = vld [vmem:[#allocation2 + $0x1244] sm:$0xf]
    %v862 = vld [vmem:[#allocation2 + $0x1248] sm:$0xff]
    %v863 = vld [vmem:[#allocation2 + $0x1250] sm:$0xff]
    %v864 = vld [vmem:[#allocation2 + $0x1258] sm:$0xf]
    %v865 = vld [vmem:[#allocation2 + $0x125c] sm:$0xff]
    %v866 = vld [vmem:[#allocation2 + $0x1264] sm:$0xff]
    %v867 = vld [vmem:[#allocation2 + $0x126c] sm:$0xf]
    %v868 = vld [vmem:[#allocation2 + $0x1270] sm:$0xff]
    %v869 = vld [vmem:[#allocation2 + $0x1278] sm:$0xff]
    %v870 = vld [vmem:[#allocation2 + $0x1280] sm:$0xf]
    %v871 = vld [vmem:[#allocation2 + $0x1284] sm:$0xff]
    %v872 = vld [vmem:[#allocation2 + $0x128c] sm:$0xff]
    %v873 = vld [vmem:[#allocation2 + $0x1294] sm:$0xf]
    %v874 = vld [vmem:[#allocation2 + $0x1298] sm:$0xff]
    %v875 = vld [vmem:[#allocation2 + $0x12a0] sm:$0xff]
    %v876 = vld [vmem:[#allocation2 + $0x12a8] sm:$0xf]
    %v877 = vld [vmem:[#allocation2 + $0x12ac] sm:$0xff]
    %v878 = vld [vmem:[#allocation2 + $0x12b4] sm:$0xff]
    %v879 = vld [vmem:[#allocation2 + $0x12bc] sm:$0xf]
    %v880 = vld [vmem:[#allocation2 + $0x12c0] sm:$0xff]
    %v881 = vld [vmem:[#allocation2 + $0x12c8] sm:$0xff]
    %v882 = vld [vmem:[#allocation2 + $0x12d0] sm:$0xf]
    %v883 = vld [vmem:[#allocation2 + $0x12d4] sm:$0xff]
    %v884 = vld [vmem:[#allocation2 + $0x12dc] sm:$0xff]
    %v885 = vld [vmem:[#allocation2 + $0x12e4] sm:$0xf]
    %v886 = vld [vmem:[#allocation2 + $0x12e8] sm:$0xff]
    %v887 = vld [vmem:[#allocation2 + $0x12f0] sm:$0xff]
    %v888 = vld [vmem:[#allocation2 + $0x12f8] sm:$0xf]
    %v889 = vld [vmem:[#allocation2 + $0x12fc] sm:$0xff]
    %v890 = vld [vmem:[#allocation2 + $0x1304] sm:$0xff]
    %v891 = vld [vmem:[#allocation2 + $0x130c] sm:$0xf]
    %v892 = vld [vmem:[#allocation2 + $0x1310] sm:$0xff]
    %v893 = vld [vmem:[#allocation2 + $0x1318] sm:$0xff]
    %v894 = vld [vmem:[#allocation2 + $0x1320] sm:$0xf]
    %v895 = vld [vmem:[#allocation2 + $0x1324] sm:$0xff]
    %v896 = vld [vmem:[#allocation2 + $0x132c] sm:$0xff]
    %v897 = vld [vmem:[#allocation2 + $0x1334] sm:$0xf]
    %v898 = vld [vmem:[#allocation2 + $0x1338] sm:$0xff]
    %v899 = vld [vmem:[#allocation2 + $0x1340] sm:$0xff]
    %v900 = vld [vmem:[#allocation2 + $0x1348] sm:$0xf]
    %v901 = vld [vmem:[#allocation2 + $0x134c] sm:$0xff]
    %v902 = vld [vmem:[#allocation2 + $0x1354] sm:$0xff]
    %v903 = vld [vmem:[#allocation2 + $0x135c] sm:$0xf]
    %v904 = vld [vmem:[#allocation2 + $0x1360] sm:$0xff]
    %v905 = vld [vmem:[#allocation2 + $0x1368] sm:$0xff]
    %v906 = vld [vmem:[#allocation2 + $0x1370] sm:$0xf]
    %v907 = vld [vmem:[#allocation2 + $0x1374] sm:$0xff]
    %v908 = vld [vmem:[#allocation2 + $0x137c] sm:$0xff]
    %v909 = vld [vmem:[#allocation2 + $0x1384] sm:$0xf]
    %v910 = vld [vmem:[#allocation2 + $0x1388] sm:$0xff]
    %v911 = vld [vmem:[#allocation2 + $0x1390] sm:$0xff]
    %v912 = vld [vmem:[#allocation2 + $0x1398] sm:$0xf]
    %v913 = vld [vmem:[#allocation2 + $0x139c] sm:$0xff]
    %v914 = vld [vmem:[#allocation2 + $0x13a4] sm:$0xff]
    %v915 = vld [vmem:[#allocation2 + $0x13ac] sm:$0xf]
    %v916 = vld [vmem:[#allocation2 + $0x13b0] sm:$0xff]
    %v917 = vld [vmem:[#allocation2 + $0x13b8] sm:$0xff]
    %v918 = vld [vmem:[#allocation2 + $0x13c0] sm:$0xf]
    %v919 = vld [vmem:[#allocation2 + $0x13c4] sm:$0xff]
    %v920 = vld [vmem:[#allocation2 + $0x13cc] sm:$0xff]
    %v921 = vld [vmem:[#allocation2 + $0x13d4] sm:$0xf]
    %v922 = vld [vmem:[#allocation2 + $0x13d8] sm:$0xff]
    %v923 = vld [vmem:[#allocation2 + $0x13e0] sm:$0xff]
    %v924 = vld [vmem:[#allocation2 + $0x13e8] sm:$0xf]
    %v925 = vld [vmem:[#allocation2 + $0x13ec] sm:$0xff]
    %v926 = vld [vmem:[#allocation2 + $0x13f4] sm:$0xff]
    %v927 = vld [vmem:[#allocation2 + $0x13fc] sm:$0xf]
    %v928 = vld [vmem:[#allocation2 + $0x1400] sm:$0xff]
    %v929 = vld [vmem:[#allocation2 + $0x1408] sm:$0xff]
    %v930 = vld [vmem:[#allocation2 + $0x1410] sm:$0xf]
    %v931 = vld [vmem:[#allocation2 + $0x1414] sm:$0xff]
    %v932 = vld [vmem:[#allocation2 + $0x141c] sm:$0xff]
    %v933 = vld [vmem:[#allocation2 + $0x1424] sm:$0xf]
    %v934 = vld [vmem:[#allocation2 + $0x1428] sm:$0xff]
    %v935 = vld [vmem:[#allocation2 + $0x1430] sm:$0xff]
    %v936 = vld [vmem:[#allocation2 + $0x1438] sm:$0xf]
    %v937 = vld [vmem:[#allocation2 + $0x143c] sm:$0xff]
    %v938 = vld [vmem:[#allocation2 + $0x1444] sm:$0xff]
    %v939 = vld [vmem:[#allocation2 + $0x144c] sm:$0xf]
    %v940 = vld [vmem:[#allocation2 + $0x1450] sm:$0xff]
    %v941 = vld [vmem:[#allocation2 + $0x1458] sm:$0xff]
    %v942 = vld [vmem:[#allocation2 + $0x1460] sm:$0xf]
    %v943 = vld [vmem:[#allocation2 + $0x1464] sm:$0xff]
    %v944 = vld [vmem:[#allocation2 + $0x146c] sm:$0xff]
    %v945 = vld [vmem:[#allocation2 + $0x1474] sm:$0xf]
    %v946 = vld [vmem:[#allocation2 + $0x1478] sm:$0xff]
    %v947 = vld [vmem:[#allocation2 + $0x1480] sm:$0xff]
    %v948 = vld [vmem:[#allocation2 + $0x1488] sm:$0xf]
    %v949 = vld [vmem:[#allocation2 + $0x148c] sm:$0xff]
    %v950 = vld [vmem:[#allocation2 + $0x1494] sm:$0xff]
    %v951 = vld [vmem:[#allocation2 + $0x149c] sm:$0xf]
    %v952 = vld [vmem:[#allocation2 + $0x14a0] sm:$0xff]
    %v953 = vld [vmem:[#allocation2 + $0x14a8] sm:$0xff]
    %v954 = vld [vmem:[#allocation2 + $0x14b0] sm:$0xf]
    %v955 = vld [vmem:[#allocation2 + $0x14b4] sm:$0xff]
    %v956 = vld [vmem:[#allocation2 + $0x14bc] sm:$0xff]
    %v957 = vld [vmem:[#allocation2 + $0x14c4] sm:$0xf]
    %v958 = vld [vmem:[#allocation2 + $0x14c8] sm:$0xff]
    %v959 = vld [vmem:[#allocation2 + $0x14d0] sm:$0xff]
    %v960 = vld [vmem:[#allocation2 + $0x14d8] sm:$0xf]
    %v961 = vld [vmem:[#allocation2 + $0x14dc] sm:$0xff]
    %v962 = vld [vmem:[#allocation2 + $0x14e4] sm:$0xff]
    %v963 = vld [vmem:[#allocation2 + $0x14ec] sm:$0xf]
    %v964 = vld [vmem:[#allocation2 + $0x14f0] sm:$0xff]
    %v965 = vld [vmem:[#allocation2 + $0x14f8] sm:$0xff]
    %v966 = vld [vmem:[#allocation2 + $0x1500] sm:$0xf]
    %v967 = vld [vmem:[#allocation2 + $0x1504] sm:$0xff]
    %v968 = vld [vmem:[#allocation2 + $0x150c] sm:$0xff]
    %v969 = vld [vmem:[#allocation2 + $0x1514] sm:$0xf]
    %v970 = vld [vmem:[#allocation2 + $0x1518] sm:$0xff]
    %v971 = vld [vmem:[#allocation2 + $0x1520] sm:$0xff]
    %v972 = vld [vmem:[#allocation2 + $0x1528] sm:$0xf]
    %v973 = vld [vmem:[#allocation2 + $0x152c] sm:$0xff]
    %v974 = vld [vmem:[#allocation2 + $0x1534] sm:$0xff]
    %v975 = vld [vmem:[#allocation2 + $0x153c] sm:$0xf]
    %v976 = vld [vmem:[#allocation2 + $0x1540] sm:$0xff]
    %v977 = vld [vmem:[#allocation2 + $0x1548] sm:$0xff]
    %v978 = vld [vmem:[#allocation2 + $0x1550] sm:$0xf]
    %v979 = vld [vmem:[#allocation2 + $0x1554] sm:$0xff]
    %v980 = vld [vmem:[#allocation2 + $0x155c] sm:$0xff]
    %v981 = vld [vmem:[#allocation2 + $0x1564] sm:$0xf]
    %v982 = vld [vmem:[#allocation2 + $0x1568] sm:$0xff]
    %v983 = vld [vmem:[#allocation2 + $0x1570] sm:$0xff]
    %v984 = vld [vmem:[#allocation2 + $0x1578] sm:$0xf]
    %v985 = vld [vmem:[#allocation2 + $0x157c] sm:$0xff]
    %v986 = vld [vmem:[#allocation2 + $0x1584] sm:$0xff]
    %v987 = vld [vmem:[#allocation2 + $0x158c] sm:$0xf]
    %v988 = vld [vmem:[#allocation2 + $0x1590] sm:$0xff]
    %v989 = vld [vmem:[#allocation2 + $0x1598] sm:$0xff]
    %v990 = vld [vmem:[#allocation2 + $0x15a0] sm:$0xf]
    %v991 = vld [vmem:[#allocation2 + $0x15a4] sm:$0xff]
    %v992 = vld [vmem:[#allocation2 + $0x15ac] sm:$0xff]
    %v993 = vld [vmem:[#allocation2 + $0x15b4] sm:$0xf]
    %v994 = vld [vmem:[#allocation2 + $0x15b8] sm:$0xff]
    %v995 = vld [vmem:[#allocation2 + $0x15c0] sm:$0xff]
    %v996 = vld [vmem:[#allocation2 + $0x15c8] sm:$0xf]
    %v997 = vld [vmem:[#allocation2 + $0x15cc] sm:$0xff]
    %v998 = vld [vmem:[#allocation2 + $0x15d4] sm:$0xff]
    %v999 = vld [vmem:[#allocation2 + $0x15dc] sm:$0xf]
    %v1000 = vld [vmem:[#allocation2 + $0x15e0] sm:$0xff]
    %v1001 = vld [vmem:[#allocation2 + $0x15e8] sm:$0xff]
    %v1002 = vld [vmem:[#allocation2 + $0x15f0] sm:$0xf]
    %v1003 = vld [vmem:[#allocation2 + $0x15f4] sm:$0xff]
    %v1004 = vld [vmem:[#allocation2 + $0x15fc] sm:$0xff]
    %v1005 = vld [vmem:[#allocation2 + $0x1604] sm:$0xf]
    %v1006 = vld [vmem:[#allocation2 + $0x1608] sm:$0xff]
    %v1007 = vld [vmem:[#allocation2 + $0x1610] sm:$0xff]
    %v1008 = vld [vmem:[#allocation2 + $0x1618] sm:$0xf]
    %v1009 = vld [vmem:[#allocation2 + $0x161c] sm:$0xff]
    %v1010 = vld [vmem:[#allocation2 + $0x1624] sm:$0xff]
    %v1011 = vld [vmem:[#allocation2 + $0x162c] sm:$0xf]
    %v1012 = vld [vmem:[#allocation2 + $0x1630] sm:$0xff]
    %v1013 = vld [vmem:[#allocation2 + $0x1638] sm:$0xff]
    %v1014 = vld [vmem:[#allocation2 + $0x1640] sm:$0xf]
    %v1015 = vld [vmem:[#allocation2 + $0x1644] sm:$0xff]
    %v1016 = vld [vmem:[#allocation2 + $0x164c] sm:$0xff]
    %v1017 = vld [vmem:[#allocation2 + $0x1654] sm:$0xf]
    %v1018 = vld [vmem:[#allocation2 + $0x1658] sm:$0xff]
    %v1019 = vld [vmem:[#allocation2 + $0x1660] sm:$0xff]
    %v1020 = vld [vmem:[#allocation2 + $0x1668] sm:$0xf]
    %v1021 = vld [vmem:[#allocation2 + $0x166c] sm:$0xff]
    %v1022 = vld [vmem:[#allocation2 + $0x1674] sm:$0xff]
    %v1023 = vld [vmem:[#allocation2 + $0x167c] sm:$0xf]
    %v1024 = vld [vmem:[#allocation2 + $0x1680] sm:$0xff]
    %v1025 = vld [vmem:[#allocation2 + $0x1688] sm:$0xff]
    %v1026 = vld [vmem:[#allocation2 + $0x1690] sm:$0xf]
    %v1027 = vld [vmem:[#allocation2 + $0x1694] sm:$0xff]
    %v1028 = vld [vmem:[#allocation2 + $0x169c] sm:$0xff]
    %v1029 = vld [vmem:[#allocation2 + $0x16a4] sm:$0xf]
    %v1030 = vld [vmem:[#allocation2 + $0x16a8] sm:$0xff]
    %v1031 = vld [vmem:[#allocation2 + $0x16b0] sm:$0xff]
    %v1032 = vld [vmem:[#allocation2 + $0x16b8] sm:$0xf]
    %v1033 = vld [vmem:[#allocation2 + $0x16bc] sm:$0xff]
    %v1034 = vld [vmem:[#allocation2 + $0x16c4] sm:$0xff]
    %v1035 = vld [vmem:[#allocation2 + $0x16cc] sm:$0xf]
    %v1036 = vld [vmem:[#allocation2 + $0x16d0] sm:$0xff]
    %v1037 = vld [vmem:[#allocation2 + $0x16d8] sm:$0xff]
    %v1038 = vld [vmem:[#allocation2 + $0x16e0] sm:$0xf]
    %v1039 = vld [vmem:[#allocation2 + $0x16e4] sm:$0xff]
    %v1040 = vld [vmem:[#allocation2 + $0x16ec] sm:$0xff]
    %v1041 = vld [vmem:[#allocation2 + $0x16f4] sm:$0xf]
    %v1042 = vld [vmem:[#allocation4] sm:$0x1f]
    %v1044 = vlaneseq
    %v1045 = vshrl.u32 %v1044, 7
    %v1046 = vsub.s32 0, %v1045
    %v1047 = vrot.slane %v1042, %v1046
    %v1048 = vlaneseq
    %v1049 = vshrl.u32 %v1048, 7
    %v1050 = vsub.s32 1, %v1049
    %v1051 = vrot.slane %v1042, %v1050
    %v1052 = vlaneseq
    %v1053 = vshrl.u32 %v1052, 7
    %v1054 = vsub.s32 2, %v1053
    %v1055 = vrot.slane %v1042, %v1054
    %v1056 = vlaneseq
    %v1057 = vshrl.u32 %v1056, 7
    %v1058 = vsub.s32 3, %v1057
    %v1059 = vrot.slane %v1042, %v1058
    %v1060 = vlaneseq
    %v1061 = vshrl.u32 %v1060, 7
    %v1062 = vsub.s32 4, %v1061
    %v1063 = vrot.slane %v1042, %v1062
    %v1951 = vunpack.c.l.b16 %v160
    %v1952 = vunpack.c.h.b16 %v160
    %v1953 = vunpack.c.l.b16 %v161
    %v1954 = vunpack.c.h.b16 %v161
    %v1955 = vunpack.c.l.b16 %v162
    %v1956 = vunpack.c.l.b16 %v163
    %v1957 = vunpack.c.h.b16 %v163
    %v1958 = vunpack.c.l.b16 %v164
    %v1959 = vunpack.c.h.b16 %v164
    %v1960 = vunpack.c.l.b16 %v165
    %v1961 = vunpack.c.l.b16 %v166
    %v1962 = vunpack.c.h.b16 %v166
    %v1963 = vunpack.c.l.b16 %v167
    %v1964 = vunpack.c.h.b16 %v167
    %v1965 = vunpack.c.l.b16 %v168
    %v1966 = vunpack.c.l.b16 %v169
    %v1967 = vunpack.c.h.b16 %v169
    %v1968 = vunpack.c.l.b16 %v170
    %v1969 = vunpack.c.h.b16 %v170
    %v1970 = vunpack.c.l.b16 %v171
    %v1971 = vunpack.c.l.b16 %v172
    %v1972 = vunpack.c.h.b16 %v172
    %v1973 = vunpack.c.l.b16 %v173
    %v1974 = vunpack.c.h.b16 %v173
    %v1975 = vunpack.c.l.b16 %v174
    %v1976 = vunpack.c.l.b16 %v175
    %v1977 = vunpack.c.h.b16 %v175
    %v1978 = vunpack.c.l.b16 %v176
    %v1979 = vunpack.c.h.b16 %v176
    %v1980 = vunpack.c.l.b16 %v177
    %v1981 = vunpack.c.l.b16 %v178
    %v1982 = vunpack.c.h.b16 %v178
    %v1983 = vunpack.c.l.b16 %v179
    %v1984 = vunpack.c.h.b16 %v179
    %v1985 = vunpack.c.l.b16 %v180
    %v1986 = vunpack.c.l.b16 %v181
    %v1987 = vunpack.c.h.b16 %v181
    %v1988 = vunpack.c.l.b16 %v182
    %v1989 = vunpack.c.h.b16 %v182
    %v1990 = vunpack.c.l.b16 %v183
    %v1991 = vunpack.c.l.b16 %v184
    %v1992 = vunpack.c.h.b16 %v184
    %v1993 = vunpack.c.l.b16 %v185
    %v1994 = vunpack.c.h.b16 %v185
    %v1995 = vunpack.c.l.b16 %v186
    %v1996 = vunpack.c.l.b16 %v187
    %v1997 = vunpack.c.h.b16 %v187
    %v1998 = vunpack.c.l.b16 %v188
    %v1999 = vunpack.c.h.b16 %v188
    %v2000 = vunpack.c.l.b16 %v189
    %v2001 = vunpack.c.l.b16 %v190
    %v2002 = vunpack.c.h.b16 %v190
    %v2003 = vunpack.c.l.b16 %v191
    %v2004 = vunpack.c.h.b16 %v191
    %v2005 = vunpack.c.l.b16 %v192
    %v2006 = vunpack.c.l.b16 %v193
    %v2007 = vunpack.c.h.b16 %v193
    %v2008 = vunpack.c.l.b16 %v194
    %v2009 = vunpack.c.h.b16 %v194
    %v2010 = vunpack.c.l.b16 %v195
    %v2011 = vunpack.c.l.b16 %v196
    %v2012 = vunpack.c.h.b16 %v196
    %v2013 = vunpack.c.l.b16 %v197
    %v2014 = vunpack.c.h.b16 %v197
    %v2015 = vunpack.c.l.b16 %v198
    %v2016 = vunpack.c.l.b16 %v199
    %v2017 = vunpack.c.h.b16 %v199
    %v2018 = vunpack.c.l.b16 %v200
    %v2019 = vunpack.c.h.b16 %v200
    %v2020 = vunpack.c.l.b16 %v201
    %v2021 = vunpack.c.l.b16 %v202
    %v2022 = vunpack.c.h.b16 %v202
    %v2023 = vunpack.c.l.b16 %v203
    %v2024 = vunpack.c.h.b16 %v203
    %v2025 = vunpack.c.l.b16 %v204
    %v2026 = vunpack.c.l.b16 %v205
    %v2027 = vunpack.c.h.b16 %v205
    %v2028 = vunpack.c.l.b16 %v206
    %v2029 = vunpack.c.h.b16 %v206
    %v2030 = vunpack.c.l.b16 %v207
    %v2031 = vunpack.c.l.b16 %v208
    %v2032 = vunpack.c.h.b16 %v208
    %v2033 = vunpack.c.l.b16 %v209
    %v2034 = vunpack.c.h.b16 %v209
    %v2035 = vunpack.c.l.b16 %v210
    %v2036 = vunpack.c.l.b16 %v211
    %v2037 = vunpack.c.h.b16 %v211
    %v2038 = vunpack.c.l.b16 %v212
    %v2039 = vunpack.c.h.b16 %v212
    %v2040 = vunpack.c.l.b16 %v213
    %v2041 = vunpack.c.l.b16 %v214
    %v2042 = vunpack.c.h.b16 %v214
    %v2043 = vunpack.c.l.b16 %v215
    %v2044 = vunpack.c.h.b16 %v215
    %v2045 = vunpack.c.l.b16 %v216
    %v2046 = vunpack.c.l.b16 %v217
    %v2047 = vunpack.c.h.b16 %v217
    %v2048 = vunpack.c.l.b16 %v218
    %v2049 = vunpack.c.h.b16 %v218
    %v2050 = vunpack.c.l.b16 %v219
    %v2051 = vunpack.c.l.b16 %v220
    %v2052 = vunpack.c.h.b16 %v220
    %v2053 = vunpack.c.l.b16 %v221
    %v2054 = vunpack.c.h.b16 %v221
    %v2055 = vunpack.c.l.b16 %v222
    %v2056 = vunpack.c.l.b16 %v223
    %v2057 = vunpack.c.h.b16 %v223
    %v2058 = vunpack.c.l.b16 %v224
    %v2059 = vunpack.c.h.b16 %v224
    %v2060 = vunpack.c.l.b16 %v225
    %v2061 = vunpack.c.l.b16 %v226
    %v2062 = vunpack.c.h.b16 %v226
    %v2063 = vunpack.c.l.b16 %v227
    %v2064 = vunpack.c.h.b16 %v227
    %v2065 = vunpack.c.l.b16 %v228
    %v2066 = vunpack.c.l.b16 %v229
    %v2067 = vunpack.c.h.b16 %v229
    %v2068 = vunpack.c.l.b16 %v230
    %v2069 = vunpack.c.h.b16 %v230
    %v2070 = vunpack.c.l.b16 %v231
    %v2071 = vunpack.c.l.b16 %v232
    %v2072 = vunpack.c.h.b16 %v232
    %v2073 = vunpack.c.l.b16 %v233
    %v2074 = vunpack.c.h.b16 %v233
    %v2075 = vunpack.c.l.b16 %v234
    %v2076 = vunpack.c.l.b16 %v235
    %v2077 = vunpack.c.h.b16 %v235
    %v2078 = vunpack.c.l.b16 %v236
    %v2079 = vunpack.c.h.b16 %v236
    %v2080 = vunpack.c.l.b16 %v237
    %v2081 = vunpack.c.l.b16 %v238
    %v2082 = vunpack.c.h.b16 %v238
    %v2083 = vunpack.c.l.b16 %v239
    %v2084 = vunpack.c.h.b16 %v239
    %v2085 = vunpack.c.l.b16 %v240
    %v2086 = vunpack.c.l.b16 %v241
    %v2087 = vunpack.c.h.b16 %v241
    %v2088 = vunpack.c.l.b16 %v242
    %v2089 = vunpack.c.h.b16 %v242
    %v2090 = vunpack.c.l.b16 %v243
    %v2091 = vunpack.c.l.b16 %v244
    %v2092 = vunpack.c.h.b16 %v244
    %v2093 = vunpack.c.l.b16 %v245
    %v2094 = vunpack.c.h.b16 %v245
    %v2095 = vunpack.c.l.b16 %v246
    %v2096 = vunpack.c.l.b16 %v247
    %v2097 = vunpack.c.h.b16 %v247
    %v2098 = vunpack.c.l.b16 %v248
    %v2099 = vunpack.c.h.b16 %v248
    %v2100 = vunpack.c.l.b16 %v249
    %v2101 = vunpack.c.l.b16 %v250
    %v2102 = vunpack.c.h.b16 %v250
    %v2103 = vunpack.c.l.b16 %v251
    %v2104 = vunpack.c.h.b16 %v251
    %v2105 = vunpack.c.l.b16 %v252
    %v2106 = vunpack.c.l.b16 %v253
    %v2107 = vunpack.c.h.b16 %v253
    %v2108 = vunpack.c.l.b16 %v254
    %v2109 = vunpack.c.h.b16 %v254
    %v2110 = vunpack.c.l.b16 %v255
    %v2111 = vunpack.c.l.b16 %v256
    %v2112 = vunpack.c.h.b16 %v256
    %v2113 = vunpack.c.l.b16 %v257
    %v2114 = vunpack.c.h.b16 %v257
    %v2115 = vunpack.c.l.b16 %v258
    %v2116 = vunpack.c.l.b16 %v259
    %v2117 = vunpack.c.h.b16 %v259
    %v2118 = vunpack.c.l.b16 %v260
    %v2119 = vunpack.c.h.b16 %v260
    %v2120 = vunpack.c.l.b16 %v261
    %v2121 = vunpack.c.l.b16 %v262
    %v2122 = vunpack.c.h.b16 %v262
    %v2123 = vunpack.c.l.b16 %v263
    %v2124 = vunpack.c.h.b16 %v263
    %v2125 = vunpack.c.l.b16 %v264
    %v2126 = vunpack.c.l.b16 %v265
    %v2127 = vunpack.c.h.b16 %v265
    %v2128 = vunpack.c.l.b16 %v266
    %v2129 = vunpack.c.h.b16 %v266
    %v2130 = vunpack.c.l.b16 %v267
    %v2131 = vunpack.c.l.b16 %v268
    %v2132 = vunpack.c.h.b16 %v268
    %v2133 = vunpack.c.l.b16 %v269
    %v2134 = vunpack.c.h.b16 %v269
    %v2135 = vunpack.c.l.b16 %v270
    %v2136 = vunpack.c.l.b16 %v271
    %v2137 = vunpack.c.h.b16 %v271
    %v2138 = vunpack.c.l.b16 %v272
    %v2139 = vunpack.c.h.b16 %v272
    %v2140 = vunpack.c.l.b16 %v273
    %v2141 = vunpack.c.l.b16 %v274
    %v2142 = vunpack.c.h.b16 %v274
    %v2143 = vunpack.c.l.b16 %v275
    %v2144 = vunpack.c.h.b16 %v275
    %v2145 = vunpack.c.l.b16 %v276
    %v2146 = vunpack.c.l.b16 %v277
    %v2147 = vunpack.c.h.b16 %v277
    %v2148 = vunpack.c.l.b16 %v278
    %v2149 = vunpack.c.h.b16 %v278
    %v2150 = vunpack.c.l.b16 %v279
    %v2151 = vunpack.c.l.b16 %v280
    %v2152 = vunpack.c.h.b16 %v280
    %v2153 = vunpack.c.l.b16 %v281
    %v2154 = vunpack.c.h.b16 %v281
    %v2155 = vunpack.c.l.b16 %v282
    %v2156 = vunpack.c.l.b16 %v283
    %v2157 = vunpack.c.h.b16 %v283
    %v2158 = vunpack.c.l.b16 %v284
    %v2159 = vunpack.c.h.b16 %v284
    %v2160 = vunpack.c.l.b16 %v285
    %v2161 = vunpack.c.l.b16 %v286
    %v2162 = vunpack.c.h.b16 %v286
    %v2163 = vunpack.c.l.b16 %v287
    %v2164 = vunpack.c.h.b16 %v287
    %v2165 = vunpack.c.l.b16 %v288
    %v2166 = vunpack.c.l.b16 %v289
    %v2167 = vunpack.c.h.b16 %v289
    %v2168 = vunpack.c.l.b16 %v290
    %v2169 = vunpack.c.h.b16 %v290
    %v2170 = vunpack.c.l.b16 %v291
    %v2171 = vunpack.c.l.b16 %v292
    %v2172 = vunpack.c.h.b16 %v292
    %v2173 = vunpack.c.l.b16 %v293
    %v2174 = vunpack.c.h.b16 %v293
    %v2175 = vunpack.c.l.b16 %v294
    %v2176 = vunpack.c.l.b16 %v295
    %v2177 = vunpack.c.h.b16 %v295
    %v2178 = vunpack.c.l.b16 %v296
    %v2179 = vunpack.c.h.b16 %v296
    %v2180 = vunpack.c.l.b16 %v297
    %v2181 = vunpack.c.l.b16 %v298
    %v2182 = vunpack.c.h.b16 %v298
    %v2183 = vunpack.c.l.b16 %v299
    %v2184 = vunpack.c.h.b16 %v299
    %v2185 = vunpack.c.l.b16 %v300
    %v2186 = vunpack.c.l.b16 %v301
    %v2187 = vunpack.c.h.b16 %v301
    %v2188 = vunpack.c.l.b16 %v302
    %v2189 = vunpack.c.h.b16 %v302
    %v2190 = vunpack.c.l.b16 %v303
    %v2191 = vunpack.c.l.b16 %v304
    %v2192 = vunpack.c.h.b16 %v304
    %v2193 = vunpack.c.l.b16 %v305
    %v2194 = vunpack.c.h.b16 %v305
    %v2195 = vunpack.c.l.b16 %v306
    %v2196 = vunpack.c.l.b16 %v307
    %v2197 = vunpack.c.h.b16 %v307
    %v2198 = vunpack.c.l.b16 %v308
    %v2199 = vunpack.c.h.b16 %v308
    %v2200 = vunpack.c.l.b16 %v309
    %v2201 = vunpack.c.l.b16 %v310
    %v2202 = vunpack.c.h.b16 %v310
    %v2203 = vunpack.c.l.b16 %v311
    %v2204 = vunpack.c.h.b16 %v311
    %v2205 = vunpack.c.l.b16 %v312
    %v2206 = vunpack.c.l.b16 %v313
    %v2207 = vunpack.c.h.b16 %v313
    %v2208 = vunpack.c.l.b16 %v314
    %v2209 = vunpack.c.h.b16 %v314
    %v2210 = vunpack.c.l.b16 %v315
    %v2211 = vunpack.c.l.b16 %v316
    %v2212 = vunpack.c.h.b16 %v316
    %v2213 = vunpack.c.l.b16 %v317
    %v2214 = vunpack.c.h.b16 %v317
    %v2215 = vunpack.c.l.b16 %v318
    %v2216 = vunpack.c.l.b16 %v319
    %v2217 = vunpack.c.h.b16 %v319
    %v2218 = vunpack.c.l.b16 %v320
    %v2219 = vunpack.c.h.b16 %v320
    %v2220 = vunpack.c.l.b16 %v321
    %v2221 = vunpack.c.l.b16 %v322
    %v2222 = vunpack.c.h.b16 %v322
    %v2223 = vunpack.c.l.b16 %v323
    %v2224 = vunpack.c.h.b16 %v323
    %v2225 = vunpack.c.l.b16 %v324
    %v2226 = vunpack.c.l.b16 %v325
    %v2227 = vunpack.c.h.b16 %v325
    %v2228 = vunpack.c.l.b16 %v326
    %v2229 = vunpack.c.h.b16 %v326
    %v2230 = vunpack.c.l.b16 %v327
    %v2231 = vunpack.c.l.b16 %v328
    %v2232 = vunpack.c.h.b16 %v328
    %v2233 = vunpack.c.l.b16 %v329
    %v2234 = vunpack.c.h.b16 %v329
    %v2235 = vunpack.c.l.b16 %v330
    %v2236 = vunpack.c.l.b16 %v331
    %v2237 = vunpack.c.h.b16 %v331
    %v2238 = vunpack.c.l.b16 %v332
    %v2239 = vunpack.c.h.b16 %v332
    %v2240 = vunpack.c.l.b16 %v333
    %v2241 = vunpack.c.l.b16 %v334
    %v2242 = vunpack.c.h.b16 %v334
    %v2243 = vunpack.c.l.b16 %v335
    %v2244 = vunpack.c.h.b16 %v335
    %v2245 = vunpack.c.l.b16 %v336
    %v2246 = vunpack.c.l.b16 %v337
    %v2247 = vunpack.c.h.b16 %v337
    %v2248 = vunpack.c.l.b16 %v338
    %v2249 = vunpack.c.h.b16 %v338
    %v2250 = vunpack.c.l.b16 %v339
    %v2251 = vunpack.c.l.b16 %v340
    %v2252 = vunpack.c.h.b16 %v340
    %v2253 = vunpack.c.l.b16 %v341
    %v2254 = vunpack.c.h.b16 %v341
    %v2255 = vunpack.c.l.b16 %v342
    %v2256 = vunpack.c.l.b16 %v343
    %v2257 = vunpack.c.h.b16 %v343
    %v2258 = vunpack.c.l.b16 %v344
    %v2259 = vunpack.c.h.b16 %v344
    %v2260 = vunpack.c.l.b16 %v345
    %v2261 = vunpack.c.l.b16 %v346
    %v2262 = vunpack.c.h.b16 %v346
    %v2263 = vunpack.c.l.b16 %v347
    %v2264 = vunpack.c.h.b16 %v347
    %v2265 = vunpack.c.l.b16 %v348
    %v2266 = vunpack.c.l.b16 %v349
    %v2267 = vunpack.c.h.b16 %v349
    %v2268 = vunpack.c.l.b16 %v350
    %v2269 = vunpack.c.h.b16 %v350
    %v2270 = vunpack.c.l.b16 %v351
    %v2271 = vunpack.c.l.b16 %v352
    %v2272 = vunpack.c.h.b16 %v352
    %v2273 = vunpack.c.l.b16 %v353
    %v2274 = vunpack.c.h.b16 %v353
    %v2275 = vunpack.c.l.b16 %v354
    %v2276 = vunpack.c.l.b16 %v355
    %v2277 = vunpack.c.h.b16 %v355
    %v2278 = vunpack.c.l.b16 %v356
    %v2279 = vunpack.c.h.b16 %v356
    %v2280 = vunpack.c.l.b16 %v357
    %v2281 = vunpack.c.l.b16 %v358
    %v2282 = vunpack.c.h.b16 %v358
    %v2283 = vunpack.c.l.b16 %v359
    %v2284 = vunpack.c.h.b16 %v359
    %v2285 = vunpack.c.l.b16 %v360
    %v2286 = vunpack.c.l.b16 %v361
    %v2287 = vunpack.c.h.b16 %v361
    %v2288 = vunpack.c.l.b16 %v362
    %v2289 = vunpack.c.h.b16 %v362
    %v2290 = vunpack.c.l.b16 %v363
    %v2291 = vunpack.c.l.b16 %v364
    %v2292 = vunpack.c.h.b16 %v364
    %v2293 = vunpack.c.l.b16 %v365
    %v2294 = vunpack.c.h.b16 %v365
    %v2295 = vunpack.c.l.b16 %v366
    %v2296 = vunpack.c.l.b16 %v367
    %v2297 = vunpack.c.h.b16 %v367
    %v2298 = vunpack.c.l.b16 %v368
    %v2299 = vunpack.c.h.b16 %v368
    %v2300 = vunpack.c.l.b16 %v369
    %v2301 = vunpack.c.l.b16 %v370
    %v2302 = vunpack.c.h.b16 %v370
    %v2303 = vunpack.c.l.b16 %v371
    %v2304 = vunpack.c.h.b16 %v371
    %v2305 = vunpack.c.l.b16 %v372
    %v2306 = vunpack.c.l.b16 %v373
    %v2307 = vunpack.c.h.b16 %v373
    %v2308 = vunpack.c.l.b16 %v374
    %v2309 = vunpack.c.h.b16 %v374
    %v2310 = vunpack.c.l.b16 %v375
    %v2311 = vunpack.c.l.b16 %v376
    %v2312 = vunpack.c.h.b16 %v376
    %v2313 = vunpack.c.l.b16 %v377
    %v2314 = vunpack.c.h.b16 %v377
    %v2315 = vunpack.c.l.b16 %v378
    %v2316 = vunpack.c.l.b16 %v379
    %v2317 = vunpack.c.h.b16 %v379
    %v2318 = vunpack.c.l.b16 %v380
    %v2319 = vunpack.c.h.b16 %v380
    %v2320 = vunpack.c.l.b16 %v381
    %v2321 = vunpack.c.l.b16 %v382
    %v2322 = vunpack.c.h.b16 %v382
    %v2323 = vunpack.c.l.b16 %v383
    %v2324 = vunpack.c.h.b16 %v383
    %v2325 = vunpack.c.l.b16 %v384
    %v2326 = vunpack.c.l.b16 %v385
    %v2327 = vunpack.c.h.b16 %v385
    %v2328 = vunpack.c.l.b16 %v386
    %v2329 = vunpack.c.h.b16 %v386
    %v2330 = vunpack.c.l.b16 %v387
    %v2331 = vunpack.c.l.b16 %v388
    %v2332 = vunpack.c.h.b16 %v388
    %v2333 = vunpack.c.l.b16 %v389
    %v2334 = vunpack.c.h.b16 %v389
    %v2335 = vunpack.c.l.b16 %v390
    %v2336 = vunpack.c.l.b16 %v391
    %v2337 = vunpack.c.h.b16 %v391
    %v2338 = vunpack.c.l.b16 %v392
    %v2339 = vunpack.c.h.b16 %v392
    %v2340 = vunpack.c.l.b16 %v393
    %v2341 = vunpack.c.l.b16 %v394
    %v2342 = vunpack.c.h.b16 %v394
    %v2343 = vunpack.c.l.b16 %v395
    %v2344 = vunpack.c.h.b16 %v395
    %v2345 = vunpack.c.l.b16 %v396
    %v2346 = vunpack.c.l.b16 %v397
    %v2347 = vunpack.c.h.b16 %v397
    %v2348 = vunpack.c.l.b16 %v398
    %v2349 = vunpack.c.h.b16 %v398
    %v2350 = vunpack.c.l.b16 %v399
    %v2351 = vunpack.c.l.b16 %v400
    %v2352 = vunpack.c.h.b16 %v400
    %v2353 = vunpack.c.l.b16 %v401
    %v2354 = vunpack.c.h.b16 %v401
    %v2355 = vunpack.c.l.b16 %v402
    %v2356 = vunpack.c.l.b16 %v403
    %v2357 = vunpack.c.h.b16 %v403
    %v2358 = vunpack.c.l.b16 %v404
    %v2359 = vunpack.c.h.b16 %v404
    %v2360 = vunpack.c.l.b16 %v405
    %v2361 = vunpack.c.l.b16 %v406
    %v2362 = vunpack.c.h.b16 %v406
    %v2363 = vunpack.c.l.b16 %v407
    %v2364 = vunpack.c.h.b16 %v407
    %v2365 = vunpack.c.l.b16 %v408
    %v2366 = vunpack.c.l.b16 %v409
    %v2367 = vunpack.c.h.b16 %v409
    %v2368 = vunpack.c.l.b16 %v410
    %v2369 = vunpack.c.h.b16 %v410
    %v2370 = vunpack.c.l.b16 %v411
    %v2371 = vunpack.c.l.b16 %v412
    %v2372 = vunpack.c.h.b16 %v412
    %v2373 = vunpack.c.l.b16 %v413
    %v2374 = vunpack.c.h.b16 %v413
    %v2375 = vunpack.c.l.b16 %v414
    %v2376 = vunpack.c.l.b16 %v415
    %v2377 = vunpack.c.h.b16 %v415
    %v2378 = vunpack.c.l.b16 %v416
    %v2379 = vunpack.c.h.b16 %v416
    %v2380 = vunpack.c.l.b16 %v417
    %v2381 = vunpack.c.l.b16 %v418
    %v2382 = vunpack.c.h.b16 %v418
    %v2383 = vunpack.c.l.b16 %v419
    %v2384 = vunpack.c.h.b16 %v419
    %v2385 = vunpack.c.l.b16 %v420
    %v2386 = vunpack.c.l.b16 %v421
    %v2387 = vunpack.c.h.b16 %v421
    %v2388 = vunpack.c.l.b16 %v422
    %v2389 = vunpack.c.h.b16 %v422
    %v2390 = vunpack.c.l.b16 %v423
    %v2391 = vunpack.c.l.b16 %v424
    %v2392 = vunpack.c.h.b16 %v424
    %v2393 = vunpack.c.l.b16 %v425
    %v2394 = vunpack.c.h.b16 %v425
    %v2395 = vunpack.c.l.b16 %v426
    %v2396 = vunpack.c.l.b16 %v427
    %v2397 = vunpack.c.h.b16 %v427
    %v2398 = vunpack.c.l.b16 %v428
    %v2399 = vunpack.c.h.b16 %v428
    %v2400 = vunpack.c.l.b16 %v429
    %v2401 = vunpack.c.l.b16 %v430
    %v2402 = vunpack.c.h.b16 %v430
    %v2403 = vunpack.c.l.b16 %v431
    %v2404 = vunpack.c.h.b16 %v431
    %v2405 = vunpack.c.l.b16 %v432
    %v2406 = vunpack.c.l.b16 %v433
    %v2407 = vunpack.c.h.b16 %v433
    %v2408 = vunpack.c.l.b16 %v434
    %v2409 = vunpack.c.h.b16 %v434
    %v2410 = vunpack.c.l.b16 %v435
    %v2411 = vunpack.c.l.b16 %v436
    %v2412 = vunpack.c.h.b16 %v436
    %v2413 = vunpack.c.l.b16 %v437
    %v2414 = vunpack.c.h.b16 %v437
    %v2415 = vunpack.c.l.b16 %v438
    %v2416 = vunpack.c.l.b16 %v439
    %v2417 = vunpack.c.h.b16 %v439
    %v2418 = vunpack.c.l.b16 %v440
    %v2419 = vunpack.c.h.b16 %v440
    %v2420 = vunpack.c.l.b16 %v441
    %v2421 = vunpack.c.l.b16 %v442
    %v2422 = vunpack.c.h.b16 %v442
    %v2423 = vunpack.c.l.b16 %v443
    %v2424 = vunpack.c.h.b16 %v443
    %v2425 = vunpack.c.l.b16 %v444
    %v2426 = vunpack.c.l.b16 %v445
    %v2427 = vunpack.c.h.b16 %v445
    %v2428 = vunpack.c.l.b16 %v446
    %v2429 = vunpack.c.h.b16 %v446
    %v2430 = vunpack.c.l.b16 %v447
    %v2431 = vunpack.c.l.b16 %v448
    %v2432 = vunpack.c.h.b16 %v448
    %v2433 = vunpack.c.l.b16 %v449
    %v2434 = vunpack.c.h.b16 %v449
    %v2435 = vunpack.c.l.b16 %v450
    %v2436 = vunpack.c.l.b16 %v451
    %v2437 = vunpack.c.h.b16 %v451
    %v2438 = vunpack.c.l.b16 %v452
    %v2439 = vunpack.c.h.b16 %v452
    %v2440 = vunpack.c.l.b16 %v453
    %v2441 = vunpack.c.l.b16 %v454
    %v2442 = vunpack.c.h.b16 %v454
    %v2443 = vunpack.c.l.b16 %v455
    %v2444 = vunpack.c.h.b16 %v455
    %v2445 = vunpack.c.l.b16 %v456
    %v2446 = vunpack.c.l.b16 %v457
    %v2447 = vunpack.c.h.b16 %v457
    %v2448 = vunpack.c.l.b16 %v458
    %v2449 = vunpack.c.h.b16 %v458
    %v2450 = vunpack.c.l.b16 %v459
    %v2451 = vunpack.c.l.b16 %v460
    %v2452 = vunpack.c.h.b16 %v460
    %v2453 = vunpack.c.l.b16 %v461
    %v2454 = vunpack.c.h.b16 %v461
    %v2455 = vunpack.c.l.b16 %v462
    %v2456 = vunpack.c.l.b16 %v463
    %v2457 = vunpack.c.h.b16 %v463
    %v2458 = vunpack.c.l.b16 %v464
    %v2459 = vunpack.c.h.b16 %v464
    %v2460 = vunpack.c.l.b16 %v465
    %v2461 = vunpack.c.l.b16 %v466
    %v2462 = vunpack.c.h.b16 %v466
    %v2463 = vunpack.c.l.b16 %v467
    %v2464 = vunpack.c.h.b16 %v467
    %v2465 = vunpack.c.l.b16 %v468
    %v2466 = vunpack.c.l.b16 %v469
    %v2467 = vunpack.c.h.b16 %v469
    %v2468 = vunpack.c.l.b16 %v470
    %v2469 = vunpack.c.h.b16 %v470
    %v2470 = vunpack.c.l.b16 %v471
    %v2471 = vunpack.c.l.b16 %v472
    %v2472 = vunpack.c.h.b16 %v472
    %v2473 = vunpack.c.l.b16 %v473
    %v2474 = vunpack.c.h.b16 %v473
    %v2475 = vunpack.c.l.b16 %v474
    %v2476 = vunpack.c.l.b16 %v475
    %v2477 = vunpack.c.h.b16 %v475
    %v2478 = vunpack.c.l.b16 %v476
    %v2479 = vunpack.c.h.b16 %v476
    %v2480 = vunpack.c.l.b16 %v477
    %v2481 = vunpack.c.l.b16 %v478
    %v2482 = vunpack.c.h.b16 %v478
    %v2483 = vunpack.c.l.b16 %v479
    %v2484 = vunpack.c.h.b16 %v479
    %v2485 = vunpack.c.l.b16 %v480
    %v2486 = vunpack.c.l.b16 %v481
    %v2487 = vunpack.c.h.b16 %v481
    %v2488 = vunpack.c.l.b16 %v482
    %v2489 = vunpack.c.h.b16 %v482
    %v2490 = vunpack.c.l.b16 %v483
    %v2491 = vunpack.c.l.b16 %v484
    %v2492 = vunpack.c.h.b16 %v484
    %v2493 = vunpack.c.l.b16 %v485
    %v2494 = vunpack.c.h.b16 %v485
    %v2495 = vunpack.c.l.b16 %v486
    %v2496 = vunpack.c.l.b16 %v487
    %v2497 = vunpack.c.h.b16 %v487
    %v2498 = vunpack.c.l.b16 %v488
    %v2499 = vunpack.c.h.b16 %v488
    %v2500 = vunpack.c.l.b16 %v489
    %v2501 = vunpack.c.l.b16 %v490
    %v2502 = vunpack.c.h.b16 %v490
    %v2503 = vunpack.c.l.b16 %v491
    %v2504 = vunpack.c.h.b16 %v491
    %v2505 = vunpack.c.l.b16 %v492
    %v2506 = vunpack.c.l.b16 %v493
    %v2507 = vunpack.c.h.b16 %v493
    %v2508 = vunpack.c.l.b16 %v494
    %v2509 = vunpack.c.h.b16 %v494
    %v2510 = vunpack.c.l.b16 %v495
    %v2511 = vunpack.c.l.b16 %v496
    %v2512 = vunpack.c.h.b16 %v496
    %v2513 = vunpack.c.l.b16 %v497
    %v2514 = vunpack.c.h.b16 %v497
    %v2515 = vunpack.c.l.b16 %v498
    %v2516 = vunpack.c.l.b16 %v499
    %v2517 = vunpack.c.h.b16 %v499
    %v2518 = vunpack.c.l.b16 %v500
    %v2519 = vunpack.c.h.b16 %v500
    %v2520 = vunpack.c.l.b16 %v501
    %v2521 = vunpack.c.l.b16 %v502
    %v2522 = vunpack.c.h.b16 %v502
    %v2523 = vunpack.c.l.b16 %v503
    %v2524 = vunpack.c.h.b16 %v503
    %v2525 = vunpack.c.l.b16 %v504
    %v2526 = vunpack.c.l.b16 %v505
    %v2527 = vunpack.c.h.b16 %v505
    %v2528 = vunpack.c.l.b16 %v506
    %v2529 = vunpack.c.h.b16 %v506
    %v2530 = vunpack.c.l.b16 %v507
    %v2531 = vunpack.c.l.b16 %v508
    %v2532 = vunpack.c.h.b16 %v508
    %v2533 = vunpack.c.l.b16 %v509
    %v2534 = vunpack.c.h.b16 %v509
    %v2535 = vunpack.c.l.b16 %v510
    %v2536 = vunpack.c.l.b16 %v511
    %v2537 = vunpack.c.h.b16 %v511
    %v2538 = vunpack.c.l.b16 %v512
    %v2539 = vunpack.c.h.b16 %v512
    %v2540 = vunpack.c.l.b16 %v513
    %v2541 = vunpack.c.l.b16 %v514
    %v2542 = vunpack.c.h.b16 %v514
    %v2543 = vunpack.c.l.b16 %v515
    %v2544 = vunpack.c.h.b16 %v515
    %v2545 = vunpack.c.l.b16 %v516
    %v2546 = vunpack.c.l.b16 %v517
    %v2547 = vunpack.c.h.b16 %v517
    %v2548 = vunpack.c.l.b16 %v518
    %v2549 = vunpack.c.h.b16 %v518
    %v2550 = vunpack.c.l.b16 %v519
    %v2551 = vunpack.c.l.b16 %v520
    %v2552 = vunpack.c.h.b16 %v520
    %v2553 = vunpack.c.l.b16 %v521
    %v2554 = vunpack.c.h.b16 %v521
    %v2555 = vunpack.c.l.b16 %v522
    %v2556 = vunpack.c.l.b16 %v523
    %v2557 = vunpack.c.h.b16 %v523
    %v2558 = vunpack.c.l.b16 %v524
    %v2559 = vunpack.c.h.b16 %v524
    %v2560 = vunpack.c.l.b16 %v525
    %v2561 = vunpack.c.l.b16 %v526
    %v2562 = vunpack.c.h.b16 %v526
    %v2563 = vunpack.c.l.b16 %v527
    %v2564 = vunpack.c.h.b16 %v527
    %v2565 = vunpack.c.l.b16 %v528
    %v2566 = vunpack.c.l.b16 %v529
    %v2567 = vunpack.c.h.b16 %v529
    %v2568 = vunpack.c.l.b16 %v530
    %v2569 = vunpack.c.h.b16 %v530
    %v2570 = vunpack.c.l.b16 %v531
    %v2571 = vunpack.c.l.b16 %v532
    %v2572 = vunpack.c.h.b16 %v532
    %v2573 = vunpack.c.l.b16 %v533
    %v2574 = vunpack.c.h.b16 %v533
    %v2575 = vunpack.c.l.b16 %v534
    %v2576 = vunpack.c.l.b16 %v535
    %v2577 = vunpack.c.h.b16 %v535
    %v2578 = vunpack.c.l.b16 %v536
    %v2579 = vunpack.c.h.b16 %v536
    %v2580 = vunpack.c.l.b16 %v537
    %v2581 = vunpack.c.l.b16 %v538
    %v2582 = vunpack.c.h.b16 %v538
    %v2583 = vunpack.c.l.b16 %v539
    %v2584 = vunpack.c.h.b16 %v539
    %v2585 = vunpack.c.l.b16 %v540
    %v2586 = vunpack.c.l.b16 %v541
    %v2587 = vunpack.c.h.b16 %v541
    %v2588 = vunpack.c.l.b16 %v542
    %v2589 = vunpack.c.h.b16 %v542
    %v2590 = vunpack.c.l.b16 %v543
    %v2591 = vunpack.c.l.b16 %v544
    %v2592 = vunpack.c.h.b16 %v544
    %v2593 = vunpack.c.l.b16 %v545
    %v2594 = vunpack.c.h.b16 %v545
    %v2595 = vunpack.c.l.b16 %v546
    %v2596 = vunpack.c.l.b16 %v547
    %v2597 = vunpack.c.h.b16 %v547
    %v2598 = vunpack.c.l.b16 %v548
    %v2599 = vunpack.c.h.b16 %v548
    %v2600 = vunpack.c.l.b16 %v549
    %v2601 = vunpack.c.l.b16 %v550
    %v2602 = vunpack.c.h.b16 %v550
    %v2603 = vunpack.c.l.b16 %v551
    %v2604 = vunpack.c.h.b16 %v551
    %v2605 = vunpack.c.l.b16 %v552
    %v2606 = vunpack.c.l.b16 %v553
    %v2607 = vunpack.c.h.b16 %v553
    %v2608 = vunpack.c.l.b16 %v554
    %v2609 = vunpack.c.h.b16 %v554
    %v2610 = vunpack.c.l.b16 %v555
    %v2611 = vunpack.c.l.b16 %v556
    %v2612 = vunpack.c.h.b16 %v556
    %v2613 = vunpack.c.l.b16 %v557
    %v2614 = vunpack.c.h.b16 %v557
    %v2615 = vunpack.c.l.b16 %v558
    %v2616 = vunpack.c.l.b16 %v559
    %v2617 = vunpack.c.h.b16 %v559
    %v2618 = vunpack.c.l.b16 %v560
    %v2619 = vunpack.c.h.b16 %v560
    %v2620 = vunpack.c.l.b16 %v561
    %v2621 = vunpack.c.l.b16 %v562
    %v2622 = vunpack.c.h.b16 %v562
    %v2623 = vunpack.c.l.b16 %v563
    %v2624 = vunpack.c.h.b16 %v563
    %v2625 = vunpack.c.l.b16 %v564
    %v2626 = vunpack.c.l.b16 %v565
    %v2627 = vunpack.c.h.b16 %v565
    %v2628 = vunpack.c.l.b16 %v566
    %v2629 = vunpack.c.h.b16 %v566
    %v2630 = vunpack.c.l.b16 %v567
    %v2631 = vunpack.c.l.b16 %v568
    %v2632 = vunpack.c.h.b16 %v568
    %v2633 = vunpack.c.l.b16 %v569
    %v2634 = vunpack.c.h.b16 %v569
    %v2635 = vunpack.c.l.b16 %v570
    %v2636 = vunpack.c.l.b16 %v571
    %v2637 = vunpack.c.h.b16 %v571
    %v2638 = vunpack.c.l.b16 %v572
    %v2639 = vunpack.c.h.b16 %v572
    %v2640 = vunpack.c.l.b16 %v573
    %v2641 = vunpack.c.l.b16 %v574
    %v2642 = vunpack.c.h.b16 %v574
    %v2643 = vunpack.c.l.b16 %v575
    %v2644 = vunpack.c.h.b16 %v575
    %v2645 = vunpack.c.l.b16 %v576
    %v2646 = vunpack.c.l.b16 %v577
    %v2647 = vunpack.c.h.b16 %v577
    %v2648 = vunpack.c.l.b16 %v578
    %v2649 = vunpack.c.h.b16 %v578
    %v2650 = vunpack.c.l.b16 %v579
    %v2651 = vunpack.c.l.b16 %v580
    %v2652 = vunpack.c.h.b16 %v580
    %v2653 = vunpack.c.l.b16 %v581
    %v2654 = vunpack.c.h.b16 %v581
    %v2655 = vunpack.c.l.b16 %v582
    %v2656 = vunpack.c.l.b16 %v583
    %v2657 = vunpack.c.h.b16 %v583
    %v2658 = vunpack.c.l.b16 %v584
    %v2659 = vunpack.c.h.b16 %v584
    %v2660 = vunpack.c.l.b16 %v585
    %v2661 = vunpack.c.l.b16 %v586
    %v2662 = vunpack.c.h.b16 %v586
    %v2663 = vunpack.c.l.b16 %v587
    %v2664 = vunpack.c.h.b16 %v587
    %v2665 = vunpack.c.l.b16 %v588
    %v2666 = vunpack.c.l.b16 %v589
    %v2667 = vunpack.c.h.b16 %v589
    %v2668 = vunpack.c.l.b16 %v590
    %v2669 = vunpack.c.h.b16 %v590
    %v2670 = vunpack.c.l.b16 %v591
    %v2671 = vunpack.c.l.b16 %v592
    %v2672 = vunpack.c.h.b16 %v592
    %v2673 = vunpack.c.l.b16 %v593
    %v2674 = vunpack.c.h.b16 %v593
    %v2675 = vunpack.c.l.b16 %v594
    %v2676 = vunpack.c.l.b16 %v595
    %v2677 = vunpack.c.h.b16 %v595
    %v2678 = vunpack.c.l.b16 %v596
    %v2679 = vunpack.c.h.b16 %v596
    %v2680 = vunpack.c.l.b16 %v597
    %v2681 = vunpack.c.l.b16 %v598
    %v2682 = vunpack.c.h.b16 %v598
    %v2683 = vunpack.c.l.b16 %v599
    %v2684 = vunpack.c.h.b16 %v599
    %v2685 = vunpack.c.l.b16 %v600
    %v2686 = vunpack.c.l.b16 %v601
    %v2687 = vunpack.c.h.b16 %v601
    %v2688 = vunpack.c.l.b16 %v602
    %v2689 = vunpack.c.h.b16 %v602
    %v2690 = vunpack.c.l.b16 %v603
    %v2691 = vunpack.c.l.b16 %v604
    %v2692 = vunpack.c.h.b16 %v604
    %v2693 = vunpack.c.l.b16 %v605
    %v2694 = vunpack.c.h.b16 %v605
    %v2695 = vunpack.c.l.b16 %v606
    %v2696 = vunpack.c.l.b16 %v607
    %v2697 = vunpack.c.h.b16 %v607
    %v2698 = vunpack.c.l.b16 %v608
    %v2699 = vunpack.c.h.b16 %v608
    %v2700 = vunpack.c.l.b16 %v609
    %v2701 = vunpack.c.l.b16 %v610
    %v2702 = vunpack.c.h.b16 %v610
    %v2703 = vunpack.c.l.b16 %v611
    %v2704 = vunpack.c.h.b16 %v611
    %v2705 = vunpack.c.l.b16 %v612
    %v2706 = vunpack.c.l.b16 %v613
    %v2707 = vunpack.c.h.b16 %v613
    %v2708 = vunpack.c.l.b16 %v614
    %v2709 = vunpack.c.h.b16 %v614
    %v2710 = vunpack.c.l.b16 %v615
    %v2711 = vunpack.c.l.b16 %v616
    %v2712 = vunpack.c.h.b16 %v616
    %v2713 = vunpack.c.l.b16 %v617
    %v2714 = vunpack.c.h.b16 %v617
    %v2715 = vunpack.c.l.b16 %v618
    %v2716 = vunpack.c.l.b16 %v619
    %v2717 = vunpack.c.h.b16 %v619
    %v2718 = vunpack.c.l.b16 %v620
    %v2719 = vunpack.c.h.b16 %v620
    %v2720 = vunpack.c.l.b16 %v621
    %v2721 = vunpack.c.l.b16 %v622
    %v2722 = vunpack.c.h.b16 %v622
    %v2723 = vunpack.c.l.b16 %v623
    %v2724 = vunpack.c.h.b16 %v623
    %v2725 = vunpack.c.l.b16 %v624
    %v2726 = vunpack.c.l.b16 %v625
    %v2727 = vunpack.c.h.b16 %v625
    %v2728 = vunpack.c.l.b16 %v626
    %v2729 = vunpack.c.h.b16 %v626
    %v2730 = vunpack.c.l.b16 %v627
    %v2731 = vunpack.c.l.b16 %v628
    %v2732 = vunpack.c.h.b16 %v628
    %v2733 = vunpack.c.l.b16 %v629
    %v2734 = vunpack.c.h.b16 %v629
    %v2735 = vunpack.c.l.b16 %v630
    %v2736 = vunpack.c.l.b16 %v631
    %v2737 = vunpack.c.h.b16 %v631
    %v2738 = vunpack.c.l.b16 %v632
    %v2739 = vunpack.c.h.b16 %v632
    %v2740 = vunpack.c.l.b16 %v633
    %v2741 = vunpack.c.l.b16 %v634
    %v2742 = vunpack.c.h.b16 %v634
    %v2743 = vunpack.c.l.b16 %v635
    %v2744 = vunpack.c.h.b16 %v635
    %v2745 = vunpack.c.l.b16 %v636
    %v2746 = vunpack.c.l.b16 %v637
    %v2747 = vunpack.c.h.b16 %v637
    %v2748 = vunpack.c.l.b16 %v638
    %v2749 = vunpack.c.h.b16 %v638
    %v2750 = vunpack.c.l.b16 %v639
    %v2751 = vunpack.c.l.b16 %v640
    %v2752 = vunpack.c.h.b16 %v640
    %v2753 = vunpack.c.l.b16 %v641
    %v2754 = vunpack.c.h.b16 %v641
    %v2755 = vunpack.c.l.b16 %v642
    %v2756 = vunpack.c.l.b16 %v643
    %v2757 = vunpack.c.h.b16 %v643
    %v2758 = vunpack.c.l.b16 %v644
    %v2759 = vunpack.c.h.b16 %v644
    %v2760 = vunpack.c.l.b16 %v645
    %v2761 = vunpack.c.l.b16 %v646
    %v2762 = vunpack.c.h.b16 %v646
    %v2763 = vunpack.c.l.b16 %v647
    %v2764 = vunpack.c.h.b16 %v647
    %v2765 = vunpack.c.l.b16 %v648
    %v2766 = vunpack.c.l.b16 %v649
    %v2767 = vunpack.c.h.b16 %v649
    %v2768 = vunpack.c.l.b16 %v650
    %v2769 = vunpack.c.h.b16 %v650
    %v2770 = vunpack.c.l.b16 %v651
    %v2771 = vunpack.c.l.b16 %v652
    %v2772 = vunpack.c.h.b16 %v652
    %v2773 = vunpack.c.l.b16 %v653
    %v2774 = vunpack.c.h.b16 %v653
    %v2775 = vunpack.c.l.b16 %v654
    %v2776 = vunpack.c.l.b16 %v655
    %v2777 = vunpack.c.h.b16 %v655
    %v2778 = vunpack.c.l.b16 %v656
    %v2779 = vunpack.c.h.b16 %v656
    %v2780 = vunpack.c.l.b16 %v657
    %v2781 = vunpack.c.l.b16 %v658
    %v2782 = vunpack.c.h.b16 %v658
    %v2783 = vunpack.c.l.b16 %v659
    %v2784 = vunpack.c.h.b16 %v659
    %v2785 = vunpack.c.l.b16 %v660
    %v2786 = vunpack.c.l.b16 %v661
    %v2787 = vunpack.c.h.b16 %v661
    %v2788 = vunpack.c.l.b16 %v662
    %v2789 = vunpack.c.h.b16 %v662
    %v2790 = vunpack.c.l.b16 %v663
    %v2791 = vunpack.c.l.b16 %v664
    %v2792 = vunpack.c.h.b16 %v664
    %v2793 = vunpack.c.l.b16 %v665
    %v2794 = vunpack.c.h.b16 %v665
    %v2795 = vunpack.c.l.b16 %v666
    %v2796 = vunpack.c.l.b16 %v667
    %v2797 = vunpack.c.h.b16 %v667
    %v2798 = vunpack.c.l.b16 %v668
    %v2799 = vunpack.c.h.b16 %v668
    %v2800 = vunpack.c.l.b16 %v669
    %v2801 = vunpack.c.l.b16 %v670
    %v2802 = vunpack.c.h.b16 %v670
    %v2803 = vunpack.c.l.b16 %v671
    %v2804 = vunpack.c.h.b16 %v671
    %v2805 = vunpack.c.l.b16 %v672
    %v2806 = vunpack.c.l.b16 %v673
    %v2807 = vunpack.c.h.b16 %v673
    %v2808 = vunpack.c.l.b16 %v674
    %v2809 = vunpack.c.h.b16 %v674
    %v2810 = vunpack.c.l.b16 %v675
    %v2811 = vunpack.c.l.b16 %v676
    %v2812 = vunpack.c.h.b16 %v676
    %v2813 = vunpack.c.l.b16 %v677
    %v2814 = vunpack.c.h.b16 %v677
    %v2815 = vunpack.c.l.b16 %v678
    %v2816 = vunpack.c.l.b16 %v679
    %v2817 = vunpack.c.h.b16 %v679
    %v2818 = vunpack.c.l.b16 %v680
    %v2819 = vunpack.c.h.b16 %v680
    %v2820 = vunpack.c.l.b16 %v681
    %v2821 = vunpack.c.l.b16 %v682
    %v2822 = vunpack.c.h.b16 %v682
    %v2823 = vunpack.c.l.b16 %v683
    %v2824 = vunpack.c.h.b16 %v683
    %v2825 = vunpack.c.l.b16 %v684
    %v2826 = vunpack.c.l.b16 %v685
    %v2827 = vunpack.c.h.b16 %v685
    %v2828 = vunpack.c.l.b16 %v686
    %v2829 = vunpack.c.h.b16 %v686
    %v2830 = vunpack.c.l.b16 %v687
    %v2831 = vunpack.c.l.b16 %v688
    %v2832 = vunpack.c.h.b16 %v688
    %v2833 = vunpack.c.l.b16 %v689
    %v2834 = vunpack.c.h.b16 %v689
    %v2835 = vunpack.c.l.b16 %v690
    %v2836 = vunpack.c.l.b16 %v691
    %v2837 = vunpack.c.h.b16 %v691
    %v2838 = vunpack.c.l.b16 %v692
    %v2839 = vunpack.c.h.b16 %v692
    %v2840 = vunpack.c.l.b16 %v693
    %v2841 = vunpack.c.l.b16 %v694
    %v2842 = vunpack.c.h.b16 %v694
    %v2843 = vunpack.c.l.b16 %v695
    %v2844 = vunpack.c.h.b16 %v695
    %v2845 = vunpack.c.l.b16 %v696
    %v2846 = vunpack.c.l.b16 %v697
    %v2847 = vunpack.c.h.b16 %v697
    %v2848 = vunpack.c.l.b16 %v698
    %v2849 = vunpack.c.h.b16 %v698
    %v2850 = vunpack.c.l.b16 %v699
    %v2851 = vunpack.c.l.b16 %v700
    %v2852 = vunpack.c.h.b16 %v700
    %v2853 = vunpack.c.l.b16 %v701
    %v2854 = vunpack.c.h.b16 %v701
    %v2855 = vunpack.c.l.b16 %v702
    %v2856 = vunpack.c.l.b16 %v703
    %v2857 = vunpack.c.h.b16 %v703
    %v2858 = vunpack.c.l.b16 %v704
    %v2859 = vunpack.c.h.b16 %v704
    %v2860 = vunpack.c.l.b16 %v705
    %v2861 = vunpack.c.l.b16 %v706
    %v2862 = vunpack.c.h.b16 %v706
    %v2863 = vunpack.c.l.b16 %v707
    %v2864 = vunpack.c.h.b16 %v707
    %v2865 = vunpack.c.l.b16 %v708
    %v2866 = vunpack.c.l.b16 %v709
    %v2867 = vunpack.c.h.b16 %v709
    %v2868 = vunpack.c.l.b16 %v710
    %v2869 = vunpack.c.h.b16 %v710
    %v2870 = vunpack.c.l.b16 %v711
    %v2871 = vunpack.c.l.b16 %v712
    %v2872 = vunpack.c.h.b16 %v712
    %v2873 = vunpack.c.l.b16 %v713
    %v2874 = vunpack.c.h.b16 %v713
    %v2875 = vunpack.c.l.b16 %v714
    %v2876 = vunpack.c.l.b16 %v715
    %v2877 = vunpack.c.h.b16 %v715
    %v2878 = vunpack.c.l.b16 %v716
    %v2879 = vunpack.c.h.b16 %v716
    %v2880 = vunpack.c.l.b16 %v717
    %v2881 = vunpack.c.l.b16 %v718
    %v2882 = vunpack.c.h.b16 %v718
    %v2883 = vunpack.c.l.b16 %v719
    %v2884 = vunpack.c.h.b16 %v719
    %v2885 = vunpack.c.l.b16 %v720
    %v2886 = vunpack.c.l.b16 %v721
    %v2887 = vunpack.c.h.b16 %v721
    %v2888 = vunpack.c.l.b16 %v722
    %v2889 = vunpack.c.h.b16 %v722
    %v2890 = vunpack.c.l.b16 %v723
    %v2891 = vunpack.c.l.b16 %v724
    %v2892 = vunpack.c.h.b16 %v724
    %v2893 = vunpack.c.l.b16 %v725
    %v2894 = vunpack.c.h.b16 %v725
    %v2895 = vunpack.c.l.b16 %v726
    %v2896 = vunpack.c.l.b16 %v727
    %v2897 = vunpack.c.h.b16 %v727
    %v2898 = vunpack.c.l.b16 %v728
    %v2899 = vunpack.c.h.b16 %v728
    %v2900 = vunpack.c.l.b16 %v729
    %v2901 = vunpack.c.l.b16 %v730
    %v2902 = vunpack.c.h.b16 %v730
    %v2903 = vunpack.c.l.b16 %v731
    %v2904 = vunpack.c.h.b16 %v731
    %v2905 = vunpack.c.l.b16 %v732
    %v2906 = vunpack.c.l.b16 %v733
    %v2907 = vunpack.c.h.b16 %v733
    %v2908 = vunpack.c.l.b16 %v734
    %v2909 = vunpack.c.h.b16 %v734
    %v2910 = vunpack.c.l.b16 %v735
    %v2911 = vunpack.c.l.b16 %v736
    %v2912 = vunpack.c.h.b16 %v736
    %v2913 = vunpack.c.l.b16 %v737
    %v2914 = vunpack.c.h.b16 %v737
    %v2915 = vunpack.c.l.b16 %v738
    %v2916 = vunpack.c.l.b16 %v739
    %v2917 = vunpack.c.h.b16 %v739
    %v2918 = vunpack.c.l.b16 %v740
    %v2919 = vunpack.c.h.b16 %v740
    %v2920 = vunpack.c.l.b16 %v741
    %v2921 = vunpack.c.l.b16 %v742
    %v2922 = vunpack.c.h.b16 %v742
    %v2923 = vunpack.c.l.b16 %v743
    %v2924 = vunpack.c.h.b16 %v743
    %v2925 = vunpack.c.l.b16 %v744
    %v2926 = vunpack.c.l.b16 %v745
    %v2927 = vunpack.c.h.b16 %v745
    %v2928 = vunpack.c.l.b16 %v746
    %v2929 = vunpack.c.h.b16 %v746
    %v2930 = vunpack.c.l.b16 %v747
    %v2931 = vunpack.c.l.b16 %v748
    %v2932 = vunpack.c.h.b16 %v748
    %v2933 = vunpack.c.l.b16 %v749
    %v2934 = vunpack.c.h.b16 %v749
    %v2935 = vunpack.c.l.b16 %v750
    %v2936 = vunpack.c.l.b16 %v751
    %v2937 = vunpack.c.h.b16 %v751
    %v2938 = vunpack.c.l.b16 %v752
    %v2939 = vunpack.c.h.b16 %v752
    %v2940 = vunpack.c.l.b16 %v753
    %v2941 = vunpack.c.l.b16 %v754
    %v2942 = vunpack.c.h.b16 %v754
    %v2943 = vunpack.c.l.b16 %v755
    %v2944 = vunpack.c.h.b16 %v755
    %v2945 = vunpack.c.l.b16 %v756
    %v2946 = vunpack.c.l.b16 %v757
    %v2947 = vunpack.c.h.b16 %v757
    %v2948 = vunpack.c.l.b16 %v758
    %v2949 = vunpack.c.h.b16 %v758
    %v2950 = vunpack.c.l.b16 %v759
    %v2951 = vunpack.c.l.b16 %v760
    %v2952 = vunpack.c.h.b16 %v760
    %v2953 = vunpack.c.l.b16 %v761
    %v2954 = vunpack.c.h.b16 %v761
    %v2955 = vunpack.c.l.b16 %v762
    %v2956 = vunpack.c.l.b16 %v763
    %v2957 = vunpack.c.h.b16 %v763
    %v2958 = vunpack.c.l.b16 %v764
    %v2959 = vunpack.c.h.b16 %v764
    %v2960 = vunpack.c.l.b16 %v765
    %v2961 = vunpack.c.l.b16 %v766
    %v2962 = vunpack.c.h.b16 %v766
    %v2963 = vunpack.c.l.b16 %v767
    %v2964 = vunpack.c.h.b16 %v767
    %v2965 = vunpack.c.l.b16 %v768
    %v2966 = vunpack.c.l.b16 %v769
    %v2967 = vunpack.c.h.b16 %v769
    %v2968 = vunpack.c.l.b16 %v770
    %v2969 = vunpack.c.h.b16 %v770
    %v2970 = vunpack.c.l.b16 %v771
    %v2971 = vunpack.c.l.b16 %v772
    %v2972 = vunpack.c.h.b16 %v772
    %v2973 = vunpack.c.l.b16 %v773
    %v2974 = vunpack.c.h.b16 %v773
    %v2975 = vunpack.c.l.b16 %v774
    %v2976 = vunpack.c.l.b16 %v775
    %v2977 = vunpack.c.h.b16 %v775
    %v2978 = vunpack.c.l.b16 %v776
    %v2979 = vunpack.c.h.b16 %v776
    %v2980 = vunpack.c.l.b16 %v777
    %v2981 = vunpack.c.l.b16 %v778
    %v2982 = vunpack.c.h.b16 %v778
    %v2983 = vunpack.c.l.b16 %v779
    %v2984 = vunpack.c.h.b16 %v779
    %v2985 = vunpack.c.l.b16 %v780
    %v2986 = vunpack.c.l.b16 %v781
    %v2987 = vunpack.c.h.b16 %v781
    %v2988 = vunpack.c.l.b16 %v782
    %v2989 = vunpack.c.h.b16 %v782
    %v2990 = vunpack.c.l.b16 %v783
    %v2991 = vunpack.c.l.b16 %v784
    %v2992 = vunpack.c.h.b16 %v784
    %v2993 = vunpack.c.l.b16 %v785
    %v2994 = vunpack.c.h.b16 %v785
    %v2995 = vunpack.c.l.b16 %v786
    %v2996 = vunpack.c.l.b16 %v787
    %v2997 = vunpack.c.h.b16 %v787
    %v2998 = vunpack.c.l.b16 %v788
    %v2999 = vunpack.c.h.b16 %v788
    %v3000 = vunpack.c.l.b16 %v789
    %v3001 = vunpack.c.l.b16 %v790
    %v3002 = vunpack.c.h.b16 %v790
    %v3003 = vunpack.c.l.b16 %v791
    %v3004 = vunpack.c.h.b16 %v791
    %v3005 = vunpack.c.l.b16 %v792
    %v3006 = vunpack.c.l.b16 %v793
    %v3007 = vunpack.c.h.b16 %v793
    %v3008 = vunpack.c.l.b16 %v794
    %v3009 = vunpack.c.h.b16 %v794
    %v3010 = vunpack.c.l.b16 %v795
    %v3011 = vunpack.c.l.b16 %v796
    %v3012 = vunpack.c.h.b16 %v796
    %v3013 = vunpack.c.l.b16 %v797
    %v3014 = vunpack.c.h.b16 %v797
    %v3015 = vunpack.c.l.b16 %v798
    %v3016 = vunpack.c.l.b16 %v799
    %v3017 = vunpack.c.h.b16 %v799
    %v3018 = vunpack.c.l.b16 %v800
    %v3019 = vunpack.c.h.b16 %v800
    %v3020 = vunpack.c.l.b16 %v801
    %v3021 = vunpack.c.l.b16 %v802
    %v3022 = vunpack.c.h.b16 %v802
    %v3023 = vunpack.c.l.b16 %v803
    %v3024 = vunpack.c.h.b16 %v803
    %v3025 = vunpack.c.l.b16 %v804
    %v3026 = vunpack.c.l.b16 %v805
    %v3027 = vunpack.c.h.b16 %v805
    %v3028 = vunpack.c.l.b16 %v806
    %v3029 = vunpack.c.h.b16 %v806
    %v3030 = vunpack.c.l.b16 %v807
    %v3031 = vunpack.c.l.b16 %v808
    %v3032 = vunpack.c.h.b16 %v808
    %v3033 = vunpack.c.l.b16 %v809
    %v3034 = vunpack.c.h.b16 %v809
    %v3035 = vunpack.c.l.b16 %v810
    %v3036 = vunpack.c.l.b16 %v811
    %v3037 = vunpack.c.h.b16 %v811
    %v3038 = vunpack.c.l.b16 %v812
    %v3039 = vunpack.c.h.b16 %v812
    %v3040 = vunpack.c.l.b16 %v813
    %v3041 = vunpack.c.l.b16 %v814
    %v3042 = vunpack.c.h.b16 %v814
    %v3043 = vunpack.c.l.b16 %v815
    %v3044 = vunpack.c.h.b16 %v815
    %v3045 = vunpack.c.l.b16 %v816
    %v3046 = vunpack.c.l.b16 %v817
    %v3047 = vunpack.c.h.b16 %v817
    %v3048 = vunpack.c.l.b16 %v818
    %v3049 = vunpack.c.h.b16 %v818
    %v3050 = vunpack.c.l.b16 %v819
    %v3051 = vunpack.c.l.b16 %v820
    %v3052 = vunpack.c.h.b16 %v820
    %v3053 = vunpack.c.l.b16 %v821
    %v3054 = vunpack.c.h.b16 %v821
    %v3055 = vunpack.c.l.b16 %v822
    %v3056 = vunpack.c.l.b16 %v823
    %v3057 = vunpack.c.h.b16 %v823
    %v3058 = vunpack.c.l.b16 %v824
    %v3059 = vunpack.c.h.b16 %v824
    %v3060 = vunpack.c.l.b16 %v825
    %v3061 = vunpack.c.l.b16 %v826
    %v3062 = vunpack.c.h.b16 %v826
    %v3063 = vunpack.c.l.b16 %v827
    %v3064 = vunpack.c.h.b16 %v827
    %v3065 = vunpack.c.l.b16 %v828
    %v3066 = vunpack.c.l.b16 %v829
    %v3067 = vunpack.c.h.b16 %v829
    %v3068 = vunpack.c.l.b16 %v830
    %v3069 = vunpack.c.h.b16 %v830
    %v3070 = vunpack.c.l.b16 %v831
    %v3071 = vunpack.c.l.b16 %v832
    %v3072 = vunpack.c.h.b16 %v832
    %v3073 = vunpack.c.l.b16 %v833
    %v3074 = vunpack.c.h.b16 %v833
    %v3075 = vunpack.c.l.b16 %v834
    %v3076 = vunpack.c.l.b16 %v835
    %v3077 = vunpack.c.h.b16 %v835
    %v3078 = vunpack.c.l.b16 %v836
    %v3079 = vunpack.c.h.b16 %v836
    %v3080 = vunpack.c.l.b16 %v837
    %v3081 = vunpack.c.l.b16 %v838
    %v3082 = vunpack.c.h.b16 %v838
    %v3083 = vunpack.c.l.b16 %v839
    %v3084 = vunpack.c.h.b16 %v839
    %v3085 = vunpack.c.l.b16 %v840
    %v3086 = vunpack.c.l.b16 %v841
    %v3087 = vunpack.c.h.b16 %v841
    %v3088 = vunpack.c.l.b16 %v842
    %v3089 = vunpack.c.h.b16 %v842
    %v3090 = vunpack.c.l.b16 %v843
    %v3091 = vunpack.c.l.b16 %v844
    %v3092 = vunpack.c.h.b16 %v844
    %v3093 = vunpack.c.l.b16 %v845
    %v3094 = vunpack.c.h.b16 %v845
    %v3095 = vunpack.c.l.b16 %v846
    %v3096 = vunpack.c.l.b16 %v847
    %v3097 = vunpack.c.h.b16 %v847
    %v3098 = vunpack.c.l.b16 %v848
    %v3099 = vunpack.c.h.b16 %v848
    %v3100 = vunpack.c.l.b16 %v849
    %v3101 = vunpack.c.l.b16 %v850
    %v3102 = vunpack.c.h.b16 %v850
    %v3103 = vunpack.c.l.b16 %v851
    %v3104 = vunpack.c.h.b16 %v851
    %v3105 = vunpack.c.l.b16 %v852
    %v3106 = vunpack.c.l.b16 %v853
    %v3107 = vunpack.c.h.b16 %v853
    %v3108 = vunpack.c.l.b16 %v854
    %v3109 = vunpack.c.h.b16 %v854
    %v3110 = vunpack.c.l.b16 %v855
    %v3111 = vunpack.c.l.b16 %v856
    %v3112 = vunpack.c.h.b16 %v856
    %v3113 = vunpack.c.l.b16 %v857
    %v3114 = vunpack.c.h.b16 %v857
    %v3115 = vunpack.c.l.b16 %v858
    %v3116 = vunpack.c.l.b16 %v859
    %v3117 = vunpack.c.h.b16 %v859
    %v3118 = vunpack.c.l.b16 %v860
    %v3119 = vunpack.c.h.b16 %v860
    %v3120 = vunpack.c.l.b16 %v861
    %v3121 = vunpack.c.l.b16 %v862
    %v3122 = vunpack.c.h.b16 %v862
    %v3123 = vunpack.c.l.b16 %v863
    %v3124 = vunpack.c.h.b16 %v863
    %v3125 = vunpack.c.l.b16 %v864
    %v3126 = vunpack.c.l.b16 %v865
    %v3127 = vunpack.c.h.b16 %v865
    %v3128 = vunpack.c.l.b16 %v866
    %v3129 = vunpack.c.h.b16 %v866
    %v3130 = vunpack.c.l.b16 %v867
    %v3131 = vunpack.c.l.b16 %v868
    %v3132 = vunpack.c.h.b16 %v868
    %v3133 = vunpack.c.l.b16 %v869
    %v3134 = vunpack.c.h.b16 %v869
    %v3135 = vunpack.c.l.b16 %v870
    %v3136 = vunpack.c.l.b16 %v871
    %v3137 = vunpack.c.h.b16 %v871
    %v3138 = vunpack.c.l.b16 %v872
    %v3139 = vunpack.c.h.b16 %v872
    %v3140 = vunpack.c.l.b16 %v873
    %v3141 = vunpack.c.l.b16 %v874
    %v3142 = vunpack.c.h.b16 %v874
    %v3143 = vunpack.c.l.b16 %v875
    %v3144 = vunpack.c.h.b16 %v875
    %v3145 = vunpack.c.l.b16 %v876
    %v3146 = vunpack.c.l.b16 %v877
    %v3147 = vunpack.c.h.b16 %v877
    %v3148 = vunpack.c.l.b16 %v878
    %v3149 = vunpack.c.h.b16 %v878
    %v3150 = vunpack.c.l.b16 %v879
    %v3151 = vunpack.c.l.b16 %v880
    %v3152 = vunpack.c.h.b16 %v880
    %v3153 = vunpack.c.l.b16 %v881
    %v3154 = vunpack.c.h.b16 %v881
    %v3155 = vunpack.c.l.b16 %v882
    %v3156 = vunpack.c.l.b16 %v883
    %v3157 = vunpack.c.h.b16 %v883
    %v3158 = vunpack.c.l.b16 %v884
    %v3159 = vunpack.c.h.b16 %v884
    %v3160 = vunpack.c.l.b16 %v885
    %v3161 = vunpack.c.l.b16 %v886
    %v3162 = vunpack.c.h.b16 %v886
    %v3163 = vunpack.c.l.b16 %v887
    %v3164 = vunpack.c.h.b16 %v887
    %v3165 = vunpack.c.l.b16 %v888
    %v3166 = vunpack.c.l.b16 %v889
    %v3167 = vunpack.c.h.b16 %v889
    %v3168 = vunpack.c.l.b16 %v890
    %v3169 = vunpack.c.h.b16 %v890
    %v3170 = vunpack.c.l.b16 %v891
    %v3171 = vunpack.c.l.b16 %v892
    %v3172 = vunpack.c.h.b16 %v892
    %v3173 = vunpack.c.l.b16 %v893
    %v3174 = vunpack.c.h.b16 %v893
    %v3175 = vunpack.c.l.b16 %v894
    %v3176 = vunpack.c.l.b16 %v895
    %v3177 = vunpack.c.h.b16 %v895
    %v3178 = vunpack.c.l.b16 %v896
    %v3179 = vunpack.c.h.b16 %v896
    %v3180 = vunpack.c.l.b16 %v897
    %v3181 = vunpack.c.l.b16 %v898
    %v3182 = vunpack.c.h.b16 %v898
    %v3183 = vunpack.c.l.b16 %v899
    %v3184 = vunpack.c.h.b16 %v899
    %v3185 = vunpack.c.l.b16 %v900
    %v3186 = vunpack.c.l.b16 %v901
    %v3187 = vunpack.c.h.b16 %v901
    %v3188 = vunpack.c.l.b16 %v902
    %v3189 = vunpack.c.h.b16 %v902
    %v3190 = vunpack.c.l.b16 %v903
    %v3191 = vunpack.c.l.b16 %v904
    %v3192 = vunpack.c.h.b16 %v904
    %v3193 = vunpack.c.l.b16 %v905
    %v3194 = vunpack.c.h.b16 %v905
    %v3195 = vunpack.c.l.b16 %v906
    %v3196 = vunpack.c.l.b16 %v907
    %v3197 = vunpack.c.h.b16 %v907
    %v3198 = vunpack.c.l.b16 %v908
    %v3199 = vunpack.c.h.b16 %v908
    %v3200 = vunpack.c.l.b16 %v909
    %v3201 = vunpack.c.l.b16 %v910
    %v3202 = vunpack.c.h.b16 %v910
    %v3203 = vunpack.c.l.b16 %v911
    %v3204 = vunpack.c.h.b16 %v911
    %v3205 = vunpack.c.l.b16 %v912
    %v3206 = vunpack.c.l.b16 %v913
    %v3207 = vunpack.c.h.b16 %v913
    %v3208 = vunpack.c.l.b16 %v914
    %v3209 = vunpack.c.h.b16 %v914
    %v3210 = vunpack.c.l.b16 %v915
    %v3211 = vunpack.c.l.b16 %v916
    %v3212 = vunpack.c.h.b16 %v916
    %v3213 = vunpack.c.l.b16 %v917
    %v3214 = vunpack.c.h.b16 %v917
    %v3215 = vunpack.c.l.b16 %v918
    %v3216 = vunpack.c.l.b16 %v919
    %v3217 = vunpack.c.h.b16 %v919
    %v3218 = vunpack.c.l.b16 %v920
    %v3219 = vunpack.c.h.b16 %v920
    %v3220 = vunpack.c.l.b16 %v921
    %v3221 = vunpack.c.l.b16 %v922
    %v3222 = vunpack.c.h.b16 %v922
    %v3223 = vunpack.c.l.b16 %v923
    %v3224 = vunpack.c.h.b16 %v923
    %v3225 = vunpack.c.l.b16 %v924
    %v3226 = vunpack.c.l.b16 %v925
    %v3227 = vunpack.c.h.b16 %v925
    %v3228 = vunpack.c.l.b16 %v926
    %v3229 = vunpack.c.h.b16 %v926
    %v3230 = vunpack.c.l.b16 %v927
    %v3231 = vunpack.c.l.b16 %v928
    %v3232 = vunpack.c.h.b16 %v928
    %v3233 = vunpack.c.l.b16 %v929
    %v3234 = vunpack.c.h.b16 %v929
    %v3235 = vunpack.c.l.b16 %v930
    %v3236 = vunpack.c.l.b16 %v931
    %v3237 = vunpack.c.h.b16 %v931
    %v3238 = vunpack.c.l.b16 %v932
    %v3239 = vunpack.c.h.b16 %v932
    %v3240 = vunpack.c.l.b16 %v933
    %v3241 = vunpack.c.l.b16 %v934
    %v3242 = vunpack.c.h.b16 %v934
    %v3243 = vunpack.c.l.b16 %v935
    %v3244 = vunpack.c.h.b16 %v935
    %v3245 = vunpack.c.l.b16 %v936
    %v3246 = vunpack.c.l.b16 %v937
    %v3247 = vunpack.c.h.b16 %v937
    %v3248 = vunpack.c.l.b16 %v938
    %v3249 = vunpack.c.h.b16 %v938
    %v3250 = vunpack.c.l.b16 %v939
    %v3251 = vunpack.c.l.b16 %v940
    %v3252 = vunpack.c.h.b16 %v940
    %v3253 = vunpack.c.l.b16 %v941
    %v3254 = vunpack.c.h.b16 %v941
    %v3255 = vunpack.c.l.b16 %v942
    %v3256 = vunpack.c.l.b16 %v943
    %v3257 = vunpack.c.h.b16 %v943
    %v3258 = vunpack.c.l.b16 %v944
    %v3259 = vunpack.c.h.b16 %v944
    %v3260 = vunpack.c.l.b16 %v945
    %v3261 = vunpack.c.l.b16 %v946
    %v3262 = vunpack.c.h.b16 %v946
    %v3263 = vunpack.c.l.b16 %v947
    %v3264 = vunpack.c.h.b16 %v947
    %v3265 = vunpack.c.l.b16 %v948
    %v3266 = vunpack.c.l.b16 %v949
    %v3267 = vunpack.c.h.b16 %v949
    %v3268 = vunpack.c.l.b16 %v950
    %v3269 = vunpack.c.h.b16 %v950
    %v3270 = vunpack.c.l.b16 %v951
    %v3271 = vunpack.c.l.b16 %v952
    %v3272 = vunpack.c.h.b16 %v952
    %v3273 = vunpack.c.l.b16 %v953
    %v3274 = vunpack.c.h.b16 %v953
    %v3275 = vunpack.c.l.b16 %v954
    %v3276 = vunpack.c.l.b16 %v955
    %v3277 = vunpack.c.h.b16 %v955
    %v3278 = vunpack.c.l.b16 %v956
    %v3279 = vunpack.c.h.b16 %v956
    %v3280 = vunpack.c.l.b16 %v957
    %v3281 = vunpack.c.l.b16 %v958
    %v3282 = vunpack.c.h.b16 %v958
    %v3283 = vunpack.c.l.b16 %v959
    %v3284 = vunpack.c.h.b16 %v959
    %v3285 = vunpack.c.l.b16 %v960
    %v3286 = vunpack.c.l.b16 %v961
    %v3287 = vunpack.c.h.b16 %v961
    %v3288 = vunpack.c.l.b16 %v962
    %v3289 = vunpack.c.h.b16 %v962
    %v3290 = vunpack.c.l.b16 %v963
    %v3291 = vunpack.c.l.b16 %v964
    %v3292 = vunpack.c.h.b16 %v964
    %v3293 = vunpack.c.l.b16 %v965
    %v3294 = vunpack.c.h.b16 %v965
    %v3295 = vunpack.c.l.b16 %v966
    %v3296 = vunpack.c.l.b16 %v967
    %v3297 = vunpack.c.h.b16 %v967
    %v3298 = vunpack.c.l.b16 %v968
    %v3299 = vunpack.c.h.b16 %v968
    %v3300 = vunpack.c.l.b16 %v969
    %v3301 = vunpack.c.l.b16 %v970
    %v3302 = vunpack.c.h.b16 %v970
    %v3303 = vunpack.c.l.b16 %v971
    %v3304 = vunpack.c.h.b16 %v971
    %v3305 = vunpack.c.l.b16 %v972
    %v3306 = vunpack.c.l.b16 %v973
    %v3307 = vunpack.c.h.b16 %v973
    %v3308 = vunpack.c.l.b16 %v974
    %v3309 = vunpack.c.h.b16 %v974
    %v3310 = vunpack.c.l.b16 %v975
    %v3311 = vunpack.c.l.b16 %v976
    %v3312 = vunpack.c.h.b16 %v976
    %v3313 = vunpack.c.l.b16 %v977
    %v3314 = vunpack.c.h.b16 %v977
    %v3315 = vunpack.c.l.b16 %v978
    %v3316 = vunpack.c.l.b16 %v979
    %v3317 = vunpack.c.h.b16 %v979
    %v3318 = vunpack.c.l.b16 %v980
    %v3319 = vunpack.c.h.b16 %v980
    %v3320 = vunpack.c.l.b16 %v981
    %v3321 = vunpack.c.l.b16 %v982
    %v3322 = vunpack.c.h.b16 %v982
    %v3323 = vunpack.c.l.b16 %v983
    %v3324 = vunpack.c.h.b16 %v983
    %v3325 = vunpack.c.l.b16 %v984
    %v3326 = vunpack.c.l.b16 %v985
    %v3327 = vunpack.c.h.b16 %v985
    %v3328 = vunpack.c.l.b16 %v986
    %v3329 = vunpack.c.h.b16 %v986
    %v3330 = vunpack.c.l.b16 %v987
    %v3331 = vunpack.c.l.b16 %v988
    %v3332 = vunpack.c.h.b16 %v988
    %v3333 = vunpack.c.l.b16 %v989
    %v3334 = vunpack.c.h.b16 %v989
    %v3335 = vunpack.c.l.b16 %v990
    %v3336 = vunpack.c.l.b16 %v991
    %v3337 = vunpack.c.h.b16 %v991
    %v3338 = vunpack.c.l.b16 %v992
    %v3339 = vunpack.c.h.b16 %v992
    %v3340 = vunpack.c.l.b16 %v993
    %v3341 = vunpack.c.l.b16 %v994
    %v3342 = vunpack.c.h.b16 %v994
    %v3343 = vunpack.c.l.b16 %v995
    %v3344 = vunpack.c.h.b16 %v995
    %v3345 = vunpack.c.l.b16 %v996
    %v3346 = vunpack.c.l.b16 %v997
    %v3347 = vunpack.c.h.b16 %v997
    %v3348 = vunpack.c.l.b16 %v998
    %v3349 = vunpack.c.h.b16 %v998
    %v3350 = vunpack.c.l.b16 %v999
    %v3351 = vunpack.c.l.b16 %v1000
    %v3352 = vunpack.c.h.b16 %v1000
    %v3353 = vunpack.c.l.b16 %v1001
    %v3354 = vunpack.c.h.b16 %v1001
    %v3355 = vunpack.c.l.b16 %v1002
    %v3356 = vunpack.c.l.b16 %v1003
    %v3357 = vunpack.c.h.b16 %v1003
    %v3358 = vunpack.c.l.b16 %v1004
    %v3359 = vunpack.c.h.b16 %v1004
    %v3360 = vunpack.c.l.b16 %v1005
    %v3361 = vunpack.c.l.b16 %v1006
    %v3362 = vunpack.c.h.b16 %v1006
    %v3363 = vunpack.c.l.b16 %v1007
    %v3364 = vunpack.c.h.b16 %v1007
    %v3365 = vunpack.c.l.b16 %v1008
    %v3366 = vunpack.c.l.b16 %v1009
    %v3367 = vunpack.c.h.b16 %v1009
    %v3368 = vunpack.c.l.b16 %v1010
    %v3369 = vunpack.c.h.b16 %v1010
    %v3370 = vunpack.c.l.b16 %v1011
    %v3371 = vunpack.c.l.b16 %v1012
    %v3372 = vunpack.c.h.b16 %v1012
    %v3373 = vunpack.c.l.b16 %v1013
    %v3374 = vunpack.c.h.b16 %v1013
    %v3375 = vunpack.c.l.b16 %v1014
    %v3376 = vunpack.c.l.b16 %v1015
    %v3377 = vunpack.c.h.b16 %v1015
    %v3378 = vunpack.c.l.b16 %v1016
    %v3379 = vunpack.c.h.b16 %v1016
    %v3380 = vunpack.c.l.b16 %v1017
    %v3381 = vunpack.c.l.b16 %v1018
    %v3382 = vunpack.c.h.b16 %v1018
    %v3383 = vunpack.c.l.b16 %v1019
    %v3384 = vunpack.c.h.b16 %v1019
    %v3385 = vunpack.c.l.b16 %v1020
    %v3386 = vunpack.c.l.b16 %v1021
    %v3387 = vunpack.c.h.b16 %v1021
    %v3388 = vunpack.c.l.b16 %v1022
    %v3389 = vunpack.c.h.b16 %v1022
    %v3390 = vunpack.c.l.b16 %v1023
    %v3391 = vunpack.c.l.b16 %v1024
    %v3392 = vunpack.c.h.b16 %v1024
    %v3393 = vunpack.c.l.b16 %v1025
    %v3394 = vunpack.c.h.b16 %v1025
    %v3395 = vunpack.c.l.b16 %v1026
    %v3396 = vunpack.c.l.b16 %v1027
    %v3397 = vunpack.c.h.b16 %v1027
    %v3398 = vunpack.c.l.b16 %v1028
    %v3399 = vunpack.c.h.b16 %v1028
    %v3400 = vunpack.c.l.b16 %v1029
    %v3401 = vunpack.c.l.b16 %v1030
    %v3402 = vunpack.c.h.b16 %v1030
    %v3403 = vunpack.c.l.b16 %v1031
    %v3404 = vunpack.c.h.b16 %v1031
    %v3405 = vunpack.c.l.b16 %v1032
    %v3406 = vunpack.c.l.b16 %v1033
    %v3407 = vunpack.c.h.b16 %v1033
    %v3408 = vunpack.c.l.b16 %v1034
    %v3409 = vunpack.c.h.b16 %v1034
    %v3410 = vunpack.c.l.b16 %v1035
    %v3411 = vunpack.c.l.b16 %v1036
    %v3412 = vunpack.c.h.b16 %v1036
    %v3413 = vunpack.c.l.b16 %v1037
    %v3414 = vunpack.c.h.b16 %v1037
    %v3415 = vunpack.c.l.b16 %v1038
    %v3416 = vunpack.c.l.b16 %v1039
    %v3417 = vunpack.c.h.b16 %v1039
    %v3418 = vunpack.c.l.b16 %v1040
    %v3419 = vunpack.c.h.b16 %v1040
    %v3420 = vunpack.c.l.b16 %v1041
    %v3421 = vpack.c.b16 %v1956, %v1951
    %v3422 = vpack.c.b16 %v1957, %v1952
    %v3423 = vpack.c.b16 %v1958, %v1953
    %v3424 = vpack.c.b16 %v1959, %v1954
    %v3425 = vpack.c.b16 %v1960, %v1955
    %v3426 = vpack.c.b16 %v1966, %v1961
    %v3427 = vpack.c.b16 %v1967, %v1962
    %v3428 = vpack.c.b16 %v1968, %v1963
    %v3429 = vpack.c.b16 %v1969, %v1964
    %v3430 = vpack.c.b16 %v1970, %v1965
    %v3431 = vpack.c.b16 %v1976, %v1971
    %v3432 = vpack.c.b16 %v1977, %v1972
    %v3433 = vpack.c.b16 %v1978, %v1973
    %v3434 = vpack.c.b16 %v1979, %v1974
    %v3435 = vpack.c.b16 %v1980, %v1975
    %v3436 = vpack.c.b16 %v1986, %v1981
    %v3437 = vpack.c.b16 %v1987, %v1982
    %v3438 = vpack.c.b16 %v1988, %v1983
    %v3439 = vpack.c.b16 %v1989, %v1984
    %v3440 = vpack.c.b16 %v1990, %v1985
    %v3441 = vpack.c.b16 %v1996, %v1991
    %v3442 = vpack.c.b16 %v1997, %v1992
    %v3443 = vpack.c.b16 %v1998, %v1993
    %v3444 = vpack.c.b16 %v1999, %v1994
    %v3445 = vpack.c.b16 %v2000, %v1995
    %v3446 = vpack.c.b16 %v2006, %v2001
    %v3447 = vpack.c.b16 %v2007, %v2002
    %v3448 = vpack.c.b16 %v2008, %v2003
    %v3449 = vpack.c.b16 %v2009, %v2004
    %v3450 = vpack.c.b16 %v2010, %v2005
    %v3451 = vpack.c.b16 %v2016, %v2011
    %v3452 = vpack.c.b16 %v2017, %v2012
    %v3453 = vpack.c.b16 %v2018, %v2013
    %v3454 = vpack.c.b16 %v2019, %v2014
    %v3455 = vpack.c.b16 %v2020, %v2015
    %v3456 = vpack.c.b16 %v2026, %v2021
    %v3457 = vpack.c.b16 %v2027, %v2022
    %v3458 = vpack.c.b16 %v2028, %v2023
    %v3459 = vpack.c.b16 %v2029, %v2024
    %v3460 = vpack.c.b16 %v2030, %v2025
    %v3461 = vpack.c.b16 %v2036, %v2031
    %v3462 = vpack.c.b16 %v2037, %v2032
    %v3463 = vpack.c.b16 %v2038, %v2033
    %v3464 = vpack.c.b16 %v2039, %v2034
    %v3465 = vpack.c.b16 %v2040, %v2035
    %v3466 = vpack.c.b16 %v2046, %v2041
    %v3467 = vpack.c.b16 %v2047, %v2042
    %v3468 = vpack.c.b16 %v2048, %v2043
    %v3469 = vpack.c.b16 %v2049, %v2044
    %v3470 = vpack.c.b16 %v2050, %v2045
    %v3471 = vpack.c.b16 %v2056, %v2051
    %v3472 = vpack.c.b16 %v2057, %v2052
    %v3473 = vpack.c.b16 %v2058, %v2053
    %v3474 = vpack.c.b16 %v2059, %v2054
    %v3475 = vpack.c.b16 %v2060, %v2055
    %v3476 = vpack.c.b16 %v2066, %v2061
    %v3477 = vpack.c.b16 %v2067, %v2062
    %v3478 = vpack.c.b16 %v2068, %v2063
    %v3479 = vpack.c.b16 %v2069, %v2064
    %v3480 = vpack.c.b16 %v2070, %v2065
    %v3481 = vpack.c.b16 %v2076, %v2071
    %v3482 = vpack.c.b16 %v2077, %v2072
    %v3483 = vpack.c.b16 %v2078, %v2073
    %v3484 = vpack.c.b16 %v2079, %v2074
    %v3485 = vpack.c.b16 %v2080, %v2075
    %v3486 = vpack.c.b16 %v2086, %v2081
    %v3487 = vpack.c.b16 %v2087, %v2082
    %v3488 = vpack.c.b16 %v2088, %v2083
    %v3489 = vpack.c.b16 %v2089, %v2084
    %v3490 = vpack.c.b16 %v2090, %v2085
    %v3491 = vpack.c.b16 %v2096, %v2091
    %v3492 = vpack.c.b16 %v2097, %v2092
    %v3493 = vpack.c.b16 %v2098, %v2093
    %v3494 = vpack.c.b16 %v2099, %v2094
    %v3495 = vpack.c.b16 %v2100, %v2095
    %v3496 = vpack.c.b16 %v2106, %v2101
    %v3497 = vpack.c.b16 %v2107, %v2102
    %v3498 = vpack.c.b16 %v2108, %v2103
    %v3499 = vpack.c.b16 %v2109, %v2104
    %v3500 = vpack.c.b16 %v2110, %v2105
    %v3501 = vpack.c.b16 %v2116, %v2111
    %v3502 = vpack.c.b16 %v2117, %v2112
    %v3503 = vpack.c.b16 %v2118, %v2113
    %v3504 = vpack.c.b16 %v2119, %v2114
    %v3505 = vpack.c.b16 %v2120, %v2115
    %v3506 = vpack.c.b16 %v2126, %v2121
    %v3507 = vpack.c.b16 %v2127, %v2122
    %v3508 = vpack.c.b16 %v2128, %v2123
    %v3509 = vpack.c.b16 %v2129, %v2124
    %v3510 = vpack.c.b16 %v2130, %v2125
    %v3511 = vpack.c.b16 %v2136, %v2131
    %v3512 = vpack.c.b16 %v2137, %v2132
    %v3513 = vpack.c.b16 %v2138, %v2133
    %v3514 = vpack.c.b16 %v2139, %v2134
    %v3515 = vpack.c.b16 %v2140, %v2135
    %v3516 = vpack.c.b16 %v2146, %v2141
    %v3517 = vpack.c.b16 %v2147, %v2142
    %v3518 = vpack.c.b16 %v2148, %v2143
    %v3519 = vpack.c.b16 %v2149, %v2144
    %v3520 = vpack.c.b16 %v2150, %v2145
    %v3521 = vpack.c.b16 %v2156, %v2151
    %v3522 = vpack.c.b16 %v2157, %v2152
    %v3523 = vpack.c.b16 %v2158, %v2153
    %v3524 = vpack.c.b16 %v2159, %v2154
    %v3525 = vpack.c.b16 %v2160, %v2155
    %v3526 = vpack.c.b16 %v2166, %v2161
    %v3527 = vpack.c.b16 %v2167, %v2162
    %v3528 = vpack.c.b16 %v2168, %v2163
    %v3529 = vpack.c.b16 %v2169, %v2164
    %v3530 = vpack.c.b16 %v2170, %v2165
    %v3531 = vpack.c.b16 %v2176, %v2171
    %v3532 = vpack.c.b16 %v2177, %v2172
    %v3533 = vpack.c.b16 %v2178, %v2173
    %v3534 = vpack.c.b16 %v2179, %v2174
    %v3535 = vpack.c.b16 %v2180, %v2175
    %v3536 = vpack.c.b16 %v2186, %v2181
    %v3537 = vpack.c.b16 %v2187, %v2182
    %v3538 = vpack.c.b16 %v2188, %v2183
    %v3539 = vpack.c.b16 %v2189, %v2184
    %v3540 = vpack.c.b16 %v2190, %v2185
    %v3541 = vpack.c.b16 %v2196, %v2191
    %v3542 = vpack.c.b16 %v2197, %v2192
    %v3543 = vpack.c.b16 %v2198, %v2193
    %v3544 = vpack.c.b16 %v2199, %v2194
    %v3545 = vpack.c.b16 %v2200, %v2195
    %v3546 = vpack.c.b16 %v2206, %v2201
    %v3547 = vpack.c.b16 %v2207, %v2202
    %v3548 = vpack.c.b16 %v2208, %v2203
    %v3549 = vpack.c.b16 %v2209, %v2204
    %v3550 = vpack.c.b16 %v2210, %v2205
    %v3551 = vpack.c.b16 %v2216, %v2211
    %v3552 = vpack.c.b16 %v2217, %v2212
    %v3553 = vpack.c.b16 %v2218, %v2213
    %v3554 = vpack.c.b16 %v2219, %v2214
    %v3555 = vpack.c.b16 %v2220, %v2215
    %v3556 = vpack.c.b16 %v2226, %v2221
    %v3557 = vpack.c.b16 %v2227, %v2222
    %v3558 = vpack.c.b16 %v2228, %v2223
    %v3559 = vpack.c.b16 %v2229, %v2224
    %v3560 = vpack.c.b16 %v2230, %v2225
    %v3561 = vpack.c.b16 %v2236, %v2231
    %v3562 = vpack.c.b16 %v2237, %v2232
    %v3563 = vpack.c.b16 %v2238, %v2233
    %v3564 = vpack.c.b16 %v2239, %v2234
    %v3565 = vpack.c.b16 %v2240, %v2235
    %v3566 = vpack.c.b16 %v2246, %v2241
    %v3567 = vpack.c.b16 %v2247, %v2242
    %v3568 = vpack.c.b16 %v2248, %v2243
    %v3569 = vpack.c.b16 %v2249, %v2244
    %v3570 = vpack.c.b16 %v2250, %v2245
    %v3571 = vpack.c.b16 %v2256, %v2251
    %v3572 = vpack.c.b16 %v2257, %v2252
    %v3573 = vpack.c.b16 %v2258, %v2253
    %v3574 = vpack.c.b16 %v2259, %v2254
    %v3575 = vpack.c.b16 %v2260, %v2255
    %v3576 = vpack.c.b16 %v2266, %v2261
    %v3577 = vpack.c.b16 %v2267, %v2262
    %v3578 = vpack.c.b16 %v2268, %v2263
    %v3579 = vpack.c.b16 %v2269, %v2264
    %v3580 = vpack.c.b16 %v2270, %v2265
    %v3581 = vpack.c.b16 %v2276, %v2271
    %v3582 = vpack.c.b16 %v2277, %v2272
    %v3583 = vpack.c.b16 %v2278, %v2273
    %v3584 = vpack.c.b16 %v2279, %v2274
    %v3585 = vpack.c.b16 %v2280, %v2275
    %v3586 = vpack.c.b16 %v2286, %v2281
    %v3587 = vpack.c.b16 %v2287, %v2282
    %v3588 = vpack.c.b16 %v2288, %v2283
    %v3589 = vpack.c.b16 %v2289, %v2284
    %v3590 = vpack.c.b16 %v2290, %v2285
    %v3591 = vpack.c.b16 %v2296, %v2291
    %v3592 = vpack.c.b16 %v2297, %v2292
    %v3593 = vpack.c.b16 %v2298, %v2293
    %v3594 = vpack.c.b16 %v2299, %v2294
    %v3595 = vpack.c.b16 %v2300, %v2295
    %v3596 = vpack.c.b16 %v2306, %v2301
    %v3597 = vpack.c.b16 %v2307, %v2302
    %v3598 = vpack.c.b16 %v2308, %v2303
    %v3599 = vpack.c.b16 %v2309, %v2304
    %v3600 = vpack.c.b16 %v2310, %v2305
    %v3601 = vpack.c.b16 %v2316, %v2311
    %v3602 = vpack.c.b16 %v2317, %v2312
    %v3603 = vpack.c.b16 %v2318, %v2313
    %v3604 = vpack.c.b16 %v2319, %v2314
    %v3605 = vpack.c.b16 %v2320, %v2315
    %v3606 = vpack.c.b16 %v2326, %v2321
    %v3607 = vpack.c.b16 %v2327, %v2322
    %v3608 = vpack.c.b16 %v2328, %v2323
    %v3609 = vpack.c.b16 %v2329, %v2324
    %v3610 = vpack.c.b16 %v2330, %v2325
    %v3611 = vpack.c.b16 %v2336, %v2331
    %v3612 = vpack.c.b16 %v2337, %v2332
    %v3613 = vpack.c.b16 %v2338, %v2333
    %v3614 = vpack.c.b16 %v2339, %v2334
    %v3615 = vpack.c.b16 %v2340, %v2335
    %v3616 = vpack.c.b16 %v2346, %v2341
    %v3617 = vpack.c.b16 %v2347, %v2342
    %v3618 = vpack.c.b16 %v2348, %v2343
    %v3619 = vpack.c.b16 %v2349, %v2344
    %v3620 = vpack.c.b16 %v2350, %v2345
    %v3621 = vpack.c.b16 %v2356, %v2351
    %v3622 = vpack.c.b16 %v2357, %v2352
    %v3623 = vpack.c.b16 %v2358, %v2353
    %v3624 = vpack.c.b16 %v2359, %v2354
    %v3625 = vpack.c.b16 %v2360, %v2355
    %v3626 = vpack.c.b16 %v2366, %v2361
    %v3627 = vpack.c.b16 %v2367, %v2362
    %v3628 = vpack.c.b16 %v2368, %v2363
    %v3629 = vpack.c.b16 %v2369, %v2364
    %v3630 = vpack.c.b16 %v2370, %v2365
    %v3631 = vpack.c.b16 %v2376, %v2371
    %v3632 = vpack.c.b16 %v2377, %v2372
    %v3633 = vpack.c.b16 %v2378, %v2373
    %v3634 = vpack.c.b16 %v2379, %v2374
    %v3635 = vpack.c.b16 %v2380, %v2375
    %v3636 = vpack.c.b16 %v2386, %v2381
    %v3637 = vpack.c.b16 %v2387, %v2382
    %v3638 = vpack.c.b16 %v2388, %v2383
    %v3639 = vpack.c.b16 %v2389, %v2384
    %v3640 = vpack.c.b16 %v2390, %v2385
    %v3641 = vpack.c.b16 %v2396, %v2391
    %v3642 = vpack.c.b16 %v2397, %v2392
    %v3643 = vpack.c.b16 %v2398, %v2393
    %v3644 = vpack.c.b16 %v2399, %v2394
    %v3645 = vpack.c.b16 %v2400, %v2395
    %v3646 = vpack.c.b16 %v2406, %v2401
    %v3647 = vpack.c.b16 %v2407, %v2402
    %v3648 = vpack.c.b16 %v2408, %v2403
    %v3649 = vpack.c.b16 %v2409, %v2404
    %v3650 = vpack.c.b16 %v2410, %v2405
    %v3651 = vpack.c.b16 %v2416, %v2411
    %v3652 = vpack.c.b16 %v2417, %v2412
    %v3653 = vpack.c.b16 %v2418, %v2413
    %v3654 = vpack.c.b16 %v2419, %v2414
    %v3655 = vpack.c.b16 %v2420, %v2415
    %v3656 = vpack.c.b16 %v2426, %v2421
    %v3657 = vpack.c.b16 %v2427, %v2422
    %v3658 = vpack.c.b16 %v2428, %v2423
    %v3659 = vpack.c.b16 %v2429, %v2424
    %v3660 = vpack.c.b16 %v2430, %v2425
    %v3661 = vpack.c.b16 %v2436, %v2431
    %v3662 = vpack.c.b16 %v2437, %v2432
    %v3663 = vpack.c.b16 %v2438, %v2433
    %v3664 = vpack.c.b16 %v2439, %v2434
    %v3665 = vpack.c.b16 %v2440, %v2435
    %v3666 = vpack.c.b16 %v2446, %v2441
    %v3667 = vpack.c.b16 %v2447, %v2442
    %v3668 = vpack.c.b16 %v2448, %v2443
    %v3669 = vpack.c.b16 %v2449, %v2444
    %v3670 = vpack.c.b16 %v2450, %v2445
    %v3671 = vpack.c.b16 %v2456, %v2451
    %v3672 = vpack.c.b16 %v2457, %v2452
    %v3673 = vpack.c.b16 %v2458, %v2453
    %v3674 = vpack.c.b16 %v2459, %v2454
    %v3675 = vpack.c.b16 %v2460, %v2455
    %v3676 = vpack.c.b16 %v2466, %v2461
    %v3677 = vpack.c.b16 %v2467, %v2462
    %v3678 = vpack.c.b16 %v2468, %v2463
    %v3679 = vpack.c.b16 %v2469, %v2464
    %v3680 = vpack.c.b16 %v2470, %v2465
    %v3681 = vpack.c.b16 %v2476, %v2471
    %v3682 = vpack.c.b16 %v2477, %v2472
    %v3683 = vpack.c.b16 %v2478, %v2473
    %v3684 = vpack.c.b16 %v2479, %v2474
    %v3685 = vpack.c.b16 %v2480, %v2475
    %v3686 = vpack.c.b16 %v2486, %v2481
    %v3687 = vpack.c.b16 %v2487, %v2482
    %v3688 = vpack.c.b16 %v2488, %v2483
    %v3689 = vpack.c.b16 %v2489, %v2484
    %v3690 = vpack.c.b16 %v2490, %v2485
    %v3691 = vpack.c.b16 %v2496, %v2491
    %v3692 = vpack.c.b16 %v2497, %v2492
    %v3693 = vpack.c.b16 %v2498, %v2493
    %v3694 = vpack.c.b16 %v2499, %v2494
    %v3695 = vpack.c.b16 %v2500, %v2495
    %v3696 = vpack.c.b16 %v2506, %v2501
    %v3697 = vpack.c.b16 %v2507, %v2502
    %v3698 = vpack.c.b16 %v2508, %v2503
    %v3699 = vpack.c.b16 %v2509, %v2504
    %v3700 = vpack.c.b16 %v2510, %v2505
    %v3701 = vpack.c.b16 %v2516, %v2511
    %v3702 = vpack.c.b16 %v2517, %v2512
    %v3703 = vpack.c.b16 %v2518, %v2513
    %v3704 = vpack.c.b16 %v2519, %v2514
    %v3705 = vpack.c.b16 %v2520, %v2515
    %v3706 = vpack.c.b16 %v2526, %v2521
    %v3707 = vpack.c.b16 %v2527, %v2522
    %v3708 = vpack.c.b16 %v2528, %v2523
    %v3709 = vpack.c.b16 %v2529, %v2524
    %v3710 = vpack.c.b16 %v2530, %v2525
    %v3711 = vpack.c.b16 %v2536, %v2531
    %v3712 = vpack.c.b16 %v2537, %v2532
    %v3713 = vpack.c.b16 %v2538, %v2533
    %v3714 = vpack.c.b16 %v2539, %v2534
    %v3715 = vpack.c.b16 %v2540, %v2535
    %v3716 = vpack.c.b16 %v2546, %v2541
    %v3717 = vpack.c.b16 %v2547, %v2542
    %v3718 = vpack.c.b16 %v2548, %v2543
    %v3719 = vpack.c.b16 %v2549, %v2544
    %v3720 = vpack.c.b16 %v2550, %v2545
    %v3721 = vpack.c.b16 %v2556, %v2551
    %v3722 = vpack.c.b16 %v2557, %v2552
    %v3723 = vpack.c.b16 %v2558, %v2553
    %v3724 = vpack.c.b16 %v2559, %v2554
    %v3725 = vpack.c.b16 %v2560, %v2555
    %v3726 = vpack.c.b16 %v2566, %v2561
    %v3727 = vpack.c.b16 %v2567, %v2562
    %v3728 = vpack.c.b16 %v2568, %v2563
    %v3729 = vpack.c.b16 %v2569, %v2564
    %v3730 = vpack.c.b16 %v2570, %v2565
    %v3731 = vpack.c.b16 %v2576, %v2571
    %v3732 = vpack.c.b16 %v2577, %v2572
    %v3733 = vpack.c.b16 %v2578, %v2573
    %v3734 = vpack.c.b16 %v2579, %v2574
    %v3735 = vpack.c.b16 %v2580, %v2575
    %v3736 = vpack.c.b16 %v2586, %v2581
    %v3737 = vpack.c.b16 %v2587, %v2582
    %v3738 = vpack.c.b16 %v2588, %v2583
    %v3739 = vpack.c.b16 %v2589, %v2584
    %v3740 = vpack.c.b16 %v2590, %v2585
    %v3741 = vpack.c.b16 %v2596, %v2591
    %v3742 = vpack.c.b16 %v2597, %v2592
    %v3743 = vpack.c.b16 %v2598, %v2593
    %v3744 = vpack.c.b16 %v2599, %v2594
    %v3745 = vpack.c.b16 %v2600, %v2595
    %v3746 = vpack.c.b16 %v2606, %v2601
    %v3747 = vpack.c.b16 %v2607, %v2602
    %v3748 = vpack.c.b16 %v2608, %v2603
    %v3749 = vpack.c.b16 %v2609, %v2604
    %v3750 = vpack.c.b16 %v2610, %v2605
    %v3751 = vpack.c.b16 %v2616, %v2611
    %v3752 = vpack.c.b16 %v2617, %v2612
    %v3753 = vpack.c.b16 %v2618, %v2613
    %v3754 = vpack.c.b16 %v2619, %v2614
    %v3755 = vpack.c.b16 %v2620, %v2615
    %v3756 = vpack.c.b16 %v2626, %v2621
    %v3757 = vpack.c.b16 %v2627, %v2622
    %v3758 = vpack.c.b16 %v2628, %v2623
    %v3759 = vpack.c.b16 %v2629, %v2624
    %v3760 = vpack.c.b16 %v2630, %v2625
    %v3761 = vpack.c.b16 %v2636, %v2631
    %v3762 = vpack.c.b16 %v2637, %v2632
    %v3763 = vpack.c.b16 %v2638, %v2633
    %v3764 = vpack.c.b16 %v2639, %v2634
    %v3765 = vpack.c.b16 %v2640, %v2635
    %v3766 = vpack.c.b16 %v2646, %v2641
    %v3767 = vpack.c.b16 %v2647, %v2642
    %v3768 = vpack.c.b16 %v2648, %v2643
    %v3769 = vpack.c.b16 %v2649, %v2644
    %v3770 = vpack.c.b16 %v2650, %v2645
    %v3771 = vpack.c.b16 %v2656, %v2651
    %v3772 = vpack.c.b16 %v2657, %v2652
    %v3773 = vpack.c.b16 %v2658, %v2653
    %v3774 = vpack.c.b16 %v2659, %v2654
    %v3775 = vpack.c.b16 %v2660, %v2655
    %v3776 = vpack.c.b16 %v2666, %v2661
    %v3777 = vpack.c.b16 %v2667, %v2662
    %v3778 = vpack.c.b16 %v2668, %v2663
    %v3779 = vpack.c.b16 %v2669, %v2664
    %v3780 = vpack.c.b16 %v2670, %v2665
    %v3781 = vpack.c.b16 %v2676, %v2671
    %v3782 = vpack.c.b16 %v2677, %v2672
    %v3783 = vpack.c.b16 %v2678, %v2673
    %v3784 = vpack.c.b16 %v2679, %v2674
    %v3785 = vpack.c.b16 %v2680, %v2675
    %v3786 = vpack.c.b16 %v2686, %v2681
    %v3787 = vpack.c.b16 %v2687, %v2682
    %v3788 = vpack.c.b16 %v2688, %v2683
    %v3789 = vpack.c.b16 %v2689, %v2684
    %v3790 = vpack.c.b16 %v2690, %v2685
    %v3791 = vpack.c.b16 %v2696, %v2691
    %v3792 = vpack.c.b16 %v2697, %v2692
    %v3793 = vpack.c.b16 %v2698, %v2693
    %v3794 = vpack.c.b16 %v2699, %v2694
    %v3795 = vpack.c.b16 %v2700, %v2695
    %v3796 = vpack.c.b16 %v2706, %v2701
    %v3797 = vpack.c.b16 %v2707, %v2702
    %v3798 = vpack.c.b16 %v2708, %v2703
    %v3799 = vpack.c.b16 %v2709, %v2704
    %v3800 = vpack.c.b16 %v2710, %v2705
    %v3801 = vpack.c.b16 %v2716, %v2711
    %v3802 = vpack.c.b16 %v2717, %v2712
    %v3803 = vpack.c.b16 %v2718, %v2713
    %v3804 = vpack.c.b16 %v2719, %v2714
    %v3805 = vpack.c.b16 %v2720, %v2715
    %v3806 = vpack.c.b16 %v2726, %v2721
    %v3807 = vpack.c.b16 %v2727, %v2722
    %v3808 = vpack.c.b16 %v2728, %v2723
    %v3809 = vpack.c.b16 %v2729, %v2724
    %v3810 = vpack.c.b16 %v2730, %v2725
    %v3811 = vpack.c.b16 %v2736, %v2731
    %v3812 = vpack.c.b16 %v2737, %v2732
    %v3813 = vpack.c.b16 %v2738, %v2733
    %v3814 = vpack.c.b16 %v2739, %v2734
    %v3815 = vpack.c.b16 %v2740, %v2735
    %v3816 = vpack.c.b16 %v2746, %v2741
    %v3817 = vpack.c.b16 %v2747, %v2742
    %v3818 = vpack.c.b16 %v2748, %v2743
    %v3819 = vpack.c.b16 %v2749, %v2744
    %v3820 = vpack.c.b16 %v2750, %v2745
    %v3821 = vpack.c.b16 %v2756, %v2751
    %v3822 = vpack.c.b16 %v2757, %v2752
    %v3823 = vpack.c.b16 %v2758, %v2753
    %v3824 = vpack.c.b16 %v2759, %v2754
    %v3825 = vpack.c.b16 %v2760, %v2755
    %v3826 = vpack.c.b16 %v2766, %v2761
    %v3827 = vpack.c.b16 %v2767, %v2762
    %v3828 = vpack.c.b16 %v2768, %v2763
    %v3829 = vpack.c.b16 %v2769, %v2764
    %v3830 = vpack.c.b16 %v2770, %v2765
    %v3831 = vpack.c.b16 %v2776, %v2771
    %v3832 = vpack.c.b16 %v2777, %v2772
    %v3833 = vpack.c.b16 %v2778, %v2773
    %v3834 = vpack.c.b16 %v2779, %v2774
    %v3835 = vpack.c.b16 %v2780, %v2775
    %v3836 = vpack.c.b16 %v2786, %v2781
    %v3837 = vpack.c.b16 %v2787, %v2782
    %v3838 = vpack.c.b16 %v2788, %v2783
    %v3839 = vpack.c.b16 %v2789, %v2784
    %v3840 = vpack.c.b16 %v2790, %v2785
    %v3841 = vpack.c.b16 %v2796, %v2791
    %v3842 = vpack.c.b16 %v2797, %v2792
    %v3843 = vpack.c.b16 %v2798, %v2793
    %v3844 = vpack.c.b16 %v2799, %v2794
    %v3845 = vpack.c.b16 %v2800, %v2795
    %v3846 = vpack.c.b16 %v2806, %v2801
    %v3847 = vpack.c.b16 %v2807, %v2802
    %v3848 = vpack.c.b16 %v2808, %v2803
    %v3849 = vpack.c.b16 %v2809, %v2804
    %v3850 = vpack.c.b16 %v2810, %v2805
    %v3851 = vpack.c.b16 %v2816, %v2811
    %v3852 = vpack.c.b16 %v2817, %v2812
    %v3853 = vpack.c.b16 %v2818, %v2813
    %v3854 = vpack.c.b16 %v2819, %v2814
    %v3855 = vpack.c.b16 %v2820, %v2815
    %v3856 = vpack.c.b16 %v2826, %v2821
    %v3857 = vpack.c.b16 %v2827, %v2822
    %v3858 = vpack.c.b16 %v2828, %v2823
    %v3859 = vpack.c.b16 %v2829, %v2824
    %v3860 = vpack.c.b16 %v2830, %v2825
    %v3861 = vpack.c.b16 %v2836, %v2831
    %v3862 = vpack.c.b16 %v2837, %v2832
    %v3863 = vpack.c.b16 %v2838, %v2833
    %v3864 = vpack.c.b16 %v2839, %v2834
    %v3865 = vpack.c.b16 %v2840, %v2835
    %v3866 = vpack.c.b16 %v2846, %v2841
    %v3867 = vpack.c.b16 %v2847, %v2842
    %v3868 = vpack.c.b16 %v2848, %v2843
    %v3869 = vpack.c.b16 %v2849, %v2844
    %v3870 = vpack.c.b16 %v2850, %v2845
    %v3871 = vpack.c.b16 %v2856, %v2851
    %v3872 = vpack.c.b16 %v2857, %v2852
    %v3873 = vpack.c.b16 %v2858, %v2853
    %v3874 = vpack.c.b16 %v2859, %v2854
    %v3875 = vpack.c.b16 %v2860, %v2855
    %v3876 = vpack.c.b16 %v2866, %v2861
    %v3877 = vpack.c.b16 %v2867, %v2862
    %v3878 = vpack.c.b16 %v2868, %v2863
    %v3879 = vpack.c.b16 %v2869, %v2864
    %v3880 = vpack.c.b16 %v2870, %v2865
    %v3881 = vpack.c.b16 %v2876, %v2871
    %v3882 = vpack.c.b16 %v2877, %v2872
    %v3883 = vpack.c.b16 %v2878, %v2873
    %v3884 = vpack.c.b16 %v2879, %v2874
    %v3885 = vpack.c.b16 %v2880, %v2875
    %v3886 = vpack.c.b16 %v2886, %v2881
    %v3887 = vpack.c.b16 %v2887, %v2882
    %v3888 = vpack.c.b16 %v2888, %v2883
    %v3889 = vpack.c.b16 %v2889, %v2884
    %v3890 = vpack.c.b16 %v2890, %v2885
    %v3891 = vpack.c.b16 %v2896, %v2891
    %v3892 = vpack.c.b16 %v2897, %v2892
    %v3893 = vpack.c.b16 %v2898, %v2893
    %v3894 = vpack.c.b16 %v2899, %v2894
    %v3895 = vpack.c.b16 %v2900, %v2895
    %v3896 = vpack.c.b16 %v2906, %v2901
    %v3897 = vpack.c.b16 %v2907, %v2902
    %v3898 = vpack.c.b16 %v2908, %v2903
    %v3899 = vpack.c.b16 %v2909, %v2904
    %v3900 = vpack.c.b16 %v2910, %v2905
    %v3901 = vpack.c.b16 %v2916, %v2911
    %v3902 = vpack.c.b16 %v2917, %v2912
    %v3903 = vpack.c.b16 %v2918, %v2913
    %v3904 = vpack.c.b16 %v2919, %v2914
    %v3905 = vpack.c.b16 %v2920, %v2915
    %v3906 = vpack.c.b16 %v2926, %v2921
    %v3907 = vpack.c.b16 %v2927, %v2922
    %v3908 = vpack.c.b16 %v2928, %v2923
    %v3909 = vpack.c.b16 %v2929, %v2924
    %v3910 = vpack.c.b16 %v2930, %v2925
    %v3911 = vpack.c.b16 %v2936, %v2931
    %v3912 = vpack.c.b16 %v2937, %v2932
    %v3913 = vpack.c.b16 %v2938, %v2933
    %v3914 = vpack.c.b16 %v2939, %v2934
    %v3915 = vpack.c.b16 %v2940, %v2935
    %v3916 = vpack.c.b16 %v2946, %v2941
    %v3917 = vpack.c.b16 %v2947, %v2942
    %v3918 = vpack.c.b16 %v2948, %v2943
    %v3919 = vpack.c.b16 %v2949, %v2944
    %v3920 = vpack.c.b16 %v2950, %v2945
    %v3921 = vpack.c.b16 %v2956, %v2951
    %v3922 = vpack.c.b16 %v2957, %v2952
    %v3923 = vpack.c.b16 %v2958, %v2953
    %v3924 = vpack.c.b16 %v2959, %v2954
    %v3925 = vpack.c.b16 %v2960, %v2955
    %v3926 = vpack.c.b16 %v2966, %v2961
    %v3927 = vpack.c.b16 %v2967, %v2962
    %v3928 = vpack.c.b16 %v2968, %v2963
    %v3929 = vpack.c.b16 %v2969, %v2964
    %v3930 = vpack.c.b16 %v2970, %v2965
    %v3931 = vpack.c.b16 %v2976, %v2971
    %v3932 = vpack.c.b16 %v2977, %v2972
    %v3933 = vpack.c.b16 %v2978, %v2973
    %v3934 = vpack.c.b16 %v2979, %v2974
    %v3935 = vpack.c.b16 %v2980, %v2975
    %v3936 = vpack.c.b16 %v2986, %v2981
    %v3937 = vpack.c.b16 %v2987, %v2982
    %v3938 = vpack.c.b16 %v2988, %v2983
    %v3939 = vpack.c.b16 %v2989, %v2984
    %v3940 = vpack.c.b16 %v2990, %v2985
    %v3941 = vpack.c.b16 %v2996, %v2991
    %v3942 = vpack.c.b16 %v2997, %v2992
    %v3943 = vpack.c.b16 %v2998, %v2993
    %v3944 = vpack.c.b16 %v2999, %v2994
    %v3945 = vpack.c.b16 %v3000, %v2995
    %v3946 = vpack.c.b16 %v3006, %v3001
    %v3947 = vpack.c.b16 %v3007, %v3002
    %v3948 = vpack.c.b16 %v3008, %v3003
    %v3949 = vpack.c.b16 %v3009, %v3004
    %v3950 = vpack.c.b16 %v3010, %v3005
    %v3951 = vpack.c.b16 %v3016, %v3011
    %v3952 = vpack.c.b16 %v3017, %v3012
    %v3953 = vpack.c.b16 %v3018, %v3013
    %v3954 = vpack.c.b16 %v3019, %v3014
    %v3955 = vpack.c.b16 %v3020, %v3015
    %v3956 = vpack.c.b16 %v3026, %v3021
    %v3957 = vpack.c.b16 %v3027, %v3022
    %v3958 = vpack.c.b16 %v3028, %v3023
    %v3959 = vpack.c.b16 %v3029, %v3024
    %v3960 = vpack.c.b16 %v3030, %v3025
    %v3961 = vpack.c.b16 %v3036, %v3031
    %v3962 = vpack.c.b16 %v3037, %v3032
    %v3963 = vpack.c.b16 %v3038, %v3033
    %v3964 = vpack.c.b16 %v3039, %v3034
    %v3965 = vpack.c.b16 %v3040, %v3035
    %v3966 = vpack.c.b16 %v3046, %v3041
    %v3967 = vpack.c.b16 %v3047, %v3042
    %v3968 = vpack.c.b16 %v3048, %v3043
    %v3969 = vpack.c.b16 %v3049, %v3044
    %v3970 = vpack.c.b16 %v3050, %v3045
    %v3971 = vpack.c.b16 %v3056, %v3051
    %v3972 = vpack.c.b16 %v3057, %v3052
    %v3973 = vpack.c.b16 %v3058, %v3053
    %v3974 = vpack.c.b16 %v3059, %v3054
    %v3975 = vpack.c.b16 %v3060, %v3055
    %v3976 = vpack.c.b16 %v3066, %v3061
    %v3977 = vpack.c.b16 %v3067, %v3062
    %v3978 = vpack.c.b16 %v3068, %v3063
    %v3979 = vpack.c.b16 %v3069, %v3064
    %v3980 = vpack.c.b16 %v3070, %v3065
    %v3981 = vpack.c.b16 %v3076, %v3071
    %v3982 = vpack.c.b16 %v3077, %v3072
    %v3983 = vpack.c.b16 %v3078, %v3073
    %v3984 = vpack.c.b16 %v3079, %v3074
    %v3985 = vpack.c.b16 %v3080, %v3075
    %v3986 = vpack.c.b16 %v3086, %v3081
    %v3987 = vpack.c.b16 %v3087, %v3082
    %v3988 = vpack.c.b16 %v3088, %v3083
    %v3989 = vpack.c.b16 %v3089, %v3084
    %v3990 = vpack.c.b16 %v3090, %v3085
    %v3991 = vpack.c.b16 %v3096, %v3091
    %v3992 = vpack.c.b16 %v3097, %v3092
    %v3993 = vpack.c.b16 %v3098, %v3093
    %v3994 = vpack.c.b16 %v3099, %v3094
    %v3995 = vpack.c.b16 %v3100, %v3095
    %v3996 = vpack.c.b16 %v3106, %v3101
    %v3997 = vpack.c.b16 %v3107, %v3102
    %v3998 = vpack.c.b16 %v3108, %v3103
    %v3999 = vpack.c.b16 %v3109, %v3104
    %v4000 = vpack.c.b16 %v3110, %v3105
    %v4001 = vpack.c.b16 %v3116, %v3111
    %v4002 = vpack.c.b16 %v3117, %v3112
    %v4003 = vpack.c.b16 %v3118, %v3113
    %v4004 = vpack.c.b16 %v3119, %v3114
    %v4005 = vpack.c.b16 %v3120, %v3115
    %v4006 = vpack.c.b16 %v3126, %v3121
    %v4007 = vpack.c.b16 %v3127, %v3122
    %v4008 = vpack.c.b16 %v3128, %v3123
    %v4009 = vpack.c.b16 %v3129, %v3124
    %v4010 = vpack.c.b16 %v3130, %v3125
    %v4011 = vpack.c.b16 %v3136, %v3131
    %v4012 = vpack.c.b16 %v3137, %v3132
    %v4013 = vpack.c.b16 %v3138, %v3133
    %v4014 = vpack.c.b16 %v3139, %v3134
    %v4015 = vpack.c.b16 %v3140, %v3135
    %v4016 = vpack.c.b16 %v3146, %v3141
    %v4017 = vpack.c.b16 %v3147, %v3142
    %v4018 = vpack.c.b16 %v3148, %v3143
    %v4019 = vpack.c.b16 %v3149, %v3144
    %v4020 = vpack.c.b16 %v3150, %v3145
    %v4021 = vpack.c.b16 %v3156, %v3151
    %v4022 = vpack.c.b16 %v3157, %v3152
    %v4023 = vpack.c.b16 %v3158, %v3153
    %v4024 = vpack.c.b16 %v3159, %v3154
    %v4025 = vpack.c.b16 %v3160, %v3155
    %v4026 = vpack.c.b16 %v3166, %v3161
    %v4027 = vpack.c.b16 %v3167, %v3162
    %v4028 = vpack.c.b16 %v3168, %v3163
    %v4029 = vpack.c.b16 %v3169, %v3164
    %v4030 = vpack.c.b16 %v3170, %v3165
    %v4031 = vpack.c.b16 %v3176, %v3171
    %v4032 = vpack.c.b16 %v3177, %v3172
    %v4033 = vpack.c.b16 %v3178, %v3173
    %v4034 = vpack.c.b16 %v3179, %v3174
    %v4035 = vpack.c.b16 %v3180, %v3175
    %v4036 = vpack.c.b16 %v3186, %v3181
    %v4037 = vpack.c.b16 %v3187, %v3182
    %v4038 = vpack.c.b16 %v3188, %v3183
    %v4039 = vpack.c.b16 %v3189, %v3184
    %v4040 = vpack.c.b16 %v3190, %v3185
    %v4041 = vpack.c.b16 %v3196, %v3191
    %v4042 = vpack.c.b16 %v3197, %v3192
    %v4043 = vpack.c.b16 %v3198, %v3193
    %v4044 = vpack.c.b16 %v3199, %v3194
    %v4045 = vpack.c.b16 %v3200, %v3195
    %v4046 = vpack.c.b16 %v3206, %v3201
    %v4047 = vpack.c.b16 %v3207, %v3202
    %v4048 = vpack.c.b16 %v3208, %v3203
    %v4049 = vpack.c.b16 %v3209, %v3204
    %v4050 = vpack.c.b16 %v3210, %v3205
    %v4051 = vpack.c.b16 %v3216, %v3211
    %v4052 = vpack.c.b16 %v3217, %v3212
    %v4053 = vpack.c.b16 %v3218, %v3213
    %v4054 = vpack.c.b16 %v3219, %v3214
    %v4055 = vpack.c.b16 %v3220, %v3215
    %v4056 = vpack.c.b16 %v3226, %v3221
    %v4057 = vpack.c.b16 %v3227, %v3222
    %v4058 = vpack.c.b16 %v3228, %v3223
    %v4059 = vpack.c.b16 %v3229, %v3224
    %v4060 = vpack.c.b16 %v3230, %v3225
    %v4061 = vpack.c.b16 %v3236, %v3231
    %v4062 = vpack.c.b16 %v3237, %v3232
    %v4063 = vpack.c.b16 %v3238, %v3233
    %v4064 = vpack.c.b16 %v3239, %v3234
    %v4065 = vpack.c.b16 %v3240, %v3235
    %v4066 = vpack.c.b16 %v3246, %v3241
    %v4067 = vpack.c.b16 %v3247, %v3242
    %v4068 = vpack.c.b16 %v3248, %v3243
    %v4069 = vpack.c.b16 %v3249, %v3244
    %v4070 = vpack.c.b16 %v3250, %v3245
    %v4071 = vpack.c.b16 %v3256, %v3251
    %v4072 = vpack.c.b16 %v3257, %v3252
    %v4073 = vpack.c.b16 %v3258, %v3253
    %v4074 = vpack.c.b16 %v3259, %v3254
    %v4075 = vpack.c.b16 %v3260, %v3255
    %v4076 = vpack.c.b16 %v3266, %v3261
    %v4077 = vpack.c.b16 %v3267, %v3262
    %v4078 = vpack.c.b16 %v3268, %v3263
    %v4079 = vpack.c.b16 %v3269, %v3264
    %v4080 = vpack.c.b16 %v3270, %v3265
    %v4081 = vpack.c.b16 %v3276, %v3271
    %v4082 = vpack.c.b16 %v3277, %v3272
    %v4083 = vpack.c.b16 %v3278, %v3273
    %v4084 = vpack.c.b16 %v3279, %v3274
    %v4085 = vpack.c.b16 %v3280, %v3275
    %v4086 = vpack.c.b16 %v3286, %v3281
    %v4087 = vpack.c.b16 %v3287, %v3282
    %v4088 = vpack.c.b16 %v3288, %v3283
    %v4089 = vpack.c.b16 %v3289, %v3284
    %v4090 = vpack.c.b16 %v3290, %v3285
    %v4091 = vpack.c.b16 %v3296, %v3291
    %v4092 = vpack.c.b16 %v3297, %v3292
    %v4093 = vpack.c.b16 %v3298, %v3293
    %v4094 = vpack.c.b16 %v3299, %v3294
    %v4095 = vpack.c.b16 %v3300, %v3295
    %v4096 = vpack.c.b16 %v3306, %v3301
    %v4097 = vpack.c.b16 %v3307, %v3302
    %v4098 = vpack.c.b16 %v3308, %v3303
    %v4099 = vpack.c.b16 %v3309, %v3304
    %v4100 = vpack.c.b16 %v3310, %v3305
    %v4101 = vpack.c.b16 %v3316, %v3311
    %v4102 = vpack.c.b16 %v3317, %v3312
    %v4103 = vpack.c.b16 %v3318, %v3313
    %v4104 = vpack.c.b16 %v3319, %v3314
    %v4105 = vpack.c.b16 %v3320, %v3315
    %v4106 = vpack.c.b16 %v3326, %v3321
    %v4107 = vpack.c.b16 %v3327, %v3322
    %v4108 = vpack.c.b16 %v3328, %v3323
    %v4109 = vpack.c.b16 %v3329, %v3324
    %v4110 = vpack.c.b16 %v3330, %v3325
    %v4111 = vpack.c.b16 %v3336, %v3331
    %v4112 = vpack.c.b16 %v3337, %v3332
    %v4113 = vpack.c.b16 %v3338, %v3333
    %v4114 = vpack.c.b16 %v3339, %v3334
    %v4115 = vpack.c.b16 %v3340, %v3335
    %v4116 = vpack.c.b16 %v3346, %v3341
    %v4117 = vpack.c.b16 %v3347, %v3342
    %v4118 = vpack.c.b16 %v3348, %v3343
    %v4119 = vpack.c.b16 %v3349, %v3344
    %v4120 = vpack.c.b16 %v3350, %v3345
    %v4121 = vpack.c.b16 %v3356, %v3351
    %v4122 = vpack.c.b16 %v3357, %v3352
    %v4123 = vpack.c.b16 %v3358, %v3353
    %v4124 = vpack.c.b16 %v3359, %v3354
    %v4125 = vpack.c.b16 %v3360, %v3355
    %v4126 = vpack.c.b16 %v3366, %v3361
    %v4127 = vpack.c.b16 %v3367, %v3362
    %v4128 = vpack.c.b16 %v3368, %v3363
    %v4129 = vpack.c.b16 %v3369, %v3364
    %v4130 = vpack.c.b16 %v3370, %v3365
    %v4131 = vpack.c.b16 %v3376, %v3371
    %v4132 = vpack.c.b16 %v3377, %v3372
    %v4133 = vpack.c.b16 %v3378, %v3373
    %v4134 = vpack.c.b16 %v3379, %v3374
    %v4135 = vpack.c.b16 %v3380, %v3375
    %v4136 = vpack.c.b16 %v3386, %v3381
    %v4137 = vpack.c.b16 %v3387, %v3382
    %v4138 = vpack.c.b16 %v3388, %v3383
    %v4139 = vpack.c.b16 %v3389, %v3384
    %v4140 = vpack.c.b16 %v3390, %v3385
    %v4141 = vpack.c.b16 %v3396, %v3391
    %v4142 = vpack.c.b16 %v3397, %v3392
    %v4143 = vpack.c.b16 %v3398, %v3393
    %v4144 = vpack.c.b16 %v3399, %v3394
    %v4145 = vpack.c.b16 %v3400, %v3395
    %v4146 = vpack.c.b16 %v3406, %v3401
    %v4147 = vpack.c.b16 %v3407, %v3402
    %v4148 = vpack.c.b16 %v3408, %v3403
    %v4149 = vpack.c.b16 %v3409, %v3404
    %v4150 = vpack.c.b16 %v3410, %v3405
    %v4151 = vpack.c.b16 %v3416, %v3411
    %v4152 = vpack.c.b16 %v3417, %v3412
    %v4153 = vpack.c.b16 %v3418, %v3413
    %v4154 = vpack.c.b16 %v3419, %v3414
    %v4155 = vpack.c.b16 %v3420, %v3415
    %vm4891 = vcmask 392192
    %v4893 = vsel %vm4891, %v159, 0
    %4895 = vmatprep.subr.bf16.mxu0 %v3422
    %4896 = vmatpush1.bf16.msra.mxu0 %v3421
    %4897 = vmatprep.subr.bf16.mxu0 %v3427
    %4898 = vmatpush1.bf16.msra.mxu0 %v3426
    %4899 = vmatprep.subr.bf16.mxu0 %v3432
    %4900 = vmatpush1.bf16.msra.mxu0 %v3431
    %4901 = vmatprep.subr.bf16.mxu0 %v3437
    %4902 = vmatpush1.bf16.msra.mxu0 %v3436
    %4903 = vmatprep.subr.bf16.mxu0 %v3442
    %4904 = vmatpush1.bf16.msra.mxu0 %v3441
    %4905 = vmatprep.subr.bf16.mxu0 %v3447
    %4906 = vmatpush1.bf16.msra.mxu0 %v3446
    %4907 = vmatprep.subr.bf16.mxu0 %v3452
    %4908 = vmatpush1.bf16.msra.mxu0 %v3451
    %4909 = vmatprep.subr.bf16.mxu0 %v3457
    %4910 = vmatpush1.bf16.msra.mxu0 %v3456
    %4911 = vmatprep.subr.bf16.mxu0 %v3462
    %4912 = vmatpush1.bf16.msra.mxu0 %v3461
    %4913 = vmatprep.subr.bf16.mxu0 %v3467
    %4914 = vmatpush1.bf16.msra.mxu0 %v3466
    %4915 = vmatprep.subr.bf16.mxu0 %v3472
    %4916 = vmatpush1.bf16.msra.mxu0 %v3471
    %4917 = vmatprep.subr.bf16.mxu0 %v3477
    %4918 = vmatpush1.bf16.msra.mxu0 %v3476
    %4919 = vmatprep.subr.bf16.mxu0 %v3482
    %4920 = vmatpush1.bf16.msra.mxu0 %v3481
    %4921 = vmatprep.subr.bf16.mxu0 %v3487
    %4922 = vmatpush1.bf16.msra.mxu0 %v3486
    %4923 = vmatprep.subr.bf16.mxu0 %v3492
    %4924 = vmatpush1.bf16.msra.mxu0 %v3491
    %4925 = vmatprep.subr.bf16.mxu0 %v3497
    %4926 = vmatpush1.bf16.msra.mxu0 %v3496
    %4927 = vmatprep.mubr.bf16.mxu0 %v142
    %4928 = vmatmul.mubr.bf16.gmra.mrb[0].mxu0 %v141
    %v4929 = vpop.f32.mrb[0].mxu0
    %v4930 = vadd.f32 %v1047, %v4929
    %v4931 = vpop.f32.mrb[0].mxu0
    %v4932 = vadd.f32 %v1051, %v4931
    %v4933 = vpop.f32.mrb[0].mxu0
    %v4934 = vadd.f32 %v1047, %v4933
    %v4935 = vpop.f32.mrb[0].mxu0
    %v4936 = vadd.f32 %v1051, %v4935
    %4937 = vdwg.mxu0
    %4938 = vmatprep.subr.bf16.mxu0 %v3502
    %4939 = vmatpush1.bf16.msra.mxu0 %v3501
    %4940 = vmatprep.subr.bf16.mxu0 %v3507
    %4941 = vmatpush1.bf16.msra.mxu0 %v3506
    %4942 = vmatprep.subr.bf16.mxu0 %v3512
    %4943 = vmatpush1.bf16.msra.mxu0 %v3511
    %4944 = vmatprep.subr.bf16.mxu0 %v3517
    %4945 = vmatpush1.bf16.msra.mxu0 %v3516
    %4946 = vmatprep.subr.bf16.mxu0 %v3522
    %4947 = vmatpush1.bf16.msra.mxu0 %v3521
    %4948 = vmatprep.subr.bf16.mxu0 %v3527
    %4949 = vmatpush1.bf16.msra.mxu0 %v3526
    %4950 = vmatprep.subr.bf16.mxu0 %v3532
    %4951 = vmatpush1.bf16.msra.mxu0 %v3531
    %4952 = vmatprep.subr.bf16.mxu0 %v3537
    %4953 = vmatpush1.bf16.msra.mxu0 %v3536
    %4954 = vmatprep.subr.bf16.mxu0 %v3542
    %4955 = vmatpush1.bf16.msra.mxu0 %v3541
    %4956 = vmatprep.subr.bf16.mxu0 %v3547
    %4957 = vmatpush1.bf16.msra.mxu0 %v3546
    %4958 = vmatprep.subr.bf16.mxu0 %v3552
    %4959 = vmatpush1.bf16.msra.mxu0 %v3551
    %4960 = vmatprep.subr.bf16.mxu0 %v3557
    %4961 = vmatpush1.bf16.msra.mxu0 %v3556
    %4962 = vmatprep.subr.bf16.mxu0 %v3562
    %4963 = vmatpush1.bf16.msra.mxu0 %v3561
    %4964 = vmatprep.subr.bf16.mxu0 %v3567
    %4965 = vmatpush1.bf16.msra.mxu0 %v3566
    %4966 = vmatprep.subr.bf16.mxu0 %v3572
    %4967 = vmatpush1.bf16.msra.mxu0 %v3571
    %4968 = vmatprep.subr.bf16.mxu0 %v3577
    %4969 = vmatpush1.bf16.msra.mxu0 %v3576
    %4970 = vmatprep.mubr.bf16.mxu0 %v144
    %4971 = vmatmul.mubr.bf16.gmra.mrb[0].mxu0 %v143
    %v4972 = vpop.f32.mrb[0].mxu0
    %v4973 = vadd.f32 %v4930, %v4972
    %v4974 = vpop.f32.mrb[0].mxu0
    %v4975 = vadd.f32 %v4932, %v4974
    %v4976 = vpop.f32.mrb[0].mxu0
    %v4977 = vadd.f32 %v4934, %v4976
    %v4978 = vpop.f32.mrb[0].mxu0
    %v4979 = vadd.f32 %v4936, %v4978
    %4980 = vdwg.mxu0
    %4981 = vmatprep.subr.bf16.mxu0 %v3582
    %4982 = vmatpush1.bf16.msra.mxu0 %v3581
    %4983 = vmatprep.subr.bf16.mxu0 %v3587
    %4984 = vmatpush1.bf16.msra.mxu0 %v3586
    %4985 = vmatprep.subr.bf16.mxu0 %v3592
    %4986 = vmatpush1.bf16.msra.mxu0 %v3591
    %4987 = vmatprep.subr.bf16.mxu0 %v3597
    %4988 = vmatpush1.bf16.msra.mxu0 %v3596
    %4989 = vmatprep.subr.bf16.mxu0 %v3602
    %4990 = vmatpush1.bf16.msra.mxu0 %v3601
    %4991 = vmatprep.subr.bf16.mxu0 %v3607
    %4992 = vmatpush1.bf16.msra.mxu0 %v3606
    %4993 = vmatprep.subr.bf16.mxu0 %v3612
    %4994 = vmatpush1.bf16.msra.mxu0 %v3611
    %4995 = vmatprep.subr.bf16.mxu0 %v3617
    %4996 = vmatpush1.bf16.msra.mxu0 %v3616
    %4997 = vmatprep.subr.bf16.mxu0 %v3622
    %4998 = vmatpush1.bf16.msra.mxu0 %v3621
    %4999 = vmatprep.subr.bf16.mxu0 %v3627
    %5000 = vmatpush1.bf16.msra.mxu0 %v3626
    %5001 = vmatprep.subr.bf16.mxu0 %v3632
    %5002 = vmatpush1.bf16.msra.mxu0 %v3631
    %5003 = vmatprep.subr.bf16.mxu0 %v3637
    %5004 = vmatpush1.bf16.msra.mxu0 %v3636
    %5005 = vmatprep.subr.bf16.mxu0 %v3642
    %5006 = vmatpush1.bf16.msra.mxu0 %v3641
    %5007 = vmatprep.subr.bf16.mxu0 %v3647
    %5008 = vmatpush1.bf16.msra.mxu0 %v3646
    %5009 = vmatprep.subr.bf16.mxu0 %v3652
    %5010 = vmatpush1.bf16.msra.mxu0 %v3651
    %5011 = vmatprep.subr.bf16.mxu0 %v3657
    %5012 = vmatpush1.bf16.msra.mxu0 %v3656
    %5013 = vmatprep.mubr.bf16.mxu0 %v146
    %5014 = vmatmul.mubr.bf16.gmra.mrb[0].mxu0 %v145
    %v5015 = vpop.f32.mrb[0].mxu0
    %v5016 = vadd.f32 %v4973, %v5015
    %v5017 = vpop.f32.mrb[0].mxu0
    %v5018 = vadd.f32 %v4975, %v5017
    %v5019 = vpop.f32.mrb[0].mxu0
    %v5020 = vadd.f32 %v4977, %v5019
    %v5021 = vpop.f32.mrb[0].mxu0
    %v5022 = vadd.f32 %v4979, %v5021
    %5023 = vdwg.mxu0
    %5024 = vmatprep.subr.bf16.mxu0 %v3662
    %5025 = vmatpush1.bf16.msra.mxu0 %v3661
    %5026 = vmatprep.subr.bf16.mxu0 %v3667
    %5027 = vmatpush1.bf16.msra.mxu0 %v3666
    %5028 = vmatprep.subr.bf16.mxu0 %v3672
    %5029 = vmatpush1.bf16.msra.mxu0 %v3671
    %5030 = vmatprep.subr.bf16.mxu0 %v3677
    %5031 = vmatpush1.bf16.msra.mxu0 %v3676
    %5032 = vmatprep.subr.bf16.mxu0 %v3682
    %5033 = vmatpush1.bf16.msra.mxu0 %v3681
    %5034 = vmatprep.subr.bf16.mxu0 %v3687
    %5035 = vmatpush1.bf16.msra.mxu0 %v3686
    %5036 = vmatprep.subr.bf16.mxu0 %v3692
    %5037 = vmatpush1.bf16.msra.mxu0 %v3691
    %5038 = vmatprep.subr.bf16.mxu0 %v3697
    %5039 = vmatpush1.bf16.msra.mxu0 %v3696
    %5040 = vmatprep.subr.bf16.mxu0 %v3702
    %5041 = vmatpush1.bf16.msra.mxu0 %v3701
    %5042 = vmatprep.subr.bf16.mxu0 %v3707
    %5043 = vmatpush1.bf16.msra.mxu0 %v3706
    %5044 = vmatprep.subr.bf16.mxu0 %v3712
    %5045 = vmatpush1.bf16.msra.mxu0 %v3711
    %5046 = vmatprep.subr.bf16.mxu0 %v3717
    %5047 = vmatpush1.bf16.msra.mxu0 %v3716
    %5048 = vmatprep.subr.bf16.mxu0 %v3722
    %5049 = vmatpush1.bf16.msra.mxu0 %v3721
    %5050 = vmatprep.subr.bf16.mxu0 %v3727
    %5051 = vmatpush1.bf16.msra.mxu0 %v3726
    %5052 = vmatprep.subr.bf16.mxu0 %v3732
    %5053 = vmatpush1.bf16.msra.mxu0 %v3731
    %5054 = vmatprep.subr.bf16.mxu0 %v3737
    %5055 = vmatpush1.bf16.msra.mxu0 %v3736
    %5056 = vmatprep.mubr.bf16.mxu0 %v148
    %5057 = vmatmul.mubr.bf16.gmra.mrb[0].mxu0 %v147
    %v5058 = vpop.f32.mrb[0].mxu0
    %v5059 = vadd.f32 %v5016, %v5058
    %v5060 = vpop.f32.mrb[0].mxu0
    %v5061 = vadd.f32 %v5018, %v5060
    %v5062 = vpop.f32.mrb[0].mxu0
    %v5063 = vadd.f32 %v5020, %v5062
    %v5064 = vpop.f32.mrb[0].mxu0
    %v5065 = vadd.f32 %v5022, %v5064
    %5066 = vdwg.mxu0
    %5067 = vmatprep.subr.bf16.mxu0 %v3742
    %5068 = vmatpush1.bf16.msra.mxu0 %v3741
    %5069 = vmatprep.subr.bf16.mxu0 %v3747
    %5070 = vmatpush1.bf16.msra.mxu0 %v3746
    %5071 = vmatprep.subr.bf16.mxu0 %v3752
    %5072 = vmatpush1.bf16.msra.mxu0 %v3751
    %5073 = vmatprep.subr.bf16.mxu0 %v3757
    %5074 = vmatpush1.bf16.msra.mxu0 %v3756
    %5075 = vmatprep.subr.bf16.mxu0 %v3762
    %5076 = vmatpush1.bf16.msra.mxu0 %v3761
    %5077 = vmatprep.subr.bf16.mxu0 %v3767
    %5078 = vmatpush1.bf16.msra.mxu0 %v3766
    %5079 = vmatprep.subr.bf16.mxu0 %v3772
    %5080 = vmatpush1.bf16.msra.mxu0 %v3771
    %5081 = vmatprep.subr.bf16.mxu0 %v3777
    %5082 = vmatpush1.bf16.msra.mxu0 %v3776
    %5083 = vmatprep.subr.bf16.mxu0 %v3782
    %5084 = vmatpush1.bf16.msra.mxu0 %v3781
    %5085 = vmatprep.subr.bf16.mxu0 %v3787
    %5086 = vmatpush1.bf16.msra.mxu0 %v3786
    %5087 = vmatprep.subr.bf16.mxu0 %v3792
    %5088 = vmatpush1.bf16.msra.mxu0 %v3791
    %5089 = vmatprep.subr.bf16.mxu0 %v3797
    %5090 = vmatpush1.bf16.msra.mxu0 %v3796
    %5091 = vmatprep.subr.bf16.mxu0 %v3802
    %5092 = vmatpush1.bf16.msra.mxu0 %v3801
    %5093 = vmatprep.subr.bf16.mxu0 %v3807
    %5094 = vmatpush1.bf16.msra.mxu0 %v3806
    %5095 = vmatprep.subr.bf16.mxu0 %v3812
    %5096 = vmatpush1.bf16.msra.mxu0 %v3811
    %5097 = vmatprep.subr.bf16.mxu0 %v3817
    %5098 = vmatpush1.bf16.msra.mxu0 %v3816
    %5099 = vmatprep.mubr.bf16.mxu0 %v150
    %5100 = vmatmul.mubr.bf16.gmra.mrb[0].mxu0 %v149
    %v5101 = vpop.f32.mrb[0].mxu0
    %v5102 = vadd.f32 %v5059, %v5101
    %v5103 = vpop.f32.mrb[0].mxu0
    %v5104 = vadd.f32 %v5061, %v5103
    %v5105 = vpop.f32.mrb[0].mxu0
    %v5106 = vadd.f32 %v5063, %v5105
    %v5107 = vpop.f32.mrb[0].mxu0
    %v5108 = vadd.f32 %v5065, %v5107
    %5109 = vdwg.mxu0
    %5110 = vmatprep.subr.bf16.mxu0 %v3822
    %5111 = vmatpush1.bf16.msra.mxu0 %v3821
    %5112 = vmatprep.subr.bf16.mxu0 %v3827
    %5113 = vmatpush1.bf16.msra.mxu0 %v3826
    %5114 = vmatprep.subr.bf16.mxu0 %v3832
    %5115 = vmatpush1.bf16.msra.mxu0 %v3831
    %5116 = vmatprep.subr.bf16.mxu0 %v3837
    %5117 = vmatpush1.bf16.msra.mxu0 %v3836
    %5118 = vmatprep.subr.bf16.mxu0 %v3842
    %5119 = vmatpush1.bf16.msra.mxu0 %v3841
    %5120 = vmatprep.subr.bf16.mxu0 %v3847
    %5121 = vmatpush1.bf16.msra.mxu0 %v3846
    %5122 = vmatprep.subr.bf16.mxu0 %v3852
    %5123 = vmatpush1.bf16.msra.mxu0 %v3851
    %5124 = vmatprep.subr.bf16.mxu0 %v3857
    %5125 = vmatpush1.bf16.msra.mxu0 %v3856
    %5126 = vmatprep.subr.bf16.mxu0 %v3862
    %5127 = vmatpush1.bf16.msra.mxu0 %v3861
    %5128 = vmatprep.subr.bf16.mxu0 %v3867
    %5129 = vmatpush1.bf16.msra.mxu0 %v3866
    %5130 = vmatprep.subr.bf16.mxu0 %v3872
    %5131 = vmatpush1.bf16.msra.mxu0 %v3871
    %5132 = vmatprep.subr.bf16.mxu0 %v3877
    %5133 = vmatpush1.bf16.msra.mxu0 %v3876
    %5134 = vmatprep.subr.bf16.mxu0 %v3882
    %5135 = vmatpush1.bf16.msra.mxu0 %v3881
    %5136 = vmatprep.subr.bf16.mxu0 %v3887
    %5137 = vmatpush1.bf16.msra.mxu0 %v3886
    %5138 = vmatprep.subr.bf16.mxu0 %v3892
    %5139 = vmatpush1.bf16.msra.mxu0 %v3891
    %5140 = vmatprep.subr.bf16.mxu0 %v3897
    %5141 = vmatpush1.bf16.msra.mxu0 %v3896
    %5142 = vmatprep.mubr.bf16.mxu0 %v152
    %5143 = vmatmul.mubr.bf16.gmra.mrb[0].mxu0 %v151
    %v5144 = vpop.f32.mrb[0].mxu0
    %v5145 = vadd.f32 %v5102, %v5144
    %v5146 = vpop.f32.mrb[0].mxu0
    %v5147 = vadd.f32 %v5104, %v5146
    %v5148 = vpop.f32.mrb[0].mxu0
    %v5149 = vadd.f32 %v5106, %v5148
    %v5150 = vpop.f32.mrb[0].mxu0
    %v5151 = vadd.f32 %v5108, %v5150
    %5152 = vdwg.mxu0
    %5153 = vmatprep.subr.bf16.mxu0 %v3902
    %5154 = vmatpush1.bf16.msra.mxu0 %v3901
    %5155 = vmatprep.subr.bf16.mxu0 %v3907
    %5156 = vmatpush1.bf16.msra.mxu0 %v3906
    %5157 = vmatprep.subr.bf16.mxu0 %v3912
    %5158 = vmatpush1.bf16.msra.mxu0 %v3911
    %5159 = vmatprep.subr.bf16.mxu0 %v3917
    %5160 = vmatpush1.bf16.msra.mxu0 %v3916
    %5161 = vmatprep.subr.bf16.mxu0 %v3922
    %5162 = vmatpush1.bf16.msra.mxu0 %v3921
    %5163 = vmatprep.subr.bf16.mxu0 %v3927
    %5164 = vmatpush1.bf16.msra.mxu0 %v3926
    %5165 = vmatprep.subr.bf16.mxu0 %v3932
    %5166 = vmatpush1.bf16.msra.mxu0 %v3931
    %5167 = vmatprep.subr.bf16.mxu0 %v3937
    %5168 = vmatpush1.bf16.msra.mxu0 %v3936
    %5169 = vmatprep.subr.bf16.mxu0 %v3942
    %5170 = vmatpush1.bf16.msra.mxu0 %v3941
    %5171 = vmatprep.subr.bf16.mxu0 %v3947
    %5172 = vmatpush1.bf16.msra.mxu0 %v3946
    %5173 = vmatprep.subr.bf16.mxu0 %v3952
    %5174 = vmatpush1.bf16.msra.mxu0 %v3951
    %5175 = vmatprep.subr.bf16.mxu0 %v3957
    %5176 = vmatpush1.bf16.msra.mxu0 %v3956
    %5177 = vmatprep.subr.bf16.mxu0 %v3962
    %5178 = vmatpush1.bf16.msra.mxu0 %v3961
    %5179 = vmatprep.subr.bf16.mxu0 %v3967
    %5180 = vmatpush1.bf16.msra.mxu0 %v3966
    %5181 = vmatprep.subr.bf16.mxu0 %v3972
    %5182 = vmatpush1.bf16.msra.mxu0 %v3971
    %5183 = vmatprep.subr.bf16.mxu0 %v3977
    %5184 = vmatpush1.bf16.msra.mxu0 %v3976
    %5185 = vmatprep.mubr.bf16.mxu0 %v154
    %5186 = vmatmul.mubr.bf16.gmra.mrb[0].mxu0 %v153
    %v5187 = vpop.f32.mrb[0].mxu0
    %v5188 = vadd.f32 %v5145, %v5187
    %v5189 = vpop.f32.mrb[0].mxu0
    %v5190 = vadd.f32 %v5147, %v5189
    %v5191 = vpop.f32.mrb[0].mxu0
    %v5192 = vadd.f32 %v5149, %v5191
    %v5193 = vpop.f32.mrb[0].mxu0
    %v5194 = vadd.f32 %v5151, %v5193
    %5195 = vdwg.mxu0
    %5196 = vmatprep.subr.bf16.mxu0 %v3982
    %5197 = vmatpush1.bf16.msra.mxu0 %v3981
    %5198 = vmatprep.subr.bf16.mxu0 %v3987
    %5199 = vmatpush1.bf16.msra.mxu0 %v3986
    %5200 = vmatprep.subr.bf16.mxu0 %v3992
    %5201 = vmatpush1.bf16.msra.mxu0 %v3991
    %5202 = vmatprep.subr.bf16.mxu0 %v3997
    %5203 = vmatpush1.bf16.msra.mxu0 %v3996
    %5204 = vmatprep.subr.bf16.mxu0 %v4002
    %5205 = vmatpush1.bf16.msra.mxu0 %v4001
    %5206 = vmatprep.subr.bf16.mxu0 %v4007
    %5207 = vmatpush1.bf16.msra.mxu0 %v4006
    %5208 = vmatprep.subr.bf16.mxu0 %v4012
    %5209 = vmatpush1.bf16.msra.mxu0 %v4011
    %5210 = vmatprep.subr.bf16.mxu0 %v4017
    %5211 = vmatpush1.bf16.msra.mxu0 %v4016
    %5212 = vmatprep.subr.bf16.mxu0 %v4022
    %5213 = vmatpush1.bf16.msra.mxu0 %v4021
    %5214 = vmatprep.subr.bf16.mxu0 %v4027
    %5215 = vmatpush1.bf16.msra.mxu0 %v4026
    %5216 = vmatprep.subr.bf16.mxu0 %v4032
    %5217 = vmatpush1.bf16.msra.mxu0 %v4031
    %5218 = vmatprep.subr.bf16.mxu0 %v4037
    %5219 = vmatpush1.bf16.msra.mxu0 %v4036
    %5220 = vmatprep.subr.bf16.mxu0 %v4042
    %5221 = vmatpush1.bf16.msra.mxu0 %v4041
    %5222 = vmatprep.subr.bf16.mxu0 %v4047
    %5223 = vmatpush1.bf16.msra.mxu0 %v4046
    %5224 = vmatprep.subr.bf16.mxu0 %v4052
    %5225 = vmatpush1.bf16.msra.mxu0 %v4051
    %5226 = vmatprep.subr.bf16.mxu0 %v4057
    %5227 = vmatpush1.bf16.msra.mxu0 %v4056
    %5228 = vmatprep.mubr.bf16.mxu0 %v156
    %5229 = vmatmul.mubr.bf16.gmra.mrb[0].mxu0 %v155
    %v5230 = vpop.f32.mrb[0].mxu0
    %v5231 = vadd.f32 %v5188, %v5230
    %v5232 = vpop.f32.mrb[0].mxu0
    %v5233 = vadd.f32 %v5190, %v5232
    %v5234 = vpop.f32.mrb[0].mxu0
    %v5235 = vadd.f32 %v5192, %v5234
    %v5236 = vpop.f32.mrb[0].mxu0
    %v5237 = vadd.f32 %v5194, %v5236
    %5238 = vdwg.mxu0
    %5239 = vmatprep.subr.bf16.mxu0 %v4062
    %5240 = vmatpush1.bf16.msra.mxu0 %v4061
    %5241 = vmatprep.subr.bf16.mxu0 %v4067
    %5242 = vmatpush1.bf16.msra.mxu0 %v4066
    %5243 = vmatprep.subr.bf16.mxu0 %v4072
    %5244 = vmatpush1.bf16.msra.mxu0 %v4071
    %5245 = vmatprep.subr.bf16.mxu0 %v4077
    %5246 = vmatpush1.bf16.msra.mxu0 %v4076
    %5247 = vmatprep.subr.bf16.mxu0 %v4082
    %5248 = vmatpush1.bf16.msra.mxu0 %v4081
    %5249 = vmatprep.subr.bf16.mxu0 %v4087
    %5250 = vmatpush1.bf16.msra.mxu0 %v4086
    %5251 = vmatprep.subr.bf16.mxu0 %v4092
    %5252 = vmatpush1.bf16.msra.mxu0 %v4091
    %5253 = vmatprep.subr.bf16.mxu0 %v4097
    %5254 = vmatpush1.bf16.msra.mxu0 %v4096
    %5255 = vmatprep.subr.bf16.mxu0 %v4102
    %5256 = vmatpush1.bf16.msra.mxu0 %v4101
    %5257 = vmatprep.subr.bf16.mxu0 %v4107
    %5258 = vmatpush1.bf16.msra.mxu0 %v4106
    %5259 = vmatprep.subr.bf16.mxu0 %v4112
    %5260 = vmatpush1.bf16.msra.mxu0 %v4111
    %5261 = vmatprep.subr.bf16.mxu0 %v4117
    %5262 = vmatpush1.bf16.msra.mxu0 %v4116
    %5263 = vmatprep.subr.bf16.mxu0 %v4122
    %5264 = vmatpush1.bf16.msra.mxu0 %v4121
    %5265 = vmatprep.subr.bf16.mxu0 %v4127
    %5266 = vmatpush1.bf16.msra.mxu0 %v4126
    %5267 = vmatprep.subr.bf16.mxu0 %v4132
    %5268 = vmatpush1.bf16.msra.mxu0 %v4131
    %5269 = vmatprep.subr.bf16.mxu0 %v4137
    %5270 = vmatpush1.bf16.msra.mxu0 %v4136
    %5271 = vmatprep.mubr.bf16.mxu0 %v158
    %5272 = vmatmul.mubr.bf16.gmra.mrb[0].mxu0 %v157
    %v5273 = vpop.f32.mrb[0].mxu0
    %v5274 = vadd.f32 %v5231, %v5273
    %v5275 = vpop.f32.mrb[0].mxu0
    %v5276 = vadd.f32 %v5233, %v5275
    %v5277 = vpop.f32.mrb[0].mxu0
    %v5278 = vadd.f32 %v5235, %v5277
    %v5279 = vpop.f32.mrb[0].mxu0
    %v5280 = vadd.f32 %v5237, %v5279
    %5281 = vdwg.mxu0
    %5282 = vmatprep.subr.bf16.mxu0 %v4142
    %5283 = vmatpush1.bf16.msra.mxu0 %v4141
    %5284 = vmatprep.subr.bf16.mxu0 %v4147
    %5285 = vmatpush1.bf16.msra.mxu0 %v4146
    %5286 = vmatprep.subr.bf16.mxu0 %v4152
    %5287 = vmatpush1.bf16.msra.mxu0 %v4151
    %5288 = vmatprep.subr.bf16.mxu0 0
    %5289 = vmatpush1.bf16.msra.mxu0 0
    %5290 = vmatprep.subr.bf16.mxu0 0
    %5291 = vmatpush1.bf16.msra.mxu0 0
    %5292 = vmatprep.subr.bf16.mxu0 0
    %5293 = vmatpush1.bf16.msra.mxu0 0
    %5294 = vmatprep.subr.bf16.mxu0 0
    %5295 = vmatpush1.bf16.msra.mxu0 0
    %5296 = vmatprep.subr.bf16.mxu0 0
    %5297 = vmatpush1.bf16.msra.mxu0 0
    %5298 = vmatprep.subr.bf16.mxu0 0
    %5299 = vmatpush1.bf16.msra.mxu0 0
    %5300 = vmatprep.subr.bf16.mxu0 0
    %5301 = vmatpush1.bf16.msra.mxu0 0
    %5302 = vmatprep.subr.bf16.mxu0 0
    %5303 = vmatpush1.bf16.msra.mxu0 0
    %5304 = vmatprep.subr.bf16.mxu0 0
    %5305 = vmatpush1.bf16.msra.mxu0 0
    %5306 = vmatprep.subr.bf16.mxu0 0
    %5307 = vmatpush1.bf16.msra.mxu0 0
    %5308 = vmatprep.subr.bf16.mxu0 0
    %5309 = vmatpush1.bf16.msra.mxu0 0
    %5310 = vmatprep.subr.bf16.mxu0 0
    %5311 = vmatpush1.bf16.msra.mxu0 0
    %5312 = vmatprep.subr.bf16.mxu0 0
    %5313 = vmatpush1.bf16.msra.mxu0 0
    %5314 = vmatprep.mubr.bf16.mxu0 0
    %5315 = vmatmul.mubr.bf16.gmra.mrb[0].mxu0 %v4893
    %v5316 = vpop.f32.mrb[0].mxu0
    %v5317 = vadd.f32 %v5274, %v5316
    %v5318 = vpop.f32.mrb[0].mxu0
    %v5319 = vadd.f32 %v5276, %v5318
    %v5320 = vpop.f32.mrb[0].mxu0
    %v5321 = vadd.f32 %v5278, %v5320
    %v5322 = vpop.f32.mrb[0].mxu0
    %v5323 = vadd.f32 %v5280, %v5322
    %5324 = vdwg.mxu0
    %5325 = vmatprep.subr.bf16.mxu0 %v3424
    %5326 = vmatpush1.bf16.msra.mxu0 %v3423
    %5327 = vmatprep.subr.bf16.mxu0 %v3429
    %5328 = vmatpush1.bf16.msra.mxu0 %v3428
    %5329 = vmatprep.subr.bf16.mxu0 %v3434
    %5330 = vmatpush1.bf16.msra.mxu0 %v3433
    %5331 = vmatprep.subr.bf16.mxu0 %v3439
    %5332 = vmatpush1.bf16.msra.mxu0 %v3438
    %5333 = vmatprep.subr.bf16.mxu0 %v3444
    %5334 = vmatpush1.bf16.msra.mxu0 %v3443
    %5335 = vmatprep.subr.bf16.mxu0 %v3449
    %5336 = vmatpush1.bf16.msra.mxu0 %v3448
    %5337 = vmatprep.subr.bf16.mxu0 %v3454
    %5338 = vmatpush1.bf16.msra.mxu0 %v3453
    %5339 = vmatprep.subr.bf16.mxu0 %v3459
    %5340 = vmatpush1.bf16.msra.mxu0 %v3458
    %5341 = vmatprep.subr.bf16.mxu0 %v3464
    %5342 = vmatpush1.bf16.msra.mxu0 %v3463
    %5343 = vmatprep.subr.bf16.mxu0 %v3469
    %5344 = vmatpush1.bf16.msra.mxu0 %v3468
    %5345 = vmatprep.subr.bf16.mxu0 %v3474
    %5346 = vmatpush1.bf16.msra.mxu0 %v3473
    %5347 = vmatprep.subr.bf16.mxu0 %v3479
    %5348 = vmatpush1.bf16.msra.mxu0 %v3478
    %5349 = vmatprep.subr.bf16.mxu0 %v3484
    %5350 = vmatpush1.bf16.msra.mxu0 %v3483
    %5351 = vmatprep.subr.bf16.mxu0 %v3489
    %5352 = vmatpush1.bf16.msra.mxu0 %v3488
    %5353 = vmatprep.subr.bf16.mxu0 %v3494
    %5354 = vmatpush1.bf16.msra.mxu0 %v3493
    %5355 = vmatprep.subr.bf16.mxu0 %v3499
    %5356 = vmatpush1.bf16.msra.mxu0 %v3498
    %5357 = vmatprep.mubr.bf16.mxu0 %v142
    %5358 = vmatmul.mubr.bf16.gmra.mrb[0].mxu0 %v141
    %v5359 = vpop.f32.mrb[0].mxu0
    %v5360 = vadd.f32 %v1055, %v5359
    %v5361 = vpop.f32.mrb[0].mxu0
    %v5362 = vadd.f32 %v1059, %v5361
    %v5363 = vpop.f32.mrb[0].mxu0
    %v5364 = vadd.f32 %v1055, %v5363
    %v5365 = vpop.f32.mrb[0].mxu0
    %v5366 = vadd.f32 %v1059, %v5365
    %5367 = vdwg.mxu0
    %5368 = vmatprep.subr.bf16.mxu0 %v3504
    %5369 = vmatpush1.bf16.msra.mxu0 %v3503
    %5370 = vmatprep.subr.bf16.mxu0 %v3509
    %5371 = vmatpush1.bf16.msra.mxu0 %v3508
    %5372 = vmatprep.subr.bf16.mxu0 %v3514
    %5373 = vmatpush1.bf16.msra.mxu0 %v3513
    %5374 = vmatprep.subr.bf16.mxu0 %v3519
    %5375 = vmatpush1.bf16.msra.mxu0 %v3518
    %5376 = vmatprep.subr.bf16.mxu0 %v3524
    %5377 = vmatpush1.bf16.msra.mxu0 %v3523
    %5378 = vmatprep.subr.bf16.mxu0 %v3529
    %5379 = vmatpush1.bf16.msra.mxu0 %v3528
    %5380 = vmatprep.subr.bf16.mxu0 %v3534
    %5381 = vmatpush1.bf16.msra.mxu0 %v3533
    %5382 = vmatprep.subr.bf16.mxu0 %v3539
    %5383 = vmatpush1.bf16.msra.mxu0 %v3538
    %5384 = vmatprep.subr.bf16.mxu0 %v3544
    %5385 = vmatpush1.bf16.msra.mxu0 %v3543
    %5386 = vmatprep.subr.bf16.mxu0 %v3549
    %5387 = vmatpush1.bf16.msra.mxu0 %v3548
    %5388 = vmatprep.subr.bf16.mxu0 %v3554
    %5389 = vmatpush1.bf16.msra.mxu0 %v3553
    %5390 = vmatprep.subr.bf16.mxu0 %v3559
    %5391 = vmatpush1.bf16.msra.mxu0 %v3558
    %5392 = vmatprep.subr.bf16.mxu0 %v3564
    %5393 = vmatpush1.bf16.msra.mxu0 %v3563
    %5394 = vmatprep.subr.bf16.mxu0 %v3569
    %5395 = vmatpush1.bf16.msra.mxu0 %v3568
    %5396 = vmatprep.subr.bf16.mxu0 %v3574
    %5397 = vmatpush1.bf16.msra.mxu0 %v3573
    %5398 = vmatprep.subr.bf16.mxu0 %v3579
    %5399 = vmatpush1.bf16.msra.mxu0 %v3578
    %5400 = vmatprep.mubr.bf16.mxu0 %v144
    %5401 = vmatmul.mubr.bf16.gmra.mrb[0].mxu0 %v143
    %v5402 = vpop.f32.mrb[0].mxu0
    %v5403 = vadd.f32 %v5360, %v5402
    %v5404 = vpop.f32.mrb[0].mxu0
    %v5405 = vadd.f32 %v5362, %v5404
    %v5406 = vpop.f32.mrb[0].mxu0
    %v5407 = vadd.f32 %v5364, %v5406
    %v5408 = vpop.f32.mrb[0].mxu0
    %v5409 = vadd.f32 %v5366, %v5408
    %5410 = vdwg.mxu0
    %5411 = vmatprep.subr.bf16.mxu0 %v3584
    %5412 = vmatpush1.bf16.msra.mxu0 %v3583
    %5413 = vmatprep.subr.bf16.mxu0 %v3589
    %5414 = vmatpush1.bf16.msra.mxu0 %v3588
    %5415 = vmatprep.subr.bf16.mxu0 %v3594
    %5416 = vmatpush1.bf16.msra.mxu0 %v3593
    %5417 = vmatprep.subr.bf16.mxu0 %v3599
    %5418 = vmatpush1.bf16.msra.mxu0 %v3598
    %5419 = vmatprep.subr.bf16.mxu0 %v3604
    %5420 = vmatpush1.bf16.msra.mxu0 %v3603
    %5421 = vmatprep.subr.bf16.mxu0 %v3609
    %5422 = vmatpush1.bf16.msra.mxu0 %v3608
    %5423 = vmatprep.subr.bf16.mxu0 %v3614
    %5424 = vmatpush1.bf16.msra.mxu0 %v3613
    %5425 = vmatprep.subr.bf16.mxu0 %v3619
    %5426 = vmatpush1.bf16.msra.mxu0 %v3618
    %5427 = vmatprep.subr.bf16.mxu0 %v3624
    %5428 = vmatpush1.bf16.msra.mxu0 %v3623
    %5429 = vmatprep.subr.bf16.mxu0 %v3629
    %5430 = vmatpush1.bf16.msra.mxu0 %v3628
    %5431 = vmatprep.subr.bf16.mxu0 %v3634
    %5432 = vmatpush1.bf16.msra.mxu0 %v3633
    %5433 = vmatprep.subr.bf16.mxu0 %v3639
    %5434 = vmatpush1.bf16.msra.mxu0 %v3638
    %5435 = vmatprep.subr.bf16.mxu0 %v3644
    %5436 = vmatpush1.bf16.msra.mxu0 %v3643
    %5437 = vmatprep.subr.bf16.mxu0 %v3649
    %5438 = vmatpush1.bf16.msra.mxu0 %v3648
    %5439 = vmatprep.subr.bf16.mxu0 %v3654
    %5440 = vmatpush1.bf16.msra.mxu0 %v3653
    %5441 = vmatprep.subr.bf16.mxu0 %v3659
    %5442 = vmatpush1.bf16.msra.mxu0 %v3658
    %5443 = vmatprep.mubr.bf16.mxu0 %v146
    %5444 = vmatmul.mubr.bf16.gmra.mrb[0].mxu0 %v145
    %v5445 = vpop.f32.mrb[0].mxu0
    %v5446 = vadd.f32 %v5403, %v5445
    %v5447 = vpop.f32.mrb[0].mxu0
    %v5448 = vadd.f32 %v5405, %v5447
    %v5449 = vpop.f32.mrb[0].mxu0
    %v5450 = vadd.f32 %v5407, %v5449
    %v5451 = vpop.f32.mrb[0].mxu0
    %v5452 = vadd.f32 %v5409, %v5451
    %5453 = vdwg.mxu0
    %5454 = vmatprep.subr.bf16.mxu0 %v3664
    %5455 = vmatpush1.bf16.msra.mxu0 %v3663
    %5456 = vmatprep.subr.bf16.mxu0 %v3669
    %5457 = vmatpush1.bf16.msra.mxu0 %v3668
    %5458 = vmatprep.subr.bf16.mxu0 %v3674
    %5459 = vmatpush1.bf16.msra.mxu0 %v3673
    %5460 = vmatprep.subr.bf16.mxu0 %v3679
    %5461 = vmatpush1.bf16.msra.mxu0 %v3678
    %5462 = vmatprep.subr.bf16.mxu0 %v3684
    %5463 = vmatpush1.bf16.msra.mxu0 %v3683
    %5464 = vmatprep.subr.bf16.mxu0 %v3689
    %5465 = vmatpush1.bf16.msra.mxu0 %v3688
    %5466 = vmatprep.subr.bf16.mxu0 %v3694
    %5467 = vmatpush1.bf16.msra.mxu0 %v3693
    %5468 = vmatprep.subr.bf16.mxu0 %v3699
    %5469 = vmatpush1.bf16.msra.mxu0 %v3698
    %5470 = vmatprep.subr.bf16.mxu0 %v3704
    %5471 = vmatpush1.bf16.msra.mxu0 %v3703
    %5472 = vmatprep.subr.bf16.mxu0 %v3709
    %5473 = vmatpush1.bf16.msra.mxu0 %v3708
    %5474 = vmatprep.subr.bf16.mxu0 %v3714
    %5475 = vmatpush1.bf16.msra.mxu0 %v3713
    %5476 = vmatprep.subr.bf16.mxu0 %v3719
    %5477 = vmatpush1.bf16.msra.mxu0 %v3718
    %5478 = vmatprep.subr.bf16.mxu0 %v3724
    %5479 = vmatpush1.bf16.msra.mxu0 %v3723
    %5480 = vmatprep.subr.bf16.mxu0 %v3729
    %5481 = vmatpush1.bf16.msra.mxu0 %v3728
    %5482 = vmatprep.subr.bf16.mxu0 %v3734
    %5483 = vmatpush1.bf16.msra.mxu0 %v3733
    %5484 = vmatprep.subr.bf16.mxu0 %v3739
    %5485 = vmatpush1.bf16.msra.mxu0 %v3738
    %5486 = vmatprep.mubr.bf16.mxu0 %v148
    %5487 = vmatmul.mubr.bf16.gmra.mrb[0].mxu0 %v147
    %v5488 = vpop.f32.mrb[0].mxu0
    %v5489 = vadd.f32 %v5446, %v5488
    %v5490 = vpop.f32.mrb[0].mxu0
    %v5491 = vadd.f32 %v5448, %v5490
    %v5492 = vpop.f32.mrb[0].mxu0
    %v5493 = vadd.f32 %v5450, %v5492
    %v5494 = vpop.f32.mrb[0].mxu0
    %v5495 = vadd.f32 %v5452, %v5494
    %5496 = vdwg.mxu0
    %5497 = vmatprep.subr.bf16.mxu0 %v3744
    %5498 = vmatpush1.bf16.msra.mxu0 %v3743
    %5499 = vmatprep.subr.bf16.mxu0 %v3749
    %5500 = vmatpush1.bf16.msra.mxu0 %v3748
    %5501 = vmatprep.subr.bf16.mxu0 %v3754
    %5502 = vmatpush1.bf16.msra.mxu0 %v3753
    %5503 = vmatprep.subr.bf16.mxu0 %v3759
    %5504 = vmatpush1.bf16.msra.mxu0 %v3758
    %5505 = vmatprep.subr.bf16.mxu0 %v3764
    %5506 = vmatpush1.bf16.msra.mxu0 %v3763
    %5507 = vmatprep.subr.bf16.mxu0 %v3769
    %5508 = vmatpush1.bf16.msra.mxu0 %v3768
    %5509 = vmatprep.subr.bf16.mxu0 %v3774
    %5510 = vmatpush1.bf16.msra.mxu0 %v3773
    %5511 = vmatprep.subr.bf16.mxu0 %v3779
    %5512 = vmatpush1.bf16.msra.mxu0 %v3778
    %5513 = vmatprep.subr.bf16.mxu0 %v3784
    %5514 = vmatpush1.bf16.msra.mxu0 %v3783
    %5515 = vmatprep.subr.bf16.mxu0 %v3789
    %5516 = vmatpush1.bf16.msra.mxu0 %v3788
    %5517 = vmatprep.subr.bf16.mxu0 %v3794
    %5518 = vmatpush1.bf16.msra.mxu0 %v3793
    %5519 = vmatprep.subr.bf16.mxu0 %v3799
    %5520 = vmatpush1.bf16.msra.mxu0 %v3798
    %5521 = vmatprep.subr.bf16.mxu0 %v3804
    %5522 = vmatpush1.bf16.msra.mxu0 %v3803
    %5523 = vmatprep.subr.bf16.mxu0 %v3809
    %5524 = vmatpush1.bf16.msra.mxu0 %v3808
    %5525 = vmatprep.subr.bf16.mxu0 %v3814
    %5526 = vmatpush1.bf16.msra.mxu0 %v3813
    %5527 = vmatprep.subr.bf16.mxu0 %v3819
    %5528 = vmatpush1.bf16.msra.mxu0 %v3818
    %5529 = vmatprep.mubr.bf16.mxu0 %v150
    %5530 = vmatmul.mubr.bf16.gmra.mrb[0].mxu0 %v149
    %v5531 = vpop.f32.mrb[0].mxu0
    %v5532 = vadd.f32 %v5489, %v5531
    %v5533 = vpop.f32.mrb[0].mxu0
    %v5534 = vadd.f32 %v5491, %v5533
    %v5535 = vpop.f32.mrb[0].mxu0
    %v5536 = vadd.f32 %v5493, %v5535
    %v5537 = vpop.f32.mrb[0].mxu0
    %v5538 = vadd.f32 %v5495, %v5537
    %5539 = vdwg.mxu0
    %5540 = vmatprep.subr.bf16.mxu0 %v3824
    %5541 = vmatpush1.bf16.msra.mxu0 %v3823
    %5542 = vmatprep.subr.bf16.mxu0 %v3829
    %5543 = vmatpush1.bf16.msra.mxu0 %v3828
    %5544 = vmatprep.subr.bf16.mxu0 %v3834
    %5545 = vmatpush1.bf16.msra.mxu0 %v3833
    %5546 = vmatprep.subr.bf16.mxu0 %v3839
    %5547 = vmatpush1.bf16.msra.mxu0 %v3838
    %5548 = vmatprep.subr.bf16.mxu0 %v3844
    %5549 = vmatpush1.bf16.msra.mxu0 %v3843
    %5550 = vmatprep.subr.bf16.mxu0 %v3849
    %5551 = vmatpush1.bf16.msra.mxu0 %v3848
    %5552 = vmatprep.subr.bf16.mxu0 %v3854
    %5553 = vmatpush1.bf16.msra.mxu0 %v3853
    %5554 = vmatprep.subr.bf16.mxu0 %v3859
    %5555 = vmatpush1.bf16.msra.mxu0 %v3858
    %5556 = vmatprep.subr.bf16.mxu0 %v3864
    %5557 = vmatpush1.bf16.msra.mxu0 %v3863
    %5558 = vmatprep.subr.bf16.mxu0 %v3869
    %5559 = vmatpush1.bf16.msra.mxu0 %v3868
    %5560 = vmatprep.subr.bf16.mxu0 %v3874
    %5561 = vmatpush1.bf16.msra.mxu0 %v3873
    %5562 = vmatprep.subr.bf16.mxu0 %v3879
    %5563 = vmatpush1.bf16.msra.mxu0 %v3878
    %5564 = vmatprep.subr.bf16.mxu0 %v3884
    %5565 = vmatpush1.bf16.msra.mxu0 %v3883
    %5566 = vmatprep.subr.bf16.mxu0 %v3889
    %5567 = vmatpush1.bf16.msra.mxu0 %v3888
    %5568 = vmatprep.subr.bf16.mxu0 %v3894
    %5569 = vmatpush1.bf16.msra.mxu0 %v3893
    %5570 = vmatprep.subr.bf16.mxu0 %v3899
    %5571 = vmatpush1.bf16.msra.mxu0 %v3898
    %5572 = vmatprep.mubr.bf16.mxu0 %v152
    %5573 = vmatmul.mubr.bf16.gmra.mrb[0].mxu0 %v151
    %v5574 = vpop.f32.mrb[0].mxu0
    %v5575 = vadd.f32 %v5532, %v5574
    %v5576 = vpop.f32.mrb[0].mxu0
    %v5577 = vadd.f32 %v5534, %v5576
    %v5578 = vpop.f32.mrb[0].mxu0
    %v5579 = vadd.f32 %v5536, %v5578
    %v5580 = vpop.f32.mrb[0].mxu0
    %v5581 = vadd.f32 %v5538, %v5580
    %5582 = vdwg.mxu0
    %5583 = vmatprep.subr.bf16.mxu0 %v3904
    %5584 = vmatpush1.bf16.msra.mxu0 %v3903
    %5585 = vmatprep.subr.bf16.mxu0 %v3909
    %5586 = vmatpush1.bf16.msra.mxu0 %v3908
    %5587 = vmatprep.subr.bf16.mxu0 %v3914
    %5588 = vmatpush1.bf16.msra.mxu0 %v3913
    %5589 = vmatprep.subr.bf16.mxu0 %v3919
    %5590 = vmatpush1.bf16.msra.mxu0 %v3918
    %5591 = vmatprep.subr.bf16.mxu0 %v3924
    %5592 = vmatpush1.bf16.msra.mxu0 %v3923
    %5593 = vmatprep.subr.bf16.mxu0 %v3929
    %5594 = vmatpush1.bf16.msra.mxu0 %v3928
    %5595 = vmatprep.subr.bf16.mxu0 %v3934
    %5596 = vmatpush1.bf16.msra.mxu0 %v3933
    %5597 = vmatprep.subr.bf16.mxu0 %v3939
    %5598 = vmatpush1.bf16.msra.mxu0 %v3938
    %5599 = vmatprep.subr.bf16.mxu0 %v3944
    %5600 = vmatpush1.bf16.msra.mxu0 %v3943
    %5601 = vmatprep.subr.bf16.mxu0 %v3949
    %5602 = vmatpush1.bf16.msra.mxu0 %v3948
    %5603 = vmatprep.subr.bf16.mxu0 %v3954
    %5604 = vmatpush1.bf16.msra.mxu0 %v3953
    %5605 = vmatprep.subr.bf16.mxu0 %v3959
    %5606 = vmatpush1.bf16.msra.mxu0 %v3958
    %5607 = vmatprep.subr.bf16.mxu0 %v3964
    %5608 = vmatpush1.bf16.msra.mxu0 %v3963
    %5609 = vmatprep.subr.bf16.mxu0 %v3969
    %5610 = vmatpush1.bf16.msra.mxu0 %v3968
    %5611 = vmatprep.subr.bf16.mxu0 %v3974
    %5612 = vmatpush1.bf16.msra.mxu0 %v3973
    %5613 = vmatprep.subr.bf16.mxu0 %v3979
    %5614 = vmatpush1.bf16.msra.mxu0 %v3978
    %5615 = vmatprep.mubr.bf16.mxu0 %v154
    %5616 = vmatmul.mubr.bf16.gmra.mrb[0].mxu0 %v153
    %v5617 = vpop.f32.mrb[0].mxu0
    %v5618 = vadd.f32 %v5575, %v5617
    %v5619 = vpop.f32.mrb[0].mxu0
    %v5620 = vadd.f32 %v5577, %v5619
    %v5621 = vpop.f32.mrb[0].mxu0
    %v5622 = vadd.f32 %v5579, %v5621
    %v5623 = vpop.f32.mrb[0].mxu0
    %v5624 = vadd.f32 %v5581, %v5623
    %5625 = vdwg.mxu0
    %5626 = vmatprep.subr.bf16.mxu0 %v3984
    %5627 = vmatpush1.bf16.msra.mxu0 %v3983
    %5628 = vmatprep.subr.bf16.mxu0 %v3989
    %5629 = vmatpush1.bf16.msra.mxu0 %v3988
    %5630 = vmatprep.subr.bf16.mxu0 %v3994
    %5631 = vmatpush1.bf16.msra.mxu0 %v3993
    %5632 = vmatprep.subr.bf16.mxu0 %v3999
    %5633 = vmatpush1.bf16.msra.mxu0 %v3998
    %5634 = vmatprep.subr.bf16.mxu0 %v4004
    %5635 = vmatpush1.bf16.msra.mxu0 %v4003
    %5636 = vmatprep.subr.bf16.mxu0 %v4009
    %5637 = vmatpush1.bf16.msra.mxu0 %v4008
    %5638 = vmatprep.subr.bf16.mxu0 %v4014
    %5639 = vmatpush1.bf16.msra.mxu0 %v4013
    %5640 = vmatprep.subr.bf16.mxu0 %v4019
    %5641 = vmatpush1.bf16.msra.mxu0 %v4018
    %5642 = vmatprep.subr.bf16.mxu0 %v4024
    %5643 = vmatpush1.bf16.msra.mxu0 %v4023
    %5644 = vmatprep.subr.bf16.mxu0 %v4029
    %5645 = vmatpush1.bf16.msra.mxu0 %v4028
    %5646 = vmatprep.subr.bf16.mxu0 %v4034
    %5647 = vmatpush1.bf16.msra.mxu0 %v4033
    %5648 = vmatprep.subr.bf16.mxu0 %v4039
    %5649 = vmatpush1.bf16.msra.mxu0 %v4038
    %5650 = vmatprep.subr.bf16.mxu0 %v4044
    %5651 = vmatpush1.bf16.msra.mxu0 %v4043
    %5652 = vmatprep.subr.bf16.mxu0 %v4049
    %5653 = vmatpush1.bf16.msra.mxu0 %v4048
    %5654 = vmatprep.subr.bf16.mxu0 %v4054
    %5655 = vmatpush1.bf16.msra.mxu0 %v4053
    %5656 = vmatprep.subr.bf16.mxu0 %v4059
    %5657 = vmatpush1.bf16.msra.mxu0 %v4058
    %5658 = vmatprep.mubr.bf16.mxu0 %v156
    %5659 = vmatmul.mubr.bf16.gmra.mrb[0].mxu0 %v155
    %v5660 = vpop.f32.mrb[0].mxu0
    %v5661 = vadd.f32 %v5618, %v5660
    %v5662 = vpop.f32.mrb[0].mxu0
    %v5663 = vadd.f32 %v5620, %v5662
    %v5664 = vpop.f32.mrb[0].mxu0
    %v5665 = vadd.f32 %v5622, %v5664
    %v5666 = vpop.f32.mrb[0].mxu0
    %v5667 = vadd.f32 %v5624, %v5666
    %5668 = vdwg.mxu0
    %5669 = vmatprep.subr.bf16.mxu0 %v4064
    %5670 = vmatpush1.bf16.msra.mxu0 %v4063
    %5671 = vmatprep.subr.bf16.mxu0 %v4069
    %5672 = vmatpush1.bf16.msra.mxu0 %v4068
    %5673 = vmatprep.subr.bf16.mxu0 %v4074
    %5674 = vmatpush1.bf16.msra.mxu0 %v4073
    %5675 = vmatprep.subr.bf16.mxu0 %v4079
    %5676 = vmatpush1.bf16.msra.mxu0 %v4078
    %5677 = vmatprep.subr.bf16.mxu0 %v4084
    %5678 = vmatpush1.bf16.msra.mxu0 %v4083
    %5679 = vmatprep.subr.bf16.mxu0 %v4089
    %5680 = vmatpush1.bf16.msra.mxu0 %v4088
    %5681 = vmatprep.subr.bf16.mxu0 %v4094
    %5682 = vmatpush1.bf16.msra.mxu0 %v4093
    %5683 = vmatprep.subr.bf16.mxu0 %v4099
    %5684 = vmatpush1.bf16.msra.mxu0 %v4098
    %5685 = vmatprep.subr.bf16.mxu0 %v4104
    %5686 = vmatpush1.bf16.msra.mxu0 %v4103
    %5687 = vmatprep.subr.bf16.mxu0 %v4109
    %5688 = vmatpush1.bf16.msra.mxu0 %v4108
    %5689 = vmatprep.subr.bf16.mxu0 %v4114
    %5690 = vmatpush1.bf16.msra.mxu0 %v4113
    %5691 = vmatprep.subr.bf16.mxu0 %v4119
    %5692 = vmatpush1.bf16.msra.mxu0 %v4118
    %5693 = vmatprep.subr.bf16.mxu0 %v4124
    %5694 = vmatpush1.bf16.msra.mxu0 %v4123
    %5695 = vmatprep.subr.bf16.mxu0 %v4129
    %5696 = vmatpush1.bf16.msra.mxu0 %v4128
    %5697 = vmatprep.subr.bf16.mxu0 %v4134
    %5698 = vmatpush1.bf16.msra.mxu0 %v4133
    %5699 = vmatprep.subr.bf16.mxu0 %v4139
    %5700 = vmatpush1.bf16.msra.mxu0 %v4138
    %5701 = vmatprep.mubr.bf16.mxu0 %v158
    %5702 = vmatmul.mubr.bf16.gmra.mrb[0].mxu0 %v157
    %v5703 = vpop.f32.mrb[0].mxu0
    %v5704 = vadd.f32 %v5661, %v5703
    %v5705 = vpop.f32.mrb[0].mxu0
    %v5706 = vadd.f32 %v5663, %v5705
    %v5707 = vpop.f32.mrb[0].mxu0
    %v5708 = vadd.f32 %v5665, %v5707
    %v5709 = vpop.f32.mrb[0].mxu0
    %v5710 = vadd.f32 %v5667, %v5709
    %5711 = vdwg.mxu0
    %5712 = vmatprep.subr.bf16.mxu0 %v4144
    %5713 = vmatpush1.bf16.msra.mxu0 %v4143
    %5714 = vmatprep.subr.bf16.mxu0 %v4149
    %5715 = vmatpush1.bf16.msra.mxu0 %v4148
    %5716 = vmatprep.subr.bf16.mxu0 %v4154
    %5717 = vmatpush1.bf16.msra.mxu0 %v4153
    %5718 = vmatprep.subr.bf16.mxu0 0
    %5719 = vmatpush1.bf16.msra.mxu0 0
    %5720 = vmatprep.subr.bf16.mxu0 0
    %5721 = vmatpush1.bf16.msra.mxu0 0
    %5722 = vmatprep.subr.bf16.mxu0 0
    %5723 = vmatpush1.bf16.msra.mxu0 0
    %5724 = vmatprep.subr.bf16.mxu0 0
    %5725 = vmatpush1.bf16.msra.mxu0 0
    %5726 = vmatprep.subr.bf16.mxu0 0
    %5727 = vmatpush1.bf16.msra.mxu0 0
    %5728 = vmatprep.subr.bf16.mxu0 0
    %5729 = vmatpush1.bf16.msra.mxu0 0
    %5730 = vmatprep.subr.bf16.mxu0 0
    %5731 = vmatpush1.bf16.msra.mxu0 0
    %5732 = vmatprep.subr.bf16.mxu0 0
    %5733 = vmatpush1.bf16.msra.mxu0 0
    %5734 = vmatprep.subr.bf16.mxu0 0
    %5735 = vmatpush1.bf16.msra.mxu0 0
    %5736 = vmatprep.subr.bf16.mxu0 0
    %5737 = vmatpush1.bf16.msra.mxu0 0
    %5738 = vmatprep.subr.bf16.mxu0 0
    %5739 = vmatpush1.bf16.msra.mxu0 0
    %5740 = vmatprep.subr.bf16.mxu0 0
    %5741 = vmatpush1.bf16.msra.mxu0 0
    %5742 = vmatprep.subr.bf16.mxu0 0
    %5743 = vmatpush1.bf16.msra.mxu0 0
    %5744 = vmatprep.mubr.bf16.mxu0 0
    %5745 = vmatmul.mubr.bf16.gmra.mrb[0].mxu0 %v4893
    %v5746 = vpop.f32.mrb[0].mxu0
    %v5747 = vadd.f32 %v5704, %v5746
    %v5748 = vpop.f32.mrb[0].mxu0
    %v5749 = vadd.f32 %v5706, %v5748
    %v5750 = vpop.f32.mrb[0].mxu0
    %v5751 = vadd.f32 %v5708, %v5750
    %v5752 = vpop.f32.mrb[0].mxu0
    %v5753 = vadd.f32 %v5710, %v5752
    %5754 = vdwg.mxu0
    %5755 = vmatprep.subr.bf16.mxu0 0
    %5756 = vmatpush1.bf16.msra.mxu0 %v3425
    %5757 = vmatprep.subr.bf16.mxu0 0
    %5758 = vmatpush1.bf16.msra.mxu0 %v3430
    %5759 = vmatprep.subr.bf16.mxu0 0
    %5760 = vmatpush1.bf16.msra.mxu0 %v3435
    %5761 = vmatprep.subr.bf16.mxu0 0
    %5762 = vmatpush1.bf16.msra.mxu0 %v3440
    %5763 = vmatprep.subr.bf16.mxu0 0
    %5764 = vmatpush1.bf16.msra.mxu0 %v3445
    %5765 = vmatprep.subr.bf16.mxu0 0
    %5766 = vmatpush1.bf16.msra.mxu0 %v3450
    %5767 = vmatprep.subr.bf16.mxu0 0
    %5768 = vmatpush1.bf16.msra.mxu0 %v3455
    %5769 = vmatprep.subr.bf16.mxu0 0
    %5770 = vmatpush1.bf16.msra.mxu0 %v3460
    %5771 = vmatprep.subr.bf16.mxu0 0
    %5772 = vmatpush1.bf16.msra.mxu0 %v3465
    %5773 = vmatprep.subr.bf16.mxu0 0
    %5774 = vmatpush1.bf16.msra.mxu0 %v3470
    %5775 = vmatprep.subr.bf16.mxu0 0
    %5776 = vmatpush1.bf16.msra.mxu0 %v3475
    %5777 = vmatprep.subr.bf16.mxu0 0
    %5778 = vmatpush1.bf16.msra.mxu0 %v3480
    %5779 = vmatprep.subr.bf16.mxu0 0
    %5780 = vmatpush1.bf16.msra.mxu0 %v3485
    %5781 = vmatprep.subr.bf16.mxu0 0
    %5782 = vmatpush1.bf16.msra.mxu0 %v3490
    %5783 = vmatprep.subr.bf16.mxu0 0
    %5784 = vmatpush1.bf16.msra.mxu0 %v3495
    %5785 = vmatprep.subr.bf16.mxu0 0
    %5786 = vmatpush1.bf16.msra.mxu0 %v3500
    %5787 = vmatprep.mubr.bf16.mxu0 %v142
    %5788 = vmatmul.mubr.bf16.gmra.mrb[0].mxu0 %v141
    %v5789 = vpop.f32.mrb[0].mxu0
    %v5790 = vadd.f32 %v1063, %v5789
    %v5791 = vpop.f32.mrb[0].mxu0
    %v5792 = vpop.f32.mrb[0].mxu0
    %v5793 = vadd.f32 %v1063, %v5792
    %v5794 = vpop.f32.mrb[0].mxu0
    %5795 = vdwg.mxu0
    %5796 = vmatprep.subr.bf16.mxu0 0
    %5797 = vmatpush1.bf16.msra.mxu0 %v3505
    %5798 = vmatprep.subr.bf16.mxu0 0
    %5799 = vmatpush1.bf16.msra.mxu0 %v3510
    %5800 = vmatprep.subr.bf16.mxu0 0
    %5801 = vmatpush1.bf16.msra.mxu0 %v3515
    %5802 = vmatprep.subr.bf16.mxu0 0
    %5803 = vmatpush1.bf16.msra.mxu0 %v3520
    %5804 = vmatprep.subr.bf16.mxu0 0
    %5805 = vmatpush1.bf16.msra.mxu0 %v3525
    %5806 = vmatprep.subr.bf16.mxu0 0
    %5807 = vmatpush1.bf16.msra.mxu0 %v3530
    %5808 = vmatprep.subr.bf16.mxu0 0
    %5809 = vmatpush1.bf16.msra.mxu0 %v3535
    %5810 = vmatprep.subr.bf16.mxu0 0
    %5811 = vmatpush1.bf16.msra.mxu0 %v3540
    %5812 = vmatprep.subr.bf16.mxu0 0
    %5813 = vmatpush1.bf16.msra.mxu0 %v3545
    %5814 = vmatprep.subr.bf16.mxu0 0
    %5815 = vmatpush1.bf16.msra.mxu0 %v3550
    %5816 = vmatprep.subr.bf16.mxu0 0
    %5817 = vmatpush1.bf16.msra.mxu0 %v3555
    %5818 = vmatprep.subr.bf16.mxu0 0
    %5819 = vmatpush1.bf16.msra.mxu0 %v3560
    %5820 = vmatprep.subr.bf16.mxu0 0
    %5821 = vmatpush1.bf16.msra.mxu0 %v3565
    %5822 = vmatprep.subr.bf16.mxu0 0
    %5823 = vmatpush1.bf16.msra.mxu0 %v3570
    %5824 = vmatprep.subr.bf16.mxu0 0
    %5825 = vmatpush1.bf16.msra.mxu0 %v3575
    %5826 = vmatprep.subr.bf16.mxu0 0
    %5827 = vmatpush1.bf16.msra.mxu0 %v3580
    %5828 = vmatprep.mubr.bf16.mxu0 %v144
    %5829 = vmatmul.mubr.bf16.gmra.mrb[0].mxu0 %v143
    %v5830 = vpop.f32.mrb[0].mxu0
    %v5831 = vadd.f32 %v5790, %v5830
    %v5832 = vpop.f32.mrb[0].mxu0
    %v5833 = vpop.f32.mrb[0].mxu0
    %v5834 = vadd.f32 %v5793, %v5833
    %v5835 = vpop.f32.mrb[0].mxu0
    %5836 = vdwg.mxu0
    %5837 = vmatprep.subr.bf16.mxu0 0
    %5838 = vmatpush1.bf16.msra.mxu0 %v3585
    %5839 = vmatprep.subr.bf16.mxu0 0
    %5840 = vmatpush1.bf16.msra.mxu0 %v3590
    %5841 = vmatprep.subr.bf16.mxu0 0
    %5842 = vmatpush1.bf16.msra.mxu0 %v3595
    %5843 = vmatprep.subr.bf16.mxu0 0
    %5844 = vmatpush1.bf16.msra.mxu0 %v3600
    %5845 = vmatprep.subr.bf16.mxu0 0
    %5846 = vmatpush1.bf16.msra.mxu0 %v3605
    %5847 = vmatprep.subr.bf16.mxu0 0
    %5848 = vmatpush1.bf16.msra.mxu0 %v3610
    %5849 = vmatprep.subr.bf16.mxu0 0
    %5850 = vmatpush1.bf16.msra.mxu0 %v3615
    %5851 = vmatprep.subr.bf16.mxu0 0
    %5852 = vmatpush1.bf16.msra.mxu0 %v3620
    %5853 = vmatprep.subr.bf16.mxu0 0
    %5854 = vmatpush1.bf16.msra.mxu0 %v3625
    %5855 = vmatprep.subr.bf16.mxu0 0
    %5856 = vmatpush1.bf16.msra.mxu0 %v3630
    %5857 = vmatprep.subr.bf16.mxu0 0
    %5858 = vmatpush1.bf16.msra.mxu0 %v3635
    %5859 = vmatprep.subr.bf16.mxu0 0
    %5860 = vmatpush1.bf16.msra.mxu0 %v3640
    %5861 = vmatprep.subr.bf16.mxu0 0
    %5862 = vmatpush1.bf16.msra.mxu0 %v3645
    %5863 = vmatprep.subr.bf16.mxu0 0
    %5864 = vmatpush1.bf16.msra.mxu0 %v3650
    %5865 = vmatprep.subr.bf16.mxu0 0
    %5866 = vmatpush1.bf16.msra.mxu0 %v3655
    %5867 = vmatprep.subr.bf16.mxu0 0
    %5868 = vmatpush1.bf16.msra.mxu0 %v3660
    %5869 = vmatprep.mubr.bf16.mxu0 %v146
    %5870 = vmatmul.mubr.bf16.gmra.mrb[0].mxu0 %v145
    %v5871 = vpop.f32.mrb[0].mxu0
    %v5872 = vadd.f32 %v5831, %v5871
    %v5873 = vpop.f32.mrb[0].mxu0
    %v5874 = vpop.f32.mrb[0].mxu0
    %v5875 = vadd.f32 %v5834, %v5874
    %v5876 = vpop.f32.mrb[0].mxu0
    %5877 = vdwg.mxu0
    %5878 = vmatprep.subr.bf16.mxu0 0
    %5879 = vmatpush1.bf16.msra.mxu0 %v3665
    %5880 = vmatprep.subr.bf16.mxu0 0
    %5881 = vmatpush1.bf16.msra.mxu0 %v3670
    %5882 = vmatprep.subr.bf16.mxu0 0
    %5883 = vmatpush1.bf16.msra.mxu0 %v3675
    %5884 = vmatprep.subr.bf16.mxu0 0
    %5885 = vmatpush1.bf16.msra.mxu0 %v3680
    %5886 = vmatprep.subr.bf16.mxu0 0
    %5887 = vmatpush1.bf16.msra.mxu0 %v3685
    %5888 = vmatprep.subr.bf16.mxu0 0
    %5889 = vmatpush1.bf16.msra.mxu0 %v3690
    %5890 = vmatprep.subr.bf16.mxu0 0
    %5891 = vmatpush1.bf16.msra.mxu0 %v3695
    %5892 = vmatprep.subr.bf16.mxu0 0
    %5893 = vmatpush1.bf16.msra.mxu0 %v3700
    %5894 = vmatprep.subr.bf16.mxu0 0
    %5895 = vmatpush1.bf16.msra.mxu0 %v3705
    %5896 = vmatprep.subr.bf16.mxu0 0
    %5897 = vmatpush1.bf16.msra.mxu0 %v3710
    %5898 = vmatprep.subr.bf16.mxu0 0
    %5899 = vmatpush1.bf16.msra.mxu0 %v3715
    %5900 = vmatprep.subr.bf16.mxu0 0
    %5901 = vmatpush1.bf16.msra.mxu0 %v3720
    %5902 = vmatprep.subr.bf16.mxu0 0
    %5903 = vmatpush1.bf16.msra.mxu0 %v3725
    %5904 = vmatprep.subr.bf16.mxu0 0
    %5905 = vmatpush1.bf16.msra.mxu0 %v3730
    %5906 = vmatprep.subr.bf16.mxu0 0
    %5907 = vmatpush1.bf16.msra.mxu0 %v3735
    %5908 = vmatprep.subr.bf16.mxu0 0
    %5909 = vmatpush1.bf16.msra.mxu0 %v3740
    %5910 = vmatprep.mubr.bf16.mxu0 %v148
    %5911 = vmatmul.mubr.bf16.gmra.mrb[0].mxu0 %v147
    %v5912 = vpop.f32.mrb[0].mxu0
    %v5913 = vadd.f32 %v5872, %v5912
    %v5914 = vpop.f32.mrb[0].mxu0
    %v5915 = vpop.f32.mrb[0].mxu0
    %v5916 = vadd.f32 %v5875, %v5915
    %v5917 = vpop.f32.mrb[0].mxu0
    %5918 = vdwg.mxu0
    %5919 = vmatprep.subr.bf16.mxu0 0
    %5920 = vmatpush1.bf16.msra.mxu0 %v3745
    %5921 = vmatprep.subr.bf16.mxu0 0
    %5922 = vmatpush1.bf16.msra.mxu0 %v3750
    %5923 = vmatprep.subr.bf16.mxu0 0
    %5924 = vmatpush1.bf16.msra.mxu0 %v3755
    %5925 = vmatprep.subr.bf16.mxu0 0
    %5926 = vmatpush1.bf16.msra.mxu0 %v3760
    %5927 = vmatprep.subr.bf16.mxu0 0
    %5928 = vmatpush1.bf16.msra.mxu0 %v3765
    %5929 = vmatprep.subr.bf16.mxu0 0
    %5930 = vmatpush1.bf16.msra.mxu0 %v3770
    %5931 = vmatprep.subr.bf16.mxu0 0
    %5932 = vmatpush1.bf16.msra.mxu0 %v3775
    %5933 = vmatprep.subr.bf16.mxu0 0
    %5934 = vmatpush1.bf16.msra.mxu0 %v3780
    %5935 = vmatprep.subr.bf16.mxu0 0
    %5936 = vmatpush1.bf16.msra.mxu0 %v3785
    %5937 = vmatprep.subr.bf16.mxu0 0
    %5938 = vmatpush1.bf16.msra.mxu0 %v3790
    %5939 = vmatprep.subr.bf16.mxu0 0
    %5940 = vmatpush1.bf16.msra.mxu0 %v3795
    %5941 = vmatprep.subr.bf16.mxu0 0
    %5942 = vmatpush1.bf16.msra.mxu0 %v3800
    %5943 = vmatprep.subr.bf16.mxu0 0
    %5944 = vmatpush1.bf16.msra.mxu0 %v3805
    %5945 = vmatprep.subr.bf16.mxu0 0
    %5946 = vmatpush1.bf16.msra.mxu0 %v3810
    %5947 = vmatprep.subr.bf16.mxu0 0
    %5948 = vmatpush1.bf16.msra.mxu0 %v3815
    %5949 = vmatprep.subr.bf16.mxu0 0
    %5950 = vmatpush1.bf16.msra.mxu0 %v3820
    %5951 = vmatprep.mubr.bf16.mxu0 %v150
    %5952 = vmatmul.mubr.bf16.gmra.mrb[0].mxu0 %v149
    %v5953 = vpop.f32.mrb[0].mxu0
    %v5954 = vadd.f32 %v5913, %v5953
    %v5955 = vpop.f32.mrb[0].mxu0
    %v5956 = vpop.f32.mrb[0].mxu0
    %v5957 = vadd.f32 %v5916, %v5956
    %v5958 = vpop.f32.mrb[0].mxu0
    %5959 = vdwg.mxu0
    %5960 = vmatprep.subr.bf16.mxu0 0
    %5961 = vmatpush1.bf16.msra.mxu0 %v3825
    %5962 = vmatprep.subr.bf16.mxu0 0
    %5963 = vmatpush1.bf16.msra.mxu0 %v3830
    %5964 = vmatprep.subr.bf16.mxu0 0
    %5965 = vmatpush1.bf16.msra.mxu0 %v3835
    %5966 = vmatprep.subr.bf16.mxu0 0
    %5967 = vmatpush1.bf16.msra.mxu0 %v3840
    %5968 = vmatprep.subr.bf16.mxu0 0
    %5969 = vmatpush1.bf16.msra.mxu0 %v3845
    %5970 = vmatprep.subr.bf16.mxu0 0
    %5971 = vmatpush1.bf16.msra.mxu0 %v3850
    %5972 = vmatprep.subr.bf16.mxu0 0
    %5973 = vmatpush1.bf16.msra.mxu0 %v3855
    %5974 = vmatprep.subr.bf16.mxu0 0
    %5975 = vmatpush1.bf16.msra.mxu0 %v3860
    %5976 = vmatprep.subr.bf16.mxu0 0
    %5977 = vmatpush1.bf16.msra.mxu0 %v3865
    %5978 = vmatprep.subr.bf16.mxu0 0
    %5979 = vmatpush1.bf16.msra.mxu0 %v3870
    %5980 = vmatprep.subr.bf16.mxu0 0
    %5981 = vmatpush1.bf16.msra.mxu0 %v3875
    %5982 = vmatprep.subr.bf16.mxu0 0
    %5983 = vmatpush1.bf16.msra.mxu0 %v3880
    %5984 = vmatprep.subr.bf16.mxu0 0
    %5985 = vmatpush1.bf16.msra.mxu0 %v3885
    %5986 = vmatprep.subr.bf16.mxu0 0
    %5987 = vmatpush1.bf16.msra.mxu0 %v3890
    %5988 = vmatprep.subr.bf16.mxu0 0
    %5989 = vmatpush1.bf16.msra.mxu0 %v3895
    %5990 = vmatprep.subr.bf16.mxu0 0
    %5991 = vmatpush1.bf16.msra.mxu0 %v3900
    %5992 = vmatprep.mubr.bf16.mxu0 %v152
    %5993 = vmatmul.mubr.bf16.gmra.mrb[0].mxu0 %v151
    %v5994 = vpop.f32.mrb[0].mxu0
    %v5995 = vadd.f32 %v5954, %v5994
    %v5996 = vpop.f32.mrb[0].mxu0
    %v5997 = vpop.f32.mrb[0].mxu0
    %v5998 = vadd.f32 %v5957, %v5997
    %v5999 = vpop.f32.mrb[0].mxu0
    %6000 = vdwg.mxu0
    %6001 = vmatprep.subr.bf16.mxu0 0
    %6002 = vmatpush1.bf16.msra.mxu0 %v3905
    %6003 = vmatprep.subr.bf16.mxu0 0
    %6004 = vmatpush1.bf16.msra.mxu0 %v3910
    %6005 = vmatprep.subr.bf16.mxu0 0
    %6006 = vmatpush1.bf16.msra.mxu0 %v3915
    %6007 = vmatprep.subr.bf16.mxu0 0
    %6008 = vmatpush1.bf16.msra.mxu0 %v3920
    %6009 = vmatprep.subr.bf16.mxu0 0
    %6010 = vmatpush1.bf16.msra.mxu0 %v3925
    %6011 = vmatprep.subr.bf16.mxu0 0
    %6012 = vmatpush1.bf16.msra.mxu0 %v3930
    %6013 = vmatprep.subr.bf16.mxu0 0
    %6014 = vmatpush1.bf16.msra.mxu0 %v3935
    %6015 = vmatprep.subr.bf16.mxu0 0
    %6016 = vmatpush1.bf16.msra.mxu0 %v3940
    %6017 = vmatprep.subr.bf16.mxu0 0
    %6018 = vmatpush1.bf16.msra.mxu0 %v3945
    %6019 = vmatprep.subr.bf16.mxu0 0
    %6020 = vmatpush1.bf16.msra.mxu0 %v3950
    %6021 = vmatprep.subr.bf16.mxu0 0
    %6022 = vmatpush1.bf16.msra.mxu0 %v3955
    %6023 = vmatprep.subr.bf16.mxu0 0
    %6024 = vmatpush1.bf16.msra.mxu0 %v3960
    %6025 = vmatprep.subr.bf16.mxu0 0
    %6026 = vmatpush1.bf16.msra.mxu0 %v3965
    %6027 = vmatprep.subr.bf16.mxu0 0
    %6028 = vmatpush1.bf16.msra.mxu0 %v3970
    %6029 = vmatprep.subr.bf16.mxu0 0
    %6030 = vmatpush1.bf16.msra.mxu0 %v3975
    %6031 = vmatprep.subr.bf16.mxu0 0
    %6032 = vmatpush1.bf16.msra.mxu0 %v3980
    %6033 = vmatprep.mubr.bf16.mxu0 %v154
    %6034 = vmatmul.mubr.bf16.gmra.mrb[0].mxu0 %v153
    %v6035 = vpop.f32.mrb[0].mxu0
    %v6036 = vadd.f32 %v5995, %v6035
    %v6037 = vpop.f32.mrb[0].mxu0
    %v6038 = vpop.f32.mrb[0].mxu0
    %v6039 = vadd.f32 %v5998, %v6038
    %v6040 = vpop.f32.mrb[0].mxu0
    %6041 = vdwg.mxu0
    %6042 = vmatprep.subr.bf16.mxu0 0
    %6043 = vmatpush1.bf16.msra.mxu0 %v3985
    %6044 = vmatprep.subr.bf16.mxu0 0
    %6045 = vmatpush1.bf16.msra.mxu0 %v3990
    %6046 = vmatprep.subr.bf16.mxu0 0
    %6047 = vmatpush1.bf16.msra.mxu0 %v3995
    %6048 = vmatprep.subr.bf16.mxu0 0
    %6049 = vmatpush1.bf16.msra.mxu0 %v4000
    %6050 = vmatprep.subr.bf16.mxu0 0
    %6051 = vmatpush1.bf16.msra.mxu0 %v4005
    %6052 = vmatprep.subr.bf16.mxu0 0
    %6053 = vmatpush1.bf16.msra.mxu0 %v4010
    %6054 = vmatprep.subr.bf16.mxu0 0
    %6055 = vmatpush1.bf16.msra.mxu0 %v4015
    %6056 = vmatprep.subr.bf16.mxu0 0
    %6057 = vmatpush1.bf16.msra.mxu0 %v4020
    %6058 = vmatprep.subr.bf16.mxu0 0
    %6059 = vmatpush1.bf16.msra.mxu0 %v4025
    %6060 = vmatprep.subr.bf16.mxu0 0
    %6061 = vmatpush1.bf16.msra.mxu0 %v4030
    %6062 = vmatprep.subr.bf16.mxu0 0
    %6063 = vmatpush1.bf16.msra.mxu0 %v4035
    %6064 = vmatprep.subr.bf16.mxu0 0
    %6065 = vmatpush1.bf16.msra.mxu0 %v4040
    %6066 = vmatprep.subr.bf16.mxu0 0
    %6067 = vmatpush1.bf16.msra.mxu0 %v4045
    %6068 = vmatprep.subr.bf16.mxu0 0
    %6069 = vmatpush1.bf16.msra.mxu0 %v4050
    %6070 = vmatprep.subr.bf16.mxu0 0
    %6071 = vmatpush1.bf16.msra.mxu0 %v4055
    %6072 = vmatprep.subr.bf16.mxu0 0
    %6073 = vmatpush1.bf16.msra.mxu0 %v4060
    %6074 = vmatprep.mubr.bf16.mxu0 %v156
    %6075 = vmatmul.mubr.bf16.gmra.mrb[0].mxu0 %v155
    %v6076 = vpop.f32.mrb[0].mxu0
    %v6077 = vadd.f32 %v6036, %v6076
    %v6078 = vpop.f32.mrb[0].mxu0
    %v6079 = vpop.f32.mrb[0].mxu0
    %v6080 = vadd.f32 %v6039, %v6079
    %v6081 = vpop.f32.mrb[0].mxu0
    %6082 = vdwg.mxu0
    %6083 = vmatprep.subr.bf16.mxu0 0
    %6084 = vmatpush1.bf16.msra.mxu0 %v4065
    %6085 = vmatprep.subr.bf16.mxu0 0
    %6086 = vmatpush1.bf16.msra.mxu0 %v4070
    %6087 = vmatprep.subr.bf16.mxu0 0
    %6088 = vmatpush1.bf16.msra.mxu0 %v4075
    %6089 = vmatprep.subr.bf16.mxu0 0
    %6090 = vmatpush1.bf16.msra.mxu0 %v4080
    %6091 = vmatprep.subr.bf16.mxu0 0
    %6092 = vmatpush1.bf16.msra.mxu0 %v4085
    %6093 = vmatprep.subr.bf16.mxu0 0
    %6094 = vmatpush1.bf16.msra.mxu0 %v4090
    %6095 = vmatprep.subr.bf16.mxu0 0
    %6096 = vmatpush1.bf16.msra.mxu0 %v4095
    %6097 = vmatprep.subr.bf16.mxu0 0
    %6098 = vmatpush1.bf16.msra.mxu0 %v4100
    %6099 = vmatprep.subr.bf16.mxu0 0
    %6100 = vmatpush1.bf16.msra.mxu0 %v4105
    %6101 = vmatprep.subr.bf16.mxu0 0
    %6102 = vmatpush1.bf16.msra.mxu0 %v4110
    %6103 = vmatprep.subr.bf16.mxu0 0
    %6104 = vmatpush1.bf16.msra.mxu0 %v4115
    %6105 = vmatprep.subr.bf16.mxu0 0
    %6106 = vmatpush1.bf16.msra.mxu0 %v4120
    %6107 = vmatprep.subr.bf16.mxu0 0
    %6108 = vmatpush1.bf16.msra.mxu0 %v4125
    %6109 = vmatprep.subr.bf16.mxu0 0
    %6110 = vmatpush1.bf16.msra.mxu0 %v4130
    %6111 = vmatprep.subr.bf16.mxu0 0
    %6112 = vmatpush1.bf16.msra.mxu0 %v4135
    %6113 = vmatprep.subr.bf16.mxu0 0
    %6114 = vmatpush1.bf16.msra.mxu0 %v4140
    %6115 = vmatprep.mubr.bf16.mxu0 %v158
    %6116 = vmatmul.mubr.bf16.gmra.mrb[0].mxu0 %v157
    %v6117 = vpop.f32.mrb[0].mxu0
    %v6118 = vadd.f32 %v6077, %v6117
    %v6119 = vpop.f32.mrb[0].mxu0
    %v6120 = vpop.f32.mrb[0].mxu0
    %v6121 = vadd.f32 %v6080, %v6120
    %v6122 = vpop.f32.mrb[0].mxu0
    %6123 = vdwg.mxu0
    %6124 = vmatprep.subr.bf16.mxu0 0
    %6125 = vmatpush1.bf16.msra.mxu0 %v4145
    %6126 = vmatprep.subr.bf16.mxu0 0
    %6127 = vmatpush1.bf16.msra.mxu0 %v4150
    %6128 = vmatprep.subr.bf16.mxu0 0
    %6129 = vmatpush1.bf16.msra.mxu0 %v4155
    %6130 = vmatprep.subr.bf16.mxu0 0
    %6131 = vmatpush1.bf16.msra.mxu0 0
    %6132 = vmatprep.subr.bf16.mxu0 0
    %6133 = vmatpush1.bf16.msra.mxu0 0
    %6134 = vmatprep.subr.bf16.mxu0 0
    %6135 = vmatpush1.bf16.msra.mxu0 0
    %6136 = vmatprep.subr.bf16.mxu0 0
    %6137 = vmatpush1.bf16.msra.mxu0 0
    %6138 = vmatprep.subr.bf16.mxu0 0
    %6139 = vmatpush1.bf16.msra.mxu0 0
    %6140 = vmatprep.subr.bf16.mxu0 0
    %6141 = vmatpush1.bf16.msra.mxu0 0
    %6142 = vmatprep.subr.bf16.mxu0 0
    %6143 = vmatpush1.bf16.msra.mxu0 0
    %6144 = vmatprep.subr.bf16.mxu0 0
    %6145 = vmatpush1.bf16.msra.mxu0 0
    %6146 = vmatprep.subr.bf16.mxu0 0
    %6147 = vmatpush1.bf16.msra.mxu0 0
    %6148 = vmatprep.subr.bf16.mxu0 0
    %6149 = vmatpush1.bf16.msra.mxu0 0
    %6150 = vmatprep.subr.bf16.mxu0 0
    %6151 = vmatpush1.bf16.msra.mxu0 0
    %6152 = vmatprep.subr.bf16.mxu0 0
    %6153 = vmatpush1.bf16.msra.mxu0 0
    %6154 = vmatprep.subr.bf16.mxu0 0
    %6155 = vmatpush1.bf16.msra.mxu0 0
    %6156 = vmatprep.mubr.bf16.mxu0 0
    %6157 = vmatmul.mubr.bf16.gmra.mrb[0].mxu0 %v4893
    %v6158 = vpop.f32.mrb[0].mxu0
    %v6159 = vadd.f32 %v6118, %v6158
    %v6160 = vpop.f32.mrb[0].mxu0
    %v6161 = vpop.f32.mrb[0].mxu0
    %v6162 = vadd.f32 %v6121, %v6161
    %v6163 = vpop.f32.mrb[0].mxu0
    %6164 = vdwg.mxu0
    %v6165 = vmax.f32 %v5317, 0.0
    %v6166 = vmax.f32 %v5319, 0.0
    %v6167 = vmax.f32 %v5747, 0.0
    %v6168 = vmax.f32 %v5749, 0.0
    %v6169 = vmax.f32 %v6159, 0.0
    %v6170 = vmax.f32 %v5321, 0.0
    %v6171 = vmax.f32 %v5323, 0.0
    %v6172 = vmax.f32 %v5751, 0.0
    %v6173 = vmax.f32 %v5753, 0.0
    %v6174 = vmax.f32 %v6162, 0.0
    %v6175 = vpack.c.bf16 %v6170, %v6165
    %v6176 = vpack.c.bf16 %v6171, %v6166
    %v6177 = vpack.c.bf16 %v6172, %v6167
    %v6178 = vpack.c.bf16 %v6173, %v6168
    %v6179 = vpack.c.bf16 %v6174, %v6169
    %v6180 = vld [vmem:[#allocation6] sm:$0xff]
    %v6181 = vld [vmem:[#allocation6 + $0x8] sm:$0xff]
    %v6182 = vld [vmem:[#allocation6 + $0x10] sm:$0xf]
    %v6183 = vld [vmem:[#allocation6 + $0x14] sm:$0xff]
    %v6184 = vld [vmem:[#allocation6 + $0x1c] sm:$0xff]
    %v6185 = vld [vmem:[#allocation6 + $0x24] sm:$0xf]
    %v6186 = vld [vmem:[#allocation6 + $0x28] sm:$0xff]
    %v6187 = vld [vmem:[#allocation6 + $0x30] sm:$0xff]
    %v6188 = vld [vmem:[#allocation6 + $0x38] sm:$0xf]
    %v6189 = vld [vmem:[#allocation6 + $0x3c] sm:$0xff]
    %v6190 = vld [vmem:[#allocation6 + $0x44] sm:$0xff]
    %v6191 = vld [vmem:[#allocation6 + $0x4c] sm:$0xf]
    %v6192 = vld [vmem:[#allocation6 + $0x50] sm:$0xff]
    %v6193 = vld [vmem:[#allocation6 + $0x58] sm:$0xff]
    %v6194 = vld [vmem:[#allocation6 + $0x60] sm:$0xf]
    %v6195 = vld [vmem:[#allocation6 + $0x64] sm:$0xff]
    %v6196 = vld [vmem:[#allocation6 + $0x6c] sm:$0xff]
    %v6197 = vld [vmem:[#allocation6 + $0x74] sm:$0xf]
    %v6198 = vld [vmem:[#allocation6 + $0x78] sm:$0xff]
    %v6199 = vld [vmem:[#allocation6 + $0x80] sm:$0xff]
    %v6200 = vld [vmem:[#allocation6 + $0x88] sm:$0xf]
    %v6201 = vld [vmem:[#allocation6 + $0x8c] sm:$0xff]
    %v6202 = vld [vmem:[#allocation6 + $0x94] sm:$0xff]
    %v6203 = vld [vmem:[#allocation6 + $0x9c] sm:$0xf]
    %v6204 = vld [vmem:[#allocation6 + $0xa0] sm:$0xff]
    %v6205 = vld [vmem:[#allocation6 + $0xa8] sm:$0xff]
    %v6206 = vld [vmem:[#allocation6 + $0xb0] sm:$0xf]
    %v6207 = vld [vmem:[#allocation6 + $0xb4] sm:$0xff]
    %v6208 = vld [vmem:[#allocation6 + $0xbc] sm:$0xff]
    %v6209 = vld [vmem:[#allocation6 + $0xc4] sm:$0xf]
    %v6210 = vld [vmem:[#allocation6 + $0xc8] sm:$0xff]
    %v6211 = vld [vmem:[#allocation6 + $0xd0] sm:$0xff]
    %v6212 = vld [vmem:[#allocation6 + $0xd8] sm:$0xf]
    %v6213 = vld [vmem:[#allocation6 + $0xdc] sm:$0xff]
    %v6214 = vld [vmem:[#allocation6 + $0xe4] sm:$0xff]
    %v6215 = vld [vmem:[#allocation6 + $0xec] sm:$0xf]
    %v6216 = vld [vmem:[#allocation6 + $0xf0] sm:$0xff]
    %v6217 = vld [vmem:[#allocation6 + $0xf8] sm:$0xff]
    %v6218 = vld [vmem:[#allocation6 + $0x100] sm:$0xf]
    %v6219 = vld [vmem:[#allocation6 + $0x104] sm:$0xff]
    %v6220 = vld [vmem:[#allocation6 + $0x10c] sm:$0xff]
    %v6221 = vld [vmem:[#allocation6 + $0x114] sm:$0xf]
    %v6222 = vld [vmem:[#allocation6 + $0x118] sm:$0xff]
    %v6223 = vld [vmem:[#allocation6 + $0x120] sm:$0xff]
    %v6224 = vld [vmem:[#allocation6 + $0x128] sm:$0xf]
    %v6225 = vld [vmem:[#allocation6 + $0x12c] sm:$0xff]
    %v6226 = vld [vmem:[#allocation6 + $0x134] sm:$0xff]
    %v6227 = vld [vmem:[#allocation6 + $0x13c] sm:$0xf]
    %v6228 = vld [vmem:[#allocation6 + $0x140] sm:$0xff]
    %v6229 = vld [vmem:[#allocation6 + $0x148] sm:$0xff]
    %v6230 = vld [vmem:[#allocation6 + $0x150] sm:$0xf]
    %v6231 = vld [vmem:[#allocation6 + $0x154] sm:$0xff]
    %v6232 = vld [vmem:[#allocation6 + $0x15c] sm:$0xff]
    %v6233 = vld [vmem:[#allocation6 + $0x164] sm:$0xf]
    %v6234 = vld [vmem:[#allocation6 + $0x168] sm:$0xff]
    %v6235 = vld [vmem:[#allocation6 + $0x170] sm:$0xff]
    %v6236 = vld [vmem:[#allocation6 + $0x178] sm:$0xf]
    %v6237 = vld [vmem:[#allocation6 + $0x17c] sm:$0xff]
    %v6238 = vld [vmem:[#allocation6 + $0x184] sm:$0xff]
    %v6239 = vld [vmem:[#allocation6 + $0x18c] sm:$0xf]
    %v6240 = vld [vmem:[#allocation6 + $0x190] sm:$0xff]
    %v6241 = vld [vmem:[#allocation6 + $0x198] sm:$0xff]
    %v6242 = vld [vmem:[#allocation6 + $0x1a0] sm:$0xf]
    %v6243 = vld [vmem:[#allocation6 + $0x1a4] sm:$0xff]
    %v6244 = vld [vmem:[#allocation6 + $0x1ac] sm:$0xff]
    %v6245 = vld [vmem:[#allocation6 + $0x1b4] sm:$0xf]
    %v6246 = vld [vmem:[#allocation6 + $0x1b8] sm:$0xff]
    %v6247 = vld [vmem:[#allocation6 + $0x1c0] sm:$0xff]
    %v6248 = vld [vmem:[#allocation6 + $0x1c8] sm:$0xf]
    %v6249 = vld [vmem:[#allocation6 + $0x1cc] sm:$0xff]
    %v6250 = vld [vmem:[#allocation6 + $0x1d4] sm:$0xff]
    %v6251 = vld [vmem:[#allocation6 + $0x1dc] sm:$0xf]
    %v6252 = vld [vmem:[#allocation6 + $0x1e0] sm:$0xff]
    %v6253 = vld [vmem:[#allocation6 + $0x1e8] sm:$0xff]
    %v6254 = vld [vmem:[#allocation6 + $0x1f0] sm:$0xf]
    %v6255 = vld [vmem:[#allocation6 + $0x1f4] sm:$0xff]
    %v6256 = vld [vmem:[#allocation6 + $0x1fc] sm:$0xff]
    %v6257 = vld [vmem:[#allocation6 + $0x204] sm:$0xf]
    %v6258 = vld [vmem:[#allocation6 + $0x208] sm:$0xff]
    %v6259 = vld [vmem:[#allocation6 + $0x210] sm:$0xff]
    %v6260 = vld [vmem:[#allocation6 + $0x218] sm:$0xf]
    %v6261 = vld [vmem:[#allocation6 + $0x21c] sm:$0xff]
    %v6262 = vld [vmem:[#allocation6 + $0x224] sm:$0xff]
    %v6263 = vld [vmem:[#allocation6 + $0x22c] sm:$0xf]
    %v6264 = vld [vmem:[#allocation6 + $0x230] sm:$0xff]
    %v6265 = vld [vmem:[#allocation6 + $0x238] sm:$0xff]
    %v6266 = vld [vmem:[#allocation6 + $0x240] sm:$0xf]
    %v6267 = vld [vmem:[#allocation6 + $0x244] sm:$0xff]
    %v6268 = vld [vmem:[#allocation6 + $0x24c] sm:$0xff]
    %v6269 = vld [vmem:[#allocation6 + $0x254] sm:$0xf]
    %v6270 = vld [vmem:[#allocation6 + $0x258] sm:$0xff]
    %v6271 = vld [vmem:[#allocation6 + $0x260] sm:$0xff]
    %v6272 = vld [vmem:[#allocation6 + $0x268] sm:$0xf]
    %v6273 = vld [vmem:[#allocation6 + $0x26c] sm:$0xff]
    %v6274 = vld [vmem:[#allocation6 + $0x274] sm:$0xff]
    %v6275 = vld [vmem:[#allocation6 + $0x27c] sm:$0xf]
    %v6276 = vld [vmem:[#allocation6 + $0x280] sm:$0xff]
    %v6277 = vld [vmem:[#allocation6 + $0x288] sm:$0xff]
    %v6278 = vld [vmem:[#allocation6 + $0x290] sm:$0xf]
    %v6279 = vld [vmem:[#allocation6 + $0x294] sm:$0xff]
    %v6280 = vld [vmem:[#allocation6 + $0x29c] sm:$0xff]
    %v6281 = vld [vmem:[#allocation6 + $0x2a4] sm:$0xf]
    %v6282 = vld [vmem:[#allocation6 + $0x2a8] sm:$0xff]
    %v6283 = vld [vmem:[#allocation6 + $0x2b0] sm:$0xff]
    %v6284 = vld [vmem:[#allocation6 + $0x2b8] sm:$0xf]
    %v6285 = vld [vmem:[#allocation6 + $0x2bc] sm:$0xff]
    %v6286 = vld [vmem:[#allocation6 + $0x2c4] sm:$0xff]
    %v6287 = vld [vmem:[#allocation6 + $0x2cc] sm:$0xf]
    %v6288 = vld [vmem:[#allocation6 + $0x2d0] sm:$0xff]
    %v6289 = vld [vmem:[#allocation6 + $0x2d8] sm:$0xff]
    %v6290 = vld [vmem:[#allocation6 + $0x2e0] sm:$0xf]
    %v6291 = vld [vmem:[#allocation6 + $0x2e4] sm:$0xff]
    %v6292 = vld [vmem:[#allocation6 + $0x2ec] sm:$0xff]
    %v6293 = vld [vmem:[#allocation6 + $0x2f4] sm:$0xf]
    %v6294 = vld [vmem:[#allocation6 + $0x2f8] sm:$0xff]
    %v6295 = vld [vmem:[#allocation6 + $0x300] sm:$0xff]
    %v6296 = vld [vmem:[#allocation6 + $0x308] sm:$0xf]
    %v6297 = vld [vmem:[#allocation6 + $0x30c] sm:$0xff]
    %v6298 = vld [vmem:[#allocation6 + $0x314] sm:$0xff]
    %v6299 = vld [vmem:[#allocation6 + $0x31c] sm:$0xf]
    %v6300 = vld [vmem:[#allocation6 + $0x320] sm:$0xff]
    %v6301 = vld [vmem:[#allocation6 + $0x328] sm:$0xff]
    %v6302 = vld [vmem:[#allocation6 + $0x330] sm:$0xf]
    %v6303 = vld [vmem:[#allocation6 + $0x334] sm:$0xff]
    %v6304 = vld [vmem:[#allocation6 + $0x33c] sm:$0xff]
    %v6305 = vld [vmem:[#allocation6 + $0x344] sm:$0xf]
    %v6306 = vld [vmem:[#allocation6 + $0x348] sm:$0xff]
    %v6307 = vld [vmem:[#allocation6 + $0x350] sm:$0xff]
    %v6308 = vld [vmem:[#allocation6 + $0x358] sm:$0xf]
    %v6309 = vld [vmem:[#allocation6 + $0x35c] sm:$0xff]
    %v6310 = vld [vmem:[#allocation6 + $0x364] sm:$0xff]
    %v6311 = vld [vmem:[#allocation6 + $0x36c] sm:$0xf]
    %v6312 = vld [vmem:[#allocation6 + $0x370] sm:$0xff]
    %v6313 = vld [vmem:[#allocation6 + $0x378] sm:$0xff]
    %v6314 = vld [vmem:[#allocation6 + $0x380] sm:$0xf]
    %v6315 = vld [vmem:[#allocation6 + $0x384] sm:$0xff]
    %v6316 = vld [vmem:[#allocation6 + $0x38c] sm:$0xff]
    %v6317 = vld [vmem:[#allocation6 + $0x394] sm:$0xf]
    %v6318 = vld [vmem:[#allocation6 + $0x398] sm:$0xff]
    %v6319 = vld [vmem:[#allocation6 + $0x3a0] sm:$0xff]
    %v6320 = vld [vmem:[#allocation6 + $0x3a8] sm:$0xf]
    %v6321 = vld [vmem:[#allocation6 + $0x3ac] sm:$0xff]
    %v6322 = vld [vmem:[#allocation6 + $0x3b4] sm:$0xff]
    %v6323 = vld [vmem:[#allocation6 + $0x3bc] sm:$0xf]
    %v6324 = vld [vmem:[#allocation6 + $0x3c0] sm:$0xff]
    %v6325 = vld [vmem:[#allocation6 + $0x3c8] sm:$0xff]
    %v6326 = vld [vmem:[#allocation6 + $0x3d0] sm:$0xf]
    %v6327 = vld [vmem:[#allocation6 + $0x3d4] sm:$0xff]
    %v6328 = vld [vmem:[#allocation6 + $0x3dc] sm:$0xff]
    %v6329 = vld [vmem:[#allocation6 + $0x3e4] sm:$0xf]
    %v6330 = vld [vmem:[#allocation6 + $0x3e8] sm:$0xff]
    %v6331 = vld [vmem:[#allocation6 + $0x3f0] sm:$0xff]
    %v6332 = vld [vmem:[#allocation6 + $0x3f8] sm:$0xf]
    %v6333 = vld [vmem:[#allocation6 + $0x3fc] sm:$0xff]
    %v6334 = vld [vmem:[#allocation6 + $0x404] sm:$0xff]
    %v6335 = vld [vmem:[#allocation6 + $0x40c] sm:$0xf]
    %v6336 = vld [vmem:[#allocation6 + $0x410] sm:$0xff]
    %v6337 = vld [vmem:[#allocation6 + $0x418] sm:$0xff]
    %v6338 = vld [vmem:[#allocation6 + $0x420] sm:$0xf]
    %v6339 = vld [vmem:[#allocation6 + $0x424] sm:$0xff]
    %v6340 = vld [vmem:[#allocation6 + $0x42c] sm:$0xff]
    %v6341 = vld [vmem:[#allocation6 + $0x434] sm:$0xf]
    %v6342 = vld [vmem:[#allocation6 + $0x438] sm:$0xff]
    %v6343 = vld [vmem:[#allocation6 + $0x440] sm:$0xff]
    %v6344 = vld [vmem:[#allocation6 + $0x448] sm:$0xf]
    %v6345 = vld [vmem:[#allocation6 + $0x44c] sm:$0xff]
    %v6346 = vld [vmem:[#allocation6 + $0x454] sm:$0xff]
    %v6347 = vld [vmem:[#allocation6 + $0x45c] sm:$0xf]
    %v6348 = vld [vmem:[#allocation6 + $0x460] sm:$0xff]
    %v6349 = vld [vmem:[#allocation6 + $0x468] sm:$0xff]
    %v6350 = vld [vmem:[#allocation6 + $0x470] sm:$0xf]
    %v6351 = vld [vmem:[#allocation6 + $0x474] sm:$0xff]
    %v6352 = vld [vmem:[#allocation6 + $0x47c] sm:$0xff]
    %v6353 = vld [vmem:[#allocation6 + $0x484] sm:$0xf]
    %v6354 = vld [vmem:[#allocation6 + $0x488] sm:$0xff]
    %v6355 = vld [vmem:[#allocation6 + $0x490] sm:$0xff]
    %v6356 = vld [vmem:[#allocation6 + $0x498] sm:$0xf]
    %v6357 = vld [vmem:[#allocation6 + $0x49c] sm:$0xff]
    %v6358 = vld [vmem:[#allocation6 + $0x4a4] sm:$0xff]
    %v6359 = vld [vmem:[#allocation6 + $0x4ac] sm:$0xf]
    %v6360 = vld [vmem:[#allocation6 + $0x4b0] sm:$0xff]
    %v6361 = vld [vmem:[#allocation6 + $0x4b8] sm:$0xff]
    %v6362 = vld [vmem:[#allocation6 + $0x4c0] sm:$0xf]
    %v6363 = vld [vmem:[#allocation6 + $0x4c4] sm:$0xff]
    %v6364 = vld [vmem:[#allocation6 + $0x4cc] sm:$0xff]
    %v6365 = vld [vmem:[#allocation6 + $0x4d4] sm:$0xf]
    %v6366 = vld [vmem:[#allocation6 + $0x4d8] sm:$0xff]
    %v6367 = vld [vmem:[#allocation6 + $0x4e0] sm:$0xff]
    %v6368 = vld [vmem:[#allocation6 + $0x4e8] sm:$0xf]
    %v6369 = vld [vmem:[#allocation6 + $0x4ec] sm:$0xff]
    %v6370 = vld [vmem:[#allocation6 + $0x4f4] sm:$0xff]
    %v6371 = vld [vmem:[#allocation6 + $0x4fc] sm:$0xf]
    %v6372 = vld [vmem:[#allocation6 + $0x500] sm:$0xff]
    %v6373 = vld [vmem:[#allocation6 + $0x508] sm:$0xff]
    %v6374 = vld [vmem:[#allocation6 + $0x510] sm:$0xf]
    %v6375 = vld [vmem:[#allocation6 + $0x514] sm:$0xff]
    %v6376 = vld [vmem:[#allocation6 + $0x51c] sm:$0xff]
    %v6377 = vld [vmem:[#allocation6 + $0x524] sm:$0xf]
    %v6378 = vld [vmem:[#allocation6 + $0x528] sm:$0xff]
    %v6379 = vld [vmem:[#allocation6 + $0x530] sm:$0xff]
    %v6380 = vld [vmem:[#allocation6 + $0x538] sm:$0xf]
    %v6381 = vld [vmem:[#allocation6 + $0x53c] sm:$0xff]
    %v6382 = vld [vmem:[#allocation6 + $0x544] sm:$0xff]
    %v6383 = vld [vmem:[#allocation6 + $0x54c] sm:$0xf]
    %v6384 = vld [vmem:[#allocation6 + $0x550] sm:$0xff]
    %v6385 = vld [vmem:[#allocation6 + $0x558] sm:$0xff]
    %v6386 = vld [vmem:[#allocation6 + $0x560] sm:$0xf]
    %v6387 = vld [vmem:[#allocation6 + $0x564] sm:$0xff]
    %v6388 = vld [vmem:[#allocation6 + $0x56c] sm:$0xff]
    %v6389 = vld [vmem:[#allocation6 + $0x574] sm:$0xf]
    %v6390 = vld [vmem:[#allocation6 + $0x578] sm:$0xff]
    %v6391 = vld [vmem:[#allocation6 + $0x580] sm:$0xff]
    %v6392 = vld [vmem:[#allocation6 + $0x588] sm:$0xf]
    %v6393 = vld [vmem:[#allocation6 + $0x58c] sm:$0xff]
    %v6394 = vld [vmem:[#allocation6 + $0x594] sm:$0xff]
    %v6395 = vld [vmem:[#allocation6 + $0x59c] sm:$0xf]
    %v6396 = vld [vmem:[#allocation6 + $0x5a0] sm:$0xff]
    %v6397 = vld [vmem:[#allocation6 + $0x5a8] sm:$0xff]
    %v6398 = vld [vmem:[#allocation6 + $0x5b0] sm:$0xf]
    %v6399 = vld [vmem:[#allocation6 + $0x5b4] sm:$0xff]
    %v6400 = vld [vmem:[#allocation6 + $0x5bc] sm:$0xff]
    %v6401 = vld [vmem:[#allocation6 + $0x5c4] sm:$0xf]
    %v6402 = vld [vmem:[#allocation6 + $0x5c8] sm:$0xff]
    %v6403 = vld [vmem:[#allocation6 + $0x5d0] sm:$0xff]
    %v6404 = vld [vmem:[#allocation6 + $0x5d8] sm:$0xf]
    %v6405 = vld [vmem:[#allocation6 + $0x5dc] sm:$0xff]
    %v6406 = vld [vmem:[#allocation6 + $0x5e4] sm:$0xff]
    %v6407 = vld [vmem:[#allocation6 + $0x5ec] sm:$0xf]
    %v6408 = vld [vmem:[#allocation6 + $0x5f0] sm:$0xff]
    %v6409 = vld [vmem:[#allocation6 + $0x5f8] sm:$0xff]
    %v6410 = vld [vmem:[#allocation6 + $0x600] sm:$0xf]
    %v6411 = vld [vmem:[#allocation6 + $0x604] sm:$0xff]
    %v6412 = vld [vmem:[#allocation6 + $0x60c] sm:$0xff]
    %v6413 = vld [vmem:[#allocation6 + $0x614] sm:$0xf]
    %v6414 = vld [vmem:[#allocation6 + $0x618] sm:$0xff]
    %v6415 = vld [vmem:[#allocation6 + $0x620] sm:$0xff]
    %v6416 = vld [vmem:[#allocation6 + $0x628] sm:$0xf]
    %v6417 = vld [vmem:[#allocation6 + $0x62c] sm:$0xff]
    %v6418 = vld [vmem:[#allocation6 + $0x634] sm:$0xff]
    %v6419 = vld [vmem:[#allocation6 + $0x63c] sm:$0xf]
    %v6420 = vld [vmem:[#allocation7] sm:$0x1f]
    %v6422 = vlaneseq
    %v6423 = vshrl.u32 %v6422, 7
    %v6424 = vsub.s32 0, %v6423
    %v6425 = vrot.slane %v6420, %v6424
    %v6426 = vlaneseq
    %v6427 = vshrl.u32 %v6426, 7
    %v6428 = vsub.s32 1, %v6427
    %v6429 = vrot.slane %v6420, %v6428
    %v6430 = vlaneseq
    %v6431 = vshrl.u32 %v6430, 7
    %v6432 = vsub.s32 2, %v6431
    %v6433 = vrot.slane %v6420, %v6432
    %v6434 = vlaneseq
    %v6435 = vshrl.u32 %v6434, 7
    %v6436 = vsub.s32 3, %v6435
    %v6437 = vrot.slane %v6420, %v6436
    %v6438 = vlaneseq
    %v6439 = vshrl.u32 %v6438, 7
    %v6440 = vsub.s32 4, %v6439
    %v6441 = vrot.slane %v6420, %v6440
    %v6687 = vunpack.c.l.b16 %v6180
    %v6688 = vunpack.c.h.b16 %v6180
    %v6689 = vunpack.c.l.b16 %v6181
    %v6690 = vunpack.c.h.b16 %v6181
    %v6691 = vunpack.c.l.b16 %v6182
    %v6692 = vunpack.c.l.b16 %v6183
    %v6693 = vunpack.c.h.b16 %v6183
    %v6694 = vunpack.c.l.b16 %v6184
    %v6695 = vunpack.c.h.b16 %v6184
    %v6696 = vunpack.c.l.b16 %v6185
    %v6697 = vunpack.c.l.b16 %v6186
    %v6698 = vunpack.c.h.b16 %v6186
    %v6699 = vunpack.c.l.b16 %v6187
    %v6700 = vunpack.c.h.b16 %v6187
    %v6701 = vunpack.c.l.b16 %v6188
    %v6702 = vunpack.c.l.b16 %v6189
    %v6703 = vunpack.c.h.b16 %v6189
    %v6704 = vunpack.c.l.b16 %v6190
    %v6705 = vunpack.c.h.b16 %v6190
    %v6706 = vunpack.c.l.b16 %v6191
    %v6707 = vunpack.c.l.b16 %v6192
    %v6708 = vunpack.c.h.b16 %v6192
    %v6709 = vunpack.c.l.b16 %v6193
    %v6710 = vunpack.c.h.b16 %v6193
    %v6711 = vunpack.c.l.b16 %v6194
    %v6712 = vunpack.c.l.b16 %v6195
    %v6713 = vunpack.c.h.b16 %v6195
    %v6714 = vunpack.c.l.b16 %v6196
    %v6715 = vunpack.c.h.b16 %v6196
    %v6716 = vunpack.c.l.b16 %v6197
    %v6717 = vunpack.c.l.b16 %v6198
    %v6718 = vunpack.c.h.b16 %v6198
    %v6719 = vunpack.c.l.b16 %v6199
    %v6720 = vunpack.c.h.b16 %v6199
    %v6721 = vunpack.c.l.b16 %v6200
    %v6722 = vunpack.c.l.b16 %v6201
    %v6723 = vunpack.c.h.b16 %v6201
    %v6724 = vunpack.c.l.b16 %v6202
    %v6725 = vunpack.c.h.b16 %v6202
    %v6726 = vunpack.c.l.b16 %v6203
    %v6727 = vunpack.c.l.b16 %v6204
    %v6728 = vunpack.c.h.b16 %v6204
    %v6729 = vunpack.c.l.b16 %v6205
    %v6730 = vunpack.c.h.b16 %v6205
    %v6731 = vunpack.c.l.b16 %v6206
    %v6732 = vunpack.c.l.b16 %v6207
    %v6733 = vunpack.c.h.b16 %v6207
    %v6734 = vunpack.c.l.b16 %v6208
    %v6735 = vunpack.c.h.b16 %v6208
    %v6736 = vunpack.c.l.b16 %v6209
    %v6737 = vunpack.c.l.b16 %v6210
    %v6738 = vunpack.c.h.b16 %v6210
    %v6739 = vunpack.c.l.b16 %v6211
    %v6740 = vunpack.c.h.b16 %v6211
    %v6741 = vunpack.c.l.b16 %v6212
    %v6742 = vunpack.c.l.b16 %v6213
    %v6743 = vunpack.c.h.b16 %v6213
    %v6744 = vunpack.c.l.b16 %v6214
    %v6745 = vunpack.c.h.b16 %v6214
    %v6746 = vunpack.c.l.b16 %v6215
    %v6747 = vunpack.c.l.b16 %v6216
    %v6748 = vunpack.c.h.b16 %v6216
    %v6749 = vunpack.c.l.b16 %v6217
    %v6750 = vunpack.c.h.b16 %v6217
    %v6751 = vunpack.c.l.b16 %v6218
    %v6752 = vunpack.c.l.b16 %v6219
    %v6753 = vunpack.c.h.b16 %v6219
    %v6754 = vunpack.c.l.b16 %v6220
    %v6755 = vunpack.c.h.b16 %v6220
    %v6756 = vunpack.c.l.b16 %v6221
    %v6757 = vunpack.c.l.b16 %v6222
    %v6758 = vunpack.c.h.b16 %v6222
    %v6759 = vunpack.c.l.b16 %v6223
    %v6760 = vunpack.c.h.b16 %v6223
    %v6761 = vunpack.c.l.b16 %v6224
    %v6762 = vunpack.c.l.b16 %v6225
    %v6763 = vunpack.c.h.b16 %v6225
    %v6764 = vunpack.c.l.b16 %v6226
    %v6765 = vunpack.c.h.b16 %v6226
    %v6766 = vunpack.c.l.b16 %v6227
    %v6767 = vunpack.c.l.b16 %v6228
    %v6768 = vunpack.c.h.b16 %v6228
    %v6769 = vunpack.c.l.b16 %v6229
    %v6770 = vunpack.c.h.b16 %v6229
    %v6771 = vunpack.c.l.b16 %v6230
    %v6772 = vunpack.c.l.b16 %v6231
    %v6773 = vunpack.c.h.b16 %v6231
    %v6774 = vunpack.c.l.b16 %v6232
    %v6775 = vunpack.c.h.b16 %v6232
    %v6776 = vunpack.c.l.b16 %v6233
    %v6777 = vunpack.c.l.b16 %v6234
    %v6778 = vunpack.c.h.b16 %v6234
    %v6779 = vunpack.c.l.b16 %v6235
    %v6780 = vunpack.c.h.b16 %v6235
    %v6781 = vunpack.c.l.b16 %v6236
    %v6782 = vunpack.c.l.b16 %v6237
    %v6783 = vunpack.c.h.b16 %v6237
    %v6784 = vunpack.c.l.b16 %v6238
    %v6785 = vunpack.c.h.b16 %v6238
    %v6786 = vunpack.c.l.b16 %v6239
    %v6787 = vunpack.c.l.b16 %v6240
    %v6788 = vunpack.c.h.b16 %v6240
    %v6789 = vunpack.c.l.b16 %v6241
    %v6790 = vunpack.c.h.b16 %v6241
    %v6791 = vunpack.c.l.b16 %v6242
    %v6792 = vunpack.c.l.b16 %v6243
    %v6793 = vunpack.c.h.b16 %v6243
    %v6794 = vunpack.c.l.b16 %v6244
    %v6795 = vunpack.c.h.b16 %v6244
    %v6796 = vunpack.c.l.b16 %v6245
    %v6797 = vunpack.c.l.b16 %v6246
    %v6798 = vunpack.c.h.b16 %v6246
    %v6799 = vunpack.c.l.b16 %v6247
    %v6800 = vunpack.c.h.b16 %v6247
    %v6801 = vunpack.c.l.b16 %v6248
    %v6802 = vunpack.c.l.b16 %v6249
    %v6803 = vunpack.c.h.b16 %v6249
    %v6804 = vunpack.c.l.b16 %v6250
    %v6805 = vunpack.c.h.b16 %v6250
    %v6806 = vunpack.c.l.b16 %v6251
    %v6807 = vunpack.c.l.b16 %v6252
    %v6808 = vunpack.c.h.b16 %v6252
    %v6809 = vunpack.c.l.b16 %v6253
    %v6810 = vunpack.c.h.b16 %v6253
    %v6811 = vunpack.c.l.b16 %v6254
    %v6812 = vunpack.c.l.b16 %v6255
    %v6813 = vunpack.c.h.b16 %v6255
    %v6814 = vunpack.c.l.b16 %v6256
    %v6815 = vunpack.c.h.b16 %v6256
    %v6816 = vunpack.c.l.b16 %v6257
    %v6817 = vunpack.c.l.b16 %v6258
    %v6818 = vunpack.c.h.b16 %v6258
    %v6819 = vunpack.c.l.b16 %v6259
    %v6820 = vunpack.c.h.b16 %v6259
    %v6821 = vunpack.c.l.b16 %v6260
    %v6822 = vunpack.c.l.b16 %v6261
    %v6823 = vunpack.c.h.b16 %v6261
    %v6824 = vunpack.c.l.b16 %v6262
    %v6825 = vunpack.c.h.b16 %v6262
    %v6826 = vunpack.c.l.b16 %v6263
    %v6827 = vunpack.c.l.b16 %v6264
    %v6828 = vunpack.c.h.b16 %v6264
    %v6829 = vunpack.c.l.b16 %v6265
    %v6830 = vunpack.c.h.b16 %v6265
    %v6831 = vunpack.c.l.b16 %v6266
    %v6832 = vunpack.c.l.b16 %v6267
    %v6833 = vunpack.c.h.b16 %v6267
    %v6834 = vunpack.c.l.b16 %v6268
    %v6835 = vunpack.c.h.b16 %v6268
    %v6836 = vunpack.c.l.b16 %v6269
    %v6837 = vunpack.c.l.b16 %v6270
    %v6838 = vunpack.c.h.b16 %v6270
    %v6839 = vunpack.c.l.b16 %v6271
    %v6840 = vunpack.c.h.b16 %v6271
    %v6841 = vunpack.c.l.b16 %v6272
    %v6842 = vunpack.c.l.b16 %v6273
    %v6843 = vunpack.c.h.b16 %v6273
    %v6844 = vunpack.c.l.b16 %v6274
    %v6845 = vunpack.c.h.b16 %v6274
    %v6846 = vunpack.c.l.b16 %v6275
    %v6847 = vunpack.c.l.b16 %v6276
    %v6848 = vunpack.c.h.b16 %v6276
    %v6849 = vunpack.c.l.b16 %v6277
    %v6850 = vunpack.c.h.b16 %v6277
    %v6851 = vunpack.c.l.b16 %v6278
    %v6852 = vunpack.c.l.b16 %v6279
    %v6853 = vunpack.c.h.b16 %v6279
    %v6854 = vunpack.c.l.b16 %v6280
    %v6855 = vunpack.c.h.b16 %v6280
    %v6856 = vunpack.c.l.b16 %v6281
    %v6857 = vunpack.c.l.b16 %v6282
    %v6858 = vunpack.c.h.b16 %v6282
    %v6859 = vunpack.c.l.b16 %v6283
    %v6860 = vunpack.c.h.b16 %v6283
    %v6861 = vunpack.c.l.b16 %v6284
    %v6862 = vunpack.c.l.b16 %v6285
    %v6863 = vunpack.c.h.b16 %v6285
    %v6864 = vunpack.c.l.b16 %v6286
    %v6865 = vunpack.c.h.b16 %v6286
    %v6866 = vunpack.c.l.b16 %v6287
    %v6867 = vunpack.c.l.b16 %v6288
    %v6868 = vunpack.c.h.b16 %v6288
    %v6869 = vunpack.c.l.b16 %v6289
    %v6870 = vunpack.c.h.b16 %v6289
    %v6871 = vunpack.c.l.b16 %v6290
    %v6872 = vunpack.c.l.b16 %v6291
    %v6873 = vunpack.c.h.b16 %v6291
    %v6874 = vunpack.c.l.b16 %v6292
    %v6875 = vunpack.c.h.b16 %v6292
    %v6876 = vunpack.c.l.b16 %v6293
    %v6877 = vunpack.c.l.b16 %v6294
    %v6878 = vunpack.c.h.b16 %v6294
    %v6879 = vunpack.c.l.b16 %v6295
    %v6880 = vunpack.c.h.b16 %v6295
    %v6881 = vunpack.c.l.b16 %v6296
    %v6882 = vunpack.c.l.b16 %v6297
    %v6883 = vunpack.c.h.b16 %v6297
    %v6884 = vunpack.c.l.b16 %v6298
    %v6885 = vunpack.c.h.b16 %v6298
    %v6886 = vunpack.c.l.b16 %v6299
    %v6887 = vunpack.c.l.b16 %v6300
    %v6888 = vunpack.c.h.b16 %v6300
    %v6889 = vunpack.c.l.b16 %v6301
    %v6890 = vunpack.c.h.b16 %v6301
    %v6891 = vunpack.c.l.b16 %v6302
    %v6892 = vunpack.c.l.b16 %v6303
    %v6893 = vunpack.c.h.b16 %v6303
    %v6894 = vunpack.c.l.b16 %v6304
    %v6895 = vunpack.c.h.b16 %v6304
    %v6896 = vunpack.c.l.b16 %v6305
    %v6897 = vunpack.c.l.b16 %v6306
    %v6898 = vunpack.c.h.b16 %v6306
    %v6899 = vunpack.c.l.b16 %v6307
    %v6900 = vunpack.c.h.b16 %v6307
    %v6901 = vunpack.c.l.b16 %v6308
    %v6902 = vunpack.c.l.b16 %v6309
    %v6903 = vunpack.c.h.b16 %v6309
    %v6904 = vunpack.c.l.b16 %v6310
    %v6905 = vunpack.c.h.b16 %v6310
    %v6906 = vunpack.c.l.b16 %v6311
    %v6907 = vunpack.c.l.b16 %v6312
    %v6908 = vunpack.c.h.b16 %v6312
    %v6909 = vunpack.c.l.b16 %v6313
    %v6910 = vunpack.c.h.b16 %v6313
    %v6911 = vunpack.c.l.b16 %v6314
    %v6912 = vunpack.c.l.b16 %v6315
    %v6913 = vunpack.c.h.b16 %v6315
    %v6914 = vunpack.c.l.b16 %v6316
    %v6915 = vunpack.c.h.b16 %v6316
    %v6916 = vunpack.c.l.b16 %v6317
    %v6917 = vunpack.c.l.b16 %v6318
    %v6918 = vunpack.c.h.b16 %v6318
    %v6919 = vunpack.c.l.b16 %v6319
    %v6920 = vunpack.c.h.b16 %v6319
    %v6921 = vunpack.c.l.b16 %v6320
    %v6922 = vunpack.c.l.b16 %v6321
    %v6923 = vunpack.c.h.b16 %v6321
    %v6924 = vunpack.c.l.b16 %v6322
    %v6925 = vunpack.c.h.b16 %v6322
    %v6926 = vunpack.c.l.b16 %v6323
    %v6927 = vunpack.c.l.b16 %v6324
    %v6928 = vunpack.c.h.b16 %v6324
    %v6929 = vunpack.c.l.b16 %v6325
    %v6930 = vunpack.c.h.b16 %v6325
    %v6931 = vunpack.c.l.b16 %v6326
    %v6932 = vunpack.c.l.b16 %v6327
    %v6933 = vunpack.c.h.b16 %v6327
    %v6934 = vunpack.c.l.b16 %v6328
    %v6935 = vunpack.c.h.b16 %v6328
    %v6936 = vunpack.c.l.b16 %v6329
    %v6937 = vunpack.c.l.b16 %v6330
    %v6938 = vunpack.c.h.b16 %v6330
    %v6939 = vunpack.c.l.b16 %v6331
    %v6940 = vunpack.c.h.b16 %v6331
    %v6941 = vunpack.c.l.b16 %v6332
    %v6942 = vunpack.c.l.b16 %v6333
    %v6943 = vunpack.c.h.b16 %v6333
    %v6944 = vunpack.c.l.b16 %v6334
    %v6945 = vunpack.c.h.b16 %v6334
    %v6946 = vunpack.c.l.b16 %v6335
    %v6947 = vunpack.c.l.b16 %v6336
    %v6948 = vunpack.c.h.b16 %v6336
    %v6949 = vunpack.c.l.b16 %v6337
    %v6950 = vunpack.c.h.b16 %v6337
    %v6951 = vunpack.c.l.b16 %v6338
    %v6952 = vunpack.c.l.b16 %v6339
    %v6953 = vunpack.c.h.b16 %v6339
    %v6954 = vunpack.c.l.b16 %v6340
    %v6955 = vunpack.c.h.b16 %v6340
    %v6956 = vunpack.c.l.b16 %v6341
    %v6957 = vunpack.c.l.b16 %v6342
    %v6958 = vunpack.c.h.b16 %v6342
    %v6959 = vunpack.c.l.b16 %v6343
    %v6960 = vunpack.c.h.b16 %v6343
    %v6961 = vunpack.c.l.b16 %v6344
    %v6962 = vunpack.c.l.b16 %v6345
    %v6963 = vunpack.c.h.b16 %v6345
    %v6964 = vunpack.c.l.b16 %v6346
    %v6965 = vunpack.c.h.b16 %v6346
    %v6966 = vunpack.c.l.b16 %v6347
    %v6967 = vunpack.c.l.b16 %v6348
    %v6968 = vunpack.c.h.b16 %v6348
    %v6969 = vunpack.c.l.b16 %v6349
    %v6970 = vunpack.c.h.b16 %v6349
    %v6971 = vunpack.c.l.b16 %v6350
    %v6972 = vunpack.c.l.b16 %v6351
    %v6973 = vunpack.c.h.b16 %v6351
    %v6974 = vunpack.c.l.b16 %v6352
    %v6975 = vunpack.c.h.b16 %v6352
    %v6976 = vunpack.c.l.b16 %v6353
    %v6977 = vunpack.c.l.b16 %v6354
    %v6978 = vunpack.c.h.b16 %v6354
    %v6979 = vunpack.c.l.b16 %v6355
    %v6980 = vunpack.c.h.b16 %v6355
    %v6981 = vunpack.c.l.b16 %v6356
    %v6982 = vunpack.c.l.b16 %v6357
    %v6983 = vunpack.c.h.b16 %v6357
    %v6984 = vunpack.c.l.b16 %v6358
    %v6985 = vunpack.c.h.b16 %v6358
    %v6986 = vunpack.c.l.b16 %v6359
    %v6987 = vunpack.c.l.b16 %v6360
    %v6988 = vunpack.c.h.b16 %v6360
    %v6989 = vunpack.c.l.b16 %v6361
    %v6990 = vunpack.c.h.b16 %v6361
    %v6991 = vunpack.c.l.b16 %v6362
    %v6992 = vunpack.c.l.b16 %v6363
    %v6993 = vunpack.c.h.b16 %v6363
    %v6994 = vunpack.c.l.b16 %v6364
    %v6995 = vunpack.c.h.b16 %v6364
    %v6996 = vunpack.c.l.b16 %v6365
    %v6997 = vunpack.c.l.b16 %v6366
    %v6998 = vunpack.c.h.b16 %v6366
    %v6999 = vunpack.c.l.b16 %v6367
    %v7000 = vunpack.c.h.b16 %v6367
    %v7001 = vunpack.c.l.b16 %v6368
    %v7002 = vunpack.c.l.b16 %v6369
    %v7003 = vunpack.c.h.b16 %v6369
    %v7004 = vunpack.c.l.b16 %v6370
    %v7005 = vunpack.c.h.b16 %v6370
    %v7006 = vunpack.c.l.b16 %v6371
    %v7007 = vunpack.c.l.b16 %v6372
    %v7008 = vunpack.c.h.b16 %v6372
    %v7009 = vunpack.c.l.b16 %v6373
    %v7010 = vunpack.c.h.b16 %v6373
    %v7011 = vunpack.c.l.b16 %v6374
    %v7012 = vunpack.c.l.b16 %v6375
    %v7013 = vunpack.c.h.b16 %v6375
    %v7014 = vunpack.c.l.b16 %v6376
    %v7015 = vunpack.c.h.b16 %v6376
    %v7016 = vunpack.c.l.b16 %v6377
    %v7017 = vunpack.c.l.b16 %v6378
    %v7018 = vunpack.c.h.b16 %v6378
    %v7019 = vunpack.c.l.b16 %v6379
    %v7020 = vunpack.c.h.b16 %v6379
    %v7021 = vunpack.c.l.b16 %v6380
    %v7022 = vunpack.c.l.b16 %v6381
    %v7023 = vunpack.c.h.b16 %v6381
    %v7024 = vunpack.c.l.b16 %v6382
    %v7025 = vunpack.c.h.b16 %v6382
    %v7026 = vunpack.c.l.b16 %v6383
    %v7027 = vunpack.c.l.b16 %v6384
    %v7028 = vunpack.c.h.b16 %v6384
    %v7029 = vunpack.c.l.b16 %v6385
    %v7030 = vunpack.c.h.b16 %v6385
    %v7031 = vunpack.c.l.b16 %v6386
    %v7032 = vunpack.c.l.b16 %v6387
    %v7033 = vunpack.c.h.b16 %v6387
    %v7034 = vunpack.c.l.b16 %v6388
    %v7035 = vunpack.c.h.b16 %v6388
    %v7036 = vunpack.c.l.b16 %v6389
    %v7037 = vunpack.c.l.b16 %v6390
    %v7038 = vunpack.c.h.b16 %v6390
    %v7039 = vunpack.c.l.b16 %v6391
    %v7040 = vunpack.c.h.b16 %v6391
    %v7041 = vunpack.c.l.b16 %v6392
    %v7042 = vunpack.c.l.b16 %v6393
    %v7043 = vunpack.c.h.b16 %v6393
    %v7044 = vunpack.c.l.b16 %v6394
    %v7045 = vunpack.c.h.b16 %v6394
    %v7046 = vunpack.c.l.b16 %v6395
    %v7047 = vunpack.c.l.b16 %v6396
    %v7048 = vunpack.c.h.b16 %v6396
    %v7049 = vunpack.c.l.b16 %v6397
    %v7050 = vunpack.c.h.b16 %v6397
    %v7051 = vunpack.c.l.b16 %v6398
    %v7052 = vunpack.c.l.b16 %v6399
    %v7053 = vunpack.c.h.b16 %v6399
    %v7054 = vunpack.c.l.b16 %v6400
    %v7055 = vunpack.c.h.b16 %v6400
    %v7056 = vunpack.c.l.b16 %v6401
    %v7057 = vunpack.c.l.b16 %v6402
    %v7058 = vunpack.c.h.b16 %v6402
    %v7059 = vunpack.c.l.b16 %v6403
    %v7060 = vunpack.c.h.b16 %v6403
    %v7061 = vunpack.c.l.b16 %v6404
    %v7062 = vunpack.c.l.b16 %v6405
    %v7063 = vunpack.c.h.b16 %v6405
    %v7064 = vunpack.c.l.b16 %v6406
    %v7065 = vunpack.c.h.b16 %v6406
    %v7066 = vunpack.c.l.b16 %v6407
    %v7067 = vunpack.c.l.b16 %v6408
    %v7068 = vunpack.c.h.b16 %v6408
    %v7069 = vunpack.c.l.b16 %v6409
    %v7070 = vunpack.c.h.b16 %v6409
    %v7071 = vunpack.c.l.b16 %v6410
    %v7072 = vunpack.c.l.b16 %v6411
    %v7073 = vunpack.c.h.b16 %v6411
    %v7074 = vunpack.c.l.b16 %v6412
    %v7075 = vunpack.c.h.b16 %v6412
    %v7076 = vunpack.c.l.b16 %v6413
    %v7077 = vunpack.c.l.b16 %v6414
    %v7078 = vunpack.c.h.b16 %v6414
    %v7079 = vunpack.c.l.b16 %v6415
    %v7080 = vunpack.c.h.b16 %v6415
    %v7081 = vunpack.c.l.b16 %v6416
    %v7082 = vunpack.c.l.b16 %v6417
    %v7083 = vunpack.c.h.b16 %v6417
    %v7084 = vunpack.c.l.b16 %v6418
    %v7085 = vunpack.c.h.b16 %v6418
    %v7086 = vunpack.c.l.b16 %v6419
    %v7087 = vpack.c.b16 %v6692, %v6687
    %v7088 = vpack.c.b16 %v6693, %v6688
    %v7089 = vpack.c.b16 %v6694, %v6689
    %v7090 = vpack.c.b16 %v6695, %v6690
    %v7091 = vpack.c.b16 %v6696, %v6691
    %v7092 = vpack.c.b16 %v6702, %v6697
    %v7093 = vpack.c.b16 %v6703, %v6698
    %v7094 = vpack.c.b16 %v6704, %v6699
    %v7095 = vpack.c.b16 %v6705, %v6700
    %v7096 = vpack.c.b16 %v6706, %v6701
    %v7097 = vpack.c.b16 %v6712, %v6707
    %v7098 = vpack.c.b16 %v6713, %v6708
    %v7099 = vpack.c.b16 %v6714, %v6709
    %v7100 = vpack.c.b16 %v6715, %v6710
    %v7101 = vpack.c.b16 %v6716, %v6711
    %v7102 = vpack.c.b16 %v6722, %v6717
    %v7103 = vpack.c.b16 %v6723, %v6718
    %v7104 = vpack.c.b16 %v6724, %v6719
    %v7105 = vpack.c.b16 %v6725, %v6720
    %v7106 = vpack.c.b16 %v6726, %v6721
    %v7107 = vpack.c.b16 %v6732, %v6727
    %v7108 = vpack.c.b16 %v6733, %v6728
    %v7109 = vpack.c.b16 %v6734, %v6729
    %v7110 = vpack.c.b16 %v6735, %v6730
    %v7111 = vpack.c.b16 %v6736, %v6731
    %v7112 = vpack.c.b16 %v6742, %v6737
    %v7113 = vpack.c.b16 %v6743, %v6738
    %v7114 = vpack.c.b16 %v6744, %v6739
    %v7115 = vpack.c.b16 %v6745, %v6740
    %v7116 = vpack.c.b16 %v6746, %v6741
    %v7117 = vpack.c.b16 %v6752, %v6747
    %v7118 = vpack.c.b16 %v6753, %v6748
    %v7119 = vpack.c.b16 %v6754, %v6749
    %v7120 = vpack.c.b16 %v6755, %v6750
    %v7121 = vpack.c.b16 %v6756, %v6751
    %v7122 = vpack.c.b16 %v6762, %v6757
    %v7123 = vpack.c.b16 %v6763, %v6758
    %v7124 = vpack.c.b16 %v6764, %v6759
    %v7125 = vpack.c.b16 %v6765, %v6760
    %v7126 = vpack.c.b16 %v6766, %v6761
    %v7127 = vpack.c.b16 %v6772, %v6767
    %v7128 = vpack.c.b16 %v6773, %v6768
    %v7129 = vpack.c.b16 %v6774, %v6769
    %v7130 = vpack.c.b16 %v6775, %v6770
    %v7131 = vpack.c.b16 %v6776, %v6771
    %v7132 = vpack.c.b16 %v6782, %v6777
    %v7133 = vpack.c.b16 %v6783, %v6778
    %v7134 = vpack.c.b16 %v6784, %v6779
    %v7135 = vpack.c.b16 %v6785, %v6780
    %v7136 = vpack.c.b16 %v6786, %v6781
    %v7137 = vpack.c.b16 %v6792, %v6787
    %v7138 = vpack.c.b16 %v6793, %v6788
    %v7139 = vpack.c.b16 %v6794, %v6789
    %v7140 = vpack.c.b16 %v6795, %v6790
    %v7141 = vpack.c.b16 %v6796, %v6791
    %v7142 = vpack.c.b16 %v6802, %v6797
    %v7143 = vpack.c.b16 %v6803, %v6798
    %v7144 = vpack.c.b16 %v6804, %v6799
    %v7145 = vpack.c.b16 %v6805, %v6800
    %v7146 = vpack.c.b16 %v6806, %v6801
    %v7147 = vpack.c.b16 %v6812, %v6807
    %v7148 = vpack.c.b16 %v6813, %v6808
    %v7149 = vpack.c.b16 %v6814, %v6809
    %v7150 = vpack.c.b16 %v6815, %v6810
    %v7151 = vpack.c.b16 %v6816, %v6811
    %v7152 = vpack.c.b16 %v6822, %v6817
    %v7153 = vpack.c.b16 %v6823, %v6818
    %v7154 = vpack.c.b16 %v6824, %v6819
    %v7155 = vpack.c.b16 %v6825, %v6820
    %v7156 = vpack.c.b16 %v6826, %v6821
    %v7157 = vpack.c.b16 %v6832, %v6827
    %v7158 = vpack.c.b16 %v6833, %v6828
    %v7159 = vpack.c.b16 %v6834, %v6829
    %v7160 = vpack.c.b16 %v6835, %v6830
    %v7161 = vpack.c.b16 %v6836, %v6831
    %v7162 = vpack.c.b16 %v6842, %v6837
    %v7163 = vpack.c.b16 %v6843, %v6838
    %v7164 = vpack.c.b16 %v6844, %v6839
    %v7165 = vpack.c.b16 %v6845, %v6840
    %v7166 = vpack.c.b16 %v6846, %v6841
    %v7167 = vpack.c.b16 %v6852, %v6847
    %v7168 = vpack.c.b16 %v6853, %v6848
    %v7169 = vpack.c.b16 %v6854, %v6849
    %v7170 = vpack.c.b16 %v6855, %v6850
    %v7171 = vpack.c.b16 %v6856, %v6851
    %v7172 = vpack.c.b16 %v6862, %v6857
    %v7173 = vpack.c.b16 %v6863, %v6858
    %v7174 = vpack.c.b16 %v6864, %v6859
    %v7175 = vpack.c.b16 %v6865, %v6860
    %v7176 = vpack.c.b16 %v6866, %v6861
    %v7177 = vpack.c.b16 %v6872, %v6867
    %v7178 = vpack.c.b16 %v6873, %v6868
    %v7179 = vpack.c.b16 %v6874, %v6869
    %v7180 = vpack.c.b16 %v6875, %v6870
    %v7181 = vpack.c.b16 %v6876, %v6871
    %v7182 = vpack.c.b16 %v6882, %v6877
    %v7183 = vpack.c.b16 %v6883, %v6878
    %v7184 = vpack.c.b16 %v6884, %v6879
    %v7185 = vpack.c.b16 %v6885, %v6880
    %v7186 = vpack.c.b16 %v6886, %v6881
    %v7187 = vpack.c.b16 %v6892, %v6887
    %v7188 = vpack.c.b16 %v6893, %v6888
    %v7189 = vpack.c.b16 %v6894, %v6889
    %v7190 = vpack.c.b16 %v6895, %v6890
    %v7191 = vpack.c.b16 %v6896, %v6891
    %v7192 = vpack.c.b16 %v6902, %v6897
    %v7193 = vpack.c.b16 %v6903, %v6898
    %v7194 = vpack.c.b16 %v6904, %v6899
    %v7195 = vpack.c.b16 %v6905, %v6900
    %v7196 = vpack.c.b16 %v6906, %v6901
    %v7197 = vpack.c.b16 %v6912, %v6907
    %v7198 = vpack.c.b16 %v6913, %v6908
    %v7199 = vpack.c.b16 %v6914, %v6909
    %v7200 = vpack.c.b16 %v6915, %v6910
    %v7201 = vpack.c.b16 %v6916, %v6911
    %v7202 = vpack.c.b16 %v6922, %v6917
    %v7203 = vpack.c.b16 %v6923, %v6918
    %v7204 = vpack.c.b16 %v6924, %v6919
    %v7205 = vpack.c.b16 %v6925, %v6920
    %v7206 = vpack.c.b16 %v6926, %v6921
    %v7207 = vpack.c.b16 %v6932, %v6927
    %v7208 = vpack.c.b16 %v6933, %v6928
    %v7209 = vpack.c.b16 %v6934, %v6929
    %v7210 = vpack.c.b16 %v6935, %v6930
    %v7211 = vpack.c.b16 %v6936, %v6931
    %v7212 = vpack.c.b16 %v6942, %v6937
    %v7213 = vpack.c.b16 %v6943, %v6938
    %v7214 = vpack.c.b16 %v6944, %v6939
    %v7215 = vpack.c.b16 %v6945, %v6940
    %v7216 = vpack.c.b16 %v6946, %v6941
    %v7217 = vpack.c.b16 %v6952, %v6947
    %v7218 = vpack.c.b16 %v6953, %v6948
    %v7219 = vpack.c.b16 %v6954, %v6949
    %v7220 = vpack.c.b16 %v6955, %v6950
    %v7221 = vpack.c.b16 %v6956, %v6951
    %v7222 = vpack.c.b16 %v6962, %v6957
    %v7223 = vpack.c.b16 %v6963, %v6958
    %v7224 = vpack.c.b16 %v6964, %v6959
    %v7225 = vpack.c.b16 %v6965, %v6960
    %v7226 = vpack.c.b16 %v6966, %v6961
    %v7227 = vpack.c.b16 %v6972, %v6967
    %v7228 = vpack.c.b16 %v6973, %v6968
    %v7229 = vpack.c.b16 %v6974, %v6969
    %v7230 = vpack.c.b16 %v6975, %v6970
    %v7231 = vpack.c.b16 %v6976, %v6971
    %v7232 = vpack.c.b16 %v6982, %v6977
    %v7233 = vpack.c.b16 %v6983, %v6978
    %v7234 = vpack.c.b16 %v6984, %v6979
    %v7235 = vpack.c.b16 %v6985, %v6980
    %v7236 = vpack.c.b16 %v6986, %v6981
    %v7237 = vpack.c.b16 %v6992, %v6987
    %v7238 = vpack.c.b16 %v6993, %v6988
    %v7239 = vpack.c.b16 %v6994, %v6989
    %v7240 = vpack.c.b16 %v6995, %v6990
    %v7241 = vpack.c.b16 %v6996, %v6991
    %v7242 = vpack.c.b16 %v7002, %v6997
    %v7243 = vpack.c.b16 %v7003, %v6998
    %v7244 = vpack.c.b16 %v7004, %v6999
    %v7245 = vpack.c.b16 %v7005, %v7000
    %v7246 = vpack.c.b16 %v7006, %v7001
    %v7247 = vpack.c.b16 %v7012, %v7007
    %v7248 = vpack.c.b16 %v7013, %v7008
    %v7249 = vpack.c.b16 %v7014, %v7009
    %v7250 = vpack.c.b16 %v7015, %v7010
    %v7251 = vpack.c.b16 %v7016, %v7011
    %v7252 = vpack.c.b16 %v7022, %v7017
    %v7253 = vpack.c.b16 %v7023, %v7018
    %v7254 = vpack.c.b16 %v7024, %v7019
    %v7255 = vpack.c.b16 %v7025, %v7020
    %v7256 = vpack.c.b16 %v7026, %v7021
    %v7257 = vpack.c.b16 %v7032, %v7027
    %v7258 = vpack.c.b16 %v7033, %v7028
    %v7259 = vpack.c.b16 %v7034, %v7029
    %v7260 = vpack.c.b16 %v7035, %v7030
    %v7261 = vpack.c.b16 %v7036, %v7031
    %v7262 = vpack.c.b16 %v7042, %v7037
    %v7263 = vpack.c.b16 %v7043, %v7038
    %v7264 = vpack.c.b16 %v7044, %v7039
    %v7265 = vpack.c.b16 %v7045, %v7040
    %v7266 = vpack.c.b16 %v7046, %v7041
    %v7267 = vpack.c.b16 %v7052, %v7047
    %v7268 = vpack.c.b16 %v7053, %v7048
    %v7269 = vpack.c.b16 %v7054, %v7049
    %v7270 = vpack.c.b16 %v7055, %v7050
    %v7271 = vpack.c.b16 %v7056, %v7051
    %v7272 = vpack.c.b16 %v7062, %v7057
    %v7273 = vpack.c.b16 %v7063, %v7058
    %v7274 = vpack.c.b16 %v7064, %v7059
    %v7275 = vpack.c.b16 %v7065, %v7060
    %v7276 = vpack.c.b16 %v7066, %v7061
    %v7277 = vpack.c.b16 %v7072, %v7067
    %v7278 = vpack.c.b16 %v7073, %v7068
    %v7279 = vpack.c.b16 %v7074, %v7069
    %v7280 = vpack.c.b16 %v7075, %v7070
    %v7281 = vpack.c.b16 %v7076, %v7071
    %v7282 = vpack.c.b16 %v7082, %v7077
    %v7283 = vpack.c.b16 %v7083, %v7078
    %v7284 = vpack.c.b16 %v7084, %v7079
    %v7285 = vpack.c.b16 %v7085, %v7080
    %v7286 = vpack.c.b16 %v7086, %v7081
    %7487 = vmatprep.subr.bf16.mxu0 %v7088
    %7488 = vmatpush1.bf16.msra.mxu0 %v7087
    %7489 = vmatprep.subr.bf16.mxu0 %v7093
    %7490 = vmatpush1.bf16.msra.mxu0 %v7092
    %7491 = vmatprep.subr.bf16.mxu0 %v7098
    %7492 = vmatpush1.bf16.msra.mxu0 %v7097
    %7493 = vmatprep.subr.bf16.mxu0 %v7103
    %7494 = vmatpush1.bf16.msra.mxu0 %v7102
    %7495 = vmatprep.subr.bf16.mxu0 %v7108
    %7496 = vmatpush1.bf16.msra.mxu0 %v7107
    %7497 = vmatprep.subr.bf16.mxu0 %v7113
    %7498 = vmatpush1.bf16.msra.mxu0 %v7112
    %7499 = vmatprep.subr.bf16.mxu0 %v7118
    %7500 = vmatpush1.bf16.msra.mxu0 %v7117
    %7501 = vmatprep.subr.bf16.mxu0 %v7123
    %7502 = vmatpush1.bf16.msra.mxu0 %v7122
    %7503 = vmatprep.subr.bf16.mxu0 %v7128
    %7504 = vmatpush1.bf16.msra.mxu0 %v7127
    %7505 = vmatprep.subr.bf16.mxu0 %v7133
    %7506 = vmatpush1.bf16.msra.mxu0 %v7132
    %7507 = vmatprep.subr.bf16.mxu0 %v7138
    %7508 = vmatpush1.bf16.msra.mxu0 %v7137
    %7509 = vmatprep.subr.bf16.mxu0 %v7143
    %7510 = vmatpush1.bf16.msra.mxu0 %v7142
    %7511 = vmatprep.subr.bf16.mxu0 %v7148
    %7512 = vmatpush1.bf16.msra.mxu0 %v7147
    %7513 = vmatprep.subr.bf16.mxu0 %v7153
    %7514 = vmatpush1.bf16.msra.mxu0 %v7152
    %7515 = vmatprep.subr.bf16.mxu0 %v7158
    %7516 = vmatpush1.bf16.msra.mxu0 %v7157
    %7517 = vmatprep.subr.bf16.mxu0 %v7163
    %7518 = vmatpush1.bf16.msra.mxu0 %v7162
    %7519 = vmatprep.mubr.bf16.mxu0 %v6176
    %7520 = vmatmul.mubr.bf16.gmra.mrb[0].mxu0 %v6175
    %v7521 = vpop.f32.mrb[0].mxu0
    %v7522 = vadd.f32 %v6425, %v7521
    %v7523 = vpop.f32.mrb[0].mxu0
    %v7524 = vadd.f32 %v6429, %v7523
    %v7525 = vpop.f32.mrb[0].mxu0
    %v7526 = vadd.f32 %v6425, %v7525
    %v7527 = vpop.f32.mrb[0].mxu0
    %v7528 = vadd.f32 %v6429, %v7527
    %7529 = vdwg.mxu0
    %7530 = vmatprep.subr.bf16.mxu0 %v7168
    %7531 = vmatpush1.bf16.msra.mxu0 %v7167
    %7532 = vmatprep.subr.bf16.mxu0 %v7173
    %7533 = vmatpush1.bf16.msra.mxu0 %v7172
    %7534 = vmatprep.subr.bf16.mxu0 %v7178
    %7535 = vmatpush1.bf16.msra.mxu0 %v7177
    %7536 = vmatprep.subr.bf16.mxu0 %v7183
    %7537 = vmatpush1.bf16.msra.mxu0 %v7182
    %7538 = vmatprep.subr.bf16.mxu0 %v7188
    %7539 = vmatpush1.bf16.msra.mxu0 %v7187
    %7540 = vmatprep.subr.bf16.mxu0 %v7193
    %7541 = vmatpush1.bf16.msra.mxu0 %v7192
    %7542 = vmatprep.subr.bf16.mxu0 %v7198
    %7543 = vmatpush1.bf16.msra.mxu0 %v7197
    %7544 = vmatprep.subr.bf16.mxu0 %v7203
    %7545 = vmatpush1.bf16.msra.mxu0 %v7202
    %7546 = vmatprep.subr.bf16.mxu0 %v7208
    %7547 = vmatpush1.bf16.msra.mxu0 %v7207
    %7548 = vmatprep.subr.bf16.mxu0 %v7213
    %7549 = vmatpush1.bf16.msra.mxu0 %v7212
    %7550 = vmatprep.subr.bf16.mxu0 %v7218
    %7551 = vmatpush1.bf16.msra.mxu0 %v7217
    %7552 = vmatprep.subr.bf16.mxu0 %v7223
    %7553 = vmatpush1.bf16.msra.mxu0 %v7222
    %7554 = vmatprep.subr.bf16.mxu0 %v7228
    %7555 = vmatpush1.bf16.msra.mxu0 %v7227
    %7556 = vmatprep.subr.bf16.mxu0 %v7233
    %7557 = vmatpush1.bf16.msra.mxu0 %v7232
    %7558 = vmatprep.subr.bf16.mxu0 %v7238
    %7559 = vmatpush1.bf16.msra.mxu0 %v7237
    %7560 = vmatprep.subr.bf16.mxu0 %v7243
    %7561 = vmatpush1.bf16.msra.mxu0 %v7242
    %7562 = vmatprep.mubr.bf16.mxu0 %v6178
    %7563 = vmatmul.mubr.bf16.gmra.mrb[0].mxu0 %v6177
    %v7564 = vpop.f32.mrb[0].mxu0
    %v7565 = vadd.f32 %v7522, %v7564
    %v7566 = vpop.f32.mrb[0].mxu0
    %v7567 = vadd.f32 %v7524, %v7566
    %v7568 = vpop.f32.mrb[0].mxu0
    %v7569 = vadd.f32 %v7526, %v7568
    %v7570 = vpop.f32.mrb[0].mxu0
    %v7571 = vadd.f32 %v7528, %v7570
    %7572 = vdwg.mxu0
    %7573 = vmatprep.subr.bf16.mxu0 %v7248
    %7574 = vmatpush1.bf16.msra.mxu0 %v7247
    %7575 = vmatprep.subr.bf16.mxu0 %v7253
    %7576 = vmatpush1.bf16.msra.mxu0 %v7252
    %7577 = vmatprep.subr.bf16.mxu0 %v7258
    %7578 = vmatpush1.bf16.msra.mxu0 %v7257
    %7579 = vmatprep.subr.bf16.mxu0 %v7263
    %7580 = vmatpush1.bf16.msra.mxu0 %v7262
    %7581 = vmatprep.subr.bf16.mxu0 %v7268
    %7582 = vmatpush1.bf16.msra.mxu0 %v7267
    %7583 = vmatprep.subr.bf16.mxu0 %v7273
    %7584 = vmatpush1.bf16.msra.mxu0 %v7272
    %7585 = vmatprep.subr.bf16.mxu0 %v7278
    %7586 = vmatpush1.bf16.msra.mxu0 %v7277
    %7587 = vmatprep.subr.bf16.mxu0 %v7283
    %7588 = vmatpush1.bf16.msra.mxu0 %v7282
    %7589 = vmatprep.subr.bf16.mxu0 0
    %7590 = vmatpush1.bf16.msra.mxu0 0
    %7591 = vmatprep.subr.bf16.mxu0 0
    %7592 = vmatpush1.bf16.msra.mxu0 0
    %7593 = vmatprep.subr.bf16.mxu0 0
    %7594 = vmatpush1.bf16.msra.mxu0 0
    %7595 = vmatprep.subr.bf16.mxu0 0
    %7596 = vmatpush1.bf16.msra.mxu0 0
    %7597 = vmatprep.subr.bf16.mxu0 0
    %7598 = vmatpush1.bf16.msra.mxu0 0
    %7599 = vmatprep.subr.bf16.mxu0 0
    %7600 = vmatpush1.bf16.msra.mxu0 0
    %7601 = vmatprep.subr.bf16.mxu0 0
    %7602 = vmatpush1.bf16.msra.mxu0 0
    %7603 = vmatprep.subr.bf16.mxu0 0
    %7604 = vmatpush1.bf16.msra.mxu0 0
    %7605 = vmatprep.mubr.bf16.mxu0 0
    %7606 = vmatmul.mubr.bf16.gmra.mrb[0].mxu0 %v6179
    %v7607 = vpop.f32.mrb[0].mxu0
    %v7608 = vadd.f32 %v7565, %v7607
    %v7609 = vpop.f32.mrb[0].mxu0
    %v7610 = vadd.f32 %v7567, %v7609
    %v7611 = vpop.f32.mrb[0].mxu0
    %v7612 = vadd.f32 %v7569, %v7611
    %v7613 = vpop.f32.mrb[0].mxu0
    %v7614 = vadd.f32 %v7571, %v7613
    %7615 = vdwg.mxu0
    %7616 = vmatprep.subr.bf16.mxu0 %v7090
    %7617 = vmatpush1.bf16.msra.mxu0 %v7089
    %7618 = vmatprep.subr.bf16.mxu0 %v7095
    %7619 = vmatpush1.bf16.msra.mxu0 %v7094
    %7620 = vmatprep.subr.bf16.mxu0 %v7100
    %7621 = vmatpush1.bf16.msra.mxu0 %v7099
    %7622 = vmatprep.subr.bf16.mxu0 %v7105
    %7623 = vmatpush1.bf16.msra.mxu0 %v7104
    %7624 = vmatprep.subr.bf16.mxu0 %v7110
    %7625 = vmatpush1.bf16.msra.mxu0 %v7109
    %7626 = vmatprep.subr.bf16.mxu0 %v7115
    %7627 = vmatpush1.bf16.msra.mxu0 %v7114
    %7628 = vmatprep.subr.bf16.mxu0 %v7120
    %7629 = vmatpush1.bf16.msra.mxu0 %v7119
    %7630 = vmatprep.subr.bf16.mxu0 %v7125
    %7631 = vmatpush1.bf16.msra.mxu0 %v7124
    %7632 = vmatprep.subr.bf16.mxu0 %v7130
    %7633 = vmatpush1.bf16.msra.mxu0 %v7129
    %7634 = vmatprep.subr.bf16.mxu0 %v7135
    %7635 = vmatpush1.bf16.msra.mxu0 %v7134
    %7636 = vmatprep.subr.bf16.mxu0 %v7140
    %7637 = vmatpush1.bf16.msra.mxu0 %v7139
    %7638 = vmatprep.subr.bf16.mxu0 %v7145
    %7639 = vmatpush1.bf16.msra.mxu0 %v7144
    %7640 = vmatprep.subr.bf16.mxu0 %v7150
    %7641 = vmatpush1.bf16.msra.mxu0 %v7149
    %7642 = vmatprep.subr.bf16.mxu0 %v7155
    %7643 = vmatpush1.bf16.msra.mxu0 %v7154
    %7644 = vmatprep.subr.bf16.mxu0 %v7160
    %7645 = vmatpush1.bf16.msra.mxu0 %v7159
    %7646 = vmatprep.subr.bf16.mxu0 %v7165
    %7647 = vmatpush1.bf16.msra.mxu0 %v7164
    %7648 = vmatprep.mubr.bf16.mxu0 %v6176
    %7649 = vmatmul.mubr.bf16.gmra.mrb[0].mxu0 %v6175
    %v7650 = vpop.f32.mrb[0].mxu0
    %v7651 = vadd.f32 %v6433, %v7650
    %v7652 = vpop.f32.mrb[0].mxu0
    %v7653 = vadd.f32 %v6437, %v7652
    %v7654 = vpop.f32.mrb[0].mxu0
    %v7655 = vadd.f32 %v6433, %v7654
    %v7656 = vpop.f32.mrb[0].mxu0
    %v7657 = vadd.f32 %v6437, %v7656
    %7658 = vdwg.mxu0
    %7659 = vmatprep.subr.bf16.mxu0 %v7170
    %7660 = vmatpush1.bf16.msra.mxu0 %v7169
    %7661 = vmatprep.subr.bf16.mxu0 %v7175
    %7662 = vmatpush1.bf16.msra.mxu0 %v7174
    %7663 = vmatprep.subr.bf16.mxu0 %v7180
    %7664 = vmatpush1.bf16.msra.mxu0 %v7179
    %7665 = vmatprep.subr.bf16.mxu0 %v7185
    %7666 = vmatpush1.bf16.msra.mxu0 %v7184
    %7667 = vmatprep.subr.bf16.mxu0 %v7190
    %7668 = vmatpush1.bf16.msra.mxu0 %v7189
    %7669 = vmatprep.subr.bf16.mxu0 %v7195
    %7670 = vmatpush1.bf16.msra.mxu0 %v7194
    %7671 = vmatprep.subr.bf16.mxu0 %v7200
    %7672 = vmatpush1.bf16.msra.mxu0 %v7199
    %7673 = vmatprep.subr.bf16.mxu0 %v7205
    %7674 = vmatpush1.bf16.msra.mxu0 %v7204
    %7675 = vmatprep.subr.bf16.mxu0 %v7210
    %7676 = vmatpush1.bf16.msra.mxu0 %v7209
    %7677 = vmatprep.subr.bf16.mxu0 %v7215
    %7678 = vmatpush1.bf16.msra.mxu0 %v7214
    %7679 = vmatprep.subr.bf16.mxu0 %v7220
    %7680 = vmatpush1.bf16.msra.mxu0 %v7219
    %7681 = vmatprep.subr.bf16.mxu0 %v7225
    %7682 = vmatpush1.bf16.msra.mxu0 %v7224
    %7683 = vmatprep.subr.bf16.mxu0 %v7230
    %7684 = vmatpush1.bf16.msra.mxu0 %v7229
    %7685 = vmatprep.subr.bf16.mxu0 %v7235
    %7686 = vmatpush1.bf16.msra.mxu0 %v7234
    %7687 = vmatprep.subr.bf16.mxu0 %v7240
    %7688 = vmatpush1.bf16.msra.mxu0 %v7239
    %7689 = vmatprep.subr.bf16.mxu0 %v7245
    %7690 = vmatpush1.bf16.msra.mxu0 %v7244
    %7691 = vmatprep.mubr.bf16.mxu0 %v6178
    %7692 = vmatmul.mubr.bf16.gmra.mrb[0].mxu0 %v6177
    %v7693 = vpop.f32.mrb[0].mxu0
    %v7694 = vadd.f32 %v7651, %v7693
    %v7695 = vpop.f32.mrb[0].mxu0
    %v7696 = vadd.f32 %v7653, %v7695
    %v7697 = vpop.f32.mrb[0].mxu0
    %v7698 = vadd.f32 %v7655, %v7697
    %v7699 = vpop.f32.mrb[0].mxu0
    %v7700 = vadd.f32 %v7657, %v7699
    %7701 = vdwg.mxu0
    %7702 = vmatprep.subr.bf16.mxu0 %v7250
    %7703 = vmatpush1.bf16.msra.mxu0 %v7249
    %7704 = vmatprep.subr.bf16.mxu0 %v7255
    %7705 = vmatpush1.bf16.msra.mxu0 %v7254
    %7706 = vmatprep.subr.bf16.mxu0 %v7260
    %7707 = vmatpush1.bf16.msra.mxu0 %v7259
    %7708 = vmatprep.subr.bf16.mxu0 %v7265
    %7709 = vmatpush1.bf16.msra.mxu0 %v7264
    %7710 = vmatprep.subr.bf16.mxu0 %v7270
    %7711 = vmatpush1.bf16.msra.mxu0 %v7269
    %7712 = vmatprep.subr.bf16.mxu0 %v7275
    %7713 = vmatpush1.bf16.msra.mxu0 %v7274
    %7714 = vmatprep.subr.bf16.mxu0 %v7280
    %7715 = vmatpush1.bf16.msra.mxu0 %v7279
    %7716 = vmatprep.subr.bf16.mxu0 %v7285
    %7717 = vmatpush1.bf16.msra.mxu0 %v7284
    %7718 = vmatprep.subr.bf16.mxu0 0
    %7719 = vmatpush1.bf16.msra.mxu0 0
    %7720 = vmatprep.subr.bf16.mxu0 0
    %7721 = vmatpush1.bf16.msra.mxu0 0
    %7722 = vmatprep.subr.bf16.mxu0 0
    %7723 = vmatpush1.bf16.msra.mxu0 0
    %7724 = vmatprep.subr.bf16.mxu0 0
    %7725 = vmatpush1.bf16.msra.mxu0 0
    %7726 = vmatprep.subr.bf16.mxu0 0
    %7727 = vmatpush1.bf16.msra.mxu0 0
    %7728 = vmatprep.subr.bf16.mxu0 0
    %7729 = vmatpush1.bf16.msra.mxu0 0
    %7730 = vmatprep.subr.bf16.mxu0 0
    %7731 = vmatpush1.bf16.msra.mxu0 0
    %7732 = vmatprep.subr.bf16.mxu0 0
    %7733 = vmatpush1.bf16.msra.mxu0 0
    %7734 = vmatprep.mubr.bf16.mxu0 0
    %7735 = vmatmul.mubr.bf16.gmra.mrb[0].mxu0 %v6179
    %v7736 = vpop.f32.mrb[0].mxu0
    %v7737 = vadd.f32 %v7694, %v7736
    %v7738 = vpop.f32.mrb[0].mxu0
    %v7739 = vadd.f32 %v7696, %v7738
    %v7740 = vpop.f32.mrb[0].mxu0
    %v7741 = vadd.f32 %v7698, %v7740
    %v7742 = vpop.f32.mrb[0].mxu0
    %v7743 = vadd.f32 %v7700, %v7742
    %7744 = vdwg.mxu0
    %7745 = vmatprep.subr.bf16.mxu0 0
    %7746 = vmatpush1.bf16.msra.mxu0 %v7091
    %7747 = vmatprep.subr.bf16.mxu0 0
    %7748 = vmatpush1.bf16.msra.mxu0 %v7096
    %7749 = vmatprep.subr.bf16.mxu0 0
    %7750 = vmatpush1.bf16.msra.mxu0 %v7101
    %7751 = vmatprep.subr.bf16.mxu0 0
    %7752 = vmatpush1.bf16.msra.mxu0 %v7106
    %7753 = vmatprep.subr.bf16.mxu0 0
    %7754 = vmatpush1.bf16.msra.mxu0 %v7111
    %7755 = vmatprep.subr.bf16.mxu0 0
    %7756 = vmatpush1.bf16.msra.mxu0 %v7116
    %7757 = vmatprep.subr.bf16.mxu0 0
    %7758 = vmatpush1.bf16.msra.mxu0 %v7121
    %7759 = vmatprep.subr.bf16.mxu0 0
    %7760 = vmatpush1.bf16.msra.mxu0 %v7126
    %7761 = vmatprep.subr.bf16.mxu0 0
    %7762 = vmatpush1.bf16.msra.mxu0 %v7131
    %7763 = vmatprep.subr.bf16.mxu0 0
    %7764 = vmatpush1.bf16.msra.mxu0 %v7136
    %7765 = vmatprep.subr.bf16.mxu0 0
    %7766 = vmatpush1.bf16.msra.mxu0 %v7141
    %7767 = vmatprep.subr.bf16.mxu0 0
    %7768 = vmatpush1.bf16.msra.mxu0 %v7146
    %7769 = vmatprep.subr.bf16.mxu0 0
    %7770 = vmatpush1.bf16.msra.mxu0 %v7151
    %7771 = vmatprep.subr.bf16.mxu0 0
    %7772 = vmatpush1.bf16.msra.mxu0 %v7156
    %7773 = vmatprep.subr.bf16.mxu0 0
    %7774 = vmatpush1.bf16.msra.mxu0 %v7161
    %7775 = vmatprep.subr.bf16.mxu0 0
    %7776 = vmatpush1.bf16.msra.mxu0 %v7166
    %7777 = vmatprep.mubr.bf16.mxu0 %v6176
    %7778 = vmatmul.mubr.bf16.gmra.mrb[0].mxu0 %v6175
    %v7779 = vpop.f32.mrb[0].mxu0
    %v7780 = vadd.f32 %v6441, %v7779
    %v7781 = vpop.f32.mrb[0].mxu0
    %v7782 = vpop.f32.mrb[0].mxu0
    %v7783 = vadd.f32 %v6441, %v7782
    %v7784 = vpop.f32.mrb[0].mxu0
    %7785 = vdwg.mxu0
    %7786 = vmatprep.subr.bf16.mxu0 0
    %7787 = vmatpush1.bf16.msra.mxu0 %v7171
    %7788 = vmatprep.subr.bf16.mxu0 0
    %7789 = vmatpush1.bf16.msra.mxu0 %v7176
    %7790 = vmatprep.subr.bf16.mxu0 0
    %7791 = vmatpush1.bf16.msra.mxu0 %v7181
    %7792 = vmatprep.subr.bf16.mxu0 0
    %7793 = vmatpush1.bf16.msra.mxu0 %v7186
    %7794 = vmatprep.subr.bf16.mxu0 0
    %7795 = vmatpush1.bf16.msra.mxu0 %v7191
    %7796 = vmatprep.subr.bf16.mxu0 0
    %7797 = vmatpush1.bf16.msra.mxu0 %v7196
    %7798 = vmatprep.subr.bf16.mxu0 0
    %7799 = vmatpush1.bf16.msra.mxu0 %v7201
    %7800 = vmatprep.subr.bf16.mxu0 0
    %7801 = vmatpush1.bf16.msra.mxu0 %v7206
    %7802 = vmatprep.subr.bf16.mxu0 0
    %7803 = vmatpush1.bf16.msra.mxu0 %v7211
    %7804 = vmatprep.subr.bf16.mxu0 0
    %7805 = vmatpush1.bf16.msra.mxu0 %v7216
    %7806 = vmatprep.subr.bf16.mxu0 0
    %7807 = vmatpush1.bf16.msra.mxu0 %v7221
    %7808 = vmatprep.subr.bf16.mxu0 0
    %7809 = vmatpush1.bf16.msra.mxu0 %v7226
    %7810 = vmatprep.subr.bf16.mxu0 0
    %7811 = vmatpush1.bf16.msra.mxu0 %v7231
    %7812 = vmatprep.subr.bf16.mxu0 0
    %7813 = vmatpush1.bf16.msra.mxu0 %v7236
    %7814 = vmatprep.subr.bf16.mxu0 0
    %7815 = vmatpush1.bf16.msra.mxu0 %v7241
    %7816 = vmatprep.subr.bf16.mxu0 0
    %7817 = vmatpush1.bf16.msra.mxu0 %v7246
    %7818 = vmatprep.mubr.bf16.mxu0 %v6178
    %7819 = vmatmul.mubr.bf16.gmra.mrb[0].mxu0 %v6177
    %v7820 = vpop.f32.mrb[0].mxu0
    %v7821 = vadd.f32 %v7780, %v7820
    %v7822 = vpop.f32.mrb[0].mxu0
    %v7823 = vpop.f32.mrb[0].mxu0
    %v7824 = vadd.f32 %v7783, %v7823
    %v7825 = vpop.f32.mrb[0].mxu0
    %7826 = vdwg.mxu0
    %7827 = vmatprep.subr.bf16.mxu0 0
    %7828 = vmatpush1.bf16.msra.mxu0 %v7251
    %7829 = vmatprep.subr.bf16.mxu0 0
    %7830 = vmatpush1.bf16.msra.mxu0 %v7256
    %7831 = vmatprep.subr.bf16.mxu0 0
    %7832 = vmatpush1.bf16.msra.mxu0 %v7261
    %7833 = vmatprep.subr.bf16.mxu0 0
    %7834 = vmatpush1.bf16.msra.mxu0 %v7266
    %7835 = vmatprep.subr.bf16.mxu0 0
    %7836 = vmatpush1.bf16.msra.mxu0 %v7271
    %7837 = vmatprep.subr.bf16.mxu0 0
    %7838 = vmatpush1.bf16.msra.mxu0 %v7276
    %7839 = vmatprep.subr.bf16.mxu0 0
    %7840 = vmatpush1.bf16.msra.mxu0 %v7281
    %7841 = vmatprep.subr.bf16.mxu0 0
    %7842 = vmatpush1.bf16.msra.mxu0 %v7286
    %7843 = vmatprep.subr.bf16.mxu0 0
    %7844 = vmatpush1.bf16.msra.mxu0 0
    %7845 = vmatprep.subr.bf16.mxu0 0
    %7846 = vmatpush1.bf16.msra.mxu0 0
    %7847 = vmatprep.subr.bf16.mxu0 0
    %7848 = vmatpush1.bf16.msra.mxu0 0
    %7849 = vmatprep.subr.bf16.mxu0 0
    %7850 = vmatpush1.bf16.msra.mxu0 0
    %7851 = vmatprep.subr.bf16.mxu0 0
    %7852 = vmatpush1.bf16.msra.mxu0 0
    %7853 = vmatprep.subr.bf16.mxu0 0
    %7854 = vmatpush1.bf16.msra.mxu0 0
    %7855 = vmatprep.subr.bf16.mxu0 0
    %7856 = vmatpush1.bf16.msra.mxu0 0
    %7857 = vmatprep.subr.bf16.mxu0 0
    %7858 = vmatpush1.bf16.msra.mxu0 0
    %7859 = vmatprep.mubr.bf16.mxu0 0
    %7860 = vmatmul.mubr.bf16.gmra.mrb[0].mxu0 %v6179
    %v7861 = vpop.f32.mrb[0].mxu0
    %v7862 = vadd.f32 %v7821, %v7861
    %v7863 = vpop.f32.mrb[0].mxu0
    %v7864 = vpop.f32.mrb[0].mxu0
    %v7865 = vadd.f32 %v7824, %v7864
    %v7866 = vpop.f32.mrb[0].mxu0
    %7867 = vdwg.mxu0
    %v7868 = vmax.f32 %v7608, 0.0
    %v7869 = vmax.f32 %v7610, 0.0
    %v7870 = vmax.f32 %v7737, 0.0
    %v7871 = vmax.f32 %v7739, 0.0
    %v7872 = vmax.f32 %v7862, 0.0
    %v7873 = vmax.f32 %v7612, 0.0
    %v7874 = vmax.f32 %v7614, 0.0
    %v7875 = vmax.f32 %v7741, 0.0
    %v7876 = vmax.f32 %v7743, 0.0
    %v7877 = vmax.f32 %v7865, 0.0
    %v7878 = vpack.c.bf16 %v7873, %v7868
    %v7879 = vpack.c.bf16 %v7874, %v7869
    %v7880 = vpack.c.bf16 %v7875, %v7870
    %v7881 = vpack.c.bf16 %v7876, %v7871
    %v7882 = vpack.c.bf16 %v7877, %v7872
    %v7883 = vld [vmem:[#allocation9] sm:$0xf]
    %v7884 = vld [vmem:[#allocation9 + $0x4] sm:$0xf]
    %v7885 = vld [vmem:[#allocation9 + $0x8] sm:$0xf]
    %v7886 = vld [vmem:[#allocation9 + $0xc] sm:$0xf]
    %v7887 = vld [vmem:[#allocation9 + $0x10] sm:$0xf]
    %v7888 = vld [vmem:[#allocation9 + $0x14] sm:$0xf]
    %v7889 = vld [vmem:[#allocation9 + $0x18] sm:$0xf]
    %v7890 = vld [vmem:[#allocation9 + $0x1c] sm:$0xf]
    %v7891 = vld [vmem:[#allocation9 + $0x20] sm:$0xf]
    %v7892 = vld [vmem:[#allocation9 + $0x24] sm:$0xf]
    %v7893 = vld [vmem:[#allocation9 + $0x28] sm:$0xf]
    %v7894 = vld [vmem:[#allocation9 + $0x2c] sm:$0xf]
    %v7895 = vld [vmem:[#allocation9 + $0x30] sm:$0xf]
    %v7896 = vld [vmem:[#allocation9 + $0x34] sm:$0xf]
    %v7897 = vld [vmem:[#allocation9 + $0x38] sm:$0xf]
    %v7898 = vld [vmem:[#allocation9 + $0x3c] sm:$0xf]
    %v7899 = vld [vmem:[#allocation9 + $0x40] sm:$0xf]
    %v7900 = vld [vmem:[#allocation9 + $0x44] sm:$0xf]
    %v7901 = vld [vmem:[#allocation9 + $0x48] sm:$0xf]
    %v7902 = vld [vmem:[#allocation9 + $0x4c] sm:$0xf]
    %v7903 = vld [vmem:[#allocation9 + $0x50] sm:$0xf]
    %v7904 = vld [vmem:[#allocation9 + $0x54] sm:$0xf]
    %v7905 = vld [vmem:[#allocation9 + $0x58] sm:$0xf]
    %v7906 = vld [vmem:[#allocation9 + $0x5c] sm:$0xf]
    %v7907 = vld [vmem:[#allocation9 + $0x60] sm:$0xf]
    %v7908 = vld [vmem:[#allocation9 + $0x64] sm:$0xf]
    %v7909 = vld [vmem:[#allocation9 + $0x68] sm:$0xf]
    %v7910 = vld [vmem:[#allocation9 + $0x6c] sm:$0xf]
    %v7911 = vld [vmem:[#allocation9 + $0x70] sm:$0xf]
    %v7912 = vld [vmem:[#allocation9 + $0x74] sm:$0xf]
    %v7913 = vld [vmem:[#allocation9 + $0x78] sm:$0xf]
    %v7914 = vld [vmem:[#allocation9 + $0x7c] sm:$0xf]
    %v7915 = vld [vmem:[#allocation9 + $0x80] sm:$0xf]
    %v7916 = vld [vmem:[#allocation9 + $0x84] sm:$0xf]
    %v7917 = vld [vmem:[#allocation9 + $0x88] sm:$0xf]
    %v7918 = vld [vmem:[#allocation9 + $0x8c] sm:$0xf]
    %v7919 = vld [vmem:[#allocation9 + $0x90] sm:$0xf]
    %v7920 = vld [vmem:[#allocation9 + $0x94] sm:$0xf]
    %v7921 = vld [vmem:[#allocation9 + $0x98] sm:$0xf]
    %v7922 = vld [vmem:[#allocation9 + $0x9c] sm:$0xf]
    %v7923 = vld [vmem:[#allocation9 + $0xa0] sm:$0xf]
    %v7924 = vld [vmem:[#allocation9 + $0xa4] sm:$0xf]
    %v7925 = vld [vmem:[#allocation9 + $0xa8] sm:$0xf]
    %v7926 = vld [vmem:[#allocation9 + $0xac] sm:$0xf]
    %v7927 = vld [vmem:[#allocation9 + $0xb0] sm:$0xf]
    %v7928 = vld [vmem:[#allocation9 + $0xb4] sm:$0xf]
    %v7929 = vld [vmem:[#allocation9 + $0xb8] sm:$0xf]
    %v7930 = vld [vmem:[#allocation9 + $0xbc] sm:$0xf]
    %v7931 = vld [vmem:[#allocation9 + $0xc0] sm:$0xf]
    %v7932 = vld [vmem:[#allocation9 + $0xc4] sm:$0xf]
    %v7933 = vld [vmem:[#allocation9 + $0xc8] sm:$0xf]
    %v7934 = vld [vmem:[#allocation9 + $0xcc] sm:$0xf]
    %v7935 = vld [vmem:[#allocation9 + $0xd0] sm:$0xf]
    %v7936 = vld [vmem:[#allocation9 + $0xd4] sm:$0xf]
    %v7937 = vld [vmem:[#allocation9 + $0xd8] sm:$0xf]
    %v7938 = vld [vmem:[#allocation9 + $0xdc] sm:$0xf]
    %v7939 = vld [vmem:[#allocation9 + $0xe0] sm:$0xf]
    %v7940 = vld [vmem:[#allocation9 + $0xe4] sm:$0xf]
    %v7941 = vld [vmem:[#allocation9 + $0xe8] sm:$0xf]
    %v7942 = vld [vmem:[#allocation9 + $0xec] sm:$0xf]
    %v7943 = vld [vmem:[#allocation9 + $0xf0] sm:$0xf]
    %v7944 = vld [vmem:[#allocation9 + $0xf4] sm:$0xf]
    %v7945 = vld [vmem:[#allocation9 + $0xf8] sm:$0xf]
    %v7946 = vld [vmem:[#allocation9 + $0xfc] sm:$0xf]
    %v7947 = vld [vmem:[#allocation9 + $0x100] sm:$0xf]
    %v7948 = vld [vmem:[#allocation9 + $0x104] sm:$0xf]
    %v7949 = vld [vmem:[#allocation9 + $0x108] sm:$0xf]
    %v7950 = vld [vmem:[#allocation9 + $0x10c] sm:$0xf]
    %v7951 = vld [vmem:[#allocation9 + $0x110] sm:$0xf]
    %v7952 = vld [vmem:[#allocation9 + $0x114] sm:$0xf]
    %v7953 = vld [vmem:[#allocation9 + $0x118] sm:$0xf]
    %v7954 = vld [vmem:[#allocation9 + $0x11c] sm:$0xf]
    %v7955 = vld [vmem:[#allocation9 + $0x120] sm:$0xf]
    %v7956 = vld [vmem:[#allocation9 + $0x124] sm:$0xf]
    %v7957 = vld [vmem:[#allocation9 + $0x128] sm:$0xf]
    %v7958 = vld [vmem:[#allocation9 + $0x12c] sm:$0xf]
    %v7959 = vld [vmem:[#allocation9 + $0x130] sm:$0xf]
    %v7960 = vld [vmem:[#allocation9 + $0x134] sm:$0xf]
    %v7961 = vld [vmem:[#allocation9 + $0x138] sm:$0xf]
    %v7962 = vld [vmem:[#allocation9 + $0x13c] sm:$0xf]
    %v7963 = vld [vmem:[#allocation10] sm:$0x1]
    %v7965 = vlaneseq
    %v7966 = vshrl.u32 %v7965, 7
    %v7967 = vsub.s32 0, %v7966
    %v7968 = vrot.slane %v7963, %v7967
    %v8050 = vunpack.c.l.b16 %v7883
    %v8051 = vunpack.c.l.b16 %v7884
    %v8052 = vunpack.c.l.b16 %v7885
    %v8053 = vunpack.c.l.b16 %v7886
    %v8054 = vunpack.c.l.b16 %v7887
    %v8055 = vunpack.c.l.b16 %v7888
    %v8056 = vunpack.c.l.b16 %v7889
    %v8057 = vunpack.c.l.b16 %v7890
    %v8058 = vunpack.c.l.b16 %v7891
    %v8059 = vunpack.c.l.b16 %v7892
    %v8060 = vunpack.c.l.b16 %v7893
    %v8061 = vunpack.c.l.b16 %v7894
    %v8062 = vunpack.c.l.b16 %v7895
    %v8063 = vunpack.c.l.b16 %v7896
    %v8064 = vunpack.c.l.b16 %v7897
    %v8065 = vunpack.c.l.b16 %v7898
    %v8066 = vunpack.c.l.b16 %v7899
    %v8067 = vunpack.c.l.b16 %v7900
    %v8068 = vunpack.c.l.b16 %v7901
    %v8069 = vunpack.c.l.b16 %v7902
    %v8070 = vunpack.c.l.b16 %v7903
    %v8071 = vunpack.c.l.b16 %v7904
    %v8072 = vunpack.c.l.b16 %v7905
    %v8073 = vunpack.c.l.b16 %v7906
    %v8074 = vunpack.c.l.b16 %v7907
    %v8075 = vunpack.c.l.b16 %v7908
    %v8076 = vunpack.c.l.b16 %v7909
    %v8077 = vunpack.c.l.b16 %v7910
    %v8078 = vunpack.c.l.b16 %v7911
    %v8079 = vunpack.c.l.b16 %v7912
    %v8080 = vunpack.c.l.b16 %v7913
    %v8081 = vunpack.c.l.b16 %v7914
    %v8082 = vunpack.c.l.b16 %v7915
    %v8083 = vunpack.c.l.b16 %v7916
    %v8084 = vunpack.c.l.b16 %v7917
    %v8085 = vunpack.c.l.b16 %v7918
    %v8086 = vunpack.c.l.b16 %v7919
    %v8087 = vunpack.c.l.b16 %v7920
    %v8088 = vunpack.c.l.b16 %v7921
    %v8089 = vunpack.c.l.b16 %v7922
    %v8090 = vunpack.c.l.b16 %v7923
    %v8091 = vunpack.c.l.b16 %v7924
    %v8092 = vunpack.c.l.b16 %v7925
    %v8093 = vunpack.c.l.b16 %v7926
    %v8094 = vunpack.c.l.b16 %v7927
    %v8095 = vunpack.c.l.b16 %v7928
    %v8096 = vunpack.c.l.b16 %v7929
    %v8097 = vunpack.c.l.b16 %v7930
    %v8098 = vunpack.c.l.b16 %v7931
    %v8099 = vunpack.c.l.b16 %v7932
    %v8100 = vunpack.c.l.b16 %v7933
    %v8101 = vunpack.c.l.b16 %v7934
    %v8102 = vunpack.c.l.b16 %v7935
    %v8103 = vunpack.c.l.b16 %v7936
    %v8104 = vunpack.c.l.b16 %v7937
    %v8105 = vunpack.c.l.b16 %v7938
    %v8106 = vunpack.c.l.b16 %v7939
    %v8107 = vunpack.c.l.b16 %v7940
    %v8108 = vunpack.c.l.b16 %v7941
    %v8109 = vunpack.c.l.b16 %v7942
    %v8110 = vunpack.c.l.b16 %v7943
    %v8111 = vunpack.c.l.b16 %v7944
    %v8112 = vunpack.c.l.b16 %v7945
    %v8113 = vunpack.c.l.b16 %v7946
    %v8114 = vunpack.c.l.b16 %v7947
    %v8115 = vunpack.c.l.b16 %v7948
    %v8116 = vunpack.c.l.b16 %v7949
    %v8117 = vunpack.c.l.b16 %v7950
    %v8118 = vunpack.c.l.b16 %v7951
    %v8119 = vunpack.c.l.b16 %v7952
    %v8120 = vunpack.c.l.b16 %v7953
    %v8121 = vunpack.c.l.b16 %v7954
    %v8122 = vunpack.c.l.b16 %v7955
    %v8123 = vunpack.c.l.b16 %v7956
    %v8124 = vunpack.c.l.b16 %v7957
    %v8125 = vunpack.c.l.b16 %v7958
    %v8126 = vunpack.c.l.b16 %v7959
    %v8127 = vunpack.c.l.b16 %v7960
    %v8128 = vunpack.c.l.b16 %v7961
    %v8129 = vunpack.c.l.b16 %v7962
    %v8130 = vpack.c.b16 %v8051, %v8050
    %v8131 = vpack.c.b16 %v8053, %v8052
    %v8132 = vpack.c.b16 %v8055, %v8054
    %v8133 = vpack.c.b16 %v8057, %v8056
    %v8134 = vpack.c.b16 %v8059, %v8058
    %v8135 = vpack.c.b16 %v8061, %v8060
    %v8136 = vpack.c.b16 %v8063, %v8062
    %v8137 = vpack.c.b16 %v8065, %v8064
    %v8138 = vpack.c.b16 %v8067, %v8066
    %v8139 = vpack.c.b16 %v8069, %v8068
    %v8140 = vpack.c.b16 %v8071, %v8070
    %v8141 = vpack.c.b16 %v8073, %v8072
    %v8142 = vpack.c.b16 %v8075, %v8074
    %v8143 = vpack.c.b16 %v8077, %v8076
    %v8144 = vpack.c.b16 %v8079, %v8078
    %v8145 = vpack.c.b16 %v8081, %v8080
    %v8146 = vpack.c.b16 %v8083, %v8082
    %v8147 = vpack.c.b16 %v8085, %v8084
    %v8148 = vpack.c.b16 %v8087, %v8086
    %v8149 = vpack.c.b16 %v8089, %v8088
    %v8150 = vpack.c.b16 %v8091, %v8090
    %v8151 = vpack.c.b16 %v8093, %v8092
    %v8152 = vpack.c.b16 %v8095, %v8094
    %v8153 = vpack.c.b16 %v8097, %v8096
    %v8154 = vpack.c.b16 %v8099, %v8098
    %v8155 = vpack.c.b16 %v8101, %v8100
    %v8156 = vpack.c.b16 %v8103, %v8102
    %v8157 = vpack.c.b16 %v8105, %v8104
    %v8158 = vpack.c.b16 %v8107, %v8106
    %v8159 = vpack.c.b16 %v8109, %v8108
    %v8160 = vpack.c.b16 %v8111, %v8110
    %v8161 = vpack.c.b16 %v8113, %v8112
    %v8162 = vpack.c.b16 %v8115, %v8114
    %v8163 = vpack.c.b16 %v8117, %v8116
    %v8164 = vpack.c.b16 %v8119, %v8118
    %v8165 = vpack.c.b16 %v8121, %v8120
    %v8166 = vpack.c.b16 %v8123, %v8122
    %v8167 = vpack.c.b16 %v8125, %v8124
    %v8168 = vpack.c.b16 %v8127, %v8126
    %v8169 = vpack.c.b16 %v8129, %v8128
    %8210 = vmatprep.subr.bf16.mxu0 0
    %8211 = vmatpush1.bf16.msra.mxu0 %v8130
    %8212 = vmatprep.subr.bf16.mxu0 0
    %8213 = vmatpush1.bf16.msra.mxu0 %v8131
    %8214 = vmatprep.subr.bf16.mxu0 0
    %8215 = vmatpush1.bf16.msra.mxu0 %v8132
    %8216 = vmatprep.subr.bf16.mxu0 0
    %8217 = vmatpush1.bf16.msra.mxu0 %v8133
    %8218 = vmatprep.subr.bf16.mxu0 0
    %8219 = vmatpush1.bf16.msra.mxu0 %v8134
    %8220 = vmatprep.subr.bf16.mxu0 0
    %8221 = vmatpush1.bf16.msra.mxu0 %v8135
    %8222 = vmatprep.subr.bf16.mxu0 0
    %8223 = vmatpush1.bf16.msra.mxu0 %v8136
    %8224 = vmatprep.subr.bf16.mxu0 0
    %8225 = vmatpush1.bf16.msra.mxu0 %v8137
    %8226 = vmatprep.subr.bf16.mxu0 0
    %8227 = vmatpush1.bf16.msra.mxu0 %v8138
    %8228 = vmatprep.subr.bf16.mxu0 0
    %8229 = vmatpush1.bf16.msra.mxu0 %v8139
    %8230 = vmatprep.subr.bf16.mxu0 0
    %8231 = vmatpush1.bf16.msra.mxu0 %v8140
    %8232 = vmatprep.subr.bf16.mxu0 0
    %8233 = vmatpush1.bf16.msra.mxu0 %v8141
    %8234 = vmatprep.subr.bf16.mxu0 0
    %8235 = vmatpush1.bf16.msra.mxu0 %v8142
    %8236 = vmatprep.subr.bf16.mxu0 0
    %8237 = vmatpush1.bf16.msra.mxu0 %v8143
    %8238 = vmatprep.subr.bf16.mxu0 0
    %8239 = vmatpush1.bf16.msra.mxu0 %v8144
    %8240 = vmatprep.subr.bf16.mxu0 0
    %8241 = vmatpush1.bf16.msra.mxu0 %v8145
    %8242 = vmatprep.mubr.bf16.mxu0 %v7879
    %8243 = vmatmul.mubr.bf16.gmra.mrb[0].mxu0 %v7878
    %v8244 = vpop.f32.mrb[0].mxu0
    %v8245 = vadd.f32 %v7968, %v8244
    %v8246 = vpop.f32.mrb[0].mxu0
    %v8247 = vpop.f32.mrb[0].mxu0
    %v8248 = vadd.f32 %v7968, %v8247
    %v8249 = vpop.f32.mrb[0].mxu0
    %8250 = vdwg.mxu0
    %8251 = vmatprep.subr.bf16.mxu0 0
    %8252 = vmatpush1.bf16.msra.mxu0 %v8146
    %8253 = vmatprep.subr.bf16.mxu0 0
    %8254 = vmatpush1.bf16.msra.mxu0 %v8147
    %8255 = vmatprep.subr.bf16.mxu0 0
    %8256 = vmatpush1.bf16.msra.mxu0 %v8148
    %8257 = vmatprep.subr.bf16.mxu0 0
    %8258 = vmatpush1.bf16.msra.mxu0 %v8149
    %8259 = vmatprep.subr.bf16.mxu0 0
    %8260 = vmatpush1.bf16.msra.mxu0 %v8150
    %8261 = vmatprep.subr.bf16.mxu0 0
    %8262 = vmatpush1.bf16.msra.mxu0 %v8151
    %8263 = vmatprep.subr.bf16.mxu0 0
    %8264 = vmatpush1.bf16.msra.mxu0 %v8152
    %8265 = vmatprep.subr.bf16.mxu0 0
    %8266 = vmatpush1.bf16.msra.mxu0 %v8153
    %8267 = vmatprep.subr.bf16.mxu0 0
    %8268 = vmatpush1.bf16.msra.mxu0 %v8154
    %8269 = vmatprep.subr.bf16.mxu0 0
    %8270 = vmatpush1.bf16.msra.mxu0 %v8155
    %8271 = vmatprep.subr.bf16.mxu0 0
    %8272 = vmatpush1.bf16.msra.mxu0 %v8156
    %8273 = vmatprep.subr.bf16.mxu0 0
    %8274 = vmatpush1.bf16.msra.mxu0 %v8157
    %8275 = vmatprep.subr.bf16.mxu0 0
    %8276 = vmatpush1.bf16.msra.mxu0 %v8158
    %8277 = vmatprep.subr.bf16.mxu0 0
    %8278 = vmatpush1.bf16.msra.mxu0 %v8159
    %8279 = vmatprep.subr.bf16.mxu0 0
    %8280 = vmatpush1.bf16.msra.mxu0 %v8160
    %8281 = vmatprep.subr.bf16.mxu0 0
    %8282 = vmatpush1.bf16.msra.mxu0 %v8161
    %8283 = vmatprep.mubr.bf16.mxu0 %v7881
    %8284 = vmatmul.mubr.bf16.gmra.mrb[0].mxu0 %v7880
    %v8285 = vpop.f32.mrb[0].mxu0
    %v8286 = vadd.f32 %v8245, %v8285
    %v8287 = vpop.f32.mrb[0].mxu0
    %v8288 = vpop.f32.mrb[0].mxu0
    %v8289 = vadd.f32 %v8248, %v8288
    %v8290 = vpop.f32.mrb[0].mxu0
    %8291 = vdwg.mxu0
    %8292 = vmatprep.subr.bf16.mxu0 0
    %8293 = vmatpush1.bf16.msra.mxu0 %v8162
    %8294 = vmatprep.subr.bf16.mxu0 0
    %8295 = vmatpush1.bf16.msra.mxu0 %v8163
    %8296 = vmatprep.subr.bf16.mxu0 0
    %8297 = vmatpush1.bf16.msra.mxu0 %v8164
    %8298 = vmatprep.subr.bf16.mxu0 0
    %8299 = vmatpush1.bf16.msra.mxu0 %v8165
    %8300 = vmatprep.subr.bf16.mxu0 0
    %8301 = vmatpush1.bf16.msra.mxu0 %v8166
    %8302 = vmatprep.subr.bf16.mxu0 0
    %8303 = vmatpush1.bf16.msra.mxu0 %v8167
    %8304 = vmatprep.subr.bf16.mxu0 0
    %8305 = vmatpush1.bf16.msra.mxu0 %v8168
    %8306 = vmatprep.subr.bf16.mxu0 0
    %8307 = vmatpush1.bf16.msra.mxu0 %v8169
    %8308 = vmatprep.subr.bf16.mxu0 0
    %8309 = vmatpush1.bf16.msra.mxu0 0
    %8310 = vmatprep.subr.bf16.mxu0 0
    %8311 = vmatpush1.bf16.msra.mxu0 0
    %8312 = vmatprep.subr.bf16.mxu0 0
    %8313 = vmatpush1.bf16.msra.mxu0 0
    %8314 = vmatprep.subr.bf16.mxu0 0
    %8315 = vmatpush1.bf16.msra.mxu0 0
    %8316 = vmatprep.subr.bf16.mxu0 0
    %8317 = vmatpush1.bf16.msra.mxu0 0
    %8318 = vmatprep.subr.bf16.mxu0 0
    %8319 = vmatpush1.bf16.msra.mxu0 0
    %8320 = vmatprep.subr.bf16.mxu0 0
    %8321 = vmatpush1.bf16.msra.mxu0 0
    %8322 = vmatprep.subr.bf16.mxu0 0
    %8323 = vmatpush1.bf16.msra.mxu0 0
    %8324 = vmatprep.mubr.bf16.mxu0 0
    %8325 = vmatmul.mubr.bf16.gmra.mrb[0].mxu0 %v7882
    %v8326 = vpop.f32.mrb[0].mxu0
    %v8327 = vadd.f32 %v8286, %v8326
    %v8328 = vpop.f32.mrb[0].mxu0
    %v8329 = vpop.f32.mrb[0].mxu0
    %v8330 = vadd.f32 %v8289, %v8329
    %v8331 = vpop.f32.mrb[0].mxu0
    %8332 = vdwg.mxu0
    %v8333 = vmax.f32 %v8327, 0.0
    %v8334 = vmax.f32 %v8330, 0.0
    %8335 = vst [vmem:[%s7] sm:$0xff] %v8333
    %8336 = vst [vmem:[%s7 + $0x8] sm:$0xff] %v8334
    // Predicated region
    $region54: #{mlp_forward.1} parent=1 // pred_check
      _
    $region55: #{mlp_forward.1} parent=1 // pred_check_branch
      %8338 = sbr.rel (0) target = $region57
    $region56: #{mlp_forward.1} parent=1 // pred_region
      _
    $region57: #{mlp_forward.1} parent=1 // pred_fallthru
      _
    // Predicated region
    $region58: #{mlp_forward.1} parent=1 // pred_check
      _
    $region59: #{mlp_forward.1} parent=1 // pred_check_branch
      %8340 = sbr.rel (0) target = $region61
    $region60: #{mlp_forward.1} parent=1 // pred_region
      _
    $region61: #{mlp_forward.1} parent=1 // pred_fallthru
      _
    %8341 = vsyncpa [#allocation3], 1
    %8342 = vsyncpa [#allocation5], 1
    %8343 = vsyncpa [#allocation8], 1
    %8344 = vsyncpa [#allocation11], 1

</llo_original>
